<compile_context>
chip_gen: v7x
topology: tpu7x:2x2x1
jax: 0.10.0
libtpu: 0.0.40
codegen_flags: <defaults>
</compile_context>

<pallas_src>
import jax
import jax.numpy as jnp
from jax import lax
from jax.experimental import pallas as pl
from jax.experimental.pallas import tpu as pltpu

EPS = 1e-5
_FALLBACK_VMEM_LIMIT = 32 * 1024 * 1024


def _vmem_limit():
    # Generation-aware scoped-VMEM budget: v7x has only 64 MiB physical VMEM,
    # v5e/v6e have 128 MiB.  Cap at 3/4 of physical, never above 64 MiB;
    # conservative fallback if the query is unavailable.
    try:
        cap = int(pltpu.get_tpu_info().vmem_capacity_bytes)
        if cap > 0:
            return min(64 * 1024 * 1024, (cap * 3) // 4)
    except Exception:
        pass
    return _FALLBACK_VMEM_LIMIT


def _pick_depth_tile(n, d, min_steps=8):
    # Largest depth tile that still gives the grid >= min_steps steps so each
    # TensorCore (v7x has two) gets a few iterations of pipeline steady state.
    for t in (4, 2, 1):
        if d % t == 0 and n * (d // t) >= min_steps:
            return t
    for t in (4, 2, 1):
        if d % t == 0:
            return t
    return 1


# ---------------------------------------------------------------------------
# Pallas kernels
# ---------------------------------------------------------------------------
def _make_conv_stats_kernel(td, h, w, c):
    """Implicit 3x3x3 conv (pad=1, stride=1) with kw folded into K.

    Inputs are kw-packed planes (h+2, w, 3c): channel segment kw holds the
    activation shifted by kw along W, so every (kd, kh) tap is ONE dense dot
    with K = 3c, and the tap window is a leading-dim slice (no shifted-window
    copy).  Also emits per-tile BatchNorm partials (channel sum / sum-sq)."""
    hw = h * w
    c3 = 3 * c

    def kernel(*refs):
        x_refs = refs[:td + 2]            # td+2 packed depth planes, bf16
        w_ref = refs[td + 2]              # (9, 3c, c) bf16, VMEM-resident
        y_ref, s_ref, q_ref = refs[td + 3:]

        s = jnp.zeros((1, c), jnp.float32)
        q = jnp.zeros((1, c), jnp.float32)
        # Static plane loop; the f32 accumulator lives in vregs only for one
        # plane and is stored to the bf16 output block immediately.
        for p in range(td):
            acc = jnp.zeros((hw, c), jnp.float32)
            for kd in range(3):
                xr = x_refs[p + kd]
                for kh in range(3):
                    # Leading-dim slice: the (w, 3c) minor tiling is unchanged,
                    # so the reshape to (h*w, 3c) is a free re-view.
                    win = xr[pl.ds(kh, h), :, :].reshape(hw, c3)
                    acc = acc + jnp.dot(win, w_ref[kd * 3 + kh],
                                        preferred_element_type=jnp.float32)
            y_ref[p] = acc.reshape(h, w, c).astype(y_ref.dtype)
            s = s + jnp.sum(acc, axis=0, keepdims=True)
            q = q + jnp.sum(acc * acc, axis=0, keepdims=True)
        s_ref[...] = s
        q_ref[...] = q

    return kernel


def _bn_add_relu_kernel(y_ref, sc_ref, sh_ref, r_ref, o_ref):
    # normalize+affine folded to y*scale + shift (f32), + residual, ReLU
    y = y_ref[...].astype(jnp.float32)
    r = r_ref[...].astype(jnp.float32)
    out = y * sc_ref[...] + sh_ref[...] + r
    o_ref[...] = jnp.maximum(out, 0.0).astype(o_ref.dtype)


# ---------------------------------------------------------------------------
# pallas_call wrappers
# ---------------------------------------------------------------------------
def _conv3x3x3_bn_stats(xpk, w9, td):
    """xpk: kw-packed, zero-padded input (n, d+2, h+2, w, 3c) bf16.
    Returns raw conv output (n, d, h, w, c) bf16 and per-grid-tile channel
    sum / sum-of-squares partials (f32)."""
    n, dpad, hpp, w, c3 = xpk.shape
    d, h, c = dpad - 2, hpp - 2, c3 // 3

    def plane_spec(k):
        def imap(i, j):
            # squeezed depth dim => block index == element index
            return (i, j * td + k, 0, 0, 0)
        return pl.BlockSpec((None, None, hpp, w, c3), imap)

    in_specs = [plane_spec(k) for k in range(td + 2)]
    # weights: constant index_map -> DMA'd once, VMEM-resident across the grid
    in_specs.append(pl.BlockSpec((9, c3, c), lambda i, j: (0, 0, 0)))

    out_specs = [
        pl.BlockSpec((None, td, h, w, c), lambda i, j: (i, j, 0, 0, 0)),
        pl.BlockSpec((None, None, 1, c), lambda i, j: (i, j, 0, 0)),
        pl.BlockSpec((None, None, 1, c), lambda i, j: (i, j, 0, 0)),
    ]
    out_shape = (
        jax.ShapeDtypeStruct((n, d, h, w, c), jnp.bfloat16),   # bf16 writeback
        jax.ShapeDtypeStruct((n, d // td, 1, c), jnp.float32),
        jax.ShapeDtypeStruct((n, d // td, 1, c), jnp.float32),
    )
    return pl.pallas_call(
        _make_conv_stats_kernel(td, h, w, c),
        grid=(n, d // td),
        in_specs=in_specs,
        out_specs=out_specs,
        out_shape=out_shape,
        compiler_params=pltpu.CompilerParams(
            dimension_semantics=("parallel", "parallel"),
            vmem_limit_bytes=_vmem_limit()),
    )(*([xpk] * (td + 2) + [w9]))


def _bn_add_relu(y, scale, shift, resid, td):
    """bn2 + identity residual + ReLU, tiled over (N, D/TD)."""
    n, d, h, w, c = y.shape
    blk = pl.BlockSpec((None, td, h, w, c), lambda i, j: (i, j, 0, 0, 0))
    vec = pl.BlockSpec((1, c), lambda i, j: (0, 0))
    return pl.pallas_call(
        _bn_add_relu_kernel,
        grid=(n, d // td),
        in_specs=[blk, vec, vec, blk],
        out_specs=blk,
        out_shape=jax.ShapeDtypeStruct((n, d, h, w, c), jnp.float32),
        compiler_params=pltpu.CompilerParams(
            dimension_semantics=("parallel", "parallel"),
            vmem_limit_bytes=_vmem_limit()),
    )(y, scale, shift, resid)


# ---------------------------------------------------------------------------
# host-side layout / BN plumbing
# ---------------------------------------------------------------------------
def _pack_kw(a):
    """(n, d, h, w, c) -> zero-padded, kw-packed (n, d+2, h+2, w, 3c).
    Channel segment kw holds the input shifted by kw along W, making the kw
    tap part of the matmul K dim (dense K, aligned tap windows).  Costs ~3x
    activation HBM footprint; the conv is MXU-bound at C>=64 so trading HBM
    bandwidth for MXU cycles is the right side of the roofline."""
    w = a.shape[3]
    ap = jnp.pad(a, ((0, 0), (1, 1), (1, 1), (1, 1), (0, 0)))
    return jnp.concatenate([ap[:, :, :, kw:kw + w, :] for kw in range(3)],
                           axis=-1)


def _prep_weight(w5):
    # (kd, kh, kw, cin, cout) -> (9, 3*cin, cout) bf16 with tap index
    # kd*3 + kh and K index kw*cin + ci (matches _pack_kw's channel layout).
    kd, kh, kw, cin, cout = w5.shape
    return w5.reshape(kd * kh, kw * cin, cout).astype(jnp.bfloat16)


def _bn_scale_shift(sums, ssqs, gamma, beta, m_total):
    """Cross-tile reduction of partial stats + folding train-mode BatchNorm
    into y*scale + shift."""
    s = jnp.sum(sums, axis=(0, 1, 2))
    q = jnp.sum(ssqs, axis=(0, 1, 2))
    mean = s / m_total
    # TODO(synk): E[x^2]-E[x]^2 in f32 is cancellation-prone for large-mean
    # activations; use a shifted/Welford reduction if that regime matters.
    var = jnp.maximum(q / m_total - mean * mean, 0.0)
    inv = lax.rsqrt(var + EPS)
    scale = gamma.astype(jnp.float32) * inv
    shift = beta.astype(jnp.float32) - mean * scale
    c = scale.shape[0]
    return scale.reshape(1, c), shift.reshape(1, c)


# ---------------------------------------------------------------------------
# BasicBlock forward (stride=1, downsample=None, use_cbam=False)
# ---------------------------------------------------------------------------
def basic_block_forward(x_ncdhw, params):
    w1, g1, b1, w2, g2, b2 = params
    n, cin, d, h, w = x_ncdhw.shape
    planes = w1.shape[-1]
    if cin != planes:
        raise ValueError("identity shortcut requires inplanes == planes "
                         "(reference default: stride=1, downsample=None)")
    td = _pick_depth_tile(n, d)
    m_total = float(n * d * h * w)

    # NCDHW -> NDHWC (channels last = lane dim).  No channel zero-padding:
    # K-density comes from folding kw into K instead.
    x_bf = jnp.transpose(x_ncdhw, (0, 2, 3, 4, 1)).astype(jnp.bfloat16)

    w1p = _prep_weight(w1)
    w2p = _prep_weight(w2)

    # conv1 (+ BN partial stats)
    y1, s1, q1 = _conv3x3x3_bn_stats(_pack_kw(x_bf), w1p, td)
    sc1, sh1 = _bn_scale_shift(s1, q1, g1, b1, m_total)

    # bn1 + ReLU folded into conv2's input-packing expression (XLA fuses them
    # into the pack => no standalone normalize pass / extra HBM round trip);
    # the conv zero-padding stays exact because padding happens after ReLU.
    a1 = jnp.maximum(y1.astype(jnp.float32) * sc1 + sh1, 0.0).astype(jnp.bfloat16)

    # conv2 (+ BN partial stats)
    y2, s2, q2 = _conv3x3x3_bn_stats(_pack_kw(a1), w2p, td)
    sc2, sh2 = _bn_scale_shift(s2, q2, g2, b2, m_total)

    # bn2 + identity residual + ReLU (Pallas pass-2; reads bf16 y2 and the
    # original bf16 activation directly -- no separate padded residual copy).
    out = _bn_add_relu(y2, sc2, sh2, x_bf, td)
    return jnp.transpose(out, (0, 4, 1, 2, 3))          # NDHWC -> NCDHW


def init_params(key, inplanes, planes):
    k1, k2, k3, k4, k5, k6 = jax.random.split(key, 6)
    fan1 = 27 * inplanes
    fan2 = 27 * planes
    # conv weights stored as (kd, kh, kw, cin, cout) matching the tap packing
    w1 = jax.random.normal(k1, (3, 3, 3, inplanes, planes), jnp.float32) * (2.0 / fan1) ** 0.5
    w2 = jax.random.normal(k2, (3, 3, 3, planes, planes), jnp.float32) * (2.0 / fan2) ** 0.5
    g1 = 1.0 + 0.1 * jax.random.normal(k3, (planes,), jnp.float32)
    b1 = 0.1 * jax.random.normal(k4, (planes,), jnp.float32)
    g2 = 1.0 + 0.1 * jax.random.normal(k5, (planes,), jnp.float32)
    b2 = 0.1 * jax.random.normal(k6, (planes,), jnp.float32)
    return (w1, g1, b1, w2, g2, b2)


def _reference_block(x_ncdhw, params):
    """Pure-JAX (XLA) reference with matching precision choices."""
    w1, g1, b1, w2, g2, b2 = params
    x = jnp.transpose(x_ncdhw, (0, 2, 3, 4, 1)).astype(jnp.bfloat16)

    def conv(a, wt):
        return lax.conv_general_dilated(
            a, wt.astype(jnp.bfloat16), (1, 1, 1), "SAME",
            dimension_numbers=("NDHWC", "DHWIO", "NDHWC"),
            preferred_element_type=jnp.float32)

    def bn_apply(y_rounded, y_stats, g, b):
        mean = jnp.mean(y_stats, axis=(0, 1, 2, 3))
        var = jnp.var(y_stats, axis=(0, 1, 2, 3))
        return (y_rounded - mean) * lax.rsqrt(var + EPS) * g + b

    y1 = conv(x, w1)
    y1r = y1.astype(jnp.bfloat16).astype(jnp.float32)    # kernel stores y bf16
    a1 = jnp.maximum(bn_apply(y1r, y1, g1, b1), 0.0).astype(jnp.bfloat16)
    y2 = conv(a1, w2)
    y2r = y2.astype(jnp.bfloat16).astype(jnp.float32)
    out = jnp.maximum(bn_apply(y2r, y2, g2, b2) + x.astype(jnp.float32), 0.0)
    return jnp.transpose(out, (0, 4, 1, 2, 3))


if __name__ == "__main__":
    key = jax.random.PRNGKey(0)
    k_x, k_p = jax.random.split(key)

    # layer1-style BasicBlock: 64 -> 64 channels, batch=2, D=8, H=W=16 (NCDHW)
    inplanes = planes = 64
    x = jax.random.normal(k_x, (2, inplanes, 8, 16, 16), jnp.float32)
    params = init_params(k_p, inplanes, planes)

    fwd = jax.jit(lambda xx: basic_block_forward(xx, params))
    out = fwd(x)
    jax.block_until_ready(out)

    assert out.shape == (2, planes, 8, 16, 16)
    assert bool(jnp.all(jnp.isfinite(out)))

    ref = _reference_block(x, params)
    max_err = float(jnp.max(jnp.abs(out - ref)))
    assert max_err < 1e-1, f"mismatch vs XLA reference: max abs err {max_err}"

    print("KERNEL_OK")
</pallas_src>

<mosaic_0001>
module attributes {stable_mosaic.version = 11 : i64} {
  func.func @kernel(%arg0: i32, %arg1: i32, %arg2: memref<1x1x18x16x192xbf16, #tpu.memory_space<vmem>>, %arg3: memref<1x1x18x16x192xbf16, #tpu.memory_space<vmem>>, %arg4: memref<1x1x18x16x192xbf16, #tpu.memory_space<vmem>>, %arg5: memref<1x1x18x16x192xbf16, #tpu.memory_space<vmem>>, %arg6: memref<9x192x64xbf16, #tpu.memory_space<vmem>>, %arg7: memref<1x2x16x16x64xbf16, #tpu.memory_space<vmem>>, %arg8: memref<1x1x1x64xf32, #tpu.memory_space<vmem>>, %arg9: memref<1x1x1x64xf32, #tpu.memory_space<vmem>>) attributes {dimension_semantics = [#tpu.dimension_semantics<parallel>, #tpu.dimension_semantics<parallel>], iteration_bounds = array<i64: 2, 4>, scalar_prefetch = 0 : i64, scratch_operands = 0 : i64, tpu.core_type = #tpu.core_type<tc>, window_params = [{transform_indices = @transform_0, window_bounds = array<i64: 1, 1, 18, 16, 192>}, {transform_indices = @transform_1, window_bounds = array<i64: 1, 1, 18, 16, 192>}, {transform_indices = @transform_2, window_bounds = array<i64: 1, 1, 18, 16, 192>}, {transform_indices = @transform_3, window_bounds = array<i64: 1, 1, 18, 16, 192>}, {pipeline_mode = #tpu.pipeline_mode<synchronous>, transform_indices = @transform_4, window_bounds = array<i64: 9, 192, 64>}, {transform_indices = @transform_5, window_bounds = array<i64: 1, 2, 16, 16, 64>}, {transform_indices = @transform_6, window_bounds = array<i64: 1, 1, 1, 64>}, {transform_indices = @transform_7, window_bounds = array<i64: 1, 1, 1, 64>}]} {
    %cst = arith.constant 0.000000e+00 : f32
    %0 = vector.broadcast %cst : f32 to vector<1x64xf32>
    %cst_0 = arith.constant 0.000000e+00 : f32
    %1 = vector.broadcast %cst_0 : f32 to vector<1x64xf32>
    %cst_1 = arith.constant 0.000000e+00 : f32
    %2 = vector.broadcast %cst_1 : f32 to vector<256x64xf32>
    %c0 = arith.constant 0 : index
    %c0_2 = arith.constant 0 : index
    %c0_3 = arith.constant 0 : index
    %c0_4 = arith.constant 0 : index
    %c0_5 = arith.constant 0 : index
    %3 = vector.load %arg2[%c0, %c0_2, %c0_3, %c0_4, %c0_5] : memref<1x1x18x16x192xbf16, #tpu.memory_space<vmem>>, vector<1x1x16x16x192xbf16>
    %4 = vector.shape_cast %3 : vector<1x1x16x16x192xbf16> to vector<16x16x192xbf16>
    %5 = vector.shape_cast %4 : vector<16x16x192xbf16> to vector<256x192xbf16>
    %c0_6 = arith.constant 0 : index
    %c0_7 = arith.constant 0 : index
    %c0_8 = arith.constant 0 : index
    %6 = vector.load %arg6[%c0_6, %c0_7, %c0_8] : memref<9x192x64xbf16, #tpu.memory_space<vmem>>, vector<1x192x64xbf16>
    %7 = vector.shape_cast %6 : vector<1x192x64xbf16> to vector<192x64xbf16>
    %cst_9 = arith.constant dense<0.000000e+00> : vector<256x64xf32>
    %8 = tpu.matmul %5, %7, %cst_9 {dimension_numbers = #tpu.dot_dimension_numbers<[1], [0], [0], [1], [0, 0, 1, 1], [], []>} : vector<256x192xbf16>, vector<192x64xbf16>, vector<256x64xf32> -> vector<256x64xf32>
    %9 = arith.addf %2, %8 : vector<256x64xf32>
    %c0_10 = arith.constant 0 : index
    %c0_11 = arith.constant 0 : index
    %c1 = arith.constant 1 : index
    %c0_12 = arith.constant 0 : index
    %c0_13 = arith.constant 0 : index
    %10 = vector.load %arg2[%c0_10, %c0_11, %c1, %c0_12, %c0_13] : memref<1x1x18x16x192xbf16, #tpu.memory_space<vmem>>, vector<1x1x16x16x192xbf16>
    %11 = vector.shape_cast %10 : vector<1x1x16x16x192xbf16> to vector<16x16x192xbf16>
    %12 = vector.shape_cast %11 : vector<16x16x192xbf16> to vector<256x192xbf16>
    %c1_14 = arith.constant 1 : index
    %c0_15 = arith.constant 0 : index
    %c0_16 = arith.constant 0 : index
    %13 = vector.load %arg6[%c1_14, %c0_15, %c0_16] : memref<9x192x64xbf16, #tpu.memory_space<vmem>>, vector<1x192x64xbf16>
    %14 = vector.shape_cast %13 : vector<1x192x64xbf16> to vector<192x64xbf16>
    %cst_17 = arith.constant dense<0.000000e+00> : vector<256x64xf32>
    %15 = tpu.matmul %12, %14, %cst_17 {dimension_numbers = #tpu.dot_dimension_numbers<[1], [0], [0], [1], [0, 0, 1, 1], [], []>} : vector<256x192xbf16>, vector<192x64xbf16>, vector<256x64xf32> -> vector<256x64xf32>
    %16 = arith.addf %9, %15 : vector<256x64xf32>
    %c0_18 = arith.constant 0 : index
    %c0_19 = arith.constant 0 : index
    %c2 = arith.constant 2 : index
    %c0_20 = arith.constant 0 : index
    %c0_21 = arith.constant 0 : index
    %17 = vector.load %arg2[%c0_18, %c0_19, %c2, %c0_20, %c0_21] : memref<1x1x18x16x192xbf16, #tpu.memory_space<vmem>>, vector<1x1x16x16x192xbf16>
    %18 = vector.shape_cast %17 : vector<1x1x16x16x192xbf16> to vector<16x16x192xbf16>
    %19 = vector.shape_cast %18 : vector<16x16x192xbf16> to vector<256x192xbf16>
    %c2_22 = arith.constant 2 : index
    %c0_23 = arith.constant 0 : index
    %c0_24 = arith.constant 0 : index
    %20 = vector.load %arg6[%c2_22, %c0_23, %c0_24] : memref<9x192x64xbf16, #tpu.memory_space<vmem>>, vector<1x192x64xbf16>
    %21 = vector.shape_cast %20 : vector<1x192x64xbf16> to vector<192x64xbf16>
    %cst_25 = arith.constant dense<0.000000e+00> : vector<256x64xf32>
    %22 = tpu.matmul %19, %21, %cst_25 {dimension_numbers = #tpu.dot_dimension_numbers<[1], [0], [0], [1], [0, 0, 1, 1], [], []>} : vector<256x192xbf16>, vector<192x64xbf16>, vector<256x64xf32> -> vector<256x64xf32>
    %23 = arith.addf %16, %22 : vector<256x64xf32>
    %c0_26 = arith.constant 0 : index
    %c0_27 = arith.constant 0 : index
    %c0_28 = arith.constant 0 : index
    %c0_29 = arith.constant 0 : index
    %c0_30 = arith.constant 0 : index
    %24 = vector.load %arg3[%c0_26, %c0_27, %c0_28, %c0_29, %c0_30] : memref<1x1x18x16x192xbf16, #tpu.memory_space<vmem>>, vector<1x1x16x16x192xbf16>
    %25 = vector.shape_cast %24 : vector<1x1x16x16x192xbf16> to vector<16x16x192xbf16>
    %26 = vector.shape_cast %25 : vector<16x16x192xbf16> to vector<256x192xbf16>
    %c3 = arith.constant 3 : index
    %c0_31 = arith.constant 0 : index
    %c0_32 = arith.constant 0 : index
    %27 = vector.load %arg6[%c3, %c0_31, %c0_32] : memref<9x192x64xbf16, #tpu.memory_space<vmem>>, vector<1x192x64xbf16>
    %28 = vector.shape_cast %27 : vector<1x192x64xbf16> to vector<192x64xbf16>
    %cst_33 = arith.constant dense<0.000000e+00> : vector<256x64xf32>
    %29 = tpu.matmul %26, %28, %cst_33 {dimension_numbers = #tpu.dot_dimension_numbers<[1], [0], [0], [1], [0, 0, 1, 1], [], []>} : vector<256x192xbf16>, vector<192x64xbf16>, vector<256x64xf32> -> vector<256x64xf32>
    %30 = arith.addf %23, %29 : vector<256x64xf32>
    %c0_34 = arith.constant 0 : index
    %c0_35 = arith.constant 0 : index
    %c1_36 = arith.constant 1 : index
    %c0_37 = arith.constant 0 : index
    %c0_38 = arith.constant 0 : index
    %31 = vector.load %arg3[%c0_34, %c0_35, %c1_36, %c0_37, %c0_38] : memref<1x1x18x16x192xbf16, #tpu.memory_space<vmem>>, vector<1x1x16x16x192xbf16>
    %32 = vector.shape_cast %31 : vector<1x1x16x16x192xbf16> to vector<16x16x192xbf16>
    %33 = vector.shape_cast %32 : vector<16x16x192xbf16> to vector<256x192xbf16>
    %c4 = arith.constant 4 : index
    %c0_39 = arith.constant 0 : index
    %c0_40 = arith.constant 0 : index
    %34 = vector.load %arg6[%c4, %c0_39, %c0_40] : memref<9x192x64xbf16, #tpu.memory_space<vmem>>, vector<1x192x64xbf16>
    %35 = vector.shape_cast %34 : vector<1x192x64xbf16> to vector<192x64xbf16>
    %cst_41 = arith.constant dense<0.000000e+00> : vector<256x64xf32>
    %36 = tpu.matmul %33, %35, %cst_41 {dimension_numbers = #tpu.dot_dimension_numbers<[1], [0], [0], [1], [0, 0, 1, 1], [], []>} : vector<256x192xbf16>, vector<192x64xbf16>, vector<256x64xf32> -> vector<256x64xf32>
    %37 = arith.addf %30, %36 : vector<256x64xf32>
    %c0_42 = arith.constant 0 : index
    %c0_43 = arith.constant 0 : index
    %c2_44 = arith.constant 2 : index
    %c0_45 = arith.constant 0 : index
    %c0_46 = arith.constant 0 : index
    %38 = vector.load %arg3[%c0_42, %c0_43, %c2_44, %c0_45, %c0_46] : memref<1x1x18x16x192xbf16, #tpu.memory_space<vmem>>, vector<1x1x16x16x192xbf16>
    %39 = vector.shape_cast %38 : vector<1x1x16x16x192xbf16> to vector<16x16x192xbf16>
    %40 = vector.shape_cast %39 : vector<16x16x192xbf16> to vector<256x192xbf16>
    %c5 = arith.constant 5 : index
    %c0_47 = arith.constant 0 : index
    %c0_48 = arith.constant 0 : index
    %41 = vector.load %arg6[%c5, %c0_47, %c0_48] : memref<9x192x64xbf16, #tpu.memory_space<vmem>>, vector<1x192x64xbf16>
    %42 = vector.shape_cast %41 : vector<1x192x64xbf16> to vector<192x64xbf16>
    %cst_49 = arith.constant dense<0.000000e+00> : vector<256x64xf32>
    %43 = tpu.matmul %40, %42, %cst_49 {dimension_numbers = #tpu.dot_dimension_numbers<[1], [0], [0], [1], [0, 0, 1, 1], [], []>} : vector<256x192xbf16>, vector<192x64xbf16>, vector<256x64xf32> -> vector<256x64xf32>
    %44 = arith.addf %37, %43 : vector<256x64xf32>
    %c0_50 = arith.constant 0 : index
    %c0_51 = arith.constant 0 : index
    %c0_52 = arith.constant 0 : index
    %c0_53 = arith.constant 0 : index
    %c0_54 = arith.constant 0 : index
    %45 = vector.load %arg4[%c0_50, %c0_51, %c0_52, %c0_53, %c0_54] : memref<1x1x18x16x192xbf16, #tpu.memory_space<vmem>>, vector<1x1x16x16x192xbf16>
    %46 = vector.shape_cast %45 : vector<1x1x16x16x192xbf16> to vector<16x16x192xbf16>
    %47 = vector.shape_cast %46 : vector<16x16x192xbf16> to vector<256x192xbf16>
    %c6 = arith.constant 6 : index
    %c0_55 = arith.constant 0 : index
    %c0_56 = arith.constant 0 : index
    %48 = vector.load %arg6[%c6, %c0_55, %c0_56] : memref<9x192x64xbf16, #tpu.memory_space<vmem>>, vector<1x192x64xbf16>
    %49 = vector.shape_cast %48 : vector<1x192x64xbf16> to vector<192x64xbf16>
    %cst_57 = arith.constant dense<0.000000e+00> : vector<256x64xf32>
    %50 = tpu.matmul %47, %49, %cst_57 {dimension_numbers = #tpu.dot_dimension_numbers<[1], [0], [0], [1], [0, 0, 1, 1], [], []>} : vector<256x192xbf16>, vector<192x64xbf16>, vector<256x64xf32> -> vector<256x64xf32>
    %51 = arith.addf %44, %50 : vector<256x64xf32>
    %c0_58 = arith.constant 0 : index
    %c0_59 = arith.constant 0 : index
    %c1_60 = arith.constant 1 : index
    %c0_61 = arith.constant 0 : index
    %c0_62 = arith.constant 0 : index
    %52 = vector.load %arg4[%c0_58, %c0_59, %c1_60, %c0_61, %c0_62] : memref<1x1x18x16x192xbf16, #tpu.memory_space<vmem>>, vector<1x1x16x16x192xbf16>
    %53 = vector.shape_cast %52 : vector<1x1x16x16x192xbf16> to vector<16x16x192xbf16>
    %54 = vector.shape_cast %53 : vector<16x16x192xbf16> to vector<256x192xbf16>
    %c7 = arith.constant 7 : index
    %c0_63 = arith.constant 0 : index
    %c0_64 = arith.constant 0 : index
    %55 = vector.load %arg6[%c7, %c0_63, %c0_64] : memref<9x192x64xbf16, #tpu.memory_space<vmem>>, vector<1x192x64xbf16>
    %56 = vector.shape_cast %55 : vector<1x192x64xbf16> to vector<192x64xbf16>
    %cst_65 = arith.constant dense<0.000000e+00> : vector<256x64xf32>
    %57 = tpu.matmul %54, %56, %cst_65 {dimension_numbers = #tpu.dot_dimension_numbers<[1], [0], [0], [1], [0, 0, 1, 1], [], []>} : vector<256x192xbf16>, vector<192x64xbf16>, vector<256x64xf32> -> vector<256x64xf32>
    %58 = arith.addf %51, %57 : vector<256x64xf32>
    %c0_66 = arith.constant 0 : index
    %c0_67 = arith.constant 0 : index
    %c2_68 = arith.constant 2 : index
    %c0_69 = arith.constant 0 : index
    %c0_70 = arith.constant 0 : index
    %59 = vector.load %arg4[%c0_66, %c0_67, %c2_68, %c0_69, %c0_70] : memref<1x1x18x16x192xbf16, #tpu.memory_space<vmem>>, vector<1x1x16x16x192xbf16>
    %60 = vector.shape_cast %59 : vector<1x1x16x16x192xbf16> to vector<16x16x192xbf16>
    %61 = vector.shape_cast %60 : vector<16x16x192xbf16> to vector<256x192xbf16>
    %c8 = arith.constant 8 : index
    %c0_71 = arith.constant 0 : index
    %c0_72 = arith.constant 0 : index
    %62 = vector.load %arg6[%c8, %c0_71, %c0_72] : memref<9x192x64xbf16, #tpu.memory_space<vmem>>, vector<1x192x64xbf16>
    %63 = vector.shape_cast %62 : vector<1x192x64xbf16> to vector<192x64xbf16>
    %cst_73 = arith.constant dense<0.000000e+00> : vector<256x64xf32>
    %64 = tpu.matmul %61, %63, %cst_73 {dimension_numbers = #tpu.dot_dimension_numbers<[1], [0], [0], [1], [0, 0, 1, 1], [], []>} : vector<256x192xbf16>, vector<192x64xbf16>, vector<256x64xf32> -> vector<256x64xf32>
    %65 = arith.addf %58, %64 : vector<256x64xf32>
    %66 = vector.shape_cast %65 : vector<256x64xf32> to vector<16x16x64xf32>
    %67 = arith.truncf %66 : vector<16x16x64xf32> to vector<16x16x64xbf16>
    %c0_74 = arith.constant 0 : index
    %c0_75 = arith.constant 0 : index
    %c0_76 = arith.constant 0 : index
    %c0_77 = arith.constant 0 : index
    %c0_78 = arith.constant 0 : index
    %68 = vector.load %arg7[%c0_74, %c0_75, %c0_76, %c0_77, %c0_78] : memref<1x2x16x16x64xbf16, #tpu.memory_space<vmem>>, vector<1x1x16x16x64xbf16>
    %69 = vector.shape_cast %68 : vector<1x1x16x16x64xbf16> to vector<16x16x64xbf16>
    %70 = vector.shape_cast %67 : vector<16x16x64xbf16> to vector<1x1x16x16x64xbf16>
    tpu.vector_store %arg7[%c0_74, %c0_75, %c0_76, %c0_77, %c0_78], %70 {strides = array<i32>} : memref<1x2x16x16x64xbf16, #tpu.memory_space<vmem>>, vector<1x1x16x16x64xbf16>,
    %cst_79 = arith.constant dense<0.000000e+00> : vector<64xf32>
    %71 = vector.multi_reduction <add>, %65, %cst_79 [0] : vector<256x64xf32> to vector<64xf32>
    %72 = vector.shape_cast %71 : vector<64xf32> to vector<1x64xf32>
    %73 = arith.addf %0, %72 : vector<1x64xf32>
    %74 = arith.mulf %65, %65 : vector<256x64xf32>
    %cst_80 = arith.constant dense<0.000000e+00> : vector<64xf32>
    %75 = vector.multi_reduction <add>, %74, %cst_80 [0] : vector<256x64xf32> to vector<64xf32>
    %76 = vector.shape_cast %75 : vector<64xf32> to vector<1x64xf32>
    %77 = arith.addf %1, %76 : vector<1x64xf32>
    %cst_81 = arith.constant 0.000000e+00 : f32
    %78 = vector.broadcast %cst_81 : f32 to vector<256x64xf32>
    %c0_82 = arith.constant 0 : index
    %c0_83 = arith.constant 0 : index
    %c0_84 = arith.constant 0 : index
    %c0_85 = arith.constant 0 : index
    %c0_86 = arith.constant 0 : index
    %79 = vector.load %arg3[%c0_82, %c0_83, %c0_84, %c0_85, %c0_86] : memref<1x1x18x16x192xbf16, #tpu.memory_space<vmem>>, vector<1x1x16x16x192xbf16>
    %80 = vector.shape_cast %79 : vector<1x1x16x16x192xbf16> to vector<16x16x192xbf16>
    %81 = vector.shape_cast %80 : vector<16x16x192xbf16> to vector<256x192xbf16>
    %c0_87 = arith.constant 0 : index
    %c0_88 = arith.constant 0 : index
    %c0_89 = arith.constant 0 : index
    %82 = vector.load %arg6[%c0_87, %c0_88, %c0_89] : memref<9x192x64xbf16, #tpu.memory_space<vmem>>, vector<1x192x64xbf16>
    %83 = vector.shape_cast %82 : vector<1x192x64xbf16> to vector<192x64xbf16>
    %cst_90 = arith.constant dense<0.000000e+00> : vector<256x64xf32>
    %84 = tpu.matmul %81, %83, %cst_90 {dimension_numbers = #tpu.dot_dimension_numbers<[1], [0], [0], [1], [0, 0, 1, 1], [], []>} : vector<256x192xbf16>, vector<192x64xbf16>, vector<256x64xf32> -> vector<256x64xf32>
    %85 = arith.addf %78, %84 : vector<256x64xf32>
    %c0_91 = arith.constant 0 : index
    %c0_92 = arith.constant 0 : index
    %c1_93 = arith.constant 1 : index
    %c0_94 = arith.constant 0 : index
    %c0_95 = arith.constant 0 : index
    %86 = vector.load %arg3[%c0_91, %c0_92, %c1_93, %c0_94, %c0_95] : memref<1x1x18x16x192xbf16, #tpu.memory_space<vmem>>, vector<1x1x16x16x192xbf16>
    %87 = vector.shape_cast %86 : vector<1x1x16x16x192xbf16> to vector<16x16x192xbf16>
    %88 = vector.shape_cast %87 : vector<16x16x192xbf16> to vector<256x192xbf16>
    %c1_96 = arith.constant 1 : index
    %c0_97 = arith.constant 0 : index
    %c0_98 = arith.constant 0 : index
    %89 = vector.load %arg6[%c1_96, %c0_97, %c0_98] : memref<9x192x64xbf16, #tpu.memory_space<vmem>>, vector<1x192x64xbf16>
    %90 = vector.shape_cast %89 : vector<1x192x64xbf16> to vector<192x64xbf16>
    %cst_99 = arith.constant dense<0.000000e+00> : vector<256x64xf32>
    %91 = tpu.matmul %88, %90, %cst_99 {dimension_numbers = #tpu.dot_dimension_numbers<[1], [0], [0], [1], [0, 0, 1, 1], [], []>} : vector<256x192xbf16>, vector<192x64xbf16>, vector<256x64xf32> -> vector<256x64xf32>
    %92 = arith.addf %85, %91 : vector<256x64xf32>
    %c0_100 = arith.constant 0 : index
    %c0_101 = arith.constant 0 : index
    %c2_102 = arith.constant 2 : index
    %c0_103 = arith.constant 0 : index
    %c0_104 = arith.constant 0 : index
    %93 = vector.load %arg3[%c0_100, %c0_101, %c2_102, %c0_103, %c0_104] : memref<1x1x18x16x192xbf16, #tpu.memory_space<vmem>>, vector<1x1x16x16x192xbf16>
    %94 = vector.shape_cast %93 : vector<1x1x16x16x192xbf16> to vector<16x16x192xbf16>
    %95 = vector.shape_cast %94 : vector<16x16x192xbf16> to vector<256x192xbf16>
    %c2_105 = arith.constant 2 : index
    %c0_106 = arith.constant 0 : index
    %c0_107 = arith.constant 0 : index
    %96 = vector.load %arg6[%c2_105, %c0_106, %c0_107] : memref<9x192x64xbf16, #tpu.memory_space<vmem>>, vector<1x192x64xbf16>
    %97 = vector.shape_cast %96 : vector<1x192x64xbf16> to vector<192x64xbf16>
    %cst_108 = arith.constant dense<0.000000e+00> : vector<256x64xf32>
    %98 = tpu.matmul %95, %97, %cst_108 {dimension_numbers = #tpu.dot_dimension_numbers<[1], [0], [0], [1], [0, 0, 1, 1], [], []>} : vector<256x192xbf16>, vector<192x64xbf16>, vector<256x64xf32> -> vector<256x64xf32>
    %99 = arith.addf %92, %98 : vector<256x64xf32>
    %c0_109 = arith.constant 0 : index
    %c0_110 = arith.constant 0 : index
    %c0_111 = arith.constant 0 : index
    %c0_112 = arith.constant 0 : index
    %c0_113 = arith.constant 0 : index
    %100 = vector.load %arg4[%c0_109, %c0_110, %c0_111, %c0_112, %c0_113] : memref<1x1x18x16x192xbf16, #tpu.memory_space<vmem>>, vector<1x1x16x16x192xbf16>
    %101 = vector.shape_cast %100 : vector<1x1x16x16x192xbf16> to vector<16x16x192xbf16>
    %102 = vector.shape_cast %101 : vector<16x16x192xbf16> to vector<256x192xbf16>
    %c3_114 = arith.constant 3 : index
    %c0_115 = arith.constant 0 : index
    %c0_116 = arith.constant 0 : index
    %103 = vector.load %arg6[%c3_114, %c0_115, %c0_116] : memref<9x192x64xbf16, #tpu.memory_space<vmem>>, vector<1x192x64xbf16>
    %104 = vector.shape_cast %103 : vector<1x192x64xbf16> to vector<192x64xbf16>
    %cst_117 = arith.constant dense<0.000000e+00> : vector<256x64xf32>
    %105 = tpu.matmul %102, %104, %cst_117 {dimension_numbers = #tpu.dot_dimension_numbers<[1], [0], [0], [1], [0, 0, 1, 1], [], []>} : vector<256x192xbf16>, vector<192x64xbf16>, vector<256x64xf32> -> vector<256x64xf32>
    %106 = arith.addf %99, %105 : vector<256x64xf32>
    %c0_118 = arith.constant 0 : index
    %c0_119 = arith.constant 0 : index
    %c1_120 = arith.constant 1 : index
    %c0_121 = arith.constant 0 : index
    %c0_122 = arith.constant 0 : index
    %107 = vector.load %arg4[%c0_118, %c0_119, %c1_120, %c0_121, %c0_122] : memref<1x1x18x16x192xbf16, #tpu.memory_space<vmem>>, vector<1x1x16x16x192xbf16>
    %108 = vector.shape_cast %107 : vector<1x1x16x16x192xbf16> to vector<16x16x192xbf16>
    %109 = vector.shape_cast %108 : vector<16x16x192xbf16> to vector<256x192xbf16>
    %c4_123 = arith.constant 4 : index
    %c0_124 = arith.constant 0 : index
    %c0_125 = arith.constant 0 : index
    %110 = vector.load %arg6[%c4_123, %c0_124, %c0_125] : memref<9x192x64xbf16, #tpu.memory_space<vmem>>, vector<1x192x64xbf16>
    %111 = vector.shape_cast %110 : vector<1x192x64xbf16> to vector<192x64xbf16>
    %cst_126 = arith.constant dense<0.000000e+00> : vector<256x64xf32>
    %112 = tpu.matmul %109, %111, %cst_126 {dimension_numbers = #tpu.dot_dimension_numbers<[1], [0], [0], [1], [0, 0, 1, 1], [], []>} : vector<256x192xbf16>, vector<192x64xbf16>, vector<256x64xf32> -> vector<256x64xf32>
    %113 = arith.addf %106, %112 : vector<256x64xf32>
    %c0_127 = arith.constant 0 : index
    %c0_128 = arith.constant 0 : index
    %c2_129 = arith.constant 2 : index
    %c0_130 = arith.constant 0 : index
    %c0_131 = arith.constant 0 : index
    %114 = vector.load %arg4[%c0_127, %c0_128, %c2_129, %c0_130, %c0_131] : memref<1x1x18x16x192xbf16, #tpu.memory_space<vmem>>, vector<1x1x16x16x192xbf16>
    %115 = vector.shape_cast %114 : vector<1x1x16x16x192xbf16> to vector<16x16x192xbf16>
    %116 = vector.shape_cast %115 : vector<16x16x192xbf16> to vector<256x192xbf16>
    %c5_132 = arith.constant 5 : index
    %c0_133 = arith.constant 0 : index
    %c0_134 = arith.constant 0 : index
    %117 = vector.load %arg6[%c5_132, %c0_133, %c0_134] : memref<9x192x64xbf16, #tpu.memory_space<vmem>>, vector<1x192x64xbf16>
    %118 = vector.shape_cast %117 : vector<1x192x64xbf16> to vector<192x64xbf16>
    %cst_135 = arith.constant dense<0.000000e+00> : vector<256x64xf32>
    %119 = tpu.matmul %116, %118, %cst_135 {dimension_numbers = #tpu.dot_dimension_numbers<[1], [0], [0], [1], [0, 0, 1, 1], [], []>} : vector<256x192xbf16>, vector<192x64xbf16>, vector<256x64xf32> -> vector<256x64xf32>
    %120 = arith.addf %113, %119 : vector<256x64xf32>
    %c0_136 = arith.constant 0 : index
    %c0_137 = arith.constant 0 : index
    %c0_138 = arith.constant 0 : index
    %c0_139 = arith.constant 0 : index
    %c0_140 = arith.constant 0 : index
    %121 = vector.load %arg5[%c0_136, %c0_137, %c0_138, %c0_139, %c0_140] : memref<1x1x18x16x192xbf16, #tpu.memory_space<vmem>>, vector<1x1x16x16x192xbf16>
    %122 = vector.shape_cast %121 : vector<1x1x16x16x192xbf16> to vector<16x16x192xbf16>
    %123 = vector.shape_cast %122 : vector<16x16x192xbf16> to vector<256x192xbf16>
    %c6_141 = arith.constant 6 : index
    %c0_142 = arith.constant 0 : index
    %c0_143 = arith.constant 0 : index
    %124 = vector.load %arg6[%c6_141, %c0_142, %c0_143] : memref<9x192x64xbf16, #tpu.memory_space<vmem>>, vector<1x192x64xbf16>
    %125 = vector.shape_cast %124 : vector<1x192x64xbf16> to vector<192x64xbf16>
    %cst_144 = arith.constant dense<0.000000e+00> : vector<256x64xf32>
    %126 = tpu.matmul %123, %125, %cst_144 {dimension_numbers = #tpu.dot_dimension_numbers<[1], [0], [0], [1], [0, 0, 1, 1], [], []>} : vector<256x192xbf16>, vector<192x64xbf16>, vector<256x64xf32> -> vector<256x64xf32>
    %127 = arith.addf %120, %126 : vector<256x64xf32>
    %c0_145 = arith.constant 0 : index
    %c0_146 = arith.constant 0 : index
    %c1_147 = arith.constant 1 : index
    %c0_148 = arith.constant 0 : index
    %c0_149 = arith.constant 0 : index
    %128 = vector.load %arg5[%c0_145, %c0_146, %c1_147, %c0_148, %c0_149] : memref<1x1x18x16x192xbf16, #tpu.memory_space<vmem>>, vector<1x1x16x16x192xbf16>
    %129 = vector.shape_cast %128 : vector<1x1x16x16x192xbf16> to vector<16x16x192xbf16>
    %130 = vector.shape_cast %129 : vector<16x16x192xbf16> to vector<256x192xbf16>
    %c7_150 = arith.constant 7 : index
    %c0_151 = arith.constant 0 : index
    %c0_152 = arith.constant 0 : index
    %131 = vector.load %arg6[%c7_150, %c0_151, %c0_152] : memref<9x192x64xbf16, #tpu.memory_space<vmem>>, vector<1x192x64xbf16>
    %132 = vector.shape_cast %131 : vector<1x192x64xbf16> to vector<192x64xbf16>
    %cst_153 = arith.constant dense<0.000000e+00> : vector<256x64xf32>
    %133 = tpu.matmul %130, %132, %cst_153 {dimension_numbers = #tpu.dot_dimension_numbers<[1], [0], [0], [1], [0, 0, 1, 1], [], []>} : vector<256x192xbf16>, vector<192x64xbf16>, vector<256x64xf32> -> vector<256x64xf32>
    %134 = arith.addf %127, %133 : vector<256x64xf32>
    %c0_154 = arith.constant 0 : index
    %c0_155 = arith.constant 0 : index
    %c2_156 = arith.constant 2 : index
    %c0_157 = arith.constant 0 : index
    %c0_158 = arith.constant 0 : index
    %135 = vector.load %arg5[%c0_154, %c0_155, %c2_156, %c0_157, %c0_158] : memref<1x1x18x16x192xbf16, #tpu.memory_space<vmem>>, vector<1x1x16x16x192xbf16>
    %136 = vector.shape_cast %135 : vector<1x1x16x16x192xbf16> to vector<16x16x192xbf16>
    %137 = vector.shape_cast %136 : vector<16x16x192xbf16> to vector<256x192xbf16>
    %c8_159 = arith.constant 8 : index
    %c0_160 = arith.constant 0 : index
    %c0_161 = arith.constant 0 : index
    %138 = vector.load %arg6[%c8_159, %c0_160, %c0_161] : memref<9x192x64xbf16, #tpu.memory_space<vmem>>, vector<1x192x64xbf16>
    %139 = vector.shape_cast %138 : vector<1x192x64xbf16> to vector<192x64xbf16>
    %cst_162 = arith.constant dense<0.000000e+00> : vector<256x64xf32>
    %140 = tpu.matmul %137, %139, %cst_162 {dimension_numbers = #tpu.dot_dimension_numbers<[1], [0], [0], [1], [0, 0, 1, 1], [], []>} : vector<256x192xbf16>, vector<192x64xbf16>, vector<256x64xf32> -> vector<256x64xf32>
    %141 = arith.addf %134, %140 : vector<256x64xf32>
    %142 = vector.shape_cast %141 : vector<256x64xf32> to vector<16x16x64xf32>
    %143 = arith.truncf %142 : vector<16x16x64xf32> to vector<16x16x64xbf16>
    %c0_163 = arith.constant 0 : index
    %c1_164 = arith.constant 1 : index
    %c0_165 = arith.constant 0 : index
    %c0_166 = arith.constant 0 : index
    %c0_167 = arith.constant 0 : index
    %144 = vector.load %arg7[%c0_163, %c1_164, %c0_165, %c0_166, %c0_167] : memref<1x2x16x16x64xbf16, #tpu.memory_space<vmem>>, vector<1x1x16x16x64xbf16>
    %145 = vector.shape_cast %144 : vector<1x1x16x16x64xbf16> to vector<16x16x64xbf16>
    %146 = vector.shape_cast %143 : vector<16x16x64xbf16> to vector<1x1x16x16x64xbf16>
    tpu.vector_store %arg7[%c0_163, %c1_164, %c0_165, %c0_166, %c0_167], %146 {strides = array<i32>} : memref<1x2x16x16x64xbf16, #tpu.memory_space<vmem>>, vector<1x1x16x16x64xbf16>,
    %cst_168 = arith.constant dense<0.000000e+00> : vector<64xf32>
    %147 = vector.multi_reduction <add>, %141, %cst_168 [0] : vector<256x64xf32> to vector<64xf32>
    %148 = vector.shape_cast %147 : vector<64xf32> to vector<1x64xf32>
    %149 = arith.addf %73, %148 : vector<1x64xf32>
    %150 = arith.mulf %141, %141 : vector<256x64xf32>
    %cst_169 = arith.constant dense<0.000000e+00> : vector<64xf32>
    %151 = vector.multi_reduction <add>, %150, %cst_169 [0] : vector<256x64xf32> to vector<64xf32>
    %152 = vector.shape_cast %151 : vector<64xf32> to vector<1x64xf32>
    %153 = arith.addf %77, %152 : vector<1x64xf32>
    %c0_170 = arith.constant 0 : index
    %c0_171 = arith.constant 0 : index
    %c0_172 = arith.constant 0 : index
    %c0_173 = arith.constant 0 : index
    %154 = vector.load %arg8[%c0_170, %c0_171, %c0_172, %c0_173] : memref<1x1x1x64xf32, #tpu.memory_space<vmem>>, vector<1x1x1x64xf32>
    %155 = vector.shape_cast %154 : vector<1x1x1x64xf32> to vector<1x64xf32>
    %156 = vector.shape_cast %149 : vector<1x64xf32> to vector<1x1x1x64xf32>
    tpu.vector_store %arg8[%c0_170, %c0_171, %c0_172, %c0_173], %156 {strides = array<i32>} : memref<1x1x1x64xf32, #tpu.memory_space<vmem>>, vector<1x1x1x64xf32>,
    %c0_174 = arith.constant 0 : index
    %c0_175 = arith.constant 0 : index
    %c0_176 = arith.constant 0 : index
    %c0_177 = arith.constant 0 : index
    %157 = vector.load %arg9[%c0_174, %c0_175, %c0_176, %c0_177] : memref<1x1x1x64xf32, #tpu.memory_space<vmem>>, vector<1x1x1x64xf32>
    %158 = vector.shape_cast %157 : vector<1x1x1x64xf32> to vector<1x64xf32>
    %159 = vector.shape_cast %153 : vector<1x64xf32> to vector<1x1x1x64xf32>
    tpu.vector_store %arg9[%c0_174, %c0_175, %c0_176, %c0_177], %159 {strides = array<i32>} : memref<1x1x1x64xf32, #tpu.memory_space<vmem>>, vector<1x1x1x64xf32>,
    return
  }
  func.func @transform_0(%arg0: i32, %arg1: i32) -> (i32, i32, i32, i32, i32) {
    %c2_i32 = arith.constant 2 : i32
    %0 = arith.muli %arg1, %c2_i32 : i32
    %c0_i32 = arith.constant 0 : i32
    %1 = arith.addi %0, %c0_i32 : i32
    %c0_i32_0 = arith.constant 0 : i32
    %c0_i32_1 = arith.constant 0 : i32
    %c0_i32_2 = arith.constant 0 : i32
    %c0_i32_3 = arith.constant 0 : i32
    return %arg0, %1, %c0_i32_0, %c0_i32_1, %c0_i32_2 : i32, i32, i32, i32, i32
  }
  func.func @transform_1(%arg0: i32, %arg1: i32) -> (i32, i32, i32, i32, i32) {
    %c2_i32 = arith.constant 2 : i32
    %0 = arith.muli %arg1, %c2_i32 : i32
    %c1_i32 = arith.constant 1 : i32
    %1 = arith.addi %0, %c1_i32 : i32
    %c0_i32 = arith.constant 0 : i32
    %c0_i32_0 = arith.constant 0 : i32
    %c0_i32_1 = arith.constant 0 : i32
    %c0_i32_2 = arith.constant 0 : i32
    return %arg0, %1, %c0_i32, %c0_i32_0, %c0_i32_1 : i32, i32, i32, i32, i32
  }
  func.func @transform_2(%arg0: i32, %arg1: i32) -> (i32, i32, i32, i32, i32) {
    %c2_i32 = arith.constant 2 : i32
    %0 = arith.muli %arg1, %c2_i32 : i32
    %c2_i32_0 = arith.constant 2 : i32
    %1 = arith.addi %0, %c2_i32_0 : i32
    %c0_i32 = arith.constant 0 : i32
    %c0_i32_1 = arith.constant 0 : i32
    %c0_i32_2 = arith.constant 0 : i32
    %c0_i32_3 = arith.constant 0 : i32
    return %arg0, %1, %c0_i32, %c0_i32_1, %c0_i32_2 : i32, i32, i32, i32, i32
  }
  func.func @transform_3(%arg0: i32, %arg1: i32) -> (i32, i32, i32, i32, i32) {
    %c2_i32 = arith.constant 2 : i32
    %0 = arith.muli %arg1, %c2_i32 : i32
    %c3_i32 = arith.constant 3 : i32
    %1 = arith.addi %0, %c3_i32 : i32
    %c0_i32 = arith.constant 0 : i32
    %c0_i32_0 = arith.constant 0 : i32
    %c0_i32_1 = arith.constant 0 : i32
    %c0_i32_2 = arith.constant 0 : i32
    return %arg0, %1, %c0_i32, %c0_i32_0, %c0_i32_1 : i32, i32, i32, i32, i32
  }
  func.func @transform_4(%arg0: i32, %arg1: i32) -> (i32, i32, i32) {
    %c0_i32 = arith.constant 0 : i32
    %c0_i32_0 = arith.constant 0 : i32
    %c0_i32_1 = arith.constant 0 : i32
    %c0_i32_2 = arith.constant 0 : i32
    return %c0_i32, %c0_i32_0, %c0_i32_1 : i32, i32, i32
  }
  func.func @transform_5(%arg0: i32, %arg1: i32) -> (i32, i32, i32, i32, i32) {
    %c0_i32 = arith.constant 0 : i32
    %c0_i32_0 = arith.constant 0 : i32
    %c0_i32_1 = arith.constant 0 : i32
    %c0_i32_2 = arith.constant 0 : i32
    return %arg0, %arg1, %c0_i32, %c0_i32_0, %c0_i32_1 : i32, i32, i32, i32, i32
  }
  func.func @transform_6(%arg0: i32, %arg1: i32) -> (i32, i32, i32, i32) {
    %c0_i32 = arith.constant 0 : i32
    %c0_i32_0 = arith.constant 0 : i32
    %c0_i32_1 = arith.constant 0 : i32
    return %arg0, %arg1, %c0_i32, %c0_i32_0 : i32, i32, i32, i32
  }
  func.func @transform_7(%arg0: i32, %arg1: i32) -> (i32, i32, i32, i32) {
    %c0_i32 = arith.constant 0 : i32
    %c0_i32_0 = arith.constant 0 : i32
    %c0_i32_1 = arith.constant 0 : i32
    return %arg0, %arg1, %c0_i32, %c0_i32_0 : i32, i32, i32, i32
  }
}

module attributes {stable_mosaic.version = 11 : i64} {
  func.func @_bn_add_relu_kernel(%arg0: i32, %arg1: i32, %arg2: memref<1x2x16x16x64xbf16, #tpu.memory_space<vmem>>, %arg3: memref<1x64xf32, #tpu.memory_space<vmem>>, %arg4: memref<1x64xf32, #tpu.memory_space<vmem>>, %arg5: memref<1x2x16x16x64xbf16, #tpu.memory_space<vmem>>, %arg6: memref<1x2x16x16x64xf32, #tpu.memory_space<vmem>>) attributes {dimension_semantics = [#tpu.dimension_semantics<parallel>, #tpu.dimension_semantics<parallel>], iteration_bounds = array<i64: 2, 4>, scalar_prefetch = 0 : i64, scratch_operands = 0 : i64, tpu.core_type = #tpu.core_type<tc>, window_params = [{transform_indices = @transform_0, window_bounds = array<i64: 1, 2, 16, 16, 64>}, {pipeline_mode = #tpu.pipeline_mode<synchronous>, transform_indices = @transform_1, window_bounds = array<i64: 1, 64>}, {pipeline_mode = #tpu.pipeline_mode<synchronous>, transform_indices = @transform_2, window_bounds = array<i64: 1, 64>}, {transform_indices = @transform_3, window_bounds = array<i64: 1, 2, 16, 16, 64>}, {transform_indices = @transform_4, window_bounds = array<i64: 1, 2, 16, 16, 64>}]} {
    %c0 = arith.constant 0 : index
    %c0_0 = arith.constant 0 : index
    %c0_1 = arith.constant 0 : index
    %c0_2 = arith.constant 0 : index
    %c0_3 = arith.constant 0 : index
    %0 = vector.load %arg2[%c0, %c0_0, %c0_1, %c0_2, %c0_3] : memref<1x2x16x16x64xbf16, #tpu.memory_space<vmem>>, vector<1x2x16x16x64xbf16>
    %1 = vector.shape_cast %0 : vector<1x2x16x16x64xbf16> to vector<2x16x16x64xbf16>
    %2 = arith.extf %1 : vector<2x16x16x64xbf16> to vector<2x16x16x64xf32>
    %c0_4 = arith.constant 0 : index
    %c0_5 = arith.constant 0 : index
    %c0_6 = arith.constant 0 : index
    %c0_7 = arith.constant 0 : index
    %c0_8 = arith.constant 0 : index
    %3 = vector.load %arg5[%c0_4, %c0_5, %c0_6, %c0_7, %c0_8] : memref<1x2x16x16x64xbf16, #tpu.memory_space<vmem>>, vector<1x2x16x16x64xbf16>
    %4 = vector.shape_cast %3 : vector<1x2x16x16x64xbf16> to vector<2x16x16x64xbf16>
    %5 = arith.extf %4 : vector<2x16x16x64xbf16> to vector<2x16x16x64xf32>
    %c0_9 = arith.constant 0 : index
    %c0_10 = arith.constant 0 : index
    %6 = vector.load %arg3[%c0_9, %c0_10] : memref<1x64xf32, #tpu.memory_space<vmem>>, vector<1x64xf32>
    %7 = vector.shape_cast %6 : vector<1x64xf32> to vector<1x1x1x64xf32>
    %8 = vector.broadcast %7 : vector<1x1x1x64xf32> to vector<2x16x16x64xf32>
    %9 = arith.mulf %2, %8 : vector<2x16x16x64xf32>
    %c0_11 = arith.constant 0 : index
    %c0_12 = arith.constant 0 : index
    %10 = vector.load %arg4[%c0_11, %c0_12] : memref<1x64xf32, #tpu.memory_space<vmem>>, vector<1x64xf32>
    %11 = vector.shape_cast %10 : vector<1x64xf32> to vector<1x1x1x64xf32>
    %12 = vector.broadcast %11 : vector<1x1x1x64xf32> to vector<2x16x16x64xf32>
    %13 = arith.addf %9, %12 : vector<2x16x16x64xf32>
    %14 = arith.addf %13, %5 : vector<2x16x16x64xf32>
    %cst = arith.constant 0.000000e+00 : f32
    %15 = vector.broadcast %cst : f32 to vector<2x16x16x64xf32>
    %16 = arith.maximumf %14, %15 : vector<2x16x16x64xf32>
    %c0_13 = arith.constant 0 : index
    %c0_14 = arith.constant 0 : index
    %c0_15 = arith.constant 0 : index
    %c0_16 = arith.constant 0 : index
    %c0_17 = arith.constant 0 : index
    %17 = vector.load %arg6[%c0_13, %c0_14, %c0_15, %c0_16, %c0_17] : memref<1x2x16x16x64xf32, #tpu.memory_space<vmem>>, vector<1x2x16x16x64xf32>
    %18 = vector.shape_cast %17 : vector<1x2x16x16x64xf32> to vector<2x16x16x64xf32>
    %19 = vector.shape_cast %16 : vector<2x16x16x64xf32> to vector<1x2x16x16x64xf32>
    tpu.vector_store %arg6[%c0_13, %c0_14, %c0_15, %c0_16, %c0_17], %19 {strides = array<i32>} : memref<1x2x16x16x64xf32, #tpu.memory_space<vmem>>, vector<1x2x16x16x64xf32>,
    return
  }
  func.func @transform_0(%arg0: i32, %arg1: i32) -> (i32, i32, i32, i32, i32) {
    %c0_i32 = arith.constant 0 : i32
    %c0_i32_0 = arith.constant 0 : i32
    %c0_i32_1 = arith.constant 0 : i32
    %c0_i32_2 = arith.constant 0 : i32
    return %arg0, %arg1, %c0_i32, %c0_i32_0, %c0_i32_1 : i32, i32, i32, i32, i32
  }
  func.func @transform_1(%arg0: i32, %arg1: i32) -> (i32, i32) {
    %c0_i32 = arith.constant 0 : i32
    %c0_i32_0 = arith.constant 0 : i32
    %c0_i32_1 = arith.constant 0 : i32
    return %c0_i32, %c0_i32_0 : i32, i32
  }
  func.func @transform_2(%arg0: i32, %arg1: i32) -> (i32, i32) {
    %c0_i32 = arith.constant 0 : i32
    %c0_i32_0 = arith.constant 0 : i32
    %c0_i32_1 = arith.constant 0 : i32
    return %c0_i32, %c0_i32_0 : i32, i32
  }
  func.func @transform_3(%arg0: i32, %arg1: i32) -> (i32, i32, i32, i32, i32) {
    %c0_i32 = arith.constant 0 : i32
    %c0_i32_0 = arith.constant 0 : i32
    %c0_i32_1 = arith.constant 0 : i32
    %c0_i32_2 = arith.constant 0 : i32
    return %arg0, %arg1, %c0_i32, %c0_i32_0, %c0_i32_1 : i32, i32, i32, i32, i32
  }
  func.func @transform_4(%arg0: i32, %arg1: i32) -> (i32, i32, i32, i32, i32) {
    %c0_i32 = arith.constant 0 : i32
    %c0_i32_0 = arith.constant 0 : i32
    %c0_i32_1 = arith.constant 0 : i32
    %c0_i32_2 = arith.constant 0 : i32
    return %arg0, %arg1, %c0_i32, %c0_i32_0, %c0_i32_1 : i32, i32, i32, i32, i32
  }
}

</mosaic_0001>

<llo_original>
// kernel: _lambda_.5
$region0: #{_lambda_.5}
  #allocation0 [shape = 'u32[]', space=smem, size = 0x4, offset = 0x4, fixed_abs, tag = 'smem constant byte address 0x4 - core index']
  #allocation1 [shape = 'u32[144,128]{1,0:T(1,128)}', space=vmem, size = 0x12000, scoped, tag = 'internal scratch']
  %s0 = inlined_call_operand.vmem [shape: bf16[2,8,16,16,64], index: 0, kind: input, shape index: {}]
  %s1 = inlined_call_operand.vmem [shape: f32[1,64], index: 1, kind: input, shape index: {}]
  %s2 = inlined_call_operand.vmem [shape: f32[1,64], index: 2, kind: input, shape index: {}]
  %s3 = inlined_call_operand.vmem [shape: bf16[2,8,16,16,64], index: 3, kind: input, shape index: {}]
  %s4 = inlined_call_operand.hbm [shape: f32[2,8,16,16,64], index: 4, kind: output, shape index: {}]
  %s5 = sld [smem:[#allocation0]]
  $region49: #{_lambda_.5} parent=0
    _
  %s7 = ssub.s32 1, %s5
  %s8 = scalar_select 0, %s7, %s5
  $region1: #{_lambda_.5} parent=0
    #allocation2 [shape = 'u8[524288]{0}', space=vmem, size = 0x80000, scoped, tag = 'output window, operand 0']
    #allocation3 [shape = 's32[2]{0}', space=sflag, size = 0x8, scoped, tag = 'scoped memory for _lambda_.5']
    %9 = vsyncpa [#allocation3], 0
    %s10 = scalar_lea.sflag [#allocation3], 1
    %11 = vsyncpa %s10, 0
    loop: start=0, step=1, limit=10
    $region2: #{_lambda_.5} parent=1 // loop_pre_header
      _
    $region3: #{_lambda_.5} parent=1 // loop_header
      %s13 = sphi 0, %s17
      %p14 = scmp.ge.s32.totalorder %s13, 10
      %s20 = sphi 0, %s32
      %s21 = sphi 0, %s28
      %s22 = sphi 0, %s20
      %s23 = sphi 0, %s21
      %s24 = sphi 0, %s22
      %s25 = sphi 0, %s23
      %s37 = sphi 0, %s39
      %s40 = sphi 0, %s37
      %s41 = sphi 0, %s40
      %s57 = sphi 0, %s41
      %s61 = sphi 0, %s61
      %s63 = sphi 0, %s61
      %s64 = sphi 0, %s63
      %s78 = sphi 0, %s64
      %s82 = sphi 0, %s82
      %s84 = sphi 0, %s82
      %s85 = sphi 0, %s84
      %s99 = sphi 0, %s85
      %s107 = sphi 0, %s109
      %s110 = sphi 0, %s107
      %s111 = sphi 0, %s110
      %s127 = sphi 0, %s111
      %s135 = sphi 0, %s137
      %s138 = sphi 0, %s135
      %s139 = sphi 0, %s138
      %s155 = sphi 0, %s139
    $region4: #{_lambda_.5} parent=1 // loop_header_branch
      %16 = sbr.rel (%p14) target = $region8
    $region5: #{_lambda_.5} parent=1 // loop_body
      %s18 = ssub.s32 %s13, 1
      %s19 = ssub.s32 %s13, 2
      %s26 = sadd.s32 1, %s21
      %p27 = scmp.ge.s32.totalorder %s26, 4
      %s28 = scalar_select %p27, 0, %s26
      %s29 = sadd.s32 1, %s20
      %s30 = scalar_select %p27, %s29, %s20
      %p31 = scmp.ge.s32.totalorder %s30, 2
      %s32 = scalar_select %p31, 0, %s30
      %s33 = ssub.s32 %s20, %s32
      %s34 = ssub.s32 %s21, %s28
      %s35 = sor.u32 %s33, %s34
      %p36 = scmp.eq.s32.totalorder %s35, 0
      %s38 = sadd.s32 %s37, 1
      %s39 = scalar_select %p36, %s37, %s38
      %p42 = pneg %p36
      %p43 = scmp.eq.s32.totalorder %s13, 7
      %p44 = por %p42, %p43
      %p45 = scmp.ne.s32.totalorder %s37, %s40
      %p46 = scmp.eq.s32.totalorder %s13, 0
      %p47 = por %p45, %p46
      %p48 = scmp.ne.s32.totalorder %s37, %s40
      %p49 = scmp.eq.s32.totalorder %s18, 7
      %p50 = por %p48, %p49
      %p51 = scmp.ne.s32.totalorder %s40, %s41
      %p52 = scmp.eq.s32.totalorder %s18, 0
      %p53 = por %p51, %p52
      %p54 = scmp.ne.s32.totalorder %s40, %s41
      %p55 = scmp.eq.s32.totalorder %s19, 7
      %p56 = por %p54, %p55
      %p58 = scmp.ne.s32.totalorder %s41, %s57
      %p59 = scmp.eq.s32.totalorder %s19, 0
      %p60 = por %p58, %p59
      %s62 = sadd.s32 %s61, 1
      %p65 = scmp.eq.s32.totalorder %s13, 7
      %p66 = scmp.ne.s32.totalorder %s61, %s63
      %p67 = scmp.eq.s32.totalorder %s13, 0
      %p68 = por %p66, %p67
      %p69 = scmp.ne.s32.totalorder %s61, %s63
      %p70 = scmp.eq.s32.totalorder %s18, 7
      %p71 = por %p69, %p70
      %p72 = scmp.ne.s32.totalorder %s63, %s64
      %p73 = scmp.eq.s32.totalorder %s18, 0
      %p74 = por %p72, %p73
      %p75 = scmp.ne.s32.totalorder %s63, %s64
      %p76 = scmp.eq.s32.totalorder %s19, 7
      %p77 = por %p75, %p76
      %p79 = scmp.ne.s32.totalorder %s64, %s78
      %p80 = scmp.eq.s32.totalorder %s19, 0
      %p81 = por %p79, %p80
      %s83 = sadd.s32 %s82, 1
      %p86 = scmp.eq.s32.totalorder %s13, 7
      %p87 = scmp.ne.s32.totalorder %s82, %s84
      %p88 = scmp.eq.s32.totalorder %s13, 0
      %p89 = por %p87, %p88
      %p90 = scmp.ne.s32.totalorder %s82, %s84
      %p91 = scmp.eq.s32.totalorder %s18, 7
      %p92 = por %p90, %p91
      %p93 = scmp.ne.s32.totalorder %s84, %s85
      %p94 = scmp.eq.s32.totalorder %s18, 0
      %p95 = por %p93, %p94
      %p96 = scmp.ne.s32.totalorder %s84, %s85
      %p97 = scmp.eq.s32.totalorder %s19, 7
      %p98 = por %p96, %p97
      %p100 = scmp.ne.s32.totalorder %s85, %s99
      %p101 = scmp.eq.s32.totalorder %s19, 0
      %p102 = por %p100, %p101
      %s103 = ssub.s32 %s20, %s32
      %s104 = ssub.s32 %s21, %s28
      %s105 = sor.u32 %s103, %s104
      %p106 = scmp.eq.s32.totalorder %s105, 0
      %s108 = sadd.s32 %s107, 1
      %s109 = scalar_select %p106, %s107, %s108
      %p112 = pneg %p106
      %p113 = scmp.eq.s32.totalorder %s13, 7
      %p114 = por %p112, %p113
      %p115 = scmp.ne.s32.totalorder %s107, %s110
      %p116 = scmp.eq.s32.totalorder %s13, 0
      %p117 = por %p115, %p116
      %p118 = scmp.ne.s32.totalorder %s107, %s110
      %p119 = scmp.eq.s32.totalorder %s18, 7
      %p120 = por %p118, %p119
      %p121 = scmp.ne.s32.totalorder %s110, %s111
      %p122 = scmp.eq.s32.totalorder %s18, 0
      %p123 = por %p121, %p122
      %p124 = scmp.ne.s32.totalorder %s110, %s111
      %p125 = scmp.eq.s32.totalorder %s19, 7
      %p126 = por %p124, %p125
      %p128 = scmp.ne.s32.totalorder %s111, %s127
      %p129 = scmp.eq.s32.totalorder %s19, 0
      %p130 = por %p128, %p129
      %s131 = ssub.s32 %s20, %s32
      %s132 = ssub.s32 %s21, %s28
      %s133 = sor.u32 %s131, %s132
      %p134 = scmp.eq.s32.totalorder %s133, 0
      %s136 = sadd.s32 %s135, 1
      %s137 = scalar_select %p134, %s135, %s136
      %p140 = pneg %p134
      %p141 = scmp.eq.s32.totalorder %s13, 7
      %p142 = por %p140, %p141
      %p143 = scmp.ne.s32.totalorder %s135, %s138
      %p144 = scmp.eq.s32.totalorder %s13, 0
      %p145 = por %p143, %p144
      %p146 = scmp.ne.s32.totalorder %s135, %s138
      %p147 = scmp.eq.s32.totalorder %s18, 7
      %p148 = por %p146, %p147
      %p149 = scmp.ne.s32.totalorder %s138, %s139
      %p150 = scmp.eq.s32.totalorder %s18, 0
      %p151 = por %p149, %p150
      %p152 = scmp.ne.s32.totalorder %s138, %s139
      %p153 = scmp.eq.s32.totalorder %s19, 7
      %p154 = por %p152, %p153
      %p156 = scmp.ne.s32.totalorder %s139, %s155
      %p157 = scmp.eq.s32.totalorder %s19, 0
      %p158 = por %p156, %p157
      %p159 = scmp.le.s32.totalorder 1, %s13
      %p160 = scmp.lt.s32.totalorder %s13, 9
      %p161 = pnand %p159, %p160
      %p162 = pneg %p161
      // Predicated region
      $region9: #{_lambda_.5} parent=5 // pred_check
        _
      $region10: #{_lambda_.5} parent=5 // pred_check_branch
        %164 = sbr.rel (%p161) target = $region12
      $region11: #{_lambda_.5} parent=5 // pred_region
        %s165 = ssub.s32 %s13, 1
        // Predicated region
        $region13: #{_lambda_.5} parent=11 // pred_check
          %p166 = pneg %p74
        $region14: #{_lambda_.5} parent=11 // pred_check_branch
          %168 = sbr.rel (%p166) target = $region16
        $region15: #{_lambda_.5} parent=11 // pred_region
          _
        $region16: #{_lambda_.5} parent=11 // pred_fallthru
          _
        // Predicated region
        $region17: #{_lambda_.5} parent=11 // pred_check
          %p169 = pneg %p95
        $region18: #{_lambda_.5} parent=11 // pred_check_branch
          %171 = sbr.rel (%p169) target = $region20
        $region19: #{_lambda_.5} parent=11 // pred_region
          _
        $region20: #{_lambda_.5} parent=11 // pred_fallthru
          _
      $region12: #{_lambda_.5} parent=5 // pred_fallthru
        _
      %p172 = scmp.lt.s32.totalorder %s13, 8
      // Predicated region
      $region21: #{_lambda_.5} parent=5 // pred_check
        %p173 = pneg %p172
      $region22: #{_lambda_.5} parent=5 // pred_check_branch
        %175 = sbr.rel (%p173) target = $region24
      $region23: #{_lambda_.5} parent=5 // pred_region
        // Predicated region
        $region25: #{_lambda_.5} parent=23 // pred_check
          %p176 = pneg %p47
        $region26: #{_lambda_.5} parent=23 // pred_check_branch
          %178 = sbr.rel (%p176) target = $region28
        $region27: #{_lambda_.5} parent=23 // pred_region
          %s179 = smul.u32 2, %s21
          %p180 = scmp.lt.s32.totalorder %s20, 1
          %s181 = scalar_select %p180, %s20, 1
          %p182 = scmp.lt.s32.totalorder %s179, 7
          %s183 = scalar_select %p182, %s179, 7
          %s184 = smul.addr %s183, 32
          %s185 = smul.addr %s181, 256
          %s186 = sadd.s32 %s184, %s185
          %s187 = smul.addr %s186, 4
          %s188 = scalar_lea.vmem %s0, %s187
          %s189 = smul.u32 2, %s21
        $region28: #{_lambda_.5} parent=23 // pred_fallthru
          _
        // Predicated region
        $region29: #{_lambda_.5} parent=23 // pred_check
          %p190 = pneg %p117
        $region30: #{_lambda_.5} parent=23 // pred_check_branch
          %192 = sbr.rel (%p190) target = $region32
        $region31: #{_lambda_.5} parent=23 // pred_region
          %s193 = smul.u32 2, %s21
          %p194 = scmp.lt.s32.totalorder %s20, 1
          %s195 = scalar_select %p194, %s20, 1
          %p196 = scmp.lt.s32.totalorder %s193, 7
          %s197 = scalar_select %p196, %s193, 7
          %s198 = smul.addr %s197, 32
          %s199 = smul.addr %s195, 256
          %s200 = sadd.s32 %s198, %s199
          %s201 = smul.addr %s200, 4
          %s202 = scalar_lea.vmem %s3, %s201
          %s203 = smul.u32 2, %s21
        $region32: #{_lambda_.5} parent=23 // pred_fallthru
          _
      $region24: #{_lambda_.5} parent=5 // pred_fallthru
        _
      %p204 = scmp.le.s32.totalorder 1, %s13
      %p205 = scmp.lt.s32.totalorder %s13, 9
      %p206 = pnand %p204, %p205
      %p207 = pneg %p206
      // Predicated region
      $region33: #{_lambda_.5} parent=5 // pred_check
        _
      $region34: #{_lambda_.5} parent=5 // pred_check_branch
        %209 = sbr.rel (%p206) target = $region36
      $region35: #{_lambda_.5} parent=5 // pred_region
        %s210 = ssub.s32 %s13, 1
        %s211 = smul.u32 2, %s23
        %p212 = scmp.lt.s32.totalorder %s22, 1
        %s213 = scalar_select %p212, %s22, 1
        %p214 = scmp.lt.s32.totalorder %s211, 7
        %s215 = scalar_select %p214, %s211, 7
        %s216 = smul.addr %s215, 32
        %s217 = smul.addr %s213, 256
        %s218 = sadd.s32 %s216, %s217
        %s219 = smul.addr %s218, 4
        %s220 = scalar_lea.vmem %s0, %s219
        %p221 = pneg %p53
        %p222 = pneg %p50
        %p223 = pneg %p74
        %p224 = pneg %p71
        %p225 = pneg %p95
        %p226 = pneg %p92
        %s227 = smul.u32 2, %s23
        %p228 = scmp.lt.s32.totalorder %s22, 1
        %s229 = scalar_select %p228, %s22, 1
        %p230 = scmp.lt.s32.totalorder %s227, 7
        %s231 = scalar_select %p230, %s227, 7
        %s232 = smul.addr %s231, 32
        %s233 = smul.addr %s229, 256
        %s234 = sadd.s32 %s232, %s233
        %s235 = smul.addr %s234, 4
        %s236 = scalar_lea.vmem %s3, %s235
        %p237 = pneg %p123
        %p238 = pneg %p120
        %p239 = pneg %p151
        %p240 = pneg %p148
        %s241 = sand.u32 %s138, 1
        %s242 = scalar_lea.sflag [#allocation3], %s241
        %s243 = sand.u32 %s138, 1
        %s244 = smul.addr %s243, 512
        %s245 = scalar_lea.vmem [#allocation2], %s244
        %s246 = smul.u32 2, %s23
        %p247 = scmp.lt.s32.totalorder %s22, 1
        %s248 = scalar_select %p247, %s22, 1
        %p249 = scmp.lt.s32.totalorder %s246, 7
        %s250 = scalar_select %p249, %s246, 7
        %s251 = smul.addr %s250, 32
        %s252 = smul.addr %s248, 256
        %s253 = sadd.s32 %s251, %s252
        %s254 = smul.addr %s253, 4
        %s255 = scalar_lea.vmem %s0, %s254
        %s256 = smul.u32 2, %s23
        %s257 = smul.u32 2, %s23
        %p258 = scmp.lt.s32.totalorder %s22, 1
        %s259 = scalar_select %p258, %s22, 1
        %p260 = scmp.lt.s32.totalorder %s257, 7
        %s261 = scalar_select %p260, %s257, 7
        %s262 = smul.addr %s261, 32
        %s263 = smul.addr %s259, 256
        %s264 = sadd.s32 %s262, %s263
        %s265 = smul.addr %s264, 4
        %s266 = scalar_lea.vmem %s3, %s265
        %s267 = smul.u32 2, %s23
        %s268 = smul.u32 2, %s23
        %v269 = vld [vmem:[%s255] sm:$0xf]
        %v270 = vld [vmem:[%s255 + $0x4] sm:$0xf]
        %v271 = vld [vmem:[%s255 + $0x8] sm:$0xf]
        %v272 = vld [vmem:[%s255 + $0xc] sm:$0xf]
        %v273 = vld [vmem:[%s255 + $0x10] sm:$0xf]
        %v274 = vld [vmem:[%s255 + $0x14] sm:$0xf]
        %v275 = vld [vmem:[%s255 + $0x18] sm:$0xf]
        %v276 = vld [vmem:[%s255 + $0x1c] sm:$0xf]
        %v277 = vld [vmem:[%s255 + $0x20] sm:$0xf]
        %v278 = vld [vmem:[%s255 + $0x24] sm:$0xf]
        %v279 = vld [vmem:[%s255 + $0x28] sm:$0xf]
        %v280 = vld [vmem:[%s255 + $0x2c] sm:$0xf]
        %v281 = vld [vmem:[%s255 + $0x30] sm:$0xf]
        %v282 = vld [vmem:[%s255 + $0x34] sm:$0xf]
        %v283 = vld [vmem:[%s255 + $0x38] sm:$0xf]
        %v284 = vld [vmem:[%s255 + $0x3c] sm:$0xf]
        %v285 = vld [vmem:[%s255 + $0x40] sm:$0xf]
        %v286 = vld [vmem:[%s255 + $0x44] sm:$0xf]
        %v287 = vld [vmem:[%s255 + $0x48] sm:$0xf]
        %v288 = vld [vmem:[%s255 + $0x4c] sm:$0xf]
        %v289 = vld [vmem:[%s255 + $0x50] sm:$0xf]
        %v290 = vld [vmem:[%s255 + $0x54] sm:$0xf]
        %v291 = vld [vmem:[%s255 + $0x58] sm:$0xf]
        %v292 = vld [vmem:[%s255 + $0x5c] sm:$0xf]
        %v293 = vld [vmem:[%s255 + $0x60] sm:$0xf]
        %v294 = vld [vmem:[%s255 + $0x64] sm:$0xf]
        %v295 = vld [vmem:[%s255 + $0x68] sm:$0xf]
        %v296 = vld [vmem:[%s255 + $0x6c] sm:$0xf]
        %v297 = vld [vmem:[%s255 + $0x70] sm:$0xf]
        %v298 = vld [vmem:[%s255 + $0x74] sm:$0xf]
        %v299 = vld [vmem:[%s255 + $0x78] sm:$0xf]
        %v300 = vld [vmem:[%s255 + $0x7c] sm:$0xf]
        %v301 = vld [vmem:[%s255 + $0x80] sm:$0xf]
        %v302 = vld [vmem:[%s255 + $0x84] sm:$0xf]
        %v303 = vld [vmem:[%s255 + $0x88] sm:$0xf]
        %v304 = vld [vmem:[%s255 + $0x8c] sm:$0xf]
        %v305 = vld [vmem:[%s255 + $0x90] sm:$0xf]
        %v306 = vld [vmem:[%s255 + $0x94] sm:$0xf]
        %v307 = vld [vmem:[%s255 + $0x98] sm:$0xf]
        %v308 = vld [vmem:[%s255 + $0x9c] sm:$0xf]
        %v309 = vld [vmem:[%s255 + $0xa0] sm:$0xf]
        %v310 = vld [vmem:[%s255 + $0xa4] sm:$0xf]
        %v311 = vld [vmem:[%s255 + $0xa8] sm:$0xf]
        %v312 = vld [vmem:[%s255 + $0xac] sm:$0xf]
        %v313 = vld [vmem:[%s255 + $0xb0] sm:$0xf]
        %v314 = vld [vmem:[%s255 + $0xb4] sm:$0xf]
        %v315 = vld [vmem:[%s255 + $0xb8] sm:$0xf]
        %v316 = vld [vmem:[%s255 + $0xbc] sm:$0xf]
        %v317 = vld [vmem:[%s255 + $0xc0] sm:$0xf]
        %v318 = vld [vmem:[%s255 + $0xc4] sm:$0xf]
        %v319 = vld [vmem:[%s255 + $0xc8] sm:$0xf]
        %v320 = vld [vmem:[%s255 + $0xcc] sm:$0xf]
        %v321 = vld [vmem:[%s255 + $0xd0] sm:$0xf]
        %v322 = vld [vmem:[%s255 + $0xd4] sm:$0xf]
        %v323 = vld [vmem:[%s255 + $0xd8] sm:$0xf]
        %v324 = vld [vmem:[%s255 + $0xdc] sm:$0xf]
        %v325 = vld [vmem:[%s255 + $0xe0] sm:$0xf]
        %v326 = vld [vmem:[%s255 + $0xe4] sm:$0xf]
        %v327 = vld [vmem:[%s255 + $0xe8] sm:$0xf]
        %v328 = vld [vmem:[%s255 + $0xec] sm:$0xf]
        %v329 = vld [vmem:[%s255 + $0xf0] sm:$0xf]
        %v330 = vld [vmem:[%s255 + $0xf4] sm:$0xf]
        %v331 = vld [vmem:[%s255 + $0xf8] sm:$0xf]
        %v332 = vld [vmem:[%s255 + $0xfc] sm:$0xf]
        %v333 = vunpack.c.l.bf16 %v269
        %v334 = vunpack.c.l.bf16 %v270
        %v335 = vunpack.c.l.bf16 %v271
        %v336 = vunpack.c.l.bf16 %v272
        %v337 = vunpack.c.l.bf16 %v273
        %v338 = vunpack.c.l.bf16 %v274
        %v339 = vunpack.c.l.bf16 %v275
        %v340 = vunpack.c.l.bf16 %v276
        %v341 = vunpack.c.l.bf16 %v277
        %v342 = vunpack.c.l.bf16 %v278
        %v343 = vunpack.c.l.bf16 %v279
        %v344 = vunpack.c.l.bf16 %v280
        %v345 = vunpack.c.l.bf16 %v281
        %v346 = vunpack.c.l.bf16 %v282
        %v347 = vunpack.c.l.bf16 %v283
        %v348 = vunpack.c.l.bf16 %v284
        %v349 = vunpack.c.l.bf16 %v285
        %v350 = vunpack.c.l.bf16 %v286
        %v351 = vunpack.c.l.bf16 %v287
        %v352 = vunpack.c.l.bf16 %v288
        %v353 = vunpack.c.l.bf16 %v289
        %v354 = vunpack.c.l.bf16 %v290
        %v355 = vunpack.c.l.bf16 %v291
        %v356 = vunpack.c.l.bf16 %v292
        %v357 = vunpack.c.l.bf16 %v293
        %v358 = vunpack.c.l.bf16 %v294
        %v359 = vunpack.c.l.bf16 %v295
        %v360 = vunpack.c.l.bf16 %v296
        %v361 = vunpack.c.l.bf16 %v297
        %v362 = vunpack.c.l.bf16 %v298
        %v363 = vunpack.c.l.bf16 %v299
        %v364 = vunpack.c.l.bf16 %v300
        %v365 = vunpack.c.l.bf16 %v301
        %v366 = vunpack.c.l.bf16 %v302
        %v367 = vunpack.c.l.bf16 %v303
        %v368 = vunpack.c.l.bf16 %v304
        %v369 = vunpack.c.l.bf16 %v305
        %v370 = vunpack.c.l.bf16 %v306
        %v371 = vunpack.c.l.bf16 %v307
        %v372 = vunpack.c.l.bf16 %v308
        %v373 = vunpack.c.l.bf16 %v309
        %v374 = vunpack.c.l.bf16 %v310
        %v375 = vunpack.c.l.bf16 %v311
        %v376 = vunpack.c.l.bf16 %v312
        %v377 = vunpack.c.l.bf16 %v313
        %v378 = vunpack.c.l.bf16 %v314
        %v379 = vunpack.c.l.bf16 %v315
        %v380 = vunpack.c.l.bf16 %v316
        %v381 = vunpack.c.l.bf16 %v317
        %v382 = vunpack.c.l.bf16 %v318
        %v383 = vunpack.c.l.bf16 %v319
        %v384 = vunpack.c.l.bf16 %v320
        %v385 = vunpack.c.l.bf16 %v321
        %v386 = vunpack.c.l.bf16 %v322
        %v387 = vunpack.c.l.bf16 %v323
        %v388 = vunpack.c.l.bf16 %v324
        %v389 = vunpack.c.l.bf16 %v325
        %v390 = vunpack.c.l.bf16 %v326
        %v391 = vunpack.c.l.bf16 %v327
        %v392 = vunpack.c.l.bf16 %v328
        %v393 = vunpack.c.l.bf16 %v329
        %v394 = vunpack.c.l.bf16 %v330
        %v395 = vunpack.c.l.bf16 %v331
        %v396 = vunpack.c.l.bf16 %v332
        %v397 = vld [vmem:[%s266] sm:$0xf]
        %v398 = vld [vmem:[%s266 + $0x4] sm:$0xf]
        %v399 = vld [vmem:[%s266 + $0x8] sm:$0xf]
        %v400 = vld [vmem:[%s266 + $0xc] sm:$0xf]
        %v401 = vld [vmem:[%s266 + $0x10] sm:$0xf]
        %v402 = vld [vmem:[%s266 + $0x14] sm:$0xf]
        %v403 = vld [vmem:[%s266 + $0x18] sm:$0xf]
        %v404 = vld [vmem:[%s266 + $0x1c] sm:$0xf]
        %v405 = vld [vmem:[%s266 + $0x20] sm:$0xf]
        %v406 = vld [vmem:[%s266 + $0x24] sm:$0xf]
        %v407 = vld [vmem:[%s266 + $0x28] sm:$0xf]
        %v408 = vld [vmem:[%s266 + $0x2c] sm:$0xf]
        %v409 = vld [vmem:[%s266 + $0x30] sm:$0xf]
        %v410 = vld [vmem:[%s266 + $0x34] sm:$0xf]
        %v411 = vld [vmem:[%s266 + $0x38] sm:$0xf]
        %v412 = vld [vmem:[%s266 + $0x3c] sm:$0xf]
        %v413 = vld [vmem:[%s266 + $0x40] sm:$0xf]
        %v414 = vld [vmem:[%s266 + $0x44] sm:$0xf]
        %v415 = vld [vmem:[%s266 + $0x48] sm:$0xf]
        %v416 = vld [vmem:[%s266 + $0x4c] sm:$0xf]
        %v417 = vld [vmem:[%s266 + $0x50] sm:$0xf]
        %v418 = vld [vmem:[%s266 + $0x54] sm:$0xf]
        %v419 = vld [vmem:[%s266 + $0x58] sm:$0xf]
        %v420 = vld [vmem:[%s266 + $0x5c] sm:$0xf]
        %v421 = vld [vmem:[%s266 + $0x60] sm:$0xf]
        %v422 = vld [vmem:[%s266 + $0x64] sm:$0xf]
        %v423 = vld [vmem:[%s266 + $0x68] sm:$0xf]
        %v424 = vld [vmem:[%s266 + $0x6c] sm:$0xf]
        %v425 = vld [vmem:[%s266 + $0x70] sm:$0xf]
        %v426 = vld [vmem:[%s266 + $0x74] sm:$0xf]
        %v427 = vld [vmem:[%s266 + $0x78] sm:$0xf]
        %v428 = vld [vmem:[%s266 + $0x7c] sm:$0xf]
        %v429 = vld [vmem:[%s266 + $0x80] sm:$0xf]
        %v430 = vld [vmem:[%s266 + $0x84] sm:$0xf]
        %v431 = vld [vmem:[%s266 + $0x88] sm:$0xf]
        %v432 = vld [vmem:[%s266 + $0x8c] sm:$0xf]
        %v433 = vld [vmem:[%s266 + $0x90] sm:$0xf]
        %v434 = vld [vmem:[%s266 + $0x94] sm:$0xf]
        %v435 = vld [vmem:[%s266 + $0x98] sm:$0xf]
        %v436 = vld [vmem:[%s266 + $0x9c] sm:$0xf]
        %v437 = vld [vmem:[%s266 + $0xa0] sm:$0xf]
        %v438 = vld [vmem:[%s266 + $0xa4] sm:$0xf]
        %v439 = vld [vmem:[%s266 + $0xa8] sm:$0xf]
        %v440 = vld [vmem:[%s266 + $0xac] sm:$0xf]
        %v441 = vld [vmem:[%s266 + $0xb0] sm:$0xf]
        %v442 = vld [vmem:[%s266 + $0xb4] sm:$0xf]
        %v443 = vld [vmem:[%s266 + $0xb8] sm:$0xf]
        %v444 = vld [vmem:[%s266 + $0xbc] sm:$0xf]
        %v445 = vld [vmem:[%s266 + $0xc0] sm:$0xf]
        %v446 = vld [vmem:[%s266 + $0xc4] sm:$0xf]
        %v447 = vld [vmem:[%s266 + $0xc8] sm:$0xf]
        %v448 = vld [vmem:[%s266 + $0xcc] sm:$0xf]
        %v449 = vld [vmem:[%s266 + $0xd0] sm:$0xf]
        %v450 = vld [vmem:[%s266 + $0xd4] sm:$0xf]
        %v451 = vld [vmem:[%s266 + $0xd8] sm:$0xf]
        %v452 = vld [vmem:[%s266 + $0xdc] sm:$0xf]
        %v453 = vld [vmem:[%s266 + $0xe0] sm:$0xf]
        %v454 = vld [vmem:[%s266 + $0xe4] sm:$0xf]
        %v455 = vld [vmem:[%s266 + $0xe8] sm:$0xf]
        %v456 = vld [vmem:[%s266 + $0xec] sm:$0xf]
        %v457 = vld [vmem:[%s266 + $0xf0] sm:$0xf]
        %v458 = vld [vmem:[%s266 + $0xf4] sm:$0xf]
        %v459 = vld [vmem:[%s266 + $0xf8] sm:$0xf]
        %v460 = vld [vmem:[%s266 + $0xfc] sm:$0xf]
        %v461 = vunpack.c.l.bf16 %v397
        %v462 = vunpack.c.l.bf16 %v398
        %v463 = vunpack.c.l.bf16 %v399
        %v464 = vunpack.c.l.bf16 %v400
        %v465 = vunpack.c.l.bf16 %v401
        %v466 = vunpack.c.l.bf16 %v402
        %v467 = vunpack.c.l.bf16 %v403
        %v468 = vunpack.c.l.bf16 %v404
        %v469 = vunpack.c.l.bf16 %v405
        %v470 = vunpack.c.l.bf16 %v406
        %v471 = vunpack.c.l.bf16 %v407
        %v472 = vunpack.c.l.bf16 %v408
        %v473 = vunpack.c.l.bf16 %v409
        %v474 = vunpack.c.l.bf16 %v410
        %v475 = vunpack.c.l.bf16 %v411
        %v476 = vunpack.c.l.bf16 %v412
        %v477 = vunpack.c.l.bf16 %v413
        %v478 = vunpack.c.l.bf16 %v414
        %v479 = vunpack.c.l.bf16 %v415
        %v480 = vunpack.c.l.bf16 %v416
        %v481 = vunpack.c.l.bf16 %v417
        %v482 = vunpack.c.l.bf16 %v418
        %v483 = vunpack.c.l.bf16 %v419
        %v484 = vunpack.c.l.bf16 %v420
        %v485 = vunpack.c.l.bf16 %v421
        %v486 = vunpack.c.l.bf16 %v422
        %v487 = vunpack.c.l.bf16 %v423
        %v488 = vunpack.c.l.bf16 %v424
        %v489 = vunpack.c.l.bf16 %v425
        %v490 = vunpack.c.l.bf16 %v426
        %v491 = vunpack.c.l.bf16 %v427
        %v492 = vunpack.c.l.bf16 %v428
        %v493 = vunpack.c.l.bf16 %v429
        %v494 = vunpack.c.l.bf16 %v430
        %v495 = vunpack.c.l.bf16 %v431
        %v496 = vunpack.c.l.bf16 %v432
        %v497 = vunpack.c.l.bf16 %v433
        %v498 = vunpack.c.l.bf16 %v434
        %v499 = vunpack.c.l.bf16 %v435
        %v500 = vunpack.c.l.bf16 %v436
        %v501 = vunpack.c.l.bf16 %v437
        %v502 = vunpack.c.l.bf16 %v438
        %v503 = vunpack.c.l.bf16 %v439
        %v504 = vunpack.c.l.bf16 %v440
        %v505 = vunpack.c.l.bf16 %v441
        %v506 = vunpack.c.l.bf16 %v442
        %v507 = vunpack.c.l.bf16 %v443
        %v508 = vunpack.c.l.bf16 %v444
        %v509 = vunpack.c.l.bf16 %v445
        %v510 = vunpack.c.l.bf16 %v446
        %v511 = vunpack.c.l.bf16 %v447
        %v512 = vunpack.c.l.bf16 %v448
        %v513 = vunpack.c.l.bf16 %v449
        %v514 = vunpack.c.l.bf16 %v450
        %v515 = vunpack.c.l.bf16 %v451
        %v516 = vunpack.c.l.bf16 %v452
        %v517 = vunpack.c.l.bf16 %v453
        %v518 = vunpack.c.l.bf16 %v454
        %v519 = vunpack.c.l.bf16 %v455
        %v520 = vunpack.c.l.bf16 %v456
        %v521 = vunpack.c.l.bf16 %v457
        %v522 = vunpack.c.l.bf16 %v458
        %v523 = vunpack.c.l.bf16 %v459
        %v524 = vunpack.c.l.bf16 %v460
        %v525 = vld [vmem:[%s1] sm:$0x1]
        %v527 = vlaneseq
        %v528 = vshrl.u32 %v527, 7
        %v529 = vsub.s32 0, %v528
        %v530 = vrot.slane %v525, %v529
        %v532 = vmul.f32 %v333, %v530
        %v533 = vmul.f32 %v334, %v530
        %v534 = vmul.f32 %v335, %v530
        %v535 = vmul.f32 %v336, %v530
        %v536 = vmul.f32 %v337, %v530
        %v537 = vmul.f32 %v338, %v530
        %v538 = vmul.f32 %v339, %v530
        %v539 = vmul.f32 %v340, %v530
        %v540 = vmul.f32 %v341, %v530
        %v541 = vmul.f32 %v342, %v530
        %v542 = vmul.f32 %v343, %v530
        %v543 = vmul.f32 %v344, %v530
        %v544 = vmul.f32 %v345, %v530
        %v545 = vmul.f32 %v346, %v530
        %v546 = vmul.f32 %v347, %v530
        %v547 = vmul.f32 %v348, %v530
        %v548 = vmul.f32 %v349, %v530
        %v549 = vmul.f32 %v350, %v530
        %v550 = vmul.f32 %v351, %v530
        %v551 = vmul.f32 %v352, %v530
        %v552 = vmul.f32 %v353, %v530
        %v553 = vmul.f32 %v354, %v530
        %v554 = vmul.f32 %v355, %v530
        %v555 = vmul.f32 %v356, %v530
        %v556 = vmul.f32 %v357, %v530
        %v557 = vmul.f32 %v358, %v530
        %v558 = vmul.f32 %v359, %v530
        %v559 = vmul.f32 %v360, %v530
        %v560 = vmul.f32 %v361, %v530
        %v561 = vmul.f32 %v362, %v530
        %v562 = vmul.f32 %v363, %v530
        %v563 = vmul.f32 %v364, %v530
        %v564 = vmul.f32 %v365, %v530
        %v565 = vmul.f32 %v366, %v530
        %v566 = vmul.f32 %v367, %v530
        %v567 = vmul.f32 %v368, %v530
        %v568 = vmul.f32 %v369, %v530
        %v569 = vmul.f32 %v370, %v530
        %v570 = vmul.f32 %v371, %v530
        %v571 = vmul.f32 %v372, %v530
        %v572 = vmul.f32 %v373, %v530
        %v573 = vmul.f32 %v374, %v530
        %v574 = vmul.f32 %v375, %v530
        %v575 = vmul.f32 %v376, %v530
        %v576 = vmul.f32 %v377, %v530
        %v577 = vmul.f32 %v378, %v530
        %v578 = vmul.f32 %v379, %v530
        %v579 = vmul.f32 %v380, %v530
        %v580 = vmul.f32 %v381, %v530
        %v581 = vmul.f32 %v382, %v530
        %v582 = vmul.f32 %v383, %v530
        %v583 = vmul.f32 %v384, %v530
        %v584 = vmul.f32 %v385, %v530
        %v585 = vmul.f32 %v386, %v530
        %v586 = vmul.f32 %v387, %v530
        %v587 = vmul.f32 %v388, %v530
        %v588 = vmul.f32 %v389, %v530
        %v589 = vmul.f32 %v390, %v530
        %v590 = vmul.f32 %v391, %v530
        %v591 = vmul.f32 %v392, %v530
        %v592 = vmul.f32 %v393, %v530
        %v593 = vmul.f32 %v394, %v530
        %v594 = vmul.f32 %v395, %v530
        %v595 = vmul.f32 %v396, %v530
        %v596 = vld [vmem:[%s2] sm:$0x1]
        %v598 = vlaneseq
        %v599 = vshrl.u32 %v598, 7
        %v600 = vsub.s32 0, %v599
        %v601 = vrot.slane %v596, %v600
        %v603 = vadd.f32 %v532, %v601
        %v604 = vadd.f32 %v533, %v601
        %v605 = vadd.f32 %v534, %v601
        %v606 = vadd.f32 %v535, %v601
        %v607 = vadd.f32 %v536, %v601
        %v608 = vadd.f32 %v537, %v601
        %v609 = vadd.f32 %v538, %v601
        %v610 = vadd.f32 %v539, %v601
        %v611 = vadd.f32 %v540, %v601
        %v612 = vadd.f32 %v541, %v601
        %v613 = vadd.f32 %v542, %v601
        %v614 = vadd.f32 %v543, %v601
        %v615 = vadd.f32 %v544, %v601
        %v616 = vadd.f32 %v545, %v601
        %v617 = vadd.f32 %v546, %v601
        %v618 = vadd.f32 %v547, %v601
        %v619 = vadd.f32 %v548, %v601
        %v620 = vadd.f32 %v549, %v601
        %v621 = vadd.f32 %v550, %v601
        %v622 = vadd.f32 %v551, %v601
        %v623 = vadd.f32 %v552, %v601
        %v624 = vadd.f32 %v553, %v601
        %v625 = vadd.f32 %v554, %v601
        %v626 = vadd.f32 %v555, %v601
        %v627 = vadd.f32 %v556, %v601
        %v628 = vadd.f32 %v557, %v601
        %v629 = vadd.f32 %v558, %v601
        %v630 = vadd.f32 %v559, %v601
        %v631 = vadd.f32 %v560, %v601
        %v632 = vadd.f32 %v561, %v601
        %v633 = vadd.f32 %v562, %v601
        %v634 = vadd.f32 %v563, %v601
        %v635 = vadd.f32 %v564, %v601
        %v636 = vadd.f32 %v565, %v601
        %v637 = vadd.f32 %v566, %v601
        %v638 = vadd.f32 %v567, %v601
        %v639 = vadd.f32 %v568, %v601
        %v640 = vadd.f32 %v569, %v601
        %v641 = vadd.f32 %v570, %v601
        %v642 = vadd.f32 %v571, %v601
        %v643 = vadd.f32 %v572, %v601
        %v644 = vadd.f32 %v573, %v601
        %v645 = vadd.f32 %v574, %v601
        %v646 = vadd.f32 %v575, %v601
        %v647 = vadd.f32 %v576, %v601
        %v648 = vadd.f32 %v577, %v601
        %v649 = vadd.f32 %v578, %v601
        %v650 = vadd.f32 %v579, %v601
        %v651 = vadd.f32 %v580, %v601
        %v652 = vadd.f32 %v581, %v601
        %v653 = vadd.f32 %v582, %v601
        %v654 = vadd.f32 %v583, %v601
        %v655 = vadd.f32 %v584, %v601
        %v656 = vadd.f32 %v585, %v601
        %v657 = vadd.f32 %v586, %v601
        %v658 = vadd.f32 %v587, %v601
        %v659 = vadd.f32 %v588, %v601
        %v660 = vadd.f32 %v589, %v601
        %v661 = vadd.f32 %v590, %v601
        %v662 = vadd.f32 %v591, %v601
        %v663 = vadd.f32 %v592, %v601
        %v664 = vadd.f32 %v593, %v601
        %v665 = vadd.f32 %v594, %v601
        %v666 = vadd.f32 %v595, %v601
        %v667 = vadd.f32 %v603, %v461
        %v668 = vadd.f32 %v604, %v462
        %v669 = vadd.f32 %v605, %v463
        %v670 = vadd.f32 %v606, %v464
        %v671 = vadd.f32 %v607, %v465
        %v672 = vadd.f32 %v608, %v466
        %v673 = vadd.f32 %v609, %v467
        %v674 = vadd.f32 %v610, %v468
        %v675 = vadd.f32 %v611, %v469
        %v676 = vadd.f32 %v612, %v470
        %v677 = vadd.f32 %v613, %v471
        %v678 = vadd.f32 %v614, %v472
        %v679 = vadd.f32 %v615, %v473
        %v680 = vadd.f32 %v616, %v474
        %v681 = vadd.f32 %v617, %v475
        %v682 = vadd.f32 %v618, %v476
        %v683 = vadd.f32 %v619, %v477
        %v684 = vadd.f32 %v620, %v478
        %v685 = vadd.f32 %v621, %v479
        %v686 = vadd.f32 %v622, %v480
        %v687 = vadd.f32 %v623, %v481
        %v688 = vadd.f32 %v624, %v482
        %v689 = vadd.f32 %v625, %v483
        %v690 = vadd.f32 %v626, %v484
        %v691 = vadd.f32 %v627, %v485
        %v692 = vadd.f32 %v628, %v486
        %v693 = vadd.f32 %v629, %v487
        %v694 = vadd.f32 %v630, %v488
        %v695 = vadd.f32 %v631, %v489
        %v696 = vadd.f32 %v632, %v490
        %v697 = vadd.f32 %v633, %v491
        %v698 = vadd.f32 %v634, %v492
        %v699 = vadd.f32 %v635, %v493
        %v700 = vadd.f32 %v636, %v494
        %v701 = vadd.f32 %v637, %v495
        %v702 = vadd.f32 %v638, %v496
        %v703 = vadd.f32 %v639, %v497
        %v704 = vadd.f32 %v640, %v498
        %v705 = vadd.f32 %v641, %v499
        %v706 = vadd.f32 %v642, %v500
        %v707 = vadd.f32 %v643, %v501
        %v708 = vadd.f32 %v644, %v502
        %v709 = vadd.f32 %v645, %v503
        %v710 = vadd.f32 %v646, %v504
        %v711 = vadd.f32 %v647, %v505
        %v712 = vadd.f32 %v648, %v506
        %v713 = vadd.f32 %v649, %v507
        %v714 = vadd.f32 %v650, %v508
        %v715 = vadd.f32 %v651, %v509
        %v716 = vadd.f32 %v652, %v510
        %v717 = vadd.f32 %v653, %v511
        %v718 = vadd.f32 %v654, %v512
        %v719 = vadd.f32 %v655, %v513
        %v720 = vadd.f32 %v656, %v514
        %v721 = vadd.f32 %v657, %v515
        %v722 = vadd.f32 %v658, %v516
        %v723 = vadd.f32 %v659, %v517
        %v724 = vadd.f32 %v660, %v518
        %v725 = vadd.f32 %v661, %v519
        %v726 = vadd.f32 %v662, %v520
        %v727 = vadd.f32 %v663, %v521
        %v728 = vadd.f32 %v664, %v522
        %v729 = vadd.f32 %v665, %v523
        %v730 = vadd.f32 %v666, %v524
        %v731 = vmax.f32 %v667, 0.0
        %v732 = vmax.f32 %v668, 0.0
        %v733 = vmax.f32 %v669, 0.0
        %v734 = vmax.f32 %v670, 0.0
        %v735 = vmax.f32 %v671, 0.0
        %v736 = vmax.f32 %v672, 0.0
        %v737 = vmax.f32 %v673, 0.0
        %v738 = vmax.f32 %v674, 0.0
        %v739 = vmax.f32 %v675, 0.0
        %v740 = vmax.f32 %v676, 0.0
        %v741 = vmax.f32 %v677, 0.0
        %v742 = vmax.f32 %v678, 0.0
        %v743 = vmax.f32 %v679, 0.0
        %v744 = vmax.f32 %v680, 0.0
        %v745 = vmax.f32 %v681, 0.0
        %v746 = vmax.f32 %v682, 0.0
        %v747 = vmax.f32 %v683, 0.0
        %v748 = vmax.f32 %v684, 0.0
        %v749 = vmax.f32 %v685, 0.0
        %v750 = vmax.f32 %v686, 0.0
        %v751 = vmax.f32 %v687, 0.0
        %v752 = vmax.f32 %v688, 0.0
        %v753 = vmax.f32 %v689, 0.0
        %v754 = vmax.f32 %v690, 0.0
        %v755 = vmax.f32 %v691, 0.0
        %v756 = vmax.f32 %v692, 0.0
        %v757 = vmax.f32 %v693, 0.0
        %v758 = vmax.f32 %v694, 0.0
        %v759 = vmax.f32 %v695, 0.0
        %v760 = vmax.f32 %v696, 0.0
        %v761 = vmax.f32 %v697, 0.0
        %v762 = vmax.f32 %v698, 0.0
        %v763 = vmax.f32 %v699, 0.0
        %v764 = vmax.f32 %v700, 0.0
        %v765 = vmax.f32 %v701, 0.0
        %v766 = vmax.f32 %v702, 0.0
        %v767 = vmax.f32 %v703, 0.0
        %v768 = vmax.f32 %v704, 0.0
        %v769 = vmax.f32 %v705, 0.0
        %v770 = vmax.f32 %v706, 0.0
        %v771 = vmax.f32 %v707, 0.0
        %v772 = vmax.f32 %v708, 0.0
        %v773 = vmax.f32 %v709, 0.0
        %v774 = vmax.f32 %v710, 0.0
        %v775 = vmax.f32 %v711, 0.0
        %v776 = vmax.f32 %v712, 0.0
        %v777 = vmax.f32 %v713, 0.0
        %v778 = vmax.f32 %v714, 0.0
        %v779 = vmax.f32 %v715, 0.0
        %v780 = vmax.f32 %v716, 0.0
        %v781 = vmax.f32 %v717, 0.0
        %v782 = vmax.f32 %v718, 0.0
        %v783 = vmax.f32 %v719, 0.0
        %v784 = vmax.f32 %v720, 0.0
        %v785 = vmax.f32 %v721, 0.0
        %v786 = vmax.f32 %v722, 0.0
        %v787 = vmax.f32 %v723, 0.0
        %v788 = vmax.f32 %v724, 0.0
        %v789 = vmax.f32 %v725, 0.0
        %v790 = vmax.f32 %v726, 0.0
        %v791 = vmax.f32 %v727, 0.0
        %v792 = vmax.f32 %v728, 0.0
        %v793 = vmax.f32 %v729, 0.0
        %v794 = vmax.f32 %v730, 0.0
        %vm795 = vcmask 523264
        %796 = vst.msk [vmem:[%s245] sm:$0xff] %vm795, %v731
        %797 = vst.msk [vmem:[%s245 + $0x8] sm:$0xff] %vm795, %v732
        %798 = vst.msk [vmem:[%s245 + $0x10] sm:$0xff] %vm795, %v733
        %799 = vst.msk [vmem:[%s245 + $0x18] sm:$0xff] %vm795, %v734
        %800 = vst.msk [vmem:[%s245 + $0x20] sm:$0xff] %vm795, %v735
        %801 = vst.msk [vmem:[%s245 + $0x28] sm:$0xff] %vm795, %v736
        %802 = vst.msk [vmem:[%s245 + $0x30] sm:$0xff] %vm795, %v737
        %803 = vst.msk [vmem:[%s245 + $0x38] sm:$0xff] %vm795, %v738
        %804 = vst.msk [vmem:[%s245 + $0x40] sm:$0xff] %vm795, %v739
        %805 = vst.msk [vmem:[%s245 + $0x48] sm:$0xff] %vm795, %v740
        %806 = vst.msk [vmem:[%s245 + $0x50] sm:$0xff] %vm795, %v741
        %807 = vst.msk [vmem:[%s245 + $0x58] sm:$0xff] %vm795, %v742
        %808 = vst.msk [vmem:[%s245 + $0x60] sm:$0xff] %vm795, %v743
        %809 = vst.msk [vmem:[%s245 + $0x68] sm:$0xff] %vm795, %v744
        %810 = vst.msk [vmem:[%s245 + $0x70] sm:$0xff] %vm795, %v745
        %811 = vst.msk [vmem:[%s245 + $0x78] sm:$0xff] %vm795, %v746
        %812 = vst.msk [vmem:[%s245 + $0x80] sm:$0xff] %vm795, %v747
        %813 = vst.msk [vmem:[%s245 + $0x88] sm:$0xff] %vm795, %v748
        %814 = vst.msk [vmem:[%s245 + $0x90] sm:$0xff] %vm795, %v749
        %815 = vst.msk [vmem:[%s245 + $0x98] sm:$0xff] %vm795, %v750
        %816 = vst.msk [vmem:[%s245 + $0xa0] sm:$0xff] %vm795, %v751
        %817 = vst.msk [vmem:[%s245 + $0xa8] sm:$0xff] %vm795, %v752
        %818 = vst.msk [vmem:[%s245 + $0xb0] sm:$0xff] %vm795, %v753
        %819 = vst.msk [vmem:[%s245 + $0xb8] sm:$0xff] %vm795, %v754
        %820 = vst.msk [vmem:[%s245 + $0xc0] sm:$0xff] %vm795, %v755
        %821 = vst.msk [vmem:[%s245 + $0xc8] sm:$0xff] %vm795, %v756
        %822 = vst.msk [vmem:[%s245 + $0xd0] sm:$0xff] %vm795, %v757
        %823 = vst.msk [vmem:[%s245 + $0xd8] sm:$0xff] %vm795, %v758
        %824 = vst.msk [vmem:[%s245 + $0xe0] sm:$0xff] %vm795, %v759
        %825 = vst.msk [vmem:[%s245 + $0xe8] sm:$0xff] %vm795, %v760
        %826 = vst.msk [vmem:[%s245 + $0xf0] sm:$0xff] %vm795, %v761
        %827 = vst.msk [vmem:[%s245 + $0xf8] sm:$0xff] %vm795, %v762
        %828 = vst.msk [vmem:[%s245 + $0x100] sm:$0xff] %vm795, %v763
        %829 = vst.msk [vmem:[%s245 + $0x108] sm:$0xff] %vm795, %v764
        %830 = vst.msk [vmem:[%s245 + $0x110] sm:$0xff] %vm795, %v765
        %831 = vst.msk [vmem:[%s245 + $0x118] sm:$0xff] %vm795, %v766
        %832 = vst.msk [vmem:[%s245 + $0x120] sm:$0xff] %vm795, %v767
        %833 = vst.msk [vmem:[%s245 + $0x128] sm:$0xff] %vm795, %v768
        %834 = vst.msk [vmem:[%s245 + $0x130] sm:$0xff] %vm795, %v769
        %835 = vst.msk [vmem:[%s245 + $0x138] sm:$0xff] %vm795, %v770
        %836 = vst.msk [vmem:[%s245 + $0x140] sm:$0xff] %vm795, %v771
        %837 = vst.msk [vmem:[%s245 + $0x148] sm:$0xff] %vm795, %v772
        %838 = vst.msk [vmem:[%s245 + $0x150] sm:$0xff] %vm795, %v773
        %839 = vst.msk [vmem:[%s245 + $0x158] sm:$0xff] %vm795, %v774
        %840 = vst.msk [vmem:[%s245 + $0x160] sm:$0xff] %vm795, %v775
        %841 = vst.msk [vmem:[%s245 + $0x168] sm:$0xff] %vm795, %v776
        %842 = vst.msk [vmem:[%s245 + $0x170] sm:$0xff] %vm795, %v777
        %843 = vst.msk [vmem:[%s245 + $0x178] sm:$0xff] %vm795, %v778
        %844 = vst.msk [vmem:[%s245 + $0x180] sm:$0xff] %vm795, %v779
        %845 = vst.msk [vmem:[%s245 + $0x188] sm:$0xff] %vm795, %v780
        %846 = vst.msk [vmem:[%s245 + $0x190] sm:$0xff] %vm795, %v781
        %847 = vst.msk [vmem:[%s245 + $0x198] sm:$0xff] %vm795, %v782
        %848 = vst.msk [vmem:[%s245 + $0x1a0] sm:$0xff] %vm795, %v783
        %849 = vst.msk [vmem:[%s245 + $0x1a8] sm:$0xff] %vm795, %v784
        %850 = vst.msk [vmem:[%s245 + $0x1b0] sm:$0xff] %vm795, %v785
        %851 = vst.msk [vmem:[%s245 + $0x1b8] sm:$0xff] %vm795, %v786
        %852 = vst.msk [vmem:[%s245 + $0x1c0] sm:$0xff] %vm795, %v787
        %853 = vst.msk [vmem:[%s245 + $0x1c8] sm:$0xff] %vm795, %v788
        %854 = vst.msk [vmem:[%s245 + $0x1d0] sm:$0xff] %vm795, %v789
        %855 = vst.msk [vmem:[%s245 + $0x1d8] sm:$0xff] %vm795, %v790
        %856 = vst.msk [vmem:[%s245 + $0x1e0] sm:$0xff] %vm795, %v791
        %857 = vst.msk [vmem:[%s245 + $0x1e8] sm:$0xff] %vm795, %v792
        %858 = vst.msk [vmem:[%s245 + $0x1f0] sm:$0xff] %vm795, %v793
        %859 = vst.msk [vmem:[%s245 + $0x1f8] sm:$0xff] %vm795, %v794
        %s860 = sand.u32 %s138, 1
        %s861 = scalar_lea.sflag [#allocation3], %s860
        %s862 = sand.u32 %s138, 1
        %s863 = smul.addr %s862, 512
        %s864 = scalar_lea.vmem [#allocation2], %s863
        // Predicated region
        $region37: #{_lambda_.5} parent=35 // pred_check
          %p865 = pneg %p148
        $region38: #{_lambda_.5} parent=35 // pred_check_branch
          %867 = sbr.rel (%p865) target = $region40
        $region39: #{_lambda_.5} parent=35 // pred_region
          %s868 = smul.u32 2, %s23
          %s870 = ssub.s32 8192, 8192
          %871 = vsyncadd %s861, %s870
          %s872 = smul.addr %s868, 32
          %s873 = smul.addr %s22, 256
          %s874 = sadd.s32 %s872, %s873
          %s875 = smul.addr %s874, 128
          %s876 = scalar_lea.hbm %s4, %s875
          %s877 = sshll.u32 %s864, 4
          %s878 = int_to_ptr.vmem [resolvable:$true] %s877
          %883 = dma.vmem_to_hbm [thread:$0]  %s878, 8192, %s876, %s861, 128, 128, 8
        $region40: #{_lambda_.5} parent=35 // pred_fallthru
          _
      $region36: #{_lambda_.5} parent=5 // pred_fallthru
        _
      %p884 = scmp.le.s32.totalorder 2, %s13
      // Predicated region
      $region41: #{_lambda_.5} parent=5 // pred_check
        %p885 = pneg %p884
      $region42: #{_lambda_.5} parent=5 // pred_check_branch
        %887 = sbr.rel (%p885) target = $region44
      $region43: #{_lambda_.5} parent=5 // pred_region
        %s888 = ssub.s32 %s13, 2
        // Predicated region
        $region45: #{_lambda_.5} parent=43 // pred_check
          %p889 = pneg %p154
        $region46: #{_lambda_.5} parent=43 // pred_check_branch
          %891 = sbr.rel (%p889) target = $region48
        $region47: #{_lambda_.5} parent=43 // pred_region
          %s892 = sand.u32 %s139, 1
          %s893 = scalar_lea.sflag [#allocation3], %s892
          %s894 = sand.u32 %s139, 1
          %s895 = smul.addr %s894, 512
          %s896 = scalar_lea.vmem [#allocation2], %s895
          %897 = dma.done %s893, 8192
        $region48: #{_lambda_.5} parent=43 // pred_fallthru
          _
      $region44: #{_lambda_.5} parent=5 // pred_fallthru
        _
    $region6: #{_lambda_.5} parent=1 // loop_footer
      %s17 = sadd.s32 1, %s13
    $region7: #{_lambda_.5} parent=1 // loop_footer_branch
      %12 = sbr.rel target = $region3
    $region8: #{_lambda_.5} parent=1 // loop_exit
      _
    %898 = vsyncpa [#allocation3], 1
    %s899 = scalar_lea.sflag [#allocation3], 1
    %900 = vsyncpa %s899, 1

// kernel: _lambda_.3
$region0: #{_lambda_.3}
  #allocation0 [shape = 'u32[]', space=smem, size = 0x4, offset = 0x4, fixed_abs, tag = 'smem constant byte address 0x4 - core index']
  #allocation1 [shape = 'u32[144,128]{1,0:T(1,128)}', space=vmem, size = 0x12000, scoped, tag = 'internal scratch']
  %s0 = inlined_call_operand.vmem [shape: bf16[2,10,18,16,192], index: 0, kind: input, shape index: {}, may-alias: {0,1,2,3}]
  %s1 = inlined_call_operand.vmem [shape: bf16[2,10,18,16,192], index: 1, kind: input, shape index: {}, may-alias: {0,1,2,3}]
  %s2 = inlined_call_operand.vmem [shape: bf16[2,10,18,16,192], index: 2, kind: input, shape index: {}, may-alias: {0,1,2,3}]
  %s3 = inlined_call_operand.vmem [shape: bf16[2,10,18,16,192], index: 3, kind: input, shape index: {}, may-alias: {0,1,2,3}]
  %s4 = inlined_call_operand.vmem [shape: bf16[9,192,64], index: 4, kind: input, shape index: {}]
  %s5 = inlined_call_operand.vmem [shape: bf16[2,8,16,16,64], index: 5, kind: output, shape index: {0}]
  %s6 = inlined_call_operand.vmem [shape: f32[2,4,1,64], index: 6, kind: output, shape index: {1}]
  %s7 = inlined_call_operand.vmem [shape: f32[2,4,1,64], index: 7, kind: output, shape index: {2}]
  %8 = xla_tuple %s5, %s6, %s7
  %s9 = sld [smem:[#allocation0]]
  $region69: #{_lambda_.3} parent=0
    _
  %s11 = ssub.s32 1, %s9
  %s12 = scalar_select 0, %s11, %s9
  loop: start=0, step=1, limit=10
  $region2: #{_lambda_.3} parent=0 // loop_pre_header
    _
  $region3: #{_lambda_.3} parent=0 // loop_header
    %s14 = sphi 0, %s18
    %p15 = scmp.ge.s32.totalorder %s14, 10
    %s21 = sphi 0, %s33
    %s22 = sphi 0, %s29
    %s23 = sphi 0, %s21
    %s24 = sphi 0, %s22
    %s25 = sphi 0, %s23
    %s26 = sphi 0, %s24
    %s40 = sphi 0, %s42
    %s43 = sphi 0, %s40
    %s44 = sphi 0, %s43
    %s60 = sphi 0, %s44
    %s72 = sphi 0, %s74
    %s75 = sphi 0, %s72
    %s76 = sphi 0, %s75
    %s92 = sphi 0, %s76
    %s104 = sphi 0, %s106
    %s107 = sphi 0, %s104
    %s108 = sphi 0, %s107
    %s124 = sphi 0, %s108
    %s136 = sphi 0, %s138
    %s139 = sphi 0, %s136
    %s140 = sphi 0, %s139
    %s156 = sphi 0, %s140
    %s160 = sphi 0, %s160
    %s162 = sphi 0, %s160
    %s163 = sphi 0, %s162
    %s177 = sphi 0, %s163
    %s185 = sphi 0, %s187
    %s188 = sphi 0, %s185
    %s189 = sphi 0, %s188
    %s205 = sphi 0, %s189
    %s213 = sphi 0, %s215
    %s216 = sphi 0, %s213
    %s217 = sphi 0, %s216
    %s233 = sphi 0, %s217
    %s241 = sphi 0, %s243
    %s244 = sphi 0, %s241
    %s245 = sphi 0, %s244
    %s261 = sphi 0, %s245
  $region4: #{_lambda_.3} parent=0 // loop_header_branch
    %17 = sbr.rel (%p15) target = $region8
  $region5: #{_lambda_.3} parent=0 // loop_body
    %s19 = ssub.s32 %s14, 1
    %s20 = ssub.s32 %s14, 2
    %s27 = sadd.s32 1, %s22
    %p28 = scmp.ge.s32.totalorder %s27, 4
    %s29 = scalar_select %p28, 0, %s27
    %s30 = sadd.s32 1, %s21
    %s31 = scalar_select %p28, %s30, %s21
    %p32 = scmp.ge.s32.totalorder %s31, 2
    %s33 = scalar_select %p32, 0, %s31
    %s34 = smul.u32 %s22, 2
    %s35 = smul.u32 %s29, 2
    %s36 = ssub.s32 %s21, %s33
    %s37 = ssub.s32 %s34, %s35
    %s38 = sor.u32 %s36, %s37
    %p39 = scmp.eq.s32.totalorder %s38, 0
    %s41 = sadd.s32 %s40, 1
    %s42 = scalar_select %p39, %s40, %s41
    %p45 = pneg %p39
    %p46 = scmp.eq.s32.totalorder %s14, 7
    %p47 = por %p45, %p46
    %p48 = scmp.ne.s32.totalorder %s40, %s43
    %p49 = scmp.eq.s32.totalorder %s14, 0
    %p50 = por %p48, %p49
    %p51 = scmp.ne.s32.totalorder %s40, %s43
    %p52 = scmp.eq.s32.totalorder %s19, 7
    %p53 = por %p51, %p52
    %p54 = scmp.ne.s32.totalorder %s43, %s44
    %p55 = scmp.eq.s32.totalorder %s19, 0
    %p56 = por %p54, %p55
    %p57 = scmp.ne.s32.totalorder %s43, %s44
    %p58 = scmp.eq.s32.totalorder %s20, 7
    %p59 = por %p57, %p58
    %p61 = scmp.ne.s32.totalorder %s44, %s60
    %p62 = scmp.eq.s32.totalorder %s20, 0
    %p63 = por %p61, %p62
    %s64 = smul.u32 %s22, 2
    %s65 = sadd.s32 %s64, 1
    %s66 = smul.u32 %s29, 2
    %s67 = sadd.s32 %s66, 1
    %s68 = ssub.s32 %s21, %s33
    %s69 = ssub.s32 %s65, %s67
    %s70 = sor.u32 %s68, %s69
    %p71 = scmp.eq.s32.totalorder %s70, 0
    %s73 = sadd.s32 %s72, 1
    %s74 = scalar_select %p71, %s72, %s73
    %p77 = pneg %p71
    %p78 = scmp.eq.s32.totalorder %s14, 7
    %p79 = por %p77, %p78
    %p80 = scmp.ne.s32.totalorder %s72, %s75
    %p81 = scmp.eq.s32.totalorder %s14, 0
    %p82 = por %p80, %p81
    %p83 = scmp.ne.s32.totalorder %s72, %s75
    %p84 = scmp.eq.s32.totalorder %s19, 7
    %p85 = por %p83, %p84
    %p86 = scmp.ne.s32.totalorder %s75, %s76
    %p87 = scmp.eq.s32.totalorder %s19, 0
    %p88 = por %p86, %p87
    %p89 = scmp.ne.s32.totalorder %s75, %s76
    %p90 = scmp.eq.s32.totalorder %s20, 7
    %p91 = por %p89, %p90
    %p93 = scmp.ne.s32.totalorder %s76, %s92
    %p94 = scmp.eq.s32.totalorder %s20, 0
    %p95 = por %p93, %p94
    %s96 = smul.u32 %s22, 2
    %s97 = sadd.s32 %s96, 2
    %s98 = smul.u32 %s29, 2
    %s99 = sadd.s32 %s98, 2
    %s100 = ssub.s32 %s21, %s33
    %s101 = ssub.s32 %s97, %s99
    %s102 = sor.u32 %s100, %s101
    %p103 = scmp.eq.s32.totalorder %s102, 0
    %s105 = sadd.s32 %s104, 1
    %s106 = scalar_select %p103, %s104, %s105
    %p109 = pneg %p103
    %p110 = scmp.eq.s32.totalorder %s14, 7
    %p111 = por %p109, %p110
    %p112 = scmp.ne.s32.totalorder %s104, %s107
    %p113 = scmp.eq.s32.totalorder %s14, 0
    %p114 = por %p112, %p113
    %p115 = scmp.ne.s32.totalorder %s104, %s107
    %p116 = scmp.eq.s32.totalorder %s19, 7
    %p117 = por %p115, %p116
    %p118 = scmp.ne.s32.totalorder %s107, %s108
    %p119 = scmp.eq.s32.totalorder %s19, 0
    %p120 = por %p118, %p119
    %p121 = scmp.ne.s32.totalorder %s107, %s108
    %p122 = scmp.eq.s32.totalorder %s20, 7
    %p123 = por %p121, %p122
    %p125 = scmp.ne.s32.totalorder %s108, %s124
    %p126 = scmp.eq.s32.totalorder %s20, 0
    %p127 = por %p125, %p126
    %s128 = smul.u32 %s22, 2
    %s129 = sadd.s32 %s128, 3
    %s130 = smul.u32 %s29, 2
    %s131 = sadd.s32 %s130, 3
    %s132 = ssub.s32 %s21, %s33
    %s133 = ssub.s32 %s129, %s131
    %s134 = sor.u32 %s132, %s133
    %p135 = scmp.eq.s32.totalorder %s134, 0
    %s137 = sadd.s32 %s136, 1
    %s138 = scalar_select %p135, %s136, %s137
    %p141 = pneg %p135
    %p142 = scmp.eq.s32.totalorder %s14, 7
    %p143 = por %p141, %p142
    %p144 = scmp.ne.s32.totalorder %s136, %s139
    %p145 = scmp.eq.s32.totalorder %s14, 0
    %p146 = por %p144, %p145
    %p147 = scmp.ne.s32.totalorder %s136, %s139
    %p148 = scmp.eq.s32.totalorder %s19, 7
    %p149 = por %p147, %p148
    %p150 = scmp.ne.s32.totalorder %s139, %s140
    %p151 = scmp.eq.s32.totalorder %s19, 0
    %p152 = por %p150, %p151
    %p153 = scmp.ne.s32.totalorder %s139, %s140
    %p154 = scmp.eq.s32.totalorder %s20, 7
    %p155 = por %p153, %p154
    %p157 = scmp.ne.s32.totalorder %s140, %s156
    %p158 = scmp.eq.s32.totalorder %s20, 0
    %p159 = por %p157, %p158
    %s161 = sadd.s32 %s160, 1
    %p164 = scmp.eq.s32.totalorder %s14, 7
    %p165 = scmp.ne.s32.totalorder %s160, %s162
    %p166 = scmp.eq.s32.totalorder %s14, 0
    %p167 = por %p165, %p166
    %p168 = scmp.ne.s32.totalorder %s160, %s162
    %p169 = scmp.eq.s32.totalorder %s19, 7
    %p170 = por %p168, %p169
    %p171 = scmp.ne.s32.totalorder %s162, %s163
    %p172 = scmp.eq.s32.totalorder %s19, 0
    %p173 = por %p171, %p172
    %p174 = scmp.ne.s32.totalorder %s162, %s163
    %p175 = scmp.eq.s32.totalorder %s20, 7
    %p176 = por %p174, %p175
    %p178 = scmp.ne.s32.totalorder %s163, %s177
    %p179 = scmp.eq.s32.totalorder %s20, 0
    %p180 = por %p178, %p179
    %s181 = ssub.s32 %s21, %s33
    %s182 = ssub.s32 %s22, %s29
    %s183 = sor.u32 %s181, %s182
    %p184 = scmp.eq.s32.totalorder %s183, 0
    %s186 = sadd.s32 %s185, 1
    %s187 = scalar_select %p184, %s185, %s186
    %p190 = pneg %p184
    %p191 = scmp.eq.s32.totalorder %s14, 7
    %p192 = por %p190, %p191
    %p193 = scmp.ne.s32.totalorder %s185, %s188
    %p194 = scmp.eq.s32.totalorder %s14, 0
    %p195 = por %p193, %p194
    %p196 = scmp.ne.s32.totalorder %s185, %s188
    %p197 = scmp.eq.s32.totalorder %s19, 7
    %p198 = por %p196, %p197
    %p199 = scmp.ne.s32.totalorder %s188, %s189
    %p200 = scmp.eq.s32.totalorder %s19, 0
    %p201 = por %p199, %p200
    %p202 = scmp.ne.s32.totalorder %s188, %s189
    %p203 = scmp.eq.s32.totalorder %s20, 7
    %p204 = por %p202, %p203
    %p206 = scmp.ne.s32.totalorder %s189, %s205
    %p207 = scmp.eq.s32.totalorder %s20, 0
    %p208 = por %p206, %p207
    %s209 = ssub.s32 %s21, %s33
    %s210 = ssub.s32 %s22, %s29
    %s211 = sor.u32 %s209, %s210
    %p212 = scmp.eq.s32.totalorder %s211, 0
    %s214 = sadd.s32 %s213, 1
    %s215 = scalar_select %p212, %s213, %s214
    %p218 = pneg %p212
    %p219 = scmp.eq.s32.totalorder %s14, 7
    %p220 = por %p218, %p219
    %p221 = scmp.ne.s32.totalorder %s213, %s216
    %p222 = scmp.eq.s32.totalorder %s14, 0
    %p223 = por %p221, %p222
    %p224 = scmp.ne.s32.totalorder %s213, %s216
    %p225 = scmp.eq.s32.totalorder %s19, 7
    %p226 = por %p224, %p225
    %p227 = scmp.ne.s32.totalorder %s216, %s217
    %p228 = scmp.eq.s32.totalorder %s19, 0
    %p229 = por %p227, %p228
    %p230 = scmp.ne.s32.totalorder %s216, %s217
    %p231 = scmp.eq.s32.totalorder %s20, 7
    %p232 = por %p230, %p231
    %p234 = scmp.ne.s32.totalorder %s217, %s233
    %p235 = scmp.eq.s32.totalorder %s20, 0
    %p236 = por %p234, %p235
    %s237 = ssub.s32 %s21, %s33
    %s238 = ssub.s32 %s22, %s29
    %s239 = sor.u32 %s237, %s238
    %p240 = scmp.eq.s32.totalorder %s239, 0
    %s242 = sadd.s32 %s241, 1
    %s243 = scalar_select %p240, %s241, %s242
    %p246 = pneg %p240
    %p247 = scmp.eq.s32.totalorder %s14, 7
    %p248 = por %p246, %p247
    %p249 = scmp.ne.s32.totalorder %s241, %s244
    %p250 = scmp.eq.s32.totalorder %s14, 0
    %p251 = por %p249, %p250
    %p252 = scmp.ne.s32.totalorder %s241, %s244
    %p253 = scmp.eq.s32.totalorder %s19, 7
    %p254 = por %p252, %p253
    %p255 = scmp.ne.s32.totalorder %s244, %s245
    %p256 = scmp.eq.s32.totalorder %s19, 0
    %p257 = por %p255, %p256
    %p258 = scmp.ne.s32.totalorder %s244, %s245
    %p259 = scmp.eq.s32.totalorder %s20, 7
    %p260 = por %p258, %p259
    %p262 = scmp.ne.s32.totalorder %s245, %s261
    %p263 = scmp.eq.s32.totalorder %s20, 0
    %p264 = por %p262, %p263
    %p265 = scmp.le.s32.totalorder 1, %s14
    %p266 = scmp.lt.s32.totalorder %s14, 9
    %p267 = pnand %p265, %p266
    %p268 = pneg %p267
    // Predicated region
    $region9: #{_lambda_.3} parent=5 // pred_check
      _
    $region10: #{_lambda_.3} parent=5 // pred_check_branch
      %270 = sbr.rel (%p267) target = $region12
    $region11: #{_lambda_.3} parent=5 // pred_region
      %s271 = ssub.s32 %s14, 1
      // Predicated region
      $region13: #{_lambda_.3} parent=11 // pred_check
        %p272 = pneg %p173
      $region14: #{_lambda_.3} parent=11 // pred_check_branch
        %274 = sbr.rel (%p272) target = $region16
      $region15: #{_lambda_.3} parent=11 // pred_region
        _
      $region16: #{_lambda_.3} parent=11 // pred_fallthru
        _
    $region12: #{_lambda_.3} parent=5 // pred_fallthru
      _
    %p275 = scmp.lt.s32.totalorder %s14, 8
    // Predicated region
    $region17: #{_lambda_.3} parent=5 // pred_check
      %p276 = pneg %p275
    $region18: #{_lambda_.3} parent=5 // pred_check_branch
      %278 = sbr.rel (%p276) target = $region20
    $region19: #{_lambda_.3} parent=5 // pred_region
      // Predicated region
      $region21: #{_lambda_.3} parent=19 // pred_check
        %p279 = pneg %p50
      $region22: #{_lambda_.3} parent=19 // pred_check_branch
        %281 = sbr.rel (%p279) target = $region24
      $region23: #{_lambda_.3} parent=19 // pred_region
        %s282 = smul.u32 %s22, 2
        %p283 = scmp.lt.s32.totalorder %s21, 1
        %s284 = scalar_select %p283, %s21, 1
        %p285 = scmp.lt.s32.totalorder %s282, 9
        %s286 = scalar_select %p285, %s282, 9
        %s287 = smul.addr %s286, 72
        %s288 = smul.addr %s284, 720
        %s289 = sadd.s32 %s287, %s288
        %s290 = smul.addr %s289, 4
        %s291 = scalar_lea.vmem %s0, %s290
        %s292 = smul.u32 %s22, 2
      $region24: #{_lambda_.3} parent=19 // pred_fallthru
        _
      // Predicated region
      $region25: #{_lambda_.3} parent=19 // pred_check
        %p293 = pneg %p82
      $region26: #{_lambda_.3} parent=19 // pred_check_branch
        %295 = sbr.rel (%p293) target = $region28
      $region27: #{_lambda_.3} parent=19 // pred_region
        %s296 = smul.u32 %s22, 2
        %s297 = sadd.s32 %s296, 1
        %p298 = scmp.lt.s32.totalorder %s21, 1
        %s299 = scalar_select %p298, %s21, 1
        %p300 = scmp.lt.s32.totalorder %s297, 9
        %s301 = scalar_select %p300, %s297, 9
        %s302 = smul.addr %s301, 72
        %s303 = smul.addr %s299, 720
        %s304 = sadd.s32 %s302, %s303
        %s305 = smul.addr %s304, 4
        %s306 = scalar_lea.vmem %s1, %s305
        %s307 = smul.u32 %s22, 2
        %s308 = sadd.s32 %s307, 1
      $region28: #{_lambda_.3} parent=19 // pred_fallthru
        _
      // Predicated region
      $region29: #{_lambda_.3} parent=19 // pred_check
        %p309 = pneg %p114
      $region30: #{_lambda_.3} parent=19 // pred_check_branch
        %311 = sbr.rel (%p309) target = $region32
      $region31: #{_lambda_.3} parent=19 // pred_region
        %s312 = smul.u32 %s22, 2
        %s313 = sadd.s32 %s312, 2
        %p314 = scmp.lt.s32.totalorder %s21, 1
        %s315 = scalar_select %p314, %s21, 1
        %p316 = scmp.lt.s32.totalorder %s313, 9
        %s317 = scalar_select %p316, %s313, 9
        %s318 = smul.addr %s317, 72
        %s319 = smul.addr %s315, 720
        %s320 = sadd.s32 %s318, %s319
        %s321 = smul.addr %s320, 4
        %s322 = scalar_lea.vmem %s2, %s321
        %s323 = smul.u32 %s22, 2
        %s324 = sadd.s32 %s323, 2
      $region32: #{_lambda_.3} parent=19 // pred_fallthru
        _
      // Predicated region
      $region33: #{_lambda_.3} parent=19 // pred_check
        %p325 = pneg %p146
      $region34: #{_lambda_.3} parent=19 // pred_check_branch
        %327 = sbr.rel (%p325) target = $region36
      $region35: #{_lambda_.3} parent=19 // pred_region
        %s328 = smul.u32 %s22, 2
        %s329 = sadd.s32 %s328, 3
        %p330 = scmp.lt.s32.totalorder %s21, 1
        %s331 = scalar_select %p330, %s21, 1
        %p332 = scmp.lt.s32.totalorder %s329, 9
        %s333 = scalar_select %p332, %s329, 9
        %s334 = smul.addr %s333, 72
        %s335 = smul.addr %s331, 720
        %s336 = sadd.s32 %s334, %s335
        %s337 = smul.addr %s336, 4
        %s338 = scalar_lea.vmem %s3, %s337
        %s339 = smul.u32 %s22, 2
        %s340 = sadd.s32 %s339, 3
      $region36: #{_lambda_.3} parent=19 // pred_fallthru
        _
    $region20: #{_lambda_.3} parent=5 // pred_fallthru
      _
    %p341 = scmp.le.s32.totalorder 1, %s14
    %p342 = scmp.lt.s32.totalorder %s14, 9
    %p343 = pnand %p341, %p342
    %p344 = pneg %p343
    // Predicated region
    $region37: #{_lambda_.3} parent=5 // pred_check
      _
    $region38: #{_lambda_.3} parent=5 // pred_check_branch
      %346 = sbr.rel (%p343) target = $region40
    $region39: #{_lambda_.3} parent=5 // pred_region
      %s347 = ssub.s32 %s14, 1
      %s348 = smul.u32 %s24, 2
      %p349 = scmp.lt.s32.totalorder %s23, 1
      %s350 = scalar_select %p349, %s23, 1
      %p351 = scmp.lt.s32.totalorder %s348, 9
      %s352 = scalar_select %p351, %s348, 9
      %s353 = smul.addr %s352, 72
      %s354 = smul.addr %s350, 720
      %s355 = sadd.s32 %s353, %s354
      %s356 = smul.addr %s355, 4
      %s357 = scalar_lea.vmem %s0, %s356
      %p358 = pneg %p56
      %p359 = pneg %p53
      %s360 = smul.u32 %s24, 2
      %s361 = sadd.s32 %s360, 1
      %p362 = scmp.lt.s32.totalorder %s23, 1
      %s363 = scalar_select %p362, %s23, 1
      %p364 = scmp.lt.s32.totalorder %s361, 9
      %s365 = scalar_select %p364, %s361, 9
      %s366 = smul.addr %s365, 72
      %s367 = smul.addr %s363, 720
      %s368 = sadd.s32 %s366, %s367
      %s369 = smul.addr %s368, 4
      %s370 = scalar_lea.vmem %s1, %s369
      %p371 = pneg %p88
      %p372 = pneg %p85
      %s373 = smul.u32 %s24, 2
      %s374 = sadd.s32 %s373, 2
      %p375 = scmp.lt.s32.totalorder %s23, 1
      %s376 = scalar_select %p375, %s23, 1
      %p377 = scmp.lt.s32.totalorder %s374, 9
      %s378 = scalar_select %p377, %s374, 9
      %s379 = smul.addr %s378, 72
      %s380 = smul.addr %s376, 720
      %s381 = sadd.s32 %s379, %s380
      %s382 = smul.addr %s381, 4
      %s383 = scalar_lea.vmem %s2, %s382
      %p384 = pneg %p120
      %p385 = pneg %p117
      %s386 = smul.u32 %s24, 2
      %s387 = sadd.s32 %s386, 3
      %p388 = scmp.lt.s32.totalorder %s23, 1
      %s389 = scalar_select %p388, %s23, 1
      %p390 = scmp.lt.s32.totalorder %s387, 9
      %s391 = scalar_select %p390, %s387, 9
      %s392 = smul.addr %s391, 72
      %s393 = smul.addr %s389, 720
      %s394 = sadd.s32 %s392, %s393
      %s395 = smul.addr %s394, 4
      %s396 = scalar_lea.vmem %s3, %s395
      %p397 = pneg %p152
      %p398 = pneg %p149
      %p399 = pneg %p173
      %p400 = pneg %p170
      %p401 = pneg %p201
      %p402 = pneg %p198
      %s403 = smul.u32 2, %s24
      %p404 = scmp.lt.s32.totalorder %s23, 1
      %s405 = scalar_select %p404, %s23, 1
      %p406 = scmp.lt.s32.totalorder %s403, 7
      %s407 = scalar_select %p406, %s403, 7
      %s408 = smul.addr %s407, 32
      %s409 = smul.addr %s405, 256
      %s410 = sadd.s32 %s408, %s409
      %s411 = smul.addr %s410, 4
      %s412 = scalar_lea.vmem %s5, %s411
      %p413 = pneg %p229
      %p414 = pneg %p226
      %p415 = scmp.lt.s32.totalorder %s23, 1
      %s416 = scalar_select %p415, %s23, 1
      %p417 = scmp.lt.s32.totalorder %s24, 3
      %s418 = scalar_select %p417, %s24, 3
      %s419 = smul.addr %s416, 4
      %s420 = sadd.s32 %s418, %s419
      %s421 = scalar_lea.vmem %s6, %s420
      %p422 = pneg %p257
      %p423 = pneg %p254
      %p424 = scmp.lt.s32.totalorder %s23, 1
      %s425 = scalar_select %p424, %s23, 1
      %p426 = scmp.lt.s32.totalorder %s24, 3
      %s427 = scalar_select %p426, %s24, 3
      %s428 = smul.addr %s425, 4
      %s429 = sadd.s32 %s427, %s428
      %s430 = scalar_lea.vmem %s7, %s429
      %s431 = smul.u32 %s24, 2
      %p432 = scmp.lt.s32.totalorder %s23, 1
      %s433 = scalar_select %p432, %s23, 1
      %p434 = scmp.lt.s32.totalorder %s431, 9
      %s435 = scalar_select %p434, %s431, 9
      %s436 = smul.addr %s435, 72
      %s437 = smul.addr %s433, 720
      %s438 = sadd.s32 %s436, %s437
      %s439 = smul.addr %s438, 4
      %s440 = scalar_lea.vmem %s0, %s439
      %s441 = smul.u32 %s24, 2
      %s442 = smul.u32 %s24, 2
      %s443 = sadd.s32 %s442, 1
      %p444 = scmp.lt.s32.totalorder %s23, 1
      %s445 = scalar_select %p444, %s23, 1
      %p446 = scmp.lt.s32.totalorder %s443, 9
      %s447 = scalar_select %p446, %s443, 9
      %s448 = smul.addr %s447, 72
      %s449 = smul.addr %s445, 720
      %s450 = sadd.s32 %s448, %s449
      %s451 = smul.addr %s450, 4
      %s452 = scalar_lea.vmem %s1, %s451
      %s453 = smul.u32 %s24, 2
      %s454 = sadd.s32 %s453, 1
      %s455 = smul.u32 %s24, 2
      %s456 = sadd.s32 %s455, 2
      %p457 = scmp.lt.s32.totalorder %s23, 1
      %s458 = scalar_select %p457, %s23, 1
      %p459 = scmp.lt.s32.totalorder %s456, 9
      %s460 = scalar_select %p459, %s456, 9
      %s461 = smul.addr %s460, 72
      %s462 = smul.addr %s458, 720
      %s463 = sadd.s32 %s461, %s462
      %s464 = smul.addr %s463, 4
      %s465 = scalar_lea.vmem %s2, %s464
      %s466 = smul.u32 %s24, 2
      %s467 = sadd.s32 %s466, 2
      %s468 = smul.u32 %s24, 2
      %s469 = sadd.s32 %s468, 3
      %p470 = scmp.lt.s32.totalorder %s23, 1
      %s471 = scalar_select %p470, %s23, 1
      %p472 = scmp.lt.s32.totalorder %s469, 9
      %s473 = scalar_select %p472, %s469, 9
      %s474 = smul.addr %s473, 72
      %s475 = smul.addr %s471, 720
      %s476 = sadd.s32 %s474, %s475
      %s477 = smul.addr %s476, 4
      %s478 = scalar_lea.vmem %s3, %s477
      %s479 = smul.u32 %s24, 2
      %s480 = sadd.s32 %s479, 3
      %s481 = smul.u32 2, %s24
      %p482 = scmp.lt.s32.totalorder %s23, 1
      %s483 = scalar_select %p482, %s23, 1
      %p484 = scmp.lt.s32.totalorder %s481, 7
      %s485 = scalar_select %p484, %s481, 7
      %s486 = smul.addr %s485, 32
      %s487 = smul.addr %s483, 256
      %s488 = sadd.s32 %s486, %s487
      %s489 = smul.addr %s488, 4
      %s490 = scalar_lea.vmem %s5, %s489
      %s491 = smul.u32 2, %s24
      %p492 = scmp.lt.s32.totalorder %s23, 1
      %s493 = scalar_select %p492, %s23, 1
      %p494 = scmp.lt.s32.totalorder %s24, 3
      %s495 = scalar_select %p494, %s24, 3
      %s496 = smul.addr %s493, 4
      %s497 = sadd.s32 %s495, %s496
      %s498 = scalar_lea.vmem %s6, %s497
      %p499 = scmp.lt.s32.totalorder %s23, 1
      %s500 = scalar_select %p499, %s23, 1
      %p501 = scmp.lt.s32.totalorder %s24, 3
      %s502 = scalar_select %p501, %s24, 3
      %s503 = smul.addr %s500, 4
      %s504 = sadd.s32 %s502, %s503
      %s505 = scalar_lea.vmem %s7, %s504
      %v507 = vld [vmem:[%s440] sm:$0xff]
      %v508 = vld [vmem:[%s440 + $0x8] sm:$0xff]
      %v509 = vld [vmem:[%s440 + $0x10] sm:$0xff]
      %v510 = vld [vmem:[%s440 + $0x18] sm:$0xff]
      %v511 = vld [vmem:[%s440 + $0x20] sm:$0xff]
      %v512 = vld [vmem:[%s440 + $0x28] sm:$0xff]
      %v513 = vld [vmem:[%s440 + $0x30] sm:$0xff]
      %v514 = vld [vmem:[%s440 + $0x38] sm:$0xff]
      %v515 = vld [vmem:[%s440 + $0x40] sm:$0xff]
      %v516 = vld [vmem:[%s440 + $0x48] sm:$0xff]
      %v517 = vld [vmem:[%s440 + $0x50] sm:$0xff]
      %v518 = vld [vmem:[%s440 + $0x58] sm:$0xff]
      %v519 = vld [vmem:[%s440 + $0x60] sm:$0xff]
      %v520 = vld [vmem:[%s440 + $0x68] sm:$0xff]
      %v521 = vld [vmem:[%s440 + $0x70] sm:$0xff]
      %v522 = vld [vmem:[%s440 + $0x78] sm:$0xff]
      %v523 = vld [vmem:[%s440 + $0x80] sm:$0xff]
      %v524 = vld [vmem:[%s440 + $0x88] sm:$0xff]
      %v525 = vld [vmem:[%s440 + $0x90] sm:$0xff]
      %v526 = vld [vmem:[%s440 + $0x98] sm:$0xff]
      %v527 = vld [vmem:[%s440 + $0xa0] sm:$0xff]
      %v528 = vld [vmem:[%s440 + $0xa8] sm:$0xff]
      %v529 = vld [vmem:[%s440 + $0xb0] sm:$0xff]
      %v530 = vld [vmem:[%s440 + $0xb8] sm:$0xff]
      %v531 = vld [vmem:[%s440 + $0xc0] sm:$0xff]
      %v532 = vld [vmem:[%s440 + $0xc8] sm:$0xff]
      %v533 = vld [vmem:[%s440 + $0xd0] sm:$0xff]
      %v534 = vld [vmem:[%s440 + $0xd8] sm:$0xff]
      %v535 = vld [vmem:[%s440 + $0xe0] sm:$0xff]
      %v536 = vld [vmem:[%s440 + $0xe8] sm:$0xff]
      %v537 = vld [vmem:[%s440 + $0xf0] sm:$0xff]
      %v538 = vld [vmem:[%s440 + $0xf8] sm:$0xff]
      %v539 = vld [vmem:[%s4] sm:$0xf]
      %v540 = vld [vmem:[%s4 + $0x4] sm:$0xf]
      %v541 = vld [vmem:[%s4 + $0x8] sm:$0xf]
      %v542 = vld [vmem:[%s4 + $0xc] sm:$0xf]
      %v543 = vld [vmem:[%s4 + $0x10] sm:$0xf]
      %v544 = vld [vmem:[%s4 + $0x14] sm:$0xf]
      %v545 = vld [vmem:[%s4 + $0x18] sm:$0xf]
      %v546 = vld [vmem:[%s4 + $0x1c] sm:$0xf]
      %v547 = vld [vmem:[%s4 + $0x20] sm:$0xf]
      %v548 = vld [vmem:[%s4 + $0x24] sm:$0xf]
      %v549 = vld [vmem:[%s4 + $0x28] sm:$0xf]
      %v550 = vld [vmem:[%s4 + $0x2c] sm:$0xf]
      %v551 = vld [vmem:[%s4 + $0x30] sm:$0xf]
      %v552 = vld [vmem:[%s4 + $0x34] sm:$0xf]
      %v553 = vld [vmem:[%s4 + $0x38] sm:$0xf]
      %v554 = vld [vmem:[%s4 + $0x3c] sm:$0xf]
      %v555 = vld [vmem:[%s4 + $0x40] sm:$0xf]
      %v556 = vld [vmem:[%s4 + $0x44] sm:$0xf]
      %v557 = vld [vmem:[%s4 + $0x48] sm:$0xf]
      %v558 = vld [vmem:[%s4 + $0x4c] sm:$0xf]
      %v559 = vld [vmem:[%s4 + $0x50] sm:$0xf]
      %v560 = vld [vmem:[%s4 + $0x54] sm:$0xf]
      %v561 = vld [vmem:[%s4 + $0x58] sm:$0xf]
      %v562 = vld [vmem:[%s4 + $0x5c] sm:$0xf]
      %s563 = scalar_lea.vmem %s440, 16
      %v564 = vld [vmem:[%s563] sm:$0xff]
      %v565 = vld [vmem:[%s563 + $0x8] sm:$0xff]
      %v566 = vld [vmem:[%s563 + $0x10] sm:$0xff]
      %v567 = vld [vmem:[%s563 + $0x18] sm:$0xff]
      %v568 = vld [vmem:[%s563 + $0x20] sm:$0xff]
      %v569 = vld [vmem:[%s563 + $0x28] sm:$0xff]
      %v570 = vld [vmem:[%s563 + $0x30] sm:$0xff]
      %v571 = vld [vmem:[%s563 + $0x38] sm:$0xff]
      %v572 = vld [vmem:[%s563 + $0x40] sm:$0xff]
      %v573 = vld [vmem:[%s563 + $0x48] sm:$0xff]
      %v574 = vld [vmem:[%s563 + $0x50] sm:$0xff]
      %v575 = vld [vmem:[%s563 + $0x58] sm:$0xff]
      %v576 = vld [vmem:[%s563 + $0x60] sm:$0xff]
      %v577 = vld [vmem:[%s563 + $0x68] sm:$0xff]
      %v578 = vld [vmem:[%s563 + $0x70] sm:$0xff]
      %v579 = vld [vmem:[%s563 + $0x78] sm:$0xff]
      %v580 = vld [vmem:[%s563 + $0x80] sm:$0xff]
      %v581 = vld [vmem:[%s563 + $0x88] sm:$0xff]
      %v582 = vld [vmem:[%s563 + $0x90] sm:$0xff]
      %v583 = vld [vmem:[%s563 + $0x98] sm:$0xff]
      %v584 = vld [vmem:[%s563 + $0xa0] sm:$0xff]
      %v585 = vld [vmem:[%s563 + $0xa8] sm:$0xff]
      %v586 = vld [vmem:[%s563 + $0xb0] sm:$0xff]
      %v587 = vld [vmem:[%s563 + $0xb8] sm:$0xff]
      %v588 = vld [vmem:[%s563 + $0xc0] sm:$0xff]
      %v589 = vld [vmem:[%s563 + $0xc8] sm:$0xff]
      %v590 = vld [vmem:[%s563 + $0xd0] sm:$0xff]
      %v591 = vld [vmem:[%s563 + $0xd8] sm:$0xff]
      %v592 = vld [vmem:[%s563 + $0xe0] sm:$0xff]
      %v593 = vld [vmem:[%s563 + $0xe8] sm:$0xff]
      %v594 = vld [vmem:[%s563 + $0xf0] sm:$0xff]
      %v595 = vld [vmem:[%s563 + $0xf8] sm:$0xff]
      %s596 = scalar_lea.vmem %s4, 96
      %v597 = vld [vmem:[%s596] sm:$0xf]
      %v598 = vld [vmem:[%s596 + $0x4] sm:$0xf]
      %v599 = vld [vmem:[%s596 + $0x8] sm:$0xf]
      %v600 = vld [vmem:[%s596 + $0xc] sm:$0xf]
      %v601 = vld [vmem:[%s596 + $0x10] sm:$0xf]
      %v602 = vld [vmem:[%s596 + $0x14] sm:$0xf]
      %v603 = vld [vmem:[%s596 + $0x18] sm:$0xf]
      %v604 = vld [vmem:[%s596 + $0x1c] sm:$0xf]
      %v605 = vld [vmem:[%s596 + $0x20] sm:$0xf]
      %v606 = vld [vmem:[%s596 + $0x24] sm:$0xf]
      %v607 = vld [vmem:[%s596 + $0x28] sm:$0xf]
      %v608 = vld [vmem:[%s596 + $0x2c] sm:$0xf]
      %v609 = vld [vmem:[%s596 + $0x30] sm:$0xf]
      %v610 = vld [vmem:[%s596 + $0x34] sm:$0xf]
      %v611 = vld [vmem:[%s596 + $0x38] sm:$0xf]
      %v612 = vld [vmem:[%s596 + $0x3c] sm:$0xf]
      %v613 = vld [vmem:[%s596 + $0x40] sm:$0xf]
      %v614 = vld [vmem:[%s596 + $0x44] sm:$0xf]
      %v615 = vld [vmem:[%s596 + $0x48] sm:$0xf]
      %v616 = vld [vmem:[%s596 + $0x4c] sm:$0xf]
      %v617 = vld [vmem:[%s596 + $0x50] sm:$0xf]
      %v618 = vld [vmem:[%s596 + $0x54] sm:$0xf]
      %v619 = vld [vmem:[%s596 + $0x58] sm:$0xf]
      %v620 = vld [vmem:[%s596 + $0x5c] sm:$0xf]
      %v653 = vunpack.c.l.b16 %v564
      %v654 = vunpack.c.h.b16 %v564
      %v655 = vunpack.c.l.b16 %v565
      %v656 = vunpack.c.h.b16 %v565
      %v657 = vunpack.c.l.b16 %v566
      %v658 = vunpack.c.h.b16 %v566
      %v659 = vunpack.c.l.b16 %v567
      %v660 = vunpack.c.h.b16 %v567
      %v661 = vunpack.c.l.b16 %v568
      %v662 = vunpack.c.h.b16 %v568
      %v663 = vunpack.c.l.b16 %v569
      %v664 = vunpack.c.h.b16 %v569
      %v665 = vunpack.c.l.b16 %v570
      %v666 = vunpack.c.h.b16 %v570
      %v667 = vunpack.c.l.b16 %v571
      %v668 = vunpack.c.h.b16 %v571
      %v669 = vunpack.c.l.b16 %v572
      %v670 = vunpack.c.h.b16 %v572
      %v671 = vunpack.c.l.b16 %v573
      %v672 = vunpack.c.h.b16 %v573
      %v673 = vunpack.c.l.b16 %v574
      %v674 = vunpack.c.h.b16 %v574
      %v675 = vunpack.c.l.b16 %v575
      %v676 = vunpack.c.h.b16 %v575
      %v677 = vunpack.c.l.b16 %v576
      %v678 = vunpack.c.h.b16 %v576
      %v679 = vunpack.c.l.b16 %v577
      %v680 = vunpack.c.h.b16 %v577
      %v681 = vunpack.c.l.b16 %v578
      %v682 = vunpack.c.h.b16 %v578
      %v683 = vunpack.c.l.b16 %v579
      %v684 = vunpack.c.h.b16 %v579
      %v685 = vunpack.c.l.b16 %v580
      %v686 = vunpack.c.h.b16 %v580
      %v687 = vunpack.c.l.b16 %v581
      %v688 = vunpack.c.h.b16 %v581
      %v689 = vunpack.c.l.b16 %v582
      %v690 = vunpack.c.h.b16 %v582
      %v691 = vunpack.c.l.b16 %v583
      %v692 = vunpack.c.h.b16 %v583
      %v693 = vunpack.c.l.b16 %v584
      %v694 = vunpack.c.h.b16 %v584
      %v695 = vunpack.c.l.b16 %v585
      %v696 = vunpack.c.h.b16 %v585
      %v697 = vunpack.c.l.b16 %v586
      %v698 = vunpack.c.h.b16 %v586
      %v699 = vunpack.c.l.b16 %v587
      %v700 = vunpack.c.h.b16 %v587
      %v701 = vunpack.c.l.b16 %v588
      %v702 = vunpack.c.h.b16 %v588
      %v703 = vunpack.c.l.b16 %v589
      %v704 = vunpack.c.h.b16 %v589
      %v705 = vunpack.c.l.b16 %v590
      %v706 = vunpack.c.h.b16 %v590
      %v707 = vunpack.c.l.b16 %v591
      %v708 = vunpack.c.h.b16 %v591
      %v709 = vunpack.c.l.b16 %v592
      %v710 = vunpack.c.h.b16 %v592
      %v711 = vunpack.c.l.b16 %v593
      %v712 = vunpack.c.h.b16 %v593
      %v713 = vunpack.c.l.b16 %v594
      %v714 = vunpack.c.h.b16 %v594
      %v715 = vunpack.c.l.b16 %v595
      %v716 = vunpack.c.h.b16 %v595
      %v717 = vpack.c.b16 %v655, %v653
      %v718 = vpack.c.b16 %v656, %v654
      %v719 = vpack.c.b16 %v659, %v657
      %v720 = vpack.c.b16 %v660, %v658
      %v721 = vpack.c.b16 %v663, %v661
      %v722 = vpack.c.b16 %v664, %v662
      %v723 = vpack.c.b16 %v667, %v665
      %v724 = vpack.c.b16 %v668, %v666
      %v725 = vpack.c.b16 %v671, %v669
      %v726 = vpack.c.b16 %v672, %v670
      %v727 = vpack.c.b16 %v675, %v673
      %v728 = vpack.c.b16 %v676, %v674
      %v729 = vpack.c.b16 %v679, %v677
      %v730 = vpack.c.b16 %v680, %v678
      %v731 = vpack.c.b16 %v683, %v681
      %v732 = vpack.c.b16 %v684, %v682
      %v733 = vpack.c.b16 %v687, %v685
      %v734 = vpack.c.b16 %v688, %v686
      %v735 = vpack.c.b16 %v691, %v689
      %v736 = vpack.c.b16 %v692, %v690
      %v737 = vpack.c.b16 %v695, %v693
      %v738 = vpack.c.b16 %v696, %v694
      %v739 = vpack.c.b16 %v699, %v697
      %v740 = vpack.c.b16 %v700, %v698
      %v741 = vpack.c.b16 %v703, %v701
      %v742 = vpack.c.b16 %v704, %v702
      %v743 = vpack.c.b16 %v707, %v705
      %v744 = vpack.c.b16 %v708, %v706
      %v745 = vpack.c.b16 %v711, %v709
      %v746 = vpack.c.b16 %v712, %v710
      %v747 = vpack.c.b16 %v715, %v713
      %v748 = vpack.c.b16 %v716, %v714
      %v789 = vunpack.c.l.b16 %v597
      %v790 = vunpack.c.l.b16 %v598
      %v791 = vunpack.c.l.b16 %v599
      %v792 = vunpack.c.l.b16 %v600
      %v793 = vunpack.c.l.b16 %v601
      %v794 = vunpack.c.l.b16 %v602
      %v795 = vunpack.c.l.b16 %v603
      %v796 = vunpack.c.l.b16 %v604
      %v797 = vunpack.c.l.b16 %v605
      %v798 = vunpack.c.l.b16 %v606
      %v799 = vunpack.c.l.b16 %v607
      %v800 = vunpack.c.l.b16 %v608
      %v801 = vunpack.c.l.b16 %v609
      %v802 = vunpack.c.l.b16 %v610
      %v803 = vunpack.c.l.b16 %v611
      %v804 = vunpack.c.l.b16 %v612
      %v805 = vunpack.c.l.b16 %v613
      %v806 = vunpack.c.l.b16 %v614
      %v807 = vunpack.c.l.b16 %v615
      %v808 = vunpack.c.l.b16 %v616
      %v809 = vunpack.c.l.b16 %v617
      %v810 = vunpack.c.l.b16 %v618
      %v811 = vunpack.c.l.b16 %v619
      %v812 = vunpack.c.l.b16 %v620
      %v813 = vpack.c.b16 %v790, %v789
      %v814 = vpack.c.b16 %v792, %v791
      %v815 = vpack.c.b16 %v794, %v793
      %v816 = vpack.c.b16 %v796, %v795
      %v817 = vpack.c.b16 %v798, %v797
      %v818 = vpack.c.b16 %v800, %v799
      %v819 = vpack.c.b16 %v802, %v801
      %v820 = vpack.c.b16 %v804, %v803
      %v821 = vpack.c.b16 %v806, %v805
      %v822 = vpack.c.b16 %v808, %v807
      %v823 = vpack.c.b16 %v810, %v809
      %v824 = vpack.c.b16 %v812, %v811
      %vm837 = vcmask 523264
      %v839 = vsel %vm837, %v718, 0
      %v842 = vsel %vm837, %v720, 0
      %v845 = vsel %vm837, %v722, 0
      %v848 = vsel %vm837, %v724, 0
      %v851 = vsel %vm837, %v726, 0
      %v854 = vsel %vm837, %v728, 0
      %v857 = vsel %vm837, %v730, 0
      %v860 = vsel %vm837, %v732, 0
      %v863 = vsel %vm837, %v734, 0
      %v866 = vsel %vm837, %v736, 0
      %v869 = vsel %vm837, %v738, 0
      %v872 = vsel %vm837, %v740, 0
      %v875 = vsel %vm837, %v742, 0
      %v878 = vsel %vm837, %v744, 0
      %v881 = vsel %vm837, %v746, 0
      %v884 = vsel %vm837, %v748, 0
      %886 = vmatprep.subr.bf16.mxu0 0
      %887 = vmatpush1.bf16.msra.mxu0 %v813
      %888 = vmatprep.subr.bf16.mxu0 0
      %889 = vmatpush1.bf16.msra.mxu0 %v814
      %890 = vmatprep.subr.bf16.mxu0 0
      %891 = vmatpush1.bf16.msra.mxu0 %v815
      %892 = vmatprep.subr.bf16.mxu0 0
      %893 = vmatpush1.bf16.msra.mxu0 %v816
      %894 = vmatprep.subr.bf16.mxu0 0
      %895 = vmatpush1.bf16.msra.mxu0 %v817
      %896 = vmatprep.subr.bf16.mxu0 0
      %897 = vmatpush1.bf16.msra.mxu0 %v818
      %898 = vmatprep.subr.bf16.mxu0 0
      %899 = vmatpush1.bf16.msra.mxu0 %v819
      %900 = vmatprep.subr.bf16.mxu0 0
      %901 = vmatpush1.bf16.msra.mxu0 %v820
      %902 = vmatprep.subr.bf16.mxu0 0
      %903 = vmatpush1.bf16.msra.mxu0 %v821
      %904 = vmatprep.subr.bf16.mxu0 0
      %905 = vmatpush1.bf16.msra.mxu0 %v822
      %906 = vmatprep.subr.bf16.mxu0 0
      %907 = vmatpush1.bf16.msra.mxu0 %v823
      %908 = vmatprep.subr.bf16.mxu0 0
      %909 = vmatpush1.bf16.msra.mxu0 %v824
      %910 = vmatprep.subr.bf16.mxu0 0
      %911 = vmatpush1.bf16.msra.mxu0 0
      %912 = vmatprep.subr.bf16.mxu0 0
      %913 = vmatpush1.bf16.msra.mxu0 0
      %914 = vmatprep.subr.bf16.mxu0 0
      %915 = vmatpush1.bf16.msra.mxu0 0
      %916 = vmatprep.subr.bf16.mxu0 0
      %917 = vmatpush1.bf16.msra.mxu0 0
      %918 = vmatprep.mubr.bf16.mxu0 %v839
      %919 = vmatmul.mubr.bf16.gmra.mrb[0].mxu0 %v717
      %v920 = vpop.f32.mrb[0].mxu0
      %v921 = vadd.f32 0.0, %v920
      %v922 = vpop.f32.mrb[0].mxu0
      %v923 = vpop.f32.mrb[0].mxu0
      %v924 = vadd.f32 0.0, %v923
      %v925 = vpop.f32.mrb[0].mxu0
      %926 = vmatprep.mubr.bf16.mxu0 %v842
      %927 = vmatmul.mubr.bf16.gmra.mrb[0].mxu0 %v719
      %v928 = vpop.f32.mrb[0].mxu0
      %v929 = vadd.f32 0.0, %v928
      %v930 = vpop.f32.mrb[0].mxu0
      %v931 = vpop.f32.mrb[0].mxu0
      %v932 = vadd.f32 0.0, %v931
      %v933 = vpop.f32.mrb[0].mxu0
      %934 = vmatprep.mubr.bf16.mxu0 %v845
      %935 = vmatmul.mubr.bf16.gmra.mrb[0].mxu0 %v721
      %v936 = vpop.f32.mrb[0].mxu0
      %v937 = vadd.f32 0.0, %v936
      %v938 = vpop.f32.mrb[0].mxu0
      %v939 = vpop.f32.mrb[0].mxu0
      %v940 = vadd.f32 0.0, %v939
      %v941 = vpop.f32.mrb[0].mxu0
      %942 = vmatprep.mubr.bf16.mxu0 %v848
      %943 = vmatmul.mubr.bf16.gmra.mrb[0].mxu0 %v723
      %v944 = vpop.f32.mrb[0].mxu0
      %v945 = vadd.f32 0.0, %v944
      %v946 = vpop.f32.mrb[0].mxu0
      %v947 = vpop.f32.mrb[0].mxu0
      %v948 = vadd.f32 0.0, %v947
      %v949 = vpop.f32.mrb[0].mxu0
      %950 = vmatprep.mubr.bf16.mxu0 %v851
      %951 = vmatmul.mubr.bf16.gmra.mrb[0].mxu0 %v725
      %v952 = vpop.f32.mrb[0].mxu0
      %v953 = vadd.f32 0.0, %v952
      %v954 = vpop.f32.mrb[0].mxu0
      %v955 = vpop.f32.mrb[0].mxu0
      %v956 = vadd.f32 0.0, %v955
      %v957 = vpop.f32.mrb[0].mxu0
      %958 = vmatprep.mubr.bf16.mxu0 %v854
      %959 = vmatmul.mubr.bf16.gmra.mrb[0].mxu0 %v727
      %v960 = vpop.f32.mrb[0].mxu0
      %v961 = vadd.f32 0.0, %v960
      %v962 = vpop.f32.mrb[0].mxu0
      %v963 = vpop.f32.mrb[0].mxu0
      %v964 = vadd.f32 0.0, %v963
      %v965 = vpop.f32.mrb[0].mxu0
      %966 = vmatprep.mubr.bf16.mxu0 %v857
      %967 = vmatmul.mubr.bf16.gmra.mrb[0].mxu0 %v729
      %v968 = vpop.f32.mrb[0].mxu0
      %v969 = vadd.f32 0.0, %v968
      %v970 = vpop.f32.mrb[0].mxu0
      %v971 = vpop.f32.mrb[0].mxu0
      %v972 = vadd.f32 0.0, %v971
      %v973 = vpop.f32.mrb[0].mxu0
      %974 = vmatprep.mubr.bf16.mxu0 %v860
      %975 = vmatmul.mubr.bf16.gmra.mrb[0].mxu0 %v731
      %v976 = vpop.f32.mrb[0].mxu0
      %v977 = vadd.f32 0.0, %v976
      %v978 = vpop.f32.mrb[0].mxu0
      %v979 = vpop.f32.mrb[0].mxu0
      %v980 = vadd.f32 0.0, %v979
      %v981 = vpop.f32.mrb[0].mxu0
      %982 = vmatprep.mubr.bf16.mxu0 %v863
      %983 = vmatmul.mubr.bf16.gmra.mrb[0].mxu0 %v733
      %v984 = vpop.f32.mrb[0].mxu0
      %v985 = vadd.f32 0.0, %v984
      %v986 = vpop.f32.mrb[0].mxu0
      %v987 = vpop.f32.mrb[0].mxu0
      %v988 = vadd.f32 0.0, %v987
      %v989 = vpop.f32.mrb[0].mxu0
      %990 = vmatprep.mubr.bf16.mxu0 %v866
      %991 = vmatmul.mubr.bf16.gmra.mrb[0].mxu0 %v735
      %v992 = vpop.f32.mrb[0].mxu0
      %v993 = vadd.f32 0.0, %v992
      %v994 = vpop.f32.mrb[0].mxu0
      %v995 = vpop.f32.mrb[0].mxu0
      %v996 = vadd.f32 0.0, %v995
      %v997 = vpop.f32.mrb[0].mxu0
      %998 = vmatprep.mubr.bf16.mxu0 %v869
      %999 = vmatmul.mubr.bf16.gmra.mrb[0].mxu0 %v737
      %v1000 = vpop.f32.mrb[0].mxu0
      %v1001 = vadd.f32 0.0, %v1000
      %v1002 = vpop.f32.mrb[0].mxu0
      %v1003 = vpop.f32.mrb[0].mxu0
      %v1004 = vadd.f32 0.0, %v1003
      %v1005 = vpop.f32.mrb[0].mxu0
      %1006 = vmatprep.mubr.bf16.mxu0 %v872
      %1007 = vmatmul.mubr.bf16.gmra.mrb[0].mxu0 %v739
      %v1008 = vpop.f32.mrb[0].mxu0
      %v1009 = vadd.f32 0.0, %v1008
      %v1010 = vpop.f32.mrb[0].mxu0
      %v1011 = vpop.f32.mrb[0].mxu0
      %v1012 = vadd.f32 0.0, %v1011
      %v1013 = vpop.f32.mrb[0].mxu0
      %1014 = vmatprep.mubr.bf16.mxu0 %v875
      %1015 = vmatmul.mubr.bf16.gmra.mrb[0].mxu0 %v741
      %v1016 = vpop.f32.mrb[0].mxu0
      %v1017 = vadd.f32 0.0, %v1016
      %v1018 = vpop.f32.mrb[0].mxu0
      %v1019 = vpop.f32.mrb[0].mxu0
      %v1020 = vadd.f32 0.0, %v1019
      %v1021 = vpop.f32.mrb[0].mxu0
      %1022 = vmatprep.mubr.bf16.mxu0 %v878
      %1023 = vmatmul.mubr.bf16.gmra.mrb[0].mxu0 %v743
      %v1024 = vpop.f32.mrb[0].mxu0
      %v1025 = vadd.f32 0.0, %v1024
      %v1026 = vpop.f32.mrb[0].mxu0
      %v1027 = vpop.f32.mrb[0].mxu0
      %v1028 = vadd.f32 0.0, %v1027
      %v1029 = vpop.f32.mrb[0].mxu0
      %1030 = vmatprep.mubr.bf16.mxu0 %v881
      %1031 = vmatmul.mubr.bf16.gmra.mrb[0].mxu0 %v745
      %v1032 = vpop.f32.mrb[0].mxu0
      %v1033 = vadd.f32 0.0, %v1032
      %v1034 = vpop.f32.mrb[0].mxu0
      %v1035 = vpop.f32.mrb[0].mxu0
      %v1036 = vadd.f32 0.0, %v1035
      %v1037 = vpop.f32.mrb[0].mxu0
      %1038 = vmatprep.mubr.bf16.mxu0 %v884
      %1039 = vmatmul.mubr.bf16.gmra.mrb[0].mxu0 %v747
      %v1040 = vpop.f32.mrb[0].mxu0
      %v1041 = vadd.f32 0.0, %v1040
      %v1042 = vpop.f32.mrb[0].mxu0
      %v1043 = vpop.f32.mrb[0].mxu0
      %v1044 = vadd.f32 0.0, %v1043
      %v1045 = vpop.f32.mrb[0].mxu0
      %1046 = vdwg.mxu0
      %v1079 = vunpack.c.l.b16 %v507
      %v1080 = vunpack.c.h.b16 %v507
      %v1081 = vunpack.c.l.b16 %v508
      %v1082 = vunpack.c.h.b16 %v508
      %v1083 = vunpack.c.l.b16 %v509
      %v1084 = vunpack.c.h.b16 %v509
      %v1085 = vunpack.c.l.b16 %v510
      %v1086 = vunpack.c.h.b16 %v510
      %v1087 = vunpack.c.l.b16 %v511
      %v1088 = vunpack.c.h.b16 %v511
      %v1089 = vunpack.c.l.b16 %v512
      %v1090 = vunpack.c.h.b16 %v512
      %v1091 = vunpack.c.l.b16 %v513
      %v1092 = vunpack.c.h.b16 %v513
      %v1093 = vunpack.c.l.b16 %v514
      %v1094 = vunpack.c.h.b16 %v514
      %v1095 = vunpack.c.l.b16 %v515
      %v1096 = vunpack.c.h.b16 %v515
      %v1097 = vunpack.c.l.b16 %v516
      %v1098 = vunpack.c.h.b16 %v516
      %v1099 = vunpack.c.l.b16 %v517
      %v1100 = vunpack.c.h.b16 %v517
      %v1101 = vunpack.c.l.b16 %v518
      %v1102 = vunpack.c.h.b16 %v518
      %v1103 = vunpack.c.l.b16 %v519
      %v1104 = vunpack.c.h.b16 %v519
      %v1105 = vunpack.c.l.b16 %v520
      %v1106 = vunpack.c.h.b16 %v520
      %v1107 = vunpack.c.l.b16 %v521
      %v1108 = vunpack.c.h.b16 %v521
      %v1109 = vunpack.c.l.b16 %v522
      %v1110 = vunpack.c.h.b16 %v522
      %v1111 = vunpack.c.l.b16 %v523
      %v1112 = vunpack.c.h.b16 %v523
      %v1113 = vunpack.c.l.b16 %v524
      %v1114 = vunpack.c.h.b16 %v524
      %v1115 = vunpack.c.l.b16 %v525
      %v1116 = vunpack.c.h.b16 %v525
      %v1117 = vunpack.c.l.b16 %v526
      %v1118 = vunpack.c.h.b16 %v526
      %v1119 = vunpack.c.l.b16 %v527
      %v1120 = vunpack.c.h.b16 %v527
      %v1121 = vunpack.c.l.b16 %v528
      %v1122 = vunpack.c.h.b16 %v528
      %v1123 = vunpack.c.l.b16 %v529
      %v1124 = vunpack.c.h.b16 %v529
      %v1125 = vunpack.c.l.b16 %v530
      %v1126 = vunpack.c.h.b16 %v530
      %v1127 = vunpack.c.l.b16 %v531
      %v1128 = vunpack.c.h.b16 %v531
      %v1129 = vunpack.c.l.b16 %v532
      %v1130 = vunpack.c.h.b16 %v532
      %v1131 = vunpack.c.l.b16 %v533
      %v1132 = vunpack.c.h.b16 %v533
      %v1133 = vunpack.c.l.b16 %v534
      %v1134 = vunpack.c.h.b16 %v534
      %v1135 = vunpack.c.l.b16 %v535
      %v1136 = vunpack.c.h.b16 %v535
      %v1137 = vunpack.c.l.b16 %v536
      %v1138 = vunpack.c.h.b16 %v536
      %v1139 = vunpack.c.l.b16 %v537
      %v1140 = vunpack.c.h.b16 %v537
      %v1141 = vunpack.c.l.b16 %v538
      %v1142 = vunpack.c.h.b16 %v538
      %v1143 = vpack.c.b16 %v1081, %v1079
      %v1144 = vpack.c.b16 %v1082, %v1080
      %v1145 = vpack.c.b16 %v1085, %v1083
      %v1146 = vpack.c.b16 %v1086, %v1084
      %v1147 = vpack.c.b16 %v1089, %v1087
      %v1148 = vpack.c.b16 %v1090, %v1088
      %v1149 = vpack.c.b16 %v1093, %v1091
      %v1150 = vpack.c.b16 %v1094, %v1092
      %v1151 = vpack.c.b16 %v1097, %v1095
      %v1152 = vpack.c.b16 %v1098, %v1096
      %v1153 = vpack.c.b16 %v1101, %v1099
      %v1154 = vpack.c.b16 %v1102, %v1100
      %v1155 = vpack.c.b16 %v1105, %v1103
      %v1156 = vpack.c.b16 %v1106, %v1104
      %v1157 = vpack.c.b16 %v1109, %v1107
      %v1158 = vpack.c.b16 %v1110, %v1108
      %v1159 = vpack.c.b16 %v1113, %v1111
      %v1160 = vpack.c.b16 %v1114, %v1112
      %v1161 = vpack.c.b16 %v1117, %v1115
      %v1162 = vpack.c.b16 %v1118, %v1116
      %v1163 = vpack.c.b16 %v1121, %v1119
      %v1164 = vpack.c.b16 %v1122, %v1120
      %v1165 = vpack.c.b16 %v1125, %v1123
      %v1166 = vpack.c.b16 %v1126, %v1124
      %v1167 = vpack.c.b16 %v1129, %v1127
      %v1168 = vpack.c.b16 %v1130, %v1128
      %v1169 = vpack.c.b16 %v1133, %v1131
      %v1170 = vpack.c.b16 %v1134, %v1132
      %v1171 = vpack.c.b16 %v1137, %v1135
      %v1172 = vpack.c.b16 %v1138, %v1136
      %v1173 = vpack.c.b16 %v1141, %v1139
      %v1174 = vpack.c.b16 %v1142, %v1140
      %v1215 = vunpack.c.l.b16 %v539
      %v1216 = vunpack.c.l.b16 %v540
      %v1217 = vunpack.c.l.b16 %v541
      %v1218 = vunpack.c.l.b16 %v542
      %v1219 = vunpack.c.l.b16 %v543
      %v1220 = vunpack.c.l.b16 %v544
      %v1221 = vunpack.c.l.b16 %v545
      %v1222 = vunpack.c.l.b16 %v546
      %v1223 = vunpack.c.l.b16 %v547
      %v1224 = vunpack.c.l.b16 %v548
      %v1225 = vunpack.c.l.b16 %v549
      %v1226 = vunpack.c.l.b16 %v550
      %v1227 = vunpack.c.l.b16 %v551
      %v1228 = vunpack.c.l.b16 %v552
      %v1229 = vunpack.c.l.b16 %v553
      %v1230 = vunpack.c.l.b16 %v554
      %v1231 = vunpack.c.l.b16 %v555
      %v1232 = vunpack.c.l.b16 %v556
      %v1233 = vunpack.c.l.b16 %v557
      %v1234 = vunpack.c.l.b16 %v558
      %v1235 = vunpack.c.l.b16 %v559
      %v1236 = vunpack.c.l.b16 %v560
      %v1237 = vunpack.c.l.b16 %v561
      %v1238 = vunpack.c.l.b16 %v562
      %v1239 = vpack.c.b16 %v1216, %v1215
      %v1240 = vpack.c.b16 %v1218, %v1217
      %v1241 = vpack.c.b16 %v1220, %v1219
      %v1242 = vpack.c.b16 %v1222, %v1221
      %v1243 = vpack.c.b16 %v1224, %v1223
      %v1244 = vpack.c.b16 %v1226, %v1225
      %v1245 = vpack.c.b16 %v1228, %v1227
      %v1246 = vpack.c.b16 %v1230, %v1229
      %v1247 = vpack.c.b16 %v1232, %v1231
      %v1248 = vpack.c.b16 %v1234, %v1233
      %v1249 = vpack.c.b16 %v1236, %v1235
      %v1250 = vpack.c.b16 %v1238, %v1237
      %v1264 = vsel %vm837, %v1144, 0
      %v1267 = vsel %vm837, %v1146, 0
      %v1270 = vsel %vm837, %v1148, 0
      %v1273 = vsel %vm837, %v1150, 0
      %v1276 = vsel %vm837, %v1152, 0
      %v1279 = vsel %vm837, %v1154, 0
      %v1282 = vsel %vm837, %v1156, 0
      %v1285 = vsel %vm837, %v1158, 0
      %v1288 = vsel %vm837, %v1160, 0
      %v1291 = vsel %vm837, %v1162, 0
      %v1294 = vsel %vm837, %v1164, 0
      %v1297 = vsel %vm837, %v1166, 0
      %v1300 = vsel %vm837, %v1168, 0
      %v1303 = vsel %vm837, %v1170, 0
      %v1306 = vsel %vm837, %v1172, 0
      %v1309 = vsel %vm837, %v1174, 0
      %1311 = vmatprep.subr.bf16.mxu0 0
      %1312 = vmatpush1.bf16.msra.mxu0 %v1239
      %1313 = vmatprep.subr.bf16.mxu0 0
      %1314 = vmatpush1.bf16.msra.mxu0 %v1240
      %1315 = vmatprep.subr.bf16.mxu0 0
      %1316 = vmatpush1.bf16.msra.mxu0 %v1241
      %1317 = vmatprep.subr.bf16.mxu0 0
      %1318 = vmatpush1.bf16.msra.mxu0 %v1242
      %1319 = vmatprep.subr.bf16.mxu0 0
      %1320 = vmatpush1.bf16.msra.mxu0 %v1243
      %1321 = vmatprep.subr.bf16.mxu0 0
      %1322 = vmatpush1.bf16.msra.mxu0 %v1244
      %1323 = vmatprep.subr.bf16.mxu0 0
      %1324 = vmatpush1.bf16.msra.mxu0 %v1245
      %1325 = vmatprep.subr.bf16.mxu0 0
      %1326 = vmatpush1.bf16.msra.mxu0 %v1246
      %1327 = vmatprep.subr.bf16.mxu0 0
      %1328 = vmatpush1.bf16.msra.mxu0 %v1247
      %1329 = vmatprep.subr.bf16.mxu0 0
      %1330 = vmatpush1.bf16.msra.mxu0 %v1248
      %1331 = vmatprep.subr.bf16.mxu0 0
      %1332 = vmatpush1.bf16.msra.mxu0 %v1249
      %1333 = vmatprep.subr.bf16.mxu0 0
      %1334 = vmatpush1.bf16.msra.mxu0 %v1250
      %1335 = vmatprep.subr.bf16.mxu0 0
      %1336 = vmatpush1.bf16.msra.mxu0 0
      %1337 = vmatprep.subr.bf16.mxu0 0
      %1338 = vmatpush1.bf16.msra.mxu0 0
      %1339 = vmatprep.subr.bf16.mxu0 0
      %1340 = vmatpush1.bf16.msra.mxu0 0
      %1341 = vmatprep.subr.bf16.mxu0 0
      %1342 = vmatpush1.bf16.msra.mxu0 0
      %1343 = vmatprep.mubr.bf16.mxu0 %v1264
      %1344 = vmatmul.mubr.bf16.gmra.mrb[0].mxu0 %v1143
      %v1345 = vpop.f32.mrb[0].mxu0
      %v1346 = vadd.f32 %v921, %v1345
      %v1347 = vpop.f32.mrb[0].mxu0
      %v1348 = vpop.f32.mrb[0].mxu0
      %v1349 = vadd.f32 %v924, %v1348
      %v1350 = vpop.f32.mrb[0].mxu0
      %1351 = vmatprep.mubr.bf16.mxu0 %v1267
      %1352 = vmatmul.mubr.bf16.gmra.mrb[0].mxu0 %v1145
      %v1353 = vpop.f32.mrb[0].mxu0
      %v1354 = vadd.f32 %v929, %v1353
      %v1355 = vpop.f32.mrb[0].mxu0
      %v1356 = vpop.f32.mrb[0].mxu0
      %v1357 = vadd.f32 %v932, %v1356
      %v1358 = vpop.f32.mrb[0].mxu0
      %1359 = vmatprep.mubr.bf16.mxu0 %v1270
      %1360 = vmatmul.mubr.bf16.gmra.mrb[0].mxu0 %v1147
      %v1361 = vpop.f32.mrb[0].mxu0
      %v1362 = vadd.f32 %v937, %v1361
      %v1363 = vpop.f32.mrb[0].mxu0
      %v1364 = vpop.f32.mrb[0].mxu0
      %v1365 = vadd.f32 %v940, %v1364
      %v1366 = vpop.f32.mrb[0].mxu0
      %1367 = vmatprep.mubr.bf16.mxu0 %v1273
      %1368 = vmatmul.mubr.bf16.gmra.mrb[0].mxu0 %v1149
      %v1369 = vpop.f32.mrb[0].mxu0
      %v1370 = vadd.f32 %v945, %v1369
      %v1371 = vpop.f32.mrb[0].mxu0
      %v1372 = vpop.f32.mrb[0].mxu0
      %v1373 = vadd.f32 %v948, %v1372
      %v1374 = vpop.f32.mrb[0].mxu0
      %1375 = vmatprep.mubr.bf16.mxu0 %v1276
      %1376 = vmatmul.mubr.bf16.gmra.mrb[0].mxu0 %v1151
      %v1377 = vpop.f32.mrb[0].mxu0
      %v1378 = vadd.f32 %v953, %v1377
      %v1379 = vpop.f32.mrb[0].mxu0
      %v1380 = vpop.f32.mrb[0].mxu0
      %v1381 = vadd.f32 %v956, %v1380
      %v1382 = vpop.f32.mrb[0].mxu0
      %1383 = vmatprep.mubr.bf16.mxu0 %v1279
      %1384 = vmatmul.mubr.bf16.gmra.mrb[0].mxu0 %v1153
      %v1385 = vpop.f32.mrb[0].mxu0
      %v1386 = vadd.f32 %v961, %v1385
      %v1387 = vpop.f32.mrb[0].mxu0
      %v1388 = vpop.f32.mrb[0].mxu0
      %v1389 = vadd.f32 %v964, %v1388
      %v1390 = vpop.f32.mrb[0].mxu0
      %1391 = vmatprep.mubr.bf16.mxu0 %v1282
      %1392 = vmatmul.mubr.bf16.gmra.mrb[0].mxu0 %v1155
      %v1393 = vpop.f32.mrb[0].mxu0
      %v1394 = vadd.f32 %v969, %v1393
      %v1395 = vpop.f32.mrb[0].mxu0
      %v1396 = vpop.f32.mrb[0].mxu0
      %v1397 = vadd.f32 %v972, %v1396
      %v1398 = vpop.f32.mrb[0].mxu0
      %1399 = vmatprep.mubr.bf16.mxu0 %v1285
      %1400 = vmatmul.mubr.bf16.gmra.mrb[0].mxu0 %v1157
      %v1401 = vpop.f32.mrb[0].mxu0
      %v1402 = vadd.f32 %v977, %v1401
      %v1403 = vpop.f32.mrb[0].mxu0
      %v1404 = vpop.f32.mrb[0].mxu0
      %v1405 = vadd.f32 %v980, %v1404
      %v1406 = vpop.f32.mrb[0].mxu0
      %1407 = vmatprep.mubr.bf16.mxu0 %v1288
      %1408 = vmatmul.mubr.bf16.gmra.mrb[0].mxu0 %v1159
      %v1409 = vpop.f32.mrb[0].mxu0
      %v1410 = vadd.f32 %v985, %v1409
      %v1411 = vpop.f32.mrb[0].mxu0
      %v1412 = vpop.f32.mrb[0].mxu0
      %v1413 = vadd.f32 %v988, %v1412
      %v1414 = vpop.f32.mrb[0].mxu0
      %1415 = vmatprep.mubr.bf16.mxu0 %v1291
      %1416 = vmatmul.mubr.bf16.gmra.mrb[0].mxu0 %v1161
      %v1417 = vpop.f32.mrb[0].mxu0
      %v1418 = vadd.f32 %v993, %v1417
      %v1419 = vpop.f32.mrb[0].mxu0
      %v1420 = vpop.f32.mrb[0].mxu0
      %v1421 = vadd.f32 %v996, %v1420
      %v1422 = vpop.f32.mrb[0].mxu0
      %1423 = vmatprep.mubr.bf16.mxu0 %v1294
      %1424 = vmatmul.mubr.bf16.gmra.mrb[0].mxu0 %v1163
      %v1425 = vpop.f32.mrb[0].mxu0
      %v1426 = vadd.f32 %v1001, %v1425
      %v1427 = vpop.f32.mrb[0].mxu0
      %v1428 = vpop.f32.mrb[0].mxu0
      %v1429 = vadd.f32 %v1004, %v1428
      %v1430 = vpop.f32.mrb[0].mxu0
      %1431 = vmatprep.mubr.bf16.mxu0 %v1297
      %1432 = vmatmul.mubr.bf16.gmra.mrb[0].mxu0 %v1165
      %v1433 = vpop.f32.mrb[0].mxu0
      %v1434 = vadd.f32 %v1009, %v1433
      %v1435 = vpop.f32.mrb[0].mxu0
      %v1436 = vpop.f32.mrb[0].mxu0
      %v1437 = vadd.f32 %v1012, %v1436
      %v1438 = vpop.f32.mrb[0].mxu0
      %1439 = vmatprep.mubr.bf16.mxu0 %v1300
      %1440 = vmatmul.mubr.bf16.gmra.mrb[0].mxu0 %v1167
      %v1441 = vpop.f32.mrb[0].mxu0
      %v1442 = vadd.f32 %v1017, %v1441
      %v1443 = vpop.f32.mrb[0].mxu0
      %v1444 = vpop.f32.mrb[0].mxu0
      %v1445 = vadd.f32 %v1020, %v1444
      %v1446 = vpop.f32.mrb[0].mxu0
      %1447 = vmatprep.mubr.bf16.mxu0 %v1303
      %1448 = vmatmul.mubr.bf16.gmra.mrb[0].mxu0 %v1169
      %v1449 = vpop.f32.mrb[0].mxu0
      %v1450 = vadd.f32 %v1025, %v1449
      %v1451 = vpop.f32.mrb[0].mxu0
      %v1452 = vpop.f32.mrb[0].mxu0
      %v1453 = vadd.f32 %v1028, %v1452
      %v1454 = vpop.f32.mrb[0].mxu0
      %1455 = vmatprep.mubr.bf16.mxu0 %v1306
      %1456 = vmatmul.mubr.bf16.gmra.mrb[0].mxu0 %v1171
      %v1457 = vpop.f32.mrb[0].mxu0
      %v1458 = vadd.f32 %v1033, %v1457
      %v1459 = vpop.f32.mrb[0].mxu0
      %v1460 = vpop.f32.mrb[0].mxu0
      %v1461 = vadd.f32 %v1036, %v1460
      %v1462 = vpop.f32.mrb[0].mxu0
      %1463 = vmatprep.mubr.bf16.mxu0 %v1309
      %1464 = vmatmul.mubr.bf16.gmra.mrb[0].mxu0 %v1173
      %v1465 = vpop.f32.mrb[0].mxu0
      %v1466 = vadd.f32 %v1041, %v1465
      %v1467 = vpop.f32.mrb[0].mxu0
      %v1468 = vpop.f32.mrb[0].mxu0
      %v1469 = vadd.f32 %v1044, %v1468
      %v1470 = vpop.f32.mrb[0].mxu0
      %1471 = vdwg.mxu0
      %s1472 = scalar_lea.vmem %s440, 32
      %v1473 = vld [vmem:[%s1472] sm:$0xff]
      %v1474 = vld [vmem:[%s1472 + $0x8] sm:$0xff]
      %v1475 = vld [vmem:[%s1472 + $0x10] sm:$0xff]
      %v1476 = vld [vmem:[%s1472 + $0x18] sm:$0xff]
      %v1477 = vld [vmem:[%s1472 + $0x20] sm:$0xff]
      %v1478 = vld [vmem:[%s1472 + $0x28] sm:$0xff]
      %v1479 = vld [vmem:[%s1472 + $0x30] sm:$0xff]
      %v1480 = vld [vmem:[%s1472 + $0x38] sm:$0xff]
      %v1481 = vld [vmem:[%s1472 + $0x40] sm:$0xff]
      %v1482 = vld [vmem:[%s1472 + $0x48] sm:$0xff]
      %v1483 = vld [vmem:[%s1472 + $0x50] sm:$0xff]
      %v1484 = vld [vmem:[%s1472 + $0x58] sm:$0xff]
      %v1485 = vld [vmem:[%s1472 + $0x60] sm:$0xff]
      %v1486 = vld [vmem:[%s1472 + $0x68] sm:$0xff]
      %v1487 = vld [vmem:[%s1472 + $0x70] sm:$0xff]
      %v1488 = vld [vmem:[%s1472 + $0x78] sm:$0xff]
      %v1489 = vld [vmem:[%s1472 + $0x80] sm:$0xff]
      %v1490 = vld [vmem:[%s1472 + $0x88] sm:$0xff]
      %v1491 = vld [vmem:[%s1472 + $0x90] sm:$0xff]
      %v1492 = vld [vmem:[%s1472 + $0x98] sm:$0xff]
      %v1493 = vld [vmem:[%s1472 + $0xa0] sm:$0xff]
      %v1494 = vld [vmem:[%s1472 + $0xa8] sm:$0xff]
      %v1495 = vld [vmem:[%s1472 + $0xb0] sm:$0xff]
      %v1496 = vld [vmem:[%s1472 + $0xb8] sm:$0xff]
      %v1497 = vld [vmem:[%s1472 + $0xc0] sm:$0xff]
      %v1498 = vld [vmem:[%s1472 + $0xc8] sm:$0xff]
      %v1499 = vld [vmem:[%s1472 + $0xd0] sm:$0xff]
      %v1500 = vld [vmem:[%s1472 + $0xd8] sm:$0xff]
      %v1501 = vld [vmem:[%s1472 + $0xe0] sm:$0xff]
      %v1502 = vld [vmem:[%s1472 + $0xe8] sm:$0xff]
      %v1503 = vld [vmem:[%s1472 + $0xf0] sm:$0xff]
      %v1504 = vld [vmem:[%s1472 + $0xf8] sm:$0xff]
      %s1505 = scalar_lea.vmem %s4, 192
      %v1506 = vld [vmem:[%s1505] sm:$0xf]
      %v1507 = vld [vmem:[%s1505 + $0x4] sm:$0xf]
      %v1508 = vld [vmem:[%s1505 + $0x8] sm:$0xf]
      %v1509 = vld [vmem:[%s1505 + $0xc] sm:$0xf]
      %v1510 = vld [vmem:[%s1505 + $0x10] sm:$0xf]
      %v1511 = vld [vmem:[%s1505 + $0x14] sm:$0xf]
      %v1512 = vld [vmem:[%s1505 + $0x18] sm:$0xf]
      %v1513 = vld [vmem:[%s1505 + $0x1c] sm:$0xf]
      %v1514 = vld [vmem:[%s1505 + $0x20] sm:$0xf]
      %v1515 = vld [vmem:[%s1505 + $0x24] sm:$0xf]
      %v1516 = vld [vmem:[%s1505 + $0x28] sm:$0xf]
      %v1517 = vld [vmem:[%s1505 + $0x2c] sm:$0xf]
      %v1518 = vld [vmem:[%s1505 + $0x30] sm:$0xf]
      %v1519 = vld [vmem:[%s1505 + $0x34] sm:$0xf]
      %v1520 = vld [vmem:[%s1505 + $0x38] sm:$0xf]
      %v1521 = vld [vmem:[%s1505 + $0x3c] sm:$0xf]
      %v1522 = vld [vmem:[%s1505 + $0x40] sm:$0xf]
      %v1523 = vld [vmem:[%s1505 + $0x44] sm:$0xf]
      %v1524 = vld [vmem:[%s1505 + $0x48] sm:$0xf]
      %v1525 = vld [vmem:[%s1505 + $0x4c] sm:$0xf]
      %v1526 = vld [vmem:[%s1505 + $0x50] sm:$0xf]
      %v1527 = vld [vmem:[%s1505 + $0x54] sm:$0xf]
      %v1528 = vld [vmem:[%s1505 + $0x58] sm:$0xf]
      %v1529 = vld [vmem:[%s1505 + $0x5c] sm:$0xf]
      %v1562 = vunpack.c.l.b16 %v1473
      %v1563 = vunpack.c.h.b16 %v1473
      %v1564 = vunpack.c.l.b16 %v1474
      %v1565 = vunpack.c.h.b16 %v1474
      %v1566 = vunpack.c.l.b16 %v1475
      %v1567 = vunpack.c.h.b16 %v1475
      %v1568 = vunpack.c.l.b16 %v1476
      %v1569 = vunpack.c.h.b16 %v1476
      %v1570 = vunpack.c.l.b16 %v1477
      %v1571 = vunpack.c.h.b16 %v1477
      %v1572 = vunpack.c.l.b16 %v1478
      %v1573 = vunpack.c.h.b16 %v1478
      %v1574 = vunpack.c.l.b16 %v1479
      %v1575 = vunpack.c.h.b16 %v1479
      %v1576 = vunpack.c.l.b16 %v1480
      %v1577 = vunpack.c.h.b16 %v1480
      %v1578 = vunpack.c.l.b16 %v1481
      %v1579 = vunpack.c.h.b16 %v1481
      %v1580 = vunpack.c.l.b16 %v1482
      %v1581 = vunpack.c.h.b16 %v1482
      %v1582 = vunpack.c.l.b16 %v1483
      %v1583 = vunpack.c.h.b16 %v1483
      %v1584 = vunpack.c.l.b16 %v1484
      %v1585 = vunpack.c.h.b16 %v1484
      %v1586 = vunpack.c.l.b16 %v1485
      %v1587 = vunpack.c.h.b16 %v1485
      %v1588 = vunpack.c.l.b16 %v1486
      %v1589 = vunpack.c.h.b16 %v1486
      %v1590 = vunpack.c.l.b16 %v1487
      %v1591 = vunpack.c.h.b16 %v1487
      %v1592 = vunpack.c.l.b16 %v1488
      %v1593 = vunpack.c.h.b16 %v1488
      %v1594 = vunpack.c.l.b16 %v1489
      %v1595 = vunpack.c.h.b16 %v1489
      %v1596 = vunpack.c.l.b16 %v1490
      %v1597 = vunpack.c.h.b16 %v1490
      %v1598 = vunpack.c.l.b16 %v1491
      %v1599 = vunpack.c.h.b16 %v1491
      %v1600 = vunpack.c.l.b16 %v1492
      %v1601 = vunpack.c.h.b16 %v1492
      %v1602 = vunpack.c.l.b16 %v1493
      %v1603 = vunpack.c.h.b16 %v1493
      %v1604 = vunpack.c.l.b16 %v1494
      %v1605 = vunpack.c.h.b16 %v1494
      %v1606 = vunpack.c.l.b16 %v1495
      %v1607 = vunpack.c.h.b16 %v1495
      %v1608 = vunpack.c.l.b16 %v1496
      %v1609 = vunpack.c.h.b16 %v1496
      %v1610 = vunpack.c.l.b16 %v1497
      %v1611 = vunpack.c.h.b16 %v1497
      %v1612 = vunpack.c.l.b16 %v1498
      %v1613 = vunpack.c.h.b16 %v1498
      %v1614 = vunpack.c.l.b16 %v1499
      %v1615 = vunpack.c.h.b16 %v1499
      %v1616 = vunpack.c.l.b16 %v1500
      %v1617 = vunpack.c.h.b16 %v1500
      %v1618 = vunpack.c.l.b16 %v1501
      %v1619 = vunpack.c.h.b16 %v1501
      %v1620 = vunpack.c.l.b16 %v1502
      %v1621 = vunpack.c.h.b16 %v1502
      %v1622 = vunpack.c.l.b16 %v1503
      %v1623 = vunpack.c.h.b16 %v1503
      %v1624 = vunpack.c.l.b16 %v1504
      %v1625 = vunpack.c.h.b16 %v1504
      %v1626 = vpack.c.b16 %v1564, %v1562
      %v1627 = vpack.c.b16 %v1565, %v1563
      %v1628 = vpack.c.b16 %v1568, %v1566
      %v1629 = vpack.c.b16 %v1569, %v1567
      %v1630 = vpack.c.b16 %v1572, %v1570
      %v1631 = vpack.c.b16 %v1573, %v1571
      %v1632 = vpack.c.b16 %v1576, %v1574
      %v1633 = vpack.c.b16 %v1577, %v1575
      %v1634 = vpack.c.b16 %v1580, %v1578
      %v1635 = vpack.c.b16 %v1581, %v1579
      %v1636 = vpack.c.b16 %v1584, %v1582
      %v1637 = vpack.c.b16 %v1585, %v1583
      %v1638 = vpack.c.b16 %v1588, %v1586
      %v1639 = vpack.c.b16 %v1589, %v1587
      %v1640 = vpack.c.b16 %v1592, %v1590
      %v1641 = vpack.c.b16 %v1593, %v1591
      %v1642 = vpack.c.b16 %v1596, %v1594
      %v1643 = vpack.c.b16 %v1597, %v1595
      %v1644 = vpack.c.b16 %v1600, %v1598
      %v1645 = vpack.c.b16 %v1601, %v1599
      %v1646 = vpack.c.b16 %v1604, %v1602
      %v1647 = vpack.c.b16 %v1605, %v1603
      %v1648 = vpack.c.b16 %v1608, %v1606
      %v1649 = vpack.c.b16 %v1609, %v1607
      %v1650 = vpack.c.b16 %v1612, %v1610
      %v1651 = vpack.c.b16 %v1613, %v1611
      %v1652 = vpack.c.b16 %v1616, %v1614
      %v1653 = vpack.c.b16 %v1617, %v1615
      %v1654 = vpack.c.b16 %v1620, %v1618
      %v1655 = vpack.c.b16 %v1621, %v1619
      %v1656 = vpack.c.b16 %v1624, %v1622
      %v1657 = vpack.c.b16 %v1625, %v1623
      %v1698 = vunpack.c.l.b16 %v1506
      %v1699 = vunpack.c.l.b16 %v1507
      %v1700 = vunpack.c.l.b16 %v1508
      %v1701 = vunpack.c.l.b16 %v1509
      %v1702 = vunpack.c.l.b16 %v1510
      %v1703 = vunpack.c.l.b16 %v1511
      %v1704 = vunpack.c.l.b16 %v1512
      %v1705 = vunpack.c.l.b16 %v1513
      %v1706 = vunpack.c.l.b16 %v1514
      %v1707 = vunpack.c.l.b16 %v1515
      %v1708 = vunpack.c.l.b16 %v1516
      %v1709 = vunpack.c.l.b16 %v1517
      %v1710 = vunpack.c.l.b16 %v1518
      %v1711 = vunpack.c.l.b16 %v1519
      %v1712 = vunpack.c.l.b16 %v1520
      %v1713 = vunpack.c.l.b16 %v1521
      %v1714 = vunpack.c.l.b16 %v1522
      %v1715 = vunpack.c.l.b16 %v1523
      %v1716 = vunpack.c.l.b16 %v1524
      %v1717 = vunpack.c.l.b16 %v1525
      %v1718 = vunpack.c.l.b16 %v1526
      %v1719 = vunpack.c.l.b16 %v1527
      %v1720 = vunpack.c.l.b16 %v1528
      %v1721 = vunpack.c.l.b16 %v1529
      %v1722 = vpack.c.b16 %v1699, %v1698
      %v1723 = vpack.c.b16 %v1701, %v1700
      %v1724 = vpack.c.b16 %v1703, %v1702
      %v1725 = vpack.c.b16 %v1705, %v1704
      %v1726 = vpack.c.b16 %v1707, %v1706
      %v1727 = vpack.c.b16 %v1709, %v1708
      %v1728 = vpack.c.b16 %v1711, %v1710
      %v1729 = vpack.c.b16 %v1713, %v1712
      %v1730 = vpack.c.b16 %v1715, %v1714
      %v1731 = vpack.c.b16 %v1717, %v1716
      %v1732 = vpack.c.b16 %v1719, %v1718
      %v1733 = vpack.c.b16 %v1721, %v1720
      %v1747 = vsel %vm837, %v1627, 0
      %v1750 = vsel %vm837, %v1629, 0
      %v1753 = vsel %vm837, %v1631, 0
      %v1756 = vsel %vm837, %v1633, 0
      %v1759 = vsel %vm837, %v1635, 0
      %v1762 = vsel %vm837, %v1637, 0
      %v1765 = vsel %vm837, %v1639, 0
      %v1768 = vsel %vm837, %v1641, 0
      %v1771 = vsel %vm837, %v1643, 0
      %v1774 = vsel %vm837, %v1645, 0
      %v1777 = vsel %vm837, %v1647, 0
      %v1780 = vsel %vm837, %v1649, 0
      %v1783 = vsel %vm837, %v1651, 0
      %v1786 = vsel %vm837, %v1653, 0
      %v1789 = vsel %vm837, %v1655, 0
      %v1792 = vsel %vm837, %v1657, 0
      %1794 = vmatprep.subr.bf16.mxu0 0
      %1795 = vmatpush1.bf16.msra.mxu0 %v1722
      %1796 = vmatprep.subr.bf16.mxu0 0
      %1797 = vmatpush1.bf16.msra.mxu0 %v1723
      %1798 = vmatprep.subr.bf16.mxu0 0
      %1799 = vmatpush1.bf16.msra.mxu0 %v1724
      %1800 = vmatprep.subr.bf16.mxu0 0
      %1801 = vmatpush1.bf16.msra.mxu0 %v1725
      %1802 = vmatprep.subr.bf16.mxu0 0
      %1803 = vmatpush1.bf16.msra.mxu0 %v1726
      %1804 = vmatprep.subr.bf16.mxu0 0
      %1805 = vmatpush1.bf16.msra.mxu0 %v1727
      %1806 = vmatprep.subr.bf16.mxu0 0
      %1807 = vmatpush1.bf16.msra.mxu0 %v1728
      %1808 = vmatprep.subr.bf16.mxu0 0
      %1809 = vmatpush1.bf16.msra.mxu0 %v1729
      %1810 = vmatprep.subr.bf16.mxu0 0
      %1811 = vmatpush1.bf16.msra.mxu0 %v1730
      %1812 = vmatprep.subr.bf16.mxu0 0
      %1813 = vmatpush1.bf16.msra.mxu0 %v1731
      %1814 = vmatprep.subr.bf16.mxu0 0
      %1815 = vmatpush1.bf16.msra.mxu0 %v1732
      %1816 = vmatprep.subr.bf16.mxu0 0
      %1817 = vmatpush1.bf16.msra.mxu0 %v1733
      %1818 = vmatprep.subr.bf16.mxu0 0
      %1819 = vmatpush1.bf16.msra.mxu0 0
      %1820 = vmatprep.subr.bf16.mxu0 0
      %1821 = vmatpush1.bf16.msra.mxu0 0
      %1822 = vmatprep.subr.bf16.mxu0 0
      %1823 = vmatpush1.bf16.msra.mxu0 0
      %1824 = vmatprep.subr.bf16.mxu0 0
      %1825 = vmatpush1.bf16.msra.mxu0 0
      %1826 = vmatprep.mubr.bf16.mxu0 %v1747
      %1827 = vmatmul.mubr.bf16.gmra.mrb[0].mxu0 %v1626
      %v1828 = vpop.f32.mrb[0].mxu0
      %v1829 = vadd.f32 0.0, %v1828
      %v1830 = vpop.f32.mrb[0].mxu0
      %v1831 = vpop.f32.mrb[0].mxu0
      %v1832 = vadd.f32 0.0, %v1831
      %v1833 = vpop.f32.mrb[0].mxu0
      %1834 = vmatprep.mubr.bf16.mxu0 %v1750
      %1835 = vmatmul.mubr.bf16.gmra.mrb[0].mxu0 %v1628
      %v1836 = vpop.f32.mrb[0].mxu0
      %v1837 = vadd.f32 0.0, %v1836
      %v1838 = vpop.f32.mrb[0].mxu0
      %v1839 = vpop.f32.mrb[0].mxu0
      %v1840 = vadd.f32 0.0, %v1839
      %v1841 = vpop.f32.mrb[0].mxu0
      %1842 = vmatprep.mubr.bf16.mxu0 %v1753
      %1843 = vmatmul.mubr.bf16.gmra.mrb[0].mxu0 %v1630
      %v1844 = vpop.f32.mrb[0].mxu0
      %v1845 = vadd.f32 0.0, %v1844
      %v1846 = vpop.f32.mrb[0].mxu0
      %v1847 = vpop.f32.mrb[0].mxu0
      %v1848 = vadd.f32 0.0, %v1847
      %v1849 = vpop.f32.mrb[0].mxu0
      %1850 = vmatprep.mubr.bf16.mxu0 %v1756
      %1851 = vmatmul.mubr.bf16.gmra.mrb[0].mxu0 %v1632
      %v1852 = vpop.f32.mrb[0].mxu0
      %v1853 = vadd.f32 0.0, %v1852
      %v1854 = vpop.f32.mrb[0].mxu0
      %v1855 = vpop.f32.mrb[0].mxu0
      %v1856 = vadd.f32 0.0, %v1855
      %v1857 = vpop.f32.mrb[0].mxu0
      %1858 = vmatprep.mubr.bf16.mxu0 %v1759
      %1859 = vmatmul.mubr.bf16.gmra.mrb[0].mxu0 %v1634
      %v1860 = vpop.f32.mrb[0].mxu0
      %v1861 = vadd.f32 0.0, %v1860
      %v1862 = vpop.f32.mrb[0].mxu0
      %v1863 = vpop.f32.mrb[0].mxu0
      %v1864 = vadd.f32 0.0, %v1863
      %v1865 = vpop.f32.mrb[0].mxu0
      %1866 = vmatprep.mubr.bf16.mxu0 %v1762
      %1867 = vmatmul.mubr.bf16.gmra.mrb[0].mxu0 %v1636
      %v1868 = vpop.f32.mrb[0].mxu0
      %v1869 = vadd.f32 0.0, %v1868
      %v1870 = vpop.f32.mrb[0].mxu0
      %v1871 = vpop.f32.mrb[0].mxu0
      %v1872 = vadd.f32 0.0, %v1871
      %v1873 = vpop.f32.mrb[0].mxu0
      %1874 = vmatprep.mubr.bf16.mxu0 %v1765
      %1875 = vmatmul.mubr.bf16.gmra.mrb[0].mxu0 %v1638
      %v1876 = vpop.f32.mrb[0].mxu0
      %v1877 = vadd.f32 0.0, %v1876
      %v1878 = vpop.f32.mrb[0].mxu0
      %v1879 = vpop.f32.mrb[0].mxu0
      %v1880 = vadd.f32 0.0, %v1879
      %v1881 = vpop.f32.mrb[0].mxu0
      %1882 = vmatprep.mubr.bf16.mxu0 %v1768
      %1883 = vmatmul.mubr.bf16.gmra.mrb[0].mxu0 %v1640
      %v1884 = vpop.f32.mrb[0].mxu0
      %v1885 = vadd.f32 0.0, %v1884
      %v1886 = vpop.f32.mrb[0].mxu0
      %v1887 = vpop.f32.mrb[0].mxu0
      %v1888 = vadd.f32 0.0, %v1887
      %v1889 = vpop.f32.mrb[0].mxu0
      %1890 = vmatprep.mubr.bf16.mxu0 %v1771
      %1891 = vmatmul.mubr.bf16.gmra.mrb[0].mxu0 %v1642
      %v1892 = vpop.f32.mrb[0].mxu0
      %v1893 = vadd.f32 0.0, %v1892
      %v1894 = vpop.f32.mrb[0].mxu0
      %v1895 = vpop.f32.mrb[0].mxu0
      %v1896 = vadd.f32 0.0, %v1895
      %v1897 = vpop.f32.mrb[0].mxu0
      %1898 = vmatprep.mubr.bf16.mxu0 %v1774
      %1899 = vmatmul.mubr.bf16.gmra.mrb[0].mxu0 %v1644
      %v1900 = vpop.f32.mrb[0].mxu0
      %v1901 = vadd.f32 0.0, %v1900
      %v1902 = vpop.f32.mrb[0].mxu0
      %v1903 = vpop.f32.mrb[0].mxu0
      %v1904 = vadd.f32 0.0, %v1903
      %v1905 = vpop.f32.mrb[0].mxu0
      %1906 = vmatprep.mubr.bf16.mxu0 %v1777
      %1907 = vmatmul.mubr.bf16.gmra.mrb[0].mxu0 %v1646
      %v1908 = vpop.f32.mrb[0].mxu0
      %v1909 = vadd.f32 0.0, %v1908
      %v1910 = vpop.f32.mrb[0].mxu0
      %v1911 = vpop.f32.mrb[0].mxu0
      %v1912 = vadd.f32 0.0, %v1911
      %v1913 = vpop.f32.mrb[0].mxu0
      %1914 = vmatprep.mubr.bf16.mxu0 %v1780
      %1915 = vmatmul.mubr.bf16.gmra.mrb[0].mxu0 %v1648
      %v1916 = vpop.f32.mrb[0].mxu0
      %v1917 = vadd.f32 0.0, %v1916
      %v1918 = vpop.f32.mrb[0].mxu0
      %v1919 = vpop.f32.mrb[0].mxu0
      %v1920 = vadd.f32 0.0, %v1919
      %v1921 = vpop.f32.mrb[0].mxu0
      %1922 = vmatprep.mubr.bf16.mxu0 %v1783
      %1923 = vmatmul.mubr.bf16.gmra.mrb[0].mxu0 %v1650
      %v1924 = vpop.f32.mrb[0].mxu0
      %v1925 = vadd.f32 0.0, %v1924
      %v1926 = vpop.f32.mrb[0].mxu0
      %v1927 = vpop.f32.mrb[0].mxu0
      %v1928 = vadd.f32 0.0, %v1927
      %v1929 = vpop.f32.mrb[0].mxu0
      %1930 = vmatprep.mubr.bf16.mxu0 %v1786
      %1931 = vmatmul.mubr.bf16.gmra.mrb[0].mxu0 %v1652
      %v1932 = vpop.f32.mrb[0].mxu0
      %v1933 = vadd.f32 0.0, %v1932
      %v1934 = vpop.f32.mrb[0].mxu0
      %v1935 = vpop.f32.mrb[0].mxu0
      %v1936 = vadd.f32 0.0, %v1935
      %v1937 = vpop.f32.mrb[0].mxu0
      %1938 = vmatprep.mubr.bf16.mxu0 %v1789
      %1939 = vmatmul.mubr.bf16.gmra.mrb[0].mxu0 %v1654
      %v1940 = vpop.f32.mrb[0].mxu0
      %v1941 = vadd.f32 0.0, %v1940
      %v1942 = vpop.f32.mrb[0].mxu0
      %v1943 = vpop.f32.mrb[0].mxu0
      %v1944 = vadd.f32 0.0, %v1943
      %v1945 = vpop.f32.mrb[0].mxu0
      %1946 = vmatprep.mubr.bf16.mxu0 %v1792
      %1947 = vmatmul.mubr.bf16.gmra.mrb[0].mxu0 %v1656
      %v1948 = vpop.f32.mrb[0].mxu0
      %v1949 = vadd.f32 0.0, %v1948
      %v1950 = vpop.f32.mrb[0].mxu0
      %v1951 = vpop.f32.mrb[0].mxu0
      %v1952 = vadd.f32 0.0, %v1951
      %v1953 = vpop.f32.mrb[0].mxu0
      %1954 = vdwg.mxu0
      %v1955 = vadd.f32 %v1346, %v1829
      %v1956 = vadd.f32 %v1349, %v1832
      %v1957 = vadd.f32 %v1354, %v1837
      %v1958 = vadd.f32 %v1357, %v1840
      %v1959 = vadd.f32 %v1362, %v1845
      %v1960 = vadd.f32 %v1365, %v1848
      %v1961 = vadd.f32 %v1370, %v1853
      %v1962 = vadd.f32 %v1373, %v1856
      %v1963 = vadd.f32 %v1378, %v1861
      %v1964 = vadd.f32 %v1381, %v1864
      %v1965 = vadd.f32 %v1386, %v1869
      %v1966 = vadd.f32 %v1389, %v1872
      %v1967 = vadd.f32 %v1394, %v1877
      %v1968 = vadd.f32 %v1397, %v1880
      %v1969 = vadd.f32 %v1402, %v1885
      %v1970 = vadd.f32 %v1405, %v1888
      %v1971 = vadd.f32 %v1410, %v1893
      %v1972 = vadd.f32 %v1413, %v1896
      %v1973 = vadd.f32 %v1418, %v1901
      %v1974 = vadd.f32 %v1421, %v1904
      %v1975 = vadd.f32 %v1426, %v1909
      %v1976 = vadd.f32 %v1429, %v1912
      %v1977 = vadd.f32 %v1434, %v1917
      %v1978 = vadd.f32 %v1437, %v1920
      %v1979 = vadd.f32 %v1442, %v1925
      %v1980 = vadd.f32 %v1445, %v1928
      %v1981 = vadd.f32 %v1450, %v1933
      %v1982 = vadd.f32 %v1453, %v1936
      %v1983 = vadd.f32 %v1458, %v1941
      %v1984 = vadd.f32 %v1461, %v1944
      %v1985 = vadd.f32 %v1466, %v1949
      %v1986 = vadd.f32 %v1469, %v1952
      %v1987 = vld [vmem:[%s452] sm:$0xff]
      %v1988 = vld [vmem:[%s452 + $0x8] sm:$0xff]
      %v1989 = vld [vmem:[%s452 + $0x10] sm:$0xff]
      %v1990 = vld [vmem:[%s452 + $0x18] sm:$0xff]
      %v1991 = vld [vmem:[%s452 + $0x20] sm:$0xff]
      %v1992 = vld [vmem:[%s452 + $0x28] sm:$0xff]
      %v1993 = vld [vmem:[%s452 + $0x30] sm:$0xff]
      %v1994 = vld [vmem:[%s452 + $0x38] sm:$0xff]
      %v1995 = vld [vmem:[%s452 + $0x40] sm:$0xff]
      %v1996 = vld [vmem:[%s452 + $0x48] sm:$0xff]
      %v1997 = vld [vmem:[%s452 + $0x50] sm:$0xff]
      %v1998 = vld [vmem:[%s452 + $0x58] sm:$0xff]
      %v1999 = vld [vmem:[%s452 + $0x60] sm:$0xff]
      %v2000 = vld [vmem:[%s452 + $0x68] sm:$0xff]
      %v2001 = vld [vmem:[%s452 + $0x70] sm:$0xff]
      %v2002 = vld [vmem:[%s452 + $0x78] sm:$0xff]
      %v2003 = vld [vmem:[%s452 + $0x80] sm:$0xff]
      %v2004 = vld [vmem:[%s452 + $0x88] sm:$0xff]
      %v2005 = vld [vmem:[%s452 + $0x90] sm:$0xff]
      %v2006 = vld [vmem:[%s452 + $0x98] sm:$0xff]
      %v2007 = vld [vmem:[%s452 + $0xa0] sm:$0xff]
      %v2008 = vld [vmem:[%s452 + $0xa8] sm:$0xff]
      %v2009 = vld [vmem:[%s452 + $0xb0] sm:$0xff]
      %v2010 = vld [vmem:[%s452 + $0xb8] sm:$0xff]
      %v2011 = vld [vmem:[%s452 + $0xc0] sm:$0xff]
      %v2012 = vld [vmem:[%s452 + $0xc8] sm:$0xff]
      %v2013 = vld [vmem:[%s452 + $0xd0] sm:$0xff]
      %v2014 = vld [vmem:[%s452 + $0xd8] sm:$0xff]
      %v2015 = vld [vmem:[%s452 + $0xe0] sm:$0xff]
      %v2016 = vld [vmem:[%s452 + $0xe8] sm:$0xff]
      %v2017 = vld [vmem:[%s452 + $0xf0] sm:$0xff]
      %v2018 = vld [vmem:[%s452 + $0xf8] sm:$0xff]
      %s2019 = scalar_lea.vmem %s4, 288
      %v2020 = vld [vmem:[%s2019] sm:$0xf]
      %v2021 = vld [vmem:[%s2019 + $0x4] sm:$0xf]
      %v2022 = vld [vmem:[%s2019 + $0x8] sm:$0xf]
      %v2023 = vld [vmem:[%s2019 + $0xc] sm:$0xf]
      %v2024 = vld [vmem:[%s2019 + $0x10] sm:$0xf]
      %v2025 = vld [vmem:[%s2019 + $0x14] sm:$0xf]
      %v2026 = vld [vmem:[%s2019 + $0x18] sm:$0xf]
      %v2027 = vld [vmem:[%s2019 + $0x1c] sm:$0xf]
      %v2028 = vld [vmem:[%s2019 + $0x20] sm:$0xf]
      %v2029 = vld [vmem:[%s2019 + $0x24] sm:$0xf]
      %v2030 = vld [vmem:[%s2019 + $0x28] sm:$0xf]
      %v2031 = vld [vmem:[%s2019 + $0x2c] sm:$0xf]
      %v2032 = vld [vmem:[%s2019 + $0x30] sm:$0xf]
      %v2033 = vld [vmem:[%s2019 + $0x34] sm:$0xf]
      %v2034 = vld [vmem:[%s2019 + $0x38] sm:$0xf]
      %v2035 = vld [vmem:[%s2019 + $0x3c] sm:$0xf]
      %v2036 = vld [vmem:[%s2019 + $0x40] sm:$0xf]
      %v2037 = vld [vmem:[%s2019 + $0x44] sm:$0xf]
      %v2038 = vld [vmem:[%s2019 + $0x48] sm:$0xf]
      %v2039 = vld [vmem:[%s2019 + $0x4c] sm:$0xf]
      %v2040 = vld [vmem:[%s2019 + $0x50] sm:$0xf]
      %v2041 = vld [vmem:[%s2019 + $0x54] sm:$0xf]
      %v2042 = vld [vmem:[%s2019 + $0x58] sm:$0xf]
      %v2043 = vld [vmem:[%s2019 + $0x5c] sm:$0xf]
      %v2076 = vunpack.c.l.b16 %v1987
      %v2077 = vunpack.c.h.b16 %v1987
      %v2078 = vunpack.c.l.b16 %v1988
      %v2079 = vunpack.c.h.b16 %v1988
      %v2080 = vunpack.c.l.b16 %v1989
      %v2081 = vunpack.c.h.b16 %v1989
      %v2082 = vunpack.c.l.b16 %v1990
      %v2083 = vunpack.c.h.b16 %v1990
      %v2084 = vunpack.c.l.b16 %v1991
      %v2085 = vunpack.c.h.b16 %v1991
      %v2086 = vunpack.c.l.b16 %v1992
      %v2087 = vunpack.c.h.b16 %v1992
      %v2088 = vunpack.c.l.b16 %v1993
      %v2089 = vunpack.c.h.b16 %v1993
      %v2090 = vunpack.c.l.b16 %v1994
      %v2091 = vunpack.c.h.b16 %v1994
      %v2092 = vunpack.c.l.b16 %v1995
      %v2093 = vunpack.c.h.b16 %v1995
      %v2094 = vunpack.c.l.b16 %v1996
      %v2095 = vunpack.c.h.b16 %v1996
      %v2096 = vunpack.c.l.b16 %v1997
      %v2097 = vunpack.c.h.b16 %v1997
      %v2098 = vunpack.c.l.b16 %v1998
      %v2099 = vunpack.c.h.b16 %v1998
      %v2100 = vunpack.c.l.b16 %v1999
      %v2101 = vunpack.c.h.b16 %v1999
      %v2102 = vunpack.c.l.b16 %v2000
      %v2103 = vunpack.c.h.b16 %v2000
      %v2104 = vunpack.c.l.b16 %v2001
      %v2105 = vunpack.c.h.b16 %v2001
      %v2106 = vunpack.c.l.b16 %v2002
      %v2107 = vunpack.c.h.b16 %v2002
      %v2108 = vunpack.c.l.b16 %v2003
      %v2109 = vunpack.c.h.b16 %v2003
      %v2110 = vunpack.c.l.b16 %v2004
      %v2111 = vunpack.c.h.b16 %v2004
      %v2112 = vunpack.c.l.b16 %v2005
      %v2113 = vunpack.c.h.b16 %v2005
      %v2114 = vunpack.c.l.b16 %v2006
      %v2115 = vunpack.c.h.b16 %v2006
      %v2116 = vunpack.c.l.b16 %v2007
      %v2117 = vunpack.c.h.b16 %v2007
      %v2118 = vunpack.c.l.b16 %v2008
      %v2119 = vunpack.c.h.b16 %v2008
      %v2120 = vunpack.c.l.b16 %v2009
      %v2121 = vunpack.c.h.b16 %v2009
      %v2122 = vunpack.c.l.b16 %v2010
      %v2123 = vunpack.c.h.b16 %v2010
      %v2124 = vunpack.c.l.b16 %v2011
      %v2125 = vunpack.c.h.b16 %v2011
      %v2126 = vunpack.c.l.b16 %v2012
      %v2127 = vunpack.c.h.b16 %v2012
      %v2128 = vunpack.c.l.b16 %v2013
      %v2129 = vunpack.c.h.b16 %v2013
      %v2130 = vunpack.c.l.b16 %v2014
      %v2131 = vunpack.c.h.b16 %v2014
      %v2132 = vunpack.c.l.b16 %v2015
      %v2133 = vunpack.c.h.b16 %v2015
      %v2134 = vunpack.c.l.b16 %v2016
      %v2135 = vunpack.c.h.b16 %v2016
      %v2136 = vunpack.c.l.b16 %v2017
      %v2137 = vunpack.c.h.b16 %v2017
      %v2138 = vunpack.c.l.b16 %v2018
      %v2139 = vunpack.c.h.b16 %v2018
      %v2140 = vpack.c.b16 %v2078, %v2076
      %v2141 = vpack.c.b16 %v2079, %v2077
      %v2142 = vpack.c.b16 %v2082, %v2080
      %v2143 = vpack.c.b16 %v2083, %v2081
      %v2144 = vpack.c.b16 %v2086, %v2084
      %v2145 = vpack.c.b16 %v2087, %v2085
      %v2146 = vpack.c.b16 %v2090, %v2088
      %v2147 = vpack.c.b16 %v2091, %v2089
      %v2148 = vpack.c.b16 %v2094, %v2092
      %v2149 = vpack.c.b16 %v2095, %v2093
      %v2150 = vpack.c.b16 %v2098, %v2096
      %v2151 = vpack.c.b16 %v2099, %v2097
      %v2152 = vpack.c.b16 %v2102, %v2100
      %v2153 = vpack.c.b16 %v2103, %v2101
      %v2154 = vpack.c.b16 %v2106, %v2104
      %v2155 = vpack.c.b16 %v2107, %v2105
      %v2156 = vpack.c.b16 %v2110, %v2108
      %v2157 = vpack.c.b16 %v2111, %v2109
      %v2158 = vpack.c.b16 %v2114, %v2112
      %v2159 = vpack.c.b16 %v2115, %v2113
      %v2160 = vpack.c.b16 %v2118, %v2116
      %v2161 = vpack.c.b16 %v2119, %v2117
      %v2162 = vpack.c.b16 %v2122, %v2120
      %v2163 = vpack.c.b16 %v2123, %v2121
      %v2164 = vpack.c.b16 %v2126, %v2124
      %v2165 = vpack.c.b16 %v2127, %v2125
      %v2166 = vpack.c.b16 %v2130, %v2128
      %v2167 = vpack.c.b16 %v2131, %v2129
      %v2168 = vpack.c.b16 %v2134, %v2132
      %v2169 = vpack.c.b16 %v2135, %v2133
      %v2170 = vpack.c.b16 %v2138, %v2136
      %v2171 = vpack.c.b16 %v2139, %v2137
      %v2212 = vunpack.c.l.b16 %v2020
      %v2213 = vunpack.c.l.b16 %v2021
      %v2214 = vunpack.c.l.b16 %v2022
      %v2215 = vunpack.c.l.b16 %v2023
      %v2216 = vunpack.c.l.b16 %v2024
      %v2217 = vunpack.c.l.b16 %v2025
      %v2218 = vunpack.c.l.b16 %v2026
      %v2219 = vunpack.c.l.b16 %v2027
      %v2220 = vunpack.c.l.b16 %v2028
      %v2221 = vunpack.c.l.b16 %v2029
      %v2222 = vunpack.c.l.b16 %v2030
      %v2223 = vunpack.c.l.b16 %v2031
      %v2224 = vunpack.c.l.b16 %v2032
      %v2225 = vunpack.c.l.b16 %v2033
      %v2226 = vunpack.c.l.b16 %v2034
      %v2227 = vunpack.c.l.b16 %v2035
      %v2228 = vunpack.c.l.b16 %v2036
      %v2229 = vunpack.c.l.b16 %v2037
      %v2230 = vunpack.c.l.b16 %v2038
      %v2231 = vunpack.c.l.b16 %v2039
      %v2232 = vunpack.c.l.b16 %v2040
      %v2233 = vunpack.c.l.b16 %v2041
      %v2234 = vunpack.c.l.b16 %v2042
      %v2235 = vunpack.c.l.b16 %v2043
      %v2236 = vpack.c.b16 %v2213, %v2212
      %v2237 = vpack.c.b16 %v2215, %v2214
      %v2238 = vpack.c.b16 %v2217, %v2216
      %v2239 = vpack.c.b16 %v2219, %v2218
      %v2240 = vpack.c.b16 %v2221, %v2220
      %v2241 = vpack.c.b16 %v2223, %v2222
      %v2242 = vpack.c.b16 %v2225, %v2224
      %v2243 = vpack.c.b16 %v2227, %v2226
      %v2244 = vpack.c.b16 %v2229, %v2228
      %v2245 = vpack.c.b16 %v2231, %v2230
      %v2246 = vpack.c.b16 %v2233, %v2232
      %v2247 = vpack.c.b16 %v2235, %v2234
      %v2261 = vsel %vm837, %v2141, 0
      %v2264 = vsel %vm837, %v2143, 0
      %v2267 = vsel %vm837, %v2145, 0
      %v2270 = vsel %vm837, %v2147, 0
      %v2273 = vsel %vm837, %v2149, 0
      %v2276 = vsel %vm837, %v2151, 0
      %v2279 = vsel %vm837, %v2153, 0
      %v2282 = vsel %vm837, %v2155, 0
      %v2285 = vsel %vm837, %v2157, 0
      %v2288 = vsel %vm837, %v2159, 0
      %v2291 = vsel %vm837, %v2161, 0
      %v2294 = vsel %vm837, %v2163, 0
      %v2297 = vsel %vm837, %v2165, 0
      %v2300 = vsel %vm837, %v2167, 0
      %v2303 = vsel %vm837, %v2169, 0
      %v2306 = vsel %vm837, %v2171, 0
      %2308 = vmatprep.subr.bf16.mxu0 0
      %2309 = vmatpush1.bf16.msra.mxu0 %v2236
      %2310 = vmatprep.subr.bf16.mxu0 0
      %2311 = vmatpush1.bf16.msra.mxu0 %v2237
      %2312 = vmatprep.subr.bf16.mxu0 0
      %2313 = vmatpush1.bf16.msra.mxu0 %v2238
      %2314 = vmatprep.subr.bf16.mxu0 0
      %2315 = vmatpush1.bf16.msra.mxu0 %v2239
      %2316 = vmatprep.subr.bf16.mxu0 0
      %2317 = vmatpush1.bf16.msra.mxu0 %v2240
      %2318 = vmatprep.subr.bf16.mxu0 0
      %2319 = vmatpush1.bf16.msra.mxu0 %v2241
      %2320 = vmatprep.subr.bf16.mxu0 0
      %2321 = vmatpush1.bf16.msra.mxu0 %v2242
      %2322 = vmatprep.subr.bf16.mxu0 0
      %2323 = vmatpush1.bf16.msra.mxu0 %v2243
      %2324 = vmatprep.subr.bf16.mxu0 0
      %2325 = vmatpush1.bf16.msra.mxu0 %v2244
      %2326 = vmatprep.subr.bf16.mxu0 0
      %2327 = vmatpush1.bf16.msra.mxu0 %v2245
      %2328 = vmatprep.subr.bf16.mxu0 0
      %2329 = vmatpush1.bf16.msra.mxu0 %v2246
      %2330 = vmatprep.subr.bf16.mxu0 0
      %2331 = vmatpush1.bf16.msra.mxu0 %v2247
      %2332 = vmatprep.subr.bf16.mxu0 0
      %2333 = vmatpush1.bf16.msra.mxu0 0
      %2334 = vmatprep.subr.bf16.mxu0 0
      %2335 = vmatpush1.bf16.msra.mxu0 0
      %2336 = vmatprep.subr.bf16.mxu0 0
      %2337 = vmatpush1.bf16.msra.mxu0 0
      %2338 = vmatprep.subr.bf16.mxu0 0
      %2339 = vmatpush1.bf16.msra.mxu0 0
      %2340 = vmatprep.mubr.bf16.mxu0 %v2261
      %2341 = vmatmul.mubr.bf16.gmra.mrb[0].mxu0 %v2140
      %v2342 = vpop.f32.mrb[0].mxu0
      %v2343 = vadd.f32 0.0, %v2342
      %v2344 = vpop.f32.mrb[0].mxu0
      %v2345 = vpop.f32.mrb[0].mxu0
      %v2346 = vadd.f32 0.0, %v2345
      %v2347 = vpop.f32.mrb[0].mxu0
      %2348 = vmatprep.mubr.bf16.mxu0 %v2264
      %2349 = vmatmul.mubr.bf16.gmra.mrb[0].mxu0 %v2142
      %v2350 = vpop.f32.mrb[0].mxu0
      %v2351 = vadd.f32 0.0, %v2350
      %v2352 = vpop.f32.mrb[0].mxu0
      %v2353 = vpop.f32.mrb[0].mxu0
      %v2354 = vadd.f32 0.0, %v2353
      %v2355 = vpop.f32.mrb[0].mxu0
      %2356 = vmatprep.mubr.bf16.mxu0 %v2267
      %2357 = vmatmul.mubr.bf16.gmra.mrb[0].mxu0 %v2144
      %v2358 = vpop.f32.mrb[0].mxu0
      %v2359 = vadd.f32 0.0, %v2358
      %v2360 = vpop.f32.mrb[0].mxu0
      %v2361 = vpop.f32.mrb[0].mxu0
      %v2362 = vadd.f32 0.0, %v2361
      %v2363 = vpop.f32.mrb[0].mxu0
      %2364 = vmatprep.mubr.bf16.mxu0 %v2270
      %2365 = vmatmul.mubr.bf16.gmra.mrb[0].mxu0 %v2146
      %v2366 = vpop.f32.mrb[0].mxu0
      %v2367 = vadd.f32 0.0, %v2366
      %v2368 = vpop.f32.mrb[0].mxu0
      %v2369 = vpop.f32.mrb[0].mxu0
      %v2370 = vadd.f32 0.0, %v2369
      %v2371 = vpop.f32.mrb[0].mxu0
      %2372 = vmatprep.mubr.bf16.mxu0 %v2273
      %2373 = vmatmul.mubr.bf16.gmra.mrb[0].mxu0 %v2148
      %v2374 = vpop.f32.mrb[0].mxu0
      %v2375 = vadd.f32 0.0, %v2374
      %v2376 = vpop.f32.mrb[0].mxu0
      %v2377 = vpop.f32.mrb[0].mxu0
      %v2378 = vadd.f32 0.0, %v2377
      %v2379 = vpop.f32.mrb[0].mxu0
      %2380 = vmatprep.mubr.bf16.mxu0 %v2276
      %2381 = vmatmul.mubr.bf16.gmra.mrb[0].mxu0 %v2150
      %v2382 = vpop.f32.mrb[0].mxu0
      %v2383 = vadd.f32 0.0, %v2382
      %v2384 = vpop.f32.mrb[0].mxu0
      %v2385 = vpop.f32.mrb[0].mxu0
      %v2386 = vadd.f32 0.0, %v2385
      %v2387 = vpop.f32.mrb[0].mxu0
      %2388 = vmatprep.mubr.bf16.mxu0 %v2279
      %2389 = vmatmul.mubr.bf16.gmra.mrb[0].mxu0 %v2152
      %v2390 = vpop.f32.mrb[0].mxu0
      %v2391 = vadd.f32 0.0, %v2390
      %v2392 = vpop.f32.mrb[0].mxu0
      %v2393 = vpop.f32.mrb[0].mxu0
      %v2394 = vadd.f32 0.0, %v2393
      %v2395 = vpop.f32.mrb[0].mxu0
      %2396 = vmatprep.mubr.bf16.mxu0 %v2282
      %2397 = vmatmul.mubr.bf16.gmra.mrb[0].mxu0 %v2154
      %v2398 = vpop.f32.mrb[0].mxu0
      %v2399 = vadd.f32 0.0, %v2398
      %v2400 = vpop.f32.mrb[0].mxu0
      %v2401 = vpop.f32.mrb[0].mxu0
      %v2402 = vadd.f32 0.0, %v2401
      %v2403 = vpop.f32.mrb[0].mxu0
      %2404 = vmatprep.mubr.bf16.mxu0 %v2285
      %2405 = vmatmul.mubr.bf16.gmra.mrb[0].mxu0 %v2156
      %v2406 = vpop.f32.mrb[0].mxu0
      %v2407 = vadd.f32 0.0, %v2406
      %v2408 = vpop.f32.mrb[0].mxu0
      %v2409 = vpop.f32.mrb[0].mxu0
      %v2410 = vadd.f32 0.0, %v2409
      %v2411 = vpop.f32.mrb[0].mxu0
      %2412 = vmatprep.mubr.bf16.mxu0 %v2288
      %2413 = vmatmul.mubr.bf16.gmra.mrb[0].mxu0 %v2158
      %v2414 = vpop.f32.mrb[0].mxu0
      %v2415 = vadd.f32 0.0, %v2414
      %v2416 = vpop.f32.mrb[0].mxu0
      %v2417 = vpop.f32.mrb[0].mxu0
      %v2418 = vadd.f32 0.0, %v2417
      %v2419 = vpop.f32.mrb[0].mxu0
      %2420 = vmatprep.mubr.bf16.mxu0 %v2291
      %2421 = vmatmul.mubr.bf16.gmra.mrb[0].mxu0 %v2160
      %v2422 = vpop.f32.mrb[0].mxu0
      %v2423 = vadd.f32 0.0, %v2422
      %v2424 = vpop.f32.mrb[0].mxu0
      %v2425 = vpop.f32.mrb[0].mxu0
      %v2426 = vadd.f32 0.0, %v2425
      %v2427 = vpop.f32.mrb[0].mxu0
      %2428 = vmatprep.mubr.bf16.mxu0 %v2294
      %2429 = vmatmul.mubr.bf16.gmra.mrb[0].mxu0 %v2162
      %v2430 = vpop.f32.mrb[0].mxu0
      %v2431 = vadd.f32 0.0, %v2430
      %v2432 = vpop.f32.mrb[0].mxu0
      %v2433 = vpop.f32.mrb[0].mxu0
      %v2434 = vadd.f32 0.0, %v2433
      %v2435 = vpop.f32.mrb[0].mxu0
      %2436 = vmatprep.mubr.bf16.mxu0 %v2297
      %2437 = vmatmul.mubr.bf16.gmra.mrb[0].mxu0 %v2164
      %v2438 = vpop.f32.mrb[0].mxu0
      %v2439 = vadd.f32 0.0, %v2438
      %v2440 = vpop.f32.mrb[0].mxu0
      %v2441 = vpop.f32.mrb[0].mxu0
      %v2442 = vadd.f32 0.0, %v2441
      %v2443 = vpop.f32.mrb[0].mxu0
      %2444 = vmatprep.mubr.bf16.mxu0 %v2300
      %2445 = vmatmul.mubr.bf16.gmra.mrb[0].mxu0 %v2166
      %v2446 = vpop.f32.mrb[0].mxu0
      %v2447 = vadd.f32 0.0, %v2446
      %v2448 = vpop.f32.mrb[0].mxu0
      %v2449 = vpop.f32.mrb[0].mxu0
      %v2450 = vadd.f32 0.0, %v2449
      %v2451 = vpop.f32.mrb[0].mxu0
      %2452 = vmatprep.mubr.bf16.mxu0 %v2303
      %2453 = vmatmul.mubr.bf16.gmra.mrb[0].mxu0 %v2168
      %v2454 = vpop.f32.mrb[0].mxu0
      %v2455 = vadd.f32 0.0, %v2454
      %v2456 = vpop.f32.mrb[0].mxu0
      %v2457 = vpop.f32.mrb[0].mxu0
      %v2458 = vadd.f32 0.0, %v2457
      %v2459 = vpop.f32.mrb[0].mxu0
      %2460 = vmatprep.mubr.bf16.mxu0 %v2306
      %2461 = vmatmul.mubr.bf16.gmra.mrb[0].mxu0 %v2170
      %v2462 = vpop.f32.mrb[0].mxu0
      %v2463 = vadd.f32 0.0, %v2462
      %v2464 = vpop.f32.mrb[0].mxu0
      %v2465 = vpop.f32.mrb[0].mxu0
      %v2466 = vadd.f32 0.0, %v2465
      %v2467 = vpop.f32.mrb[0].mxu0
      %2468 = vdwg.mxu0
      %v2469 = vadd.f32 %v1955, %v2343
      %v2470 = vadd.f32 %v1956, %v2346
      %v2471 = vadd.f32 %v1957, %v2351
      %v2472 = vadd.f32 %v1958, %v2354
      %v2473 = vadd.f32 %v1959, %v2359
      %v2474 = vadd.f32 %v1960, %v2362
      %v2475 = vadd.f32 %v1961, %v2367
      %v2476 = vadd.f32 %v1962, %v2370
      %v2477 = vadd.f32 %v1963, %v2375
      %v2478 = vadd.f32 %v1964, %v2378
      %v2479 = vadd.f32 %v1965, %v2383
      %v2480 = vadd.f32 %v1966, %v2386
      %v2481 = vadd.f32 %v1967, %v2391
      %v2482 = vadd.f32 %v1968, %v2394
      %v2483 = vadd.f32 %v1969, %v2399
      %v2484 = vadd.f32 %v1970, %v2402
      %v2485 = vadd.f32 %v1971, %v2407
      %v2486 = vadd.f32 %v1972, %v2410
      %v2487 = vadd.f32 %v1973, %v2415
      %v2488 = vadd.f32 %v1974, %v2418
      %v2489 = vadd.f32 %v1975, %v2423
      %v2490 = vadd.f32 %v1976, %v2426
      %v2491 = vadd.f32 %v1977, %v2431
      %v2492 = vadd.f32 %v1978, %v2434
      %v2493 = vadd.f32 %v1979, %v2439
      %v2494 = vadd.f32 %v1980, %v2442
      %v2495 = vadd.f32 %v1981, %v2447
      %v2496 = vadd.f32 %v1982, %v2450
      %v2497 = vadd.f32 %v1983, %v2455
      %v2498 = vadd.f32 %v1984, %v2458
      %v2499 = vadd.f32 %v1985, %v2463
      %v2500 = vadd.f32 %v1986, %v2466
      %s2501 = scalar_lea.vmem %s452, 16
      %v2502 = vld [vmem:[%s2501] sm:$0xff]
      %v2503 = vld [vmem:[%s2501 + $0x8] sm:$0xff]
      %v2504 = vld [vmem:[%s2501 + $0x10] sm:$0xff]
      %v2505 = vld [vmem:[%s2501 + $0x18] sm:$0xff]
      %v2506 = vld [vmem:[%s2501 + $0x20] sm:$0xff]
      %v2507 = vld [vmem:[%s2501 + $0x28] sm:$0xff]
      %v2508 = vld [vmem:[%s2501 + $0x30] sm:$0xff]
      %v2509 = vld [vmem:[%s2501 + $0x38] sm:$0xff]
      %v2510 = vld [vmem:[%s2501 + $0x40] sm:$0xff]
      %v2511 = vld [vmem:[%s2501 + $0x48] sm:$0xff]
      %v2512 = vld [vmem:[%s2501 + $0x50] sm:$0xff]
      %v2513 = vld [vmem:[%s2501 + $0x58] sm:$0xff]
      %v2514 = vld [vmem:[%s2501 + $0x60] sm:$0xff]
      %v2515 = vld [vmem:[%s2501 + $0x68] sm:$0xff]
      %v2516 = vld [vmem:[%s2501 + $0x70] sm:$0xff]
      %v2517 = vld [vmem:[%s2501 + $0x78] sm:$0xff]
      %v2518 = vld [vmem:[%s2501 + $0x80] sm:$0xff]
      %v2519 = vld [vmem:[%s2501 + $0x88] sm:$0xff]
      %v2520 = vld [vmem:[%s2501 + $0x90] sm:$0xff]
      %v2521 = vld [vmem:[%s2501 + $0x98] sm:$0xff]
      %v2522 = vld [vmem:[%s2501 + $0xa0] sm:$0xff]
      %v2523 = vld [vmem:[%s2501 + $0xa8] sm:$0xff]
      %v2524 = vld [vmem:[%s2501 + $0xb0] sm:$0xff]
      %v2525 = vld [vmem:[%s2501 + $0xb8] sm:$0xff]
      %v2526 = vld [vmem:[%s2501 + $0xc0] sm:$0xff]
      %v2527 = vld [vmem:[%s2501 + $0xc8] sm:$0xff]
      %v2528 = vld [vmem:[%s2501 + $0xd0] sm:$0xff]
      %v2529 = vld [vmem:[%s2501 + $0xd8] sm:$0xff]
      %v2530 = vld [vmem:[%s2501 + $0xe0] sm:$0xff]
      %v2531 = vld [vmem:[%s2501 + $0xe8] sm:$0xff]
      %v2532 = vld [vmem:[%s2501 + $0xf0] sm:$0xff]
      %v2533 = vld [vmem:[%s2501 + $0xf8] sm:$0xff]
      %s2534 = scalar_lea.vmem %s4, 384
      %v2535 = vld [vmem:[%s2534] sm:$0xf]
      %v2536 = vld [vmem:[%s2534 + $0x4] sm:$0xf]
      %v2537 = vld [vmem:[%s2534 + $0x8] sm:$0xf]
      %v2538 = vld [vmem:[%s2534 + $0xc] sm:$0xf]
      %v2539 = vld [vmem:[%s2534 + $0x10] sm:$0xf]
      %v2540 = vld [vmem:[%s2534 + $0x14] sm:$0xf]
      %v2541 = vld [vmem:[%s2534 + $0x18] sm:$0xf]
      %v2542 = vld [vmem:[%s2534 + $0x1c] sm:$0xf]
      %v2543 = vld [vmem:[%s2534 + $0x20] sm:$0xf]
      %v2544 = vld [vmem:[%s2534 + $0x24] sm:$0xf]
      %v2545 = vld [vmem:[%s2534 + $0x28] sm:$0xf]
      %v2546 = vld [vmem:[%s2534 + $0x2c] sm:$0xf]
      %v2547 = vld [vmem:[%s2534 + $0x30] sm:$0xf]
      %v2548 = vld [vmem:[%s2534 + $0x34] sm:$0xf]
      %v2549 = vld [vmem:[%s2534 + $0x38] sm:$0xf]
      %v2550 = vld [vmem:[%s2534 + $0x3c] sm:$0xf]
      %v2551 = vld [vmem:[%s2534 + $0x40] sm:$0xf]
      %v2552 = vld [vmem:[%s2534 + $0x44] sm:$0xf]
      %v2553 = vld [vmem:[%s2534 + $0x48] sm:$0xf]
      %v2554 = vld [vmem:[%s2534 + $0x4c] sm:$0xf]
      %v2555 = vld [vmem:[%s2534 + $0x50] sm:$0xf]
      %v2556 = vld [vmem:[%s2534 + $0x54] sm:$0xf]
      %v2557 = vld [vmem:[%s2534 + $0x58] sm:$0xf]
      %v2558 = vld [vmem:[%s2534 + $0x5c] sm:$0xf]
      %v2591 = vunpack.c.l.b16 %v2502
      %v2592 = vunpack.c.h.b16 %v2502
      %v2593 = vunpack.c.l.b16 %v2503
      %v2594 = vunpack.c.h.b16 %v2503
      %v2595 = vunpack.c.l.b16 %v2504
      %v2596 = vunpack.c.h.b16 %v2504
      %v2597 = vunpack.c.l.b16 %v2505
      %v2598 = vunpack.c.h.b16 %v2505
      %v2599 = vunpack.c.l.b16 %v2506
      %v2600 = vunpack.c.h.b16 %v2506
      %v2601 = vunpack.c.l.b16 %v2507
      %v2602 = vunpack.c.h.b16 %v2507
      %v2603 = vunpack.c.l.b16 %v2508
      %v2604 = vunpack.c.h.b16 %v2508
      %v2605 = vunpack.c.l.b16 %v2509
      %v2606 = vunpack.c.h.b16 %v2509
      %v2607 = vunpack.c.l.b16 %v2510
      %v2608 = vunpack.c.h.b16 %v2510
      %v2609 = vunpack.c.l.b16 %v2511
      %v2610 = vunpack.c.h.b16 %v2511
      %v2611 = vunpack.c.l.b16 %v2512
      %v2612 = vunpack.c.h.b16 %v2512
      %v2613 = vunpack.c.l.b16 %v2513
      %v2614 = vunpack.c.h.b16 %v2513
      %v2615 = vunpack.c.l.b16 %v2514
      %v2616 = vunpack.c.h.b16 %v2514
      %v2617 = vunpack.c.l.b16 %v2515
      %v2618 = vunpack.c.h.b16 %v2515
      %v2619 = vunpack.c.l.b16 %v2516
      %v2620 = vunpack.c.h.b16 %v2516
      %v2621 = vunpack.c.l.b16 %v2517
      %v2622 = vunpack.c.h.b16 %v2517
      %v2623 = vunpack.c.l.b16 %v2518
      %v2624 = vunpack.c.h.b16 %v2518
      %v2625 = vunpack.c.l.b16 %v2519
      %v2626 = vunpack.c.h.b16 %v2519
      %v2627 = vunpack.c.l.b16 %v2520
      %v2628 = vunpack.c.h.b16 %v2520
      %v2629 = vunpack.c.l.b16 %v2521
      %v2630 = vunpack.c.h.b16 %v2521
      %v2631 = vunpack.c.l.b16 %v2522
      %v2632 = vunpack.c.h.b16 %v2522
      %v2633 = vunpack.c.l.b16 %v2523
      %v2634 = vunpack.c.h.b16 %v2523
      %v2635 = vunpack.c.l.b16 %v2524
      %v2636 = vunpack.c.h.b16 %v2524
      %v2637 = vunpack.c.l.b16 %v2525
      %v2638 = vunpack.c.h.b16 %v2525
      %v2639 = vunpack.c.l.b16 %v2526
      %v2640 = vunpack.c.h.b16 %v2526
      %v2641 = vunpack.c.l.b16 %v2527
      %v2642 = vunpack.c.h.b16 %v2527
      %v2643 = vunpack.c.l.b16 %v2528
      %v2644 = vunpack.c.h.b16 %v2528
      %v2645 = vunpack.c.l.b16 %v2529
      %v2646 = vunpack.c.h.b16 %v2529
      %v2647 = vunpack.c.l.b16 %v2530
      %v2648 = vunpack.c.h.b16 %v2530
      %v2649 = vunpack.c.l.b16 %v2531
      %v2650 = vunpack.c.h.b16 %v2531
      %v2651 = vunpack.c.l.b16 %v2532
      %v2652 = vunpack.c.h.b16 %v2532
      %v2653 = vunpack.c.l.b16 %v2533
      %v2654 = vunpack.c.h.b16 %v2533
      %v2655 = vpack.c.b16 %v2593, %v2591
      %v2656 = vpack.c.b16 %v2594, %v2592
      %v2657 = vpack.c.b16 %v2597, %v2595
      %v2658 = vpack.c.b16 %v2598, %v2596
      %v2659 = vpack.c.b16 %v2601, %v2599
      %v2660 = vpack.c.b16 %v2602, %v2600
      %v2661 = vpack.c.b16 %v2605, %v2603
      %v2662 = vpack.c.b16 %v2606, %v2604
      %v2663 = vpack.c.b16 %v2609, %v2607
      %v2664 = vpack.c.b16 %v2610, %v2608
      %v2665 = vpack.c.b16 %v2613, %v2611
      %v2666 = vpack.c.b16 %v2614, %v2612
      %v2667 = vpack.c.b16 %v2617, %v2615
      %v2668 = vpack.c.b16 %v2618, %v2616
      %v2669 = vpack.c.b16 %v2621, %v2619
      %v2670 = vpack.c.b16 %v2622, %v2620
      %v2671 = vpack.c.b16 %v2625, %v2623
      %v2672 = vpack.c.b16 %v2626, %v2624
      %v2673 = vpack.c.b16 %v2629, %v2627
      %v2674 = vpack.c.b16 %v2630, %v2628
      %v2675 = vpack.c.b16 %v2633, %v2631
      %v2676 = vpack.c.b16 %v2634, %v2632
      %v2677 = vpack.c.b16 %v2637, %v2635
      %v2678 = vpack.c.b16 %v2638, %v2636
      %v2679 = vpack.c.b16 %v2641, %v2639
      %v2680 = vpack.c.b16 %v2642, %v2640
      %v2681 = vpack.c.b16 %v2645, %v2643
      %v2682 = vpack.c.b16 %v2646, %v2644
      %v2683 = vpack.c.b16 %v2649, %v2647
      %v2684 = vpack.c.b16 %v2650, %v2648
      %v2685 = vpack.c.b16 %v2653, %v2651
      %v2686 = vpack.c.b16 %v2654, %v2652
      %v2727 = vunpack.c.l.b16 %v2535
      %v2728 = vunpack.c.l.b16 %v2536
      %v2729 = vunpack.c.l.b16 %v2537
      %v2730 = vunpack.c.l.b16 %v2538
      %v2731 = vunpack.c.l.b16 %v2539
      %v2732 = vunpack.c.l.b16 %v2540
      %v2733 = vunpack.c.l.b16 %v2541
      %v2734 = vunpack.c.l.b16 %v2542
      %v2735 = vunpack.c.l.b16 %v2543
      %v2736 = vunpack.c.l.b16 %v2544
      %v2737 = vunpack.c.l.b16 %v2545
      %v2738 = vunpack.c.l.b16 %v2546
      %v2739 = vunpack.c.l.b16 %v2547
      %v2740 = vunpack.c.l.b16 %v2548
      %v2741 = vunpack.c.l.b16 %v2549
      %v2742 = vunpack.c.l.b16 %v2550
      %v2743 = vunpack.c.l.b16 %v2551
      %v2744 = vunpack.c.l.b16 %v2552
      %v2745 = vunpack.c.l.b16 %v2553
      %v2746 = vunpack.c.l.b16 %v2554
      %v2747 = vunpack.c.l.b16 %v2555
      %v2748 = vunpack.c.l.b16 %v2556
      %v2749 = vunpack.c.l.b16 %v2557
      %v2750 = vunpack.c.l.b16 %v2558
      %v2751 = vpack.c.b16 %v2728, %v2727
      %v2752 = vpack.c.b16 %v2730, %v2729
      %v2753 = vpack.c.b16 %v2732, %v2731
      %v2754 = vpack.c.b16 %v2734, %v2733
      %v2755 = vpack.c.b16 %v2736, %v2735
      %v2756 = vpack.c.b16 %v2738, %v2737
      %v2757 = vpack.c.b16 %v2740, %v2739
      %v2758 = vpack.c.b16 %v2742, %v2741
      %v2759 = vpack.c.b16 %v2744, %v2743
      %v2760 = vpack.c.b16 %v2746, %v2745
      %v2761 = vpack.c.b16 %v2748, %v2747
      %v2762 = vpack.c.b16 %v2750, %v2749
      %v2776 = vsel %vm837, %v2656, 0
      %v2779 = vsel %vm837, %v2658, 0
      %v2782 = vsel %vm837, %v2660, 0
      %v2785 = vsel %vm837, %v2662, 0
      %v2788 = vsel %vm837, %v2664, 0
      %v2791 = vsel %vm837, %v2666, 0
      %v2794 = vsel %vm837, %v2668, 0
      %v2797 = vsel %vm837, %v2670, 0
      %v2800 = vsel %vm837, %v2672, 0
      %v2803 = vsel %vm837, %v2674, 0
      %v2806 = vsel %vm837, %v2676, 0
      %v2809 = vsel %vm837, %v2678, 0
      %v2812 = vsel %vm837, %v2680, 0
      %v2815 = vsel %vm837, %v2682, 0
      %v2818 = vsel %vm837, %v2684, 0
      %v2821 = vsel %vm837, %v2686, 0
      %2823 = vmatprep.subr.bf16.mxu0 0
      %2824 = vmatpush1.bf16.msra.mxu0 %v2751
      %2825 = vmatprep.subr.bf16.mxu0 0
      %2826 = vmatpush1.bf16.msra.mxu0 %v2752
      %2827 = vmatprep.subr.bf16.mxu0 0
      %2828 = vmatpush1.bf16.msra.mxu0 %v2753
      %2829 = vmatprep.subr.bf16.mxu0 0
      %2830 = vmatpush1.bf16.msra.mxu0 %v2754
      %2831 = vmatprep.subr.bf16.mxu0 0
      %2832 = vmatpush1.bf16.msra.mxu0 %v2755
      %2833 = vmatprep.subr.bf16.mxu0 0
      %2834 = vmatpush1.bf16.msra.mxu0 %v2756
      %2835 = vmatprep.subr.bf16.mxu0 0
      %2836 = vmatpush1.bf16.msra.mxu0 %v2757
      %2837 = vmatprep.subr.bf16.mxu0 0
      %2838 = vmatpush1.bf16.msra.mxu0 %v2758
      %2839 = vmatprep.subr.bf16.mxu0 0
      %2840 = vmatpush1.bf16.msra.mxu0 %v2759
      %2841 = vmatprep.subr.bf16.mxu0 0
      %2842 = vmatpush1.bf16.msra.mxu0 %v2760
      %2843 = vmatprep.subr.bf16.mxu0 0
      %2844 = vmatpush1.bf16.msra.mxu0 %v2761
      %2845 = vmatprep.subr.bf16.mxu0 0
      %2846 = vmatpush1.bf16.msra.mxu0 %v2762
      %2847 = vmatprep.subr.bf16.mxu0 0
      %2848 = vmatpush1.bf16.msra.mxu0 0
      %2849 = vmatprep.subr.bf16.mxu0 0
      %2850 = vmatpush1.bf16.msra.mxu0 0
      %2851 = vmatprep.subr.bf16.mxu0 0
      %2852 = vmatpush1.bf16.msra.mxu0 0
      %2853 = vmatprep.subr.bf16.mxu0 0
      %2854 = vmatpush1.bf16.msra.mxu0 0
      %2855 = vmatprep.mubr.bf16.mxu0 %v2776
      %2856 = vmatmul.mubr.bf16.gmra.mrb[0].mxu0 %v2655
      %v2857 = vpop.f32.mrb[0].mxu0
      %v2858 = vadd.f32 0.0, %v2857
      %v2859 = vpop.f32.mrb[0].mxu0
      %v2860 = vpop.f32.mrb[0].mxu0
      %v2861 = vadd.f32 0.0, %v2860
      %v2862 = vpop.f32.mrb[0].mxu0
      %2863 = vmatprep.mubr.bf16.mxu0 %v2779
      %2864 = vmatmul.mubr.bf16.gmra.mrb[0].mxu0 %v2657
      %v2865 = vpop.f32.mrb[0].mxu0
      %v2866 = vadd.f32 0.0, %v2865
      %v2867 = vpop.f32.mrb[0].mxu0
      %v2868 = vpop.f32.mrb[0].mxu0
      %v2869 = vadd.f32 0.0, %v2868
      %v2870 = vpop.f32.mrb[0].mxu0
      %2871 = vmatprep.mubr.bf16.mxu0 %v2782
      %2872 = vmatmul.mubr.bf16.gmra.mrb[0].mxu0 %v2659
      %v2873 = vpop.f32.mrb[0].mxu0
      %v2874 = vadd.f32 0.0, %v2873
      %v2875 = vpop.f32.mrb[0].mxu0
      %v2876 = vpop.f32.mrb[0].mxu0
      %v2877 = vadd.f32 0.0, %v2876
      %v2878 = vpop.f32.mrb[0].mxu0
      %2879 = vmatprep.mubr.bf16.mxu0 %v2785
      %2880 = vmatmul.mubr.bf16.gmra.mrb[0].mxu0 %v2661
      %v2881 = vpop.f32.mrb[0].mxu0
      %v2882 = vadd.f32 0.0, %v2881
      %v2883 = vpop.f32.mrb[0].mxu0
      %v2884 = vpop.f32.mrb[0].mxu0
      %v2885 = vadd.f32 0.0, %v2884
      %v2886 = vpop.f32.mrb[0].mxu0
      %2887 = vmatprep.mubr.bf16.mxu0 %v2788
      %2888 = vmatmul.mubr.bf16.gmra.mrb[0].mxu0 %v2663
      %v2889 = vpop.f32.mrb[0].mxu0
      %v2890 = vadd.f32 0.0, %v2889
      %v2891 = vpop.f32.mrb[0].mxu0
      %v2892 = vpop.f32.mrb[0].mxu0
      %v2893 = vadd.f32 0.0, %v2892
      %v2894 = vpop.f32.mrb[0].mxu0
      %2895 = vmatprep.mubr.bf16.mxu0 %v2791
      %2896 = vmatmul.mubr.bf16.gmra.mrb[0].mxu0 %v2665
      %v2897 = vpop.f32.mrb[0].mxu0
      %v2898 = vadd.f32 0.0, %v2897
      %v2899 = vpop.f32.mrb[0].mxu0
      %v2900 = vpop.f32.mrb[0].mxu0
      %v2901 = vadd.f32 0.0, %v2900
      %v2902 = vpop.f32.mrb[0].mxu0
      %2903 = vmatprep.mubr.bf16.mxu0 %v2794
      %2904 = vmatmul.mubr.bf16.gmra.mrb[0].mxu0 %v2667
      %v2905 = vpop.f32.mrb[0].mxu0
      %v2906 = vadd.f32 0.0, %v2905
      %v2907 = vpop.f32.mrb[0].mxu0
      %v2908 = vpop.f32.mrb[0].mxu0
      %v2909 = vadd.f32 0.0, %v2908
      %v2910 = vpop.f32.mrb[0].mxu0
      %2911 = vmatprep.mubr.bf16.mxu0 %v2797
      %2912 = vmatmul.mubr.bf16.gmra.mrb[0].mxu0 %v2669
      %v2913 = vpop.f32.mrb[0].mxu0
      %v2914 = vadd.f32 0.0, %v2913
      %v2915 = vpop.f32.mrb[0].mxu0
      %v2916 = vpop.f32.mrb[0].mxu0
      %v2917 = vadd.f32 0.0, %v2916
      %v2918 = vpop.f32.mrb[0].mxu0
      %2919 = vmatprep.mubr.bf16.mxu0 %v2800
      %2920 = vmatmul.mubr.bf16.gmra.mrb[0].mxu0 %v2671
      %v2921 = vpop.f32.mrb[0].mxu0
      %v2922 = vadd.f32 0.0, %v2921
      %v2923 = vpop.f32.mrb[0].mxu0
      %v2924 = vpop.f32.mrb[0].mxu0
      %v2925 = vadd.f32 0.0, %v2924
      %v2926 = vpop.f32.mrb[0].mxu0
      %2927 = vmatprep.mubr.bf16.mxu0 %v2803
      %2928 = vmatmul.mubr.bf16.gmra.mrb[0].mxu0 %v2673
      %v2929 = vpop.f32.mrb[0].mxu0
      %v2930 = vadd.f32 0.0, %v2929
      %v2931 = vpop.f32.mrb[0].mxu0
      %v2932 = vpop.f32.mrb[0].mxu0
      %v2933 = vadd.f32 0.0, %v2932
      %v2934 = vpop.f32.mrb[0].mxu0
      %2935 = vmatprep.mubr.bf16.mxu0 %v2806
      %2936 = vmatmul.mubr.bf16.gmra.mrb[0].mxu0 %v2675
      %v2937 = vpop.f32.mrb[0].mxu0
      %v2938 = vadd.f32 0.0, %v2937
      %v2939 = vpop.f32.mrb[0].mxu0
      %v2940 = vpop.f32.mrb[0].mxu0
      %v2941 = vadd.f32 0.0, %v2940
      %v2942 = vpop.f32.mrb[0].mxu0
      %2943 = vmatprep.mubr.bf16.mxu0 %v2809
      %2944 = vmatmul.mubr.bf16.gmra.mrb[0].mxu0 %v2677
      %v2945 = vpop.f32.mrb[0].mxu0
      %v2946 = vadd.f32 0.0, %v2945
      %v2947 = vpop.f32.mrb[0].mxu0
      %v2948 = vpop.f32.mrb[0].mxu0
      %v2949 = vadd.f32 0.0, %v2948
      %v2950 = vpop.f32.mrb[0].mxu0
      %2951 = vmatprep.mubr.bf16.mxu0 %v2812
      %2952 = vmatmul.mubr.bf16.gmra.mrb[0].mxu0 %v2679
      %v2953 = vpop.f32.mrb[0].mxu0
      %v2954 = vadd.f32 0.0, %v2953
      %v2955 = vpop.f32.mrb[0].mxu0
      %v2956 = vpop.f32.mrb[0].mxu0
      %v2957 = vadd.f32 0.0, %v2956
      %v2958 = vpop.f32.mrb[0].mxu0
      %2959 = vmatprep.mubr.bf16.mxu0 %v2815
      %2960 = vmatmul.mubr.bf16.gmra.mrb[0].mxu0 %v2681
      %v2961 = vpop.f32.mrb[0].mxu0
      %v2962 = vadd.f32 0.0, %v2961
      %v2963 = vpop.f32.mrb[0].mxu0
      %v2964 = vpop.f32.mrb[0].mxu0
      %v2965 = vadd.f32 0.0, %v2964
      %v2966 = vpop.f32.mrb[0].mxu0
      %2967 = vmatprep.mubr.bf16.mxu0 %v2818
      %2968 = vmatmul.mubr.bf16.gmra.mrb[0].mxu0 %v2683
      %v2969 = vpop.f32.mrb[0].mxu0
      %v2970 = vadd.f32 0.0, %v2969
      %v2971 = vpop.f32.mrb[0].mxu0
      %v2972 = vpop.f32.mrb[0].mxu0
      %v2973 = vadd.f32 0.0, %v2972
      %v2974 = vpop.f32.mrb[0].mxu0
      %2975 = vmatprep.mubr.bf16.mxu0 %v2821
      %2976 = vmatmul.mubr.bf16.gmra.mrb[0].mxu0 %v2685
      %v2977 = vpop.f32.mrb[0].mxu0
      %v2978 = vadd.f32 0.0, %v2977
      %v2979 = vpop.f32.mrb[0].mxu0
      %v2980 = vpop.f32.mrb[0].mxu0
      %v2981 = vadd.f32 0.0, %v2980
      %v2982 = vpop.f32.mrb[0].mxu0
      %2983 = vdwg.mxu0
      %v2984 = vadd.f32 %v2469, %v2858
      %v2985 = vadd.f32 %v2470, %v2861
      %v2986 = vadd.f32 %v2471, %v2866
      %v2987 = vadd.f32 %v2472, %v2869
      %v2988 = vadd.f32 %v2473, %v2874
      %v2989 = vadd.f32 %v2474, %v2877
      %v2990 = vadd.f32 %v2475, %v2882
      %v2991 = vadd.f32 %v2476, %v2885
      %v2992 = vadd.f32 %v2477, %v2890
      %v2993 = vadd.f32 %v2478, %v2893
      %v2994 = vadd.f32 %v2479, %v2898
      %v2995 = vadd.f32 %v2480, %v2901
      %v2996 = vadd.f32 %v2481, %v2906
      %v2997 = vadd.f32 %v2482, %v2909
      %v2998 = vadd.f32 %v2483, %v2914
      %v2999 = vadd.f32 %v2484, %v2917
      %v3000 = vadd.f32 %v2485, %v2922
      %v3001 = vadd.f32 %v2486, %v2925
      %v3002 = vadd.f32 %v2487, %v2930
      %v3003 = vadd.f32 %v2488, %v2933
      %v3004 = vadd.f32 %v2489, %v2938
      %v3005 = vadd.f32 %v2490, %v2941
      %v3006 = vadd.f32 %v2491, %v2946
      %v3007 = vadd.f32 %v2492, %v2949
      %v3008 = vadd.f32 %v2493, %v2954
      %v3009 = vadd.f32 %v2494, %v2957
      %v3010 = vadd.f32 %v2495, %v2962
      %v3011 = vadd.f32 %v2496, %v2965
      %v3012 = vadd.f32 %v2497, %v2970
      %v3013 = vadd.f32 %v2498, %v2973
      %v3014 = vadd.f32 %v2499, %v2978
      %v3015 = vadd.f32 %v2500, %v2981
      %s3016 = scalar_lea.vmem %s452, 32
      %v3017 = vld [vmem:[%s3016] sm:$0xff]
      %v3018 = vld [vmem:[%s3016 + $0x8] sm:$0xff]
      %v3019 = vld [vmem:[%s3016 + $0x10] sm:$0xff]
      %v3020 = vld [vmem:[%s3016 + $0x18] sm:$0xff]
      %v3021 = vld [vmem:[%s3016 + $0x20] sm:$0xff]
      %v3022 = vld [vmem:[%s3016 + $0x28] sm:$0xff]
      %v3023 = vld [vmem:[%s3016 + $0x30] sm:$0xff]
      %v3024 = vld [vmem:[%s3016 + $0x38] sm:$0xff]
      %v3025 = vld [vmem:[%s3016 + $0x40] sm:$0xff]
      %v3026 = vld [vmem:[%s3016 + $0x48] sm:$0xff]
      %v3027 = vld [vmem:[%s3016 + $0x50] sm:$0xff]
      %v3028 = vld [vmem:[%s3016 + $0x58] sm:$0xff]
      %v3029 = vld [vmem:[%s3016 + $0x60] sm:$0xff]
      %v3030 = vld [vmem:[%s3016 + $0x68] sm:$0xff]
      %v3031 = vld [vmem:[%s3016 + $0x70] sm:$0xff]
      %v3032 = vld [vmem:[%s3016 + $0x78] sm:$0xff]
      %v3033 = vld [vmem:[%s3016 + $0x80] sm:$0xff]
      %v3034 = vld [vmem:[%s3016 + $0x88] sm:$0xff]
      %v3035 = vld [vmem:[%s3016 + $0x90] sm:$0xff]
      %v3036 = vld [vmem:[%s3016 + $0x98] sm:$0xff]
      %v3037 = vld [vmem:[%s3016 + $0xa0] sm:$0xff]
      %v3038 = vld [vmem:[%s3016 + $0xa8] sm:$0xff]
      %v3039 = vld [vmem:[%s3016 + $0xb0] sm:$0xff]
      %v3040 = vld [vmem:[%s3016 + $0xb8] sm:$0xff]
      %v3041 = vld [vmem:[%s3016 + $0xc0] sm:$0xff]
      %v3042 = vld [vmem:[%s3016 + $0xc8] sm:$0xff]
      %v3043 = vld [vmem:[%s3016 + $0xd0] sm:$0xff]
      %v3044 = vld [vmem:[%s3016 + $0xd8] sm:$0xff]
      %v3045 = vld [vmem:[%s3016 + $0xe0] sm:$0xff]
      %v3046 = vld [vmem:[%s3016 + $0xe8] sm:$0xff]
      %v3047 = vld [vmem:[%s3016 + $0xf0] sm:$0xff]
      %v3048 = vld [vmem:[%s3016 + $0xf8] sm:$0xff]
      %s3049 = scalar_lea.vmem %s4, 480
      %v3050 = vld [vmem:[%s3049] sm:$0xf]
      %v3051 = vld [vmem:[%s3049 + $0x4] sm:$0xf]
      %v3052 = vld [vmem:[%s3049 + $0x8] sm:$0xf]
      %v3053 = vld [vmem:[%s3049 + $0xc] sm:$0xf]
      %v3054 = vld [vmem:[%s3049 + $0x10] sm:$0xf]
      %v3055 = vld [vmem:[%s3049 + $0x14] sm:$0xf]
      %v3056 = vld [vmem:[%s3049 + $0x18] sm:$0xf]
      %v3057 = vld [vmem:[%s3049 + $0x1c] sm:$0xf]
      %v3058 = vld [vmem:[%s3049 + $0x20] sm:$0xf]
      %v3059 = vld [vmem:[%s3049 + $0x24] sm:$0xf]
      %v3060 = vld [vmem:[%s3049 + $0x28] sm:$0xf]
      %v3061 = vld [vmem:[%s3049 + $0x2c] sm:$0xf]
      %v3062 = vld [vmem:[%s3049 + $0x30] sm:$0xf]
      %v3063 = vld [vmem:[%s3049 + $0x34] sm:$0xf]
      %v3064 = vld [vmem:[%s3049 + $0x38] sm:$0xf]
      %v3065 = vld [vmem:[%s3049 + $0x3c] sm:$0xf]
      %v3066 = vld [vmem:[%s3049 + $0x40] sm:$0xf]
      %v3067 = vld [vmem:[%s3049 + $0x44] sm:$0xf]
      %v3068 = vld [vmem:[%s3049 + $0x48] sm:$0xf]
      %v3069 = vld [vmem:[%s3049 + $0x4c] sm:$0xf]
      %v3070 = vld [vmem:[%s3049 + $0x50] sm:$0xf]
      %v3071 = vld [vmem:[%s3049 + $0x54] sm:$0xf]
      %v3072 = vld [vmem:[%s3049 + $0x58] sm:$0xf]
      %v3073 = vld [vmem:[%s3049 + $0x5c] sm:$0xf]
      %v3106 = vunpack.c.l.b16 %v3017
      %v3107 = vunpack.c.h.b16 %v3017
      %v3108 = vunpack.c.l.b16 %v3018
      %v3109 = vunpack.c.h.b16 %v3018
      %v3110 = vunpack.c.l.b16 %v3019
      %v3111 = vunpack.c.h.b16 %v3019
      %v3112 = vunpack.c.l.b16 %v3020
      %v3113 = vunpack.c.h.b16 %v3020
      %v3114 = vunpack.c.l.b16 %v3021
      %v3115 = vunpack.c.h.b16 %v3021
      %v3116 = vunpack.c.l.b16 %v3022
      %v3117 = vunpack.c.h.b16 %v3022
      %v3118 = vunpack.c.l.b16 %v3023
      %v3119 = vunpack.c.h.b16 %v3023
      %v3120 = vunpack.c.l.b16 %v3024
      %v3121 = vunpack.c.h.b16 %v3024
      %v3122 = vunpack.c.l.b16 %v3025
      %v3123 = vunpack.c.h.b16 %v3025
      %v3124 = vunpack.c.l.b16 %v3026
      %v3125 = vunpack.c.h.b16 %v3026
      %v3126 = vunpack.c.l.b16 %v3027
      %v3127 = vunpack.c.h.b16 %v3027
      %v3128 = vunpack.c.l.b16 %v3028
      %v3129 = vunpack.c.h.b16 %v3028
      %v3130 = vunpack.c.l.b16 %v3029
      %v3131 = vunpack.c.h.b16 %v3029
      %v3132 = vunpack.c.l.b16 %v3030
      %v3133 = vunpack.c.h.b16 %v3030
      %v3134 = vunpack.c.l.b16 %v3031
      %v3135 = vunpack.c.h.b16 %v3031
      %v3136 = vunpack.c.l.b16 %v3032
      %v3137 = vunpack.c.h.b16 %v3032
      %v3138 = vunpack.c.l.b16 %v3033
      %v3139 = vunpack.c.h.b16 %v3033
      %v3140 = vunpack.c.l.b16 %v3034
      %v3141 = vunpack.c.h.b16 %v3034
      %v3142 = vunpack.c.l.b16 %v3035
      %v3143 = vunpack.c.h.b16 %v3035
      %v3144 = vunpack.c.l.b16 %v3036
      %v3145 = vunpack.c.h.b16 %v3036
      %v3146 = vunpack.c.l.b16 %v3037
      %v3147 = vunpack.c.h.b16 %v3037
      %v3148 = vunpack.c.l.b16 %v3038
      %v3149 = vunpack.c.h.b16 %v3038
      %v3150 = vunpack.c.l.b16 %v3039
      %v3151 = vunpack.c.h.b16 %v3039
      %v3152 = vunpack.c.l.b16 %v3040
      %v3153 = vunpack.c.h.b16 %v3040
      %v3154 = vunpack.c.l.b16 %v3041
      %v3155 = vunpack.c.h.b16 %v3041
      %v3156 = vunpack.c.l.b16 %v3042
      %v3157 = vunpack.c.h.b16 %v3042
      %v3158 = vunpack.c.l.b16 %v3043
      %v3159 = vunpack.c.h.b16 %v3043
      %v3160 = vunpack.c.l.b16 %v3044
      %v3161 = vunpack.c.h.b16 %v3044
      %v3162 = vunpack.c.l.b16 %v3045
      %v3163 = vunpack.c.h.b16 %v3045
      %v3164 = vunpack.c.l.b16 %v3046
      %v3165 = vunpack.c.h.b16 %v3046
      %v3166 = vunpack.c.l.b16 %v3047
      %v3167 = vunpack.c.h.b16 %v3047
      %v3168 = vunpack.c.l.b16 %v3048
      %v3169 = vunpack.c.h.b16 %v3048
      %v3170 = vpack.c.b16 %v3108, %v3106
      %v3171 = vpack.c.b16 %v3109, %v3107
      %v3172 = vpack.c.b16 %v3112, %v3110
      %v3173 = vpack.c.b16 %v3113, %v3111
      %v3174 = vpack.c.b16 %v3116, %v3114
      %v3175 = vpack.c.b16 %v3117, %v3115
      %v3176 = vpack.c.b16 %v3120, %v3118
      %v3177 = vpack.c.b16 %v3121, %v3119
      %v3178 = vpack.c.b16 %v3124, %v3122
      %v3179 = vpack.c.b16 %v3125, %v3123
      %v3180 = vpack.c.b16 %v3128, %v3126
      %v3181 = vpack.c.b16 %v3129, %v3127
      %v3182 = vpack.c.b16 %v3132, %v3130
      %v3183 = vpack.c.b16 %v3133, %v3131
      %v3184 = vpack.c.b16 %v3136, %v3134
      %v3185 = vpack.c.b16 %v3137, %v3135
      %v3186 = vpack.c.b16 %v3140, %v3138
      %v3187 = vpack.c.b16 %v3141, %v3139
      %v3188 = vpack.c.b16 %v3144, %v3142
      %v3189 = vpack.c.b16 %v3145, %v3143
      %v3190 = vpack.c.b16 %v3148, %v3146
      %v3191 = vpack.c.b16 %v3149, %v3147
      %v3192 = vpack.c.b16 %v3152, %v3150
      %v3193 = vpack.c.b16 %v3153, %v3151
      %v3194 = vpack.c.b16 %v3156, %v3154
      %v3195 = vpack.c.b16 %v3157, %v3155
      %v3196 = vpack.c.b16 %v3160, %v3158
      %v3197 = vpack.c.b16 %v3161, %v3159
      %v3198 = vpack.c.b16 %v3164, %v3162
      %v3199 = vpack.c.b16 %v3165, %v3163
      %v3200 = vpack.c.b16 %v3168, %v3166
      %v3201 = vpack.c.b16 %v3169, %v3167
      %v3242 = vunpack.c.l.b16 %v3050
      %v3243 = vunpack.c.l.b16 %v3051
      %v3244 = vunpack.c.l.b16 %v3052
      %v3245 = vunpack.c.l.b16 %v3053
      %v3246 = vunpack.c.l.b16 %v3054
      %v3247 = vunpack.c.l.b16 %v3055
      %v3248 = vunpack.c.l.b16 %v3056
      %v3249 = vunpack.c.l.b16 %v3057
      %v3250 = vunpack.c.l.b16 %v3058
      %v3251 = vunpack.c.l.b16 %v3059
      %v3252 = vunpack.c.l.b16 %v3060
      %v3253 = vunpack.c.l.b16 %v3061
      %v3254 = vunpack.c.l.b16 %v3062
      %v3255 = vunpack.c.l.b16 %v3063
      %v3256 = vunpack.c.l.b16 %v3064
      %v3257 = vunpack.c.l.b16 %v3065
      %v3258 = vunpack.c.l.b16 %v3066
      %v3259 = vunpack.c.l.b16 %v3067
      %v3260 = vunpack.c.l.b16 %v3068
      %v3261 = vunpack.c.l.b16 %v3069
      %v3262 = vunpack.c.l.b16 %v3070
      %v3263 = vunpack.c.l.b16 %v3071
      %v3264 = vunpack.c.l.b16 %v3072
      %v3265 = vunpack.c.l.b16 %v3073
      %v3266 = vpack.c.b16 %v3243, %v3242
      %v3267 = vpack.c.b16 %v3245, %v3244
      %v3268 = vpack.c.b16 %v3247, %v3246
      %v3269 = vpack.c.b16 %v3249, %v3248
      %v3270 = vpack.c.b16 %v3251, %v3250
      %v3271 = vpack.c.b16 %v3253, %v3252
      %v3272 = vpack.c.b16 %v3255, %v3254
      %v3273 = vpack.c.b16 %v3257, %v3256
      %v3274 = vpack.c.b16 %v3259, %v3258
      %v3275 = vpack.c.b16 %v3261, %v3260
      %v3276 = vpack.c.b16 %v3263, %v3262
      %v3277 = vpack.c.b16 %v3265, %v3264
      %v3291 = vsel %vm837, %v3171, 0
      %v3294 = vsel %vm837, %v3173, 0
      %v3297 = vsel %vm837, %v3175, 0
      %v3300 = vsel %vm837, %v3177, 0
      %v3303 = vsel %vm837, %v3179, 0
      %v3306 = vsel %vm837, %v3181, 0
      %v3309 = vsel %vm837, %v3183, 0
      %v3312 = vsel %vm837, %v3185, 0
      %v3315 = vsel %vm837, %v3187, 0
      %v3318 = vsel %vm837, %v3189, 0
      %v3321 = vsel %vm837, %v3191, 0
      %v3324 = vsel %vm837, %v3193, 0
      %v3327 = vsel %vm837, %v3195, 0
      %v3330 = vsel %vm837, %v3197, 0
      %v3333 = vsel %vm837, %v3199, 0
      %v3336 = vsel %vm837, %v3201, 0
      %3338 = vmatprep.subr.bf16.mxu0 0
      %3339 = vmatpush1.bf16.msra.mxu0 %v3266
      %3340 = vmatprep.subr.bf16.mxu0 0
      %3341 = vmatpush1.bf16.msra.mxu0 %v3267
      %3342 = vmatprep.subr.bf16.mxu0 0
      %3343 = vmatpush1.bf16.msra.mxu0 %v3268
      %3344 = vmatprep.subr.bf16.mxu0 0
      %3345 = vmatpush1.bf16.msra.mxu0 %v3269
      %3346 = vmatprep.subr.bf16.mxu0 0
      %3347 = vmatpush1.bf16.msra.mxu0 %v3270
      %3348 = vmatprep.subr.bf16.mxu0 0
      %3349 = vmatpush1.bf16.msra.mxu0 %v3271
      %3350 = vmatprep.subr.bf16.mxu0 0
      %3351 = vmatpush1.bf16.msra.mxu0 %v3272
      %3352 = vmatprep.subr.bf16.mxu0 0
      %3353 = vmatpush1.bf16.msra.mxu0 %v3273
      %3354 = vmatprep.subr.bf16.mxu0 0
      %3355 = vmatpush1.bf16.msra.mxu0 %v3274
      %3356 = vmatprep.subr.bf16.mxu0 0
      %3357 = vmatpush1.bf16.msra.mxu0 %v3275
      %3358 = vmatprep.subr.bf16.mxu0 0
      %3359 = vmatpush1.bf16.msra.mxu0 %v3276
      %3360 = vmatprep.subr.bf16.mxu0 0
      %3361 = vmatpush1.bf16.msra.mxu0 %v3277
      %3362 = vmatprep.subr.bf16.mxu0 0
      %3363 = vmatpush1.bf16.msra.mxu0 0
      %3364 = vmatprep.subr.bf16.mxu0 0
      %3365 = vmatpush1.bf16.msra.mxu0 0
      %3366 = vmatprep.subr.bf16.mxu0 0
      %3367 = vmatpush1.bf16.msra.mxu0 0
      %3368 = vmatprep.subr.bf16.mxu0 0
      %3369 = vmatpush1.bf16.msra.mxu0 0
      %3370 = vmatprep.mubr.bf16.mxu0 %v3291
      %3371 = vmatmul.mubr.bf16.gmra.mrb[0].mxu0 %v3170
      %v3372 = vpop.f32.mrb[0].mxu0
      %v3373 = vadd.f32 0.0, %v3372
      %v3374 = vpop.f32.mrb[0].mxu0
      %v3375 = vpop.f32.mrb[0].mxu0
      %v3376 = vadd.f32 0.0, %v3375
      %v3377 = vpop.f32.mrb[0].mxu0
      %3378 = vmatprep.mubr.bf16.mxu0 %v3294
      %3379 = vmatmul.mubr.bf16.gmra.mrb[0].mxu0 %v3172
      %v3380 = vpop.f32.mrb[0].mxu0
      %v3381 = vadd.f32 0.0, %v3380
      %v3382 = vpop.f32.mrb[0].mxu0
      %v3383 = vpop.f32.mrb[0].mxu0
      %v3384 = vadd.f32 0.0, %v3383
      %v3385 = vpop.f32.mrb[0].mxu0
      %3386 = vmatprep.mubr.bf16.mxu0 %v3297
      %3387 = vmatmul.mubr.bf16.gmra.mrb[0].mxu0 %v3174
      %v3388 = vpop.f32.mrb[0].mxu0
      %v3389 = vadd.f32 0.0, %v3388
      %v3390 = vpop.f32.mrb[0].mxu0
      %v3391 = vpop.f32.mrb[0].mxu0
      %v3392 = vadd.f32 0.0, %v3391
      %v3393 = vpop.f32.mrb[0].mxu0
      %3394 = vmatprep.mubr.bf16.mxu0 %v3300
      %3395 = vmatmul.mubr.bf16.gmra.mrb[0].mxu0 %v3176
      %v3396 = vpop.f32.mrb[0].mxu0
      %v3397 = vadd.f32 0.0, %v3396
      %v3398 = vpop.f32.mrb[0].mxu0
      %v3399 = vpop.f32.mrb[0].mxu0
      %v3400 = vadd.f32 0.0, %v3399
      %v3401 = vpop.f32.mrb[0].mxu0
      %3402 = vmatprep.mubr.bf16.mxu0 %v3303
      %3403 = vmatmul.mubr.bf16.gmra.mrb[0].mxu0 %v3178
      %v3404 = vpop.f32.mrb[0].mxu0
      %v3405 = vadd.f32 0.0, %v3404
      %v3406 = vpop.f32.mrb[0].mxu0
      %v3407 = vpop.f32.mrb[0].mxu0
      %v3408 = vadd.f32 0.0, %v3407
      %v3409 = vpop.f32.mrb[0].mxu0
      %3410 = vmatprep.mubr.bf16.mxu0 %v3306
      %3411 = vmatmul.mubr.bf16.gmra.mrb[0].mxu0 %v3180
      %v3412 = vpop.f32.mrb[0].mxu0
      %v3413 = vadd.f32 0.0, %v3412
      %v3414 = vpop.f32.mrb[0].mxu0
      %v3415 = vpop.f32.mrb[0].mxu0
      %v3416 = vadd.f32 0.0, %v3415
      %v3417 = vpop.f32.mrb[0].mxu0
      %3418 = vmatprep.mubr.bf16.mxu0 %v3309
      %3419 = vmatmul.mubr.bf16.gmra.mrb[0].mxu0 %v3182
      %v3420 = vpop.f32.mrb[0].mxu0
      %v3421 = vadd.f32 0.0, %v3420
      %v3422 = vpop.f32.mrb[0].mxu0
      %v3423 = vpop.f32.mrb[0].mxu0
      %v3424 = vadd.f32 0.0, %v3423
      %v3425 = vpop.f32.mrb[0].mxu0
      %3426 = vmatprep.mubr.bf16.mxu0 %v3312
      %3427 = vmatmul.mubr.bf16.gmra.mrb[0].mxu0 %v3184
      %v3428 = vpop.f32.mrb[0].mxu0
      %v3429 = vadd.f32 0.0, %v3428
      %v3430 = vpop.f32.mrb[0].mxu0
      %v3431 = vpop.f32.mrb[0].mxu0
      %v3432 = vadd.f32 0.0, %v3431
      %v3433 = vpop.f32.mrb[0].mxu0
      %3434 = vmatprep.mubr.bf16.mxu0 %v3315
      %3435 = vmatmul.mubr.bf16.gmra.mrb[0].mxu0 %v3186
      %v3436 = vpop.f32.mrb[0].mxu0
      %v3437 = vadd.f32 0.0, %v3436
      %v3438 = vpop.f32.mrb[0].mxu0
      %v3439 = vpop.f32.mrb[0].mxu0
      %v3440 = vadd.f32 0.0, %v3439
      %v3441 = vpop.f32.mrb[0].mxu0
      %3442 = vmatprep.mubr.bf16.mxu0 %v3318
      %3443 = vmatmul.mubr.bf16.gmra.mrb[0].mxu0 %v3188
      %v3444 = vpop.f32.mrb[0].mxu0
      %v3445 = vadd.f32 0.0, %v3444
      %v3446 = vpop.f32.mrb[0].mxu0
      %v3447 = vpop.f32.mrb[0].mxu0
      %v3448 = vadd.f32 0.0, %v3447
      %v3449 = vpop.f32.mrb[0].mxu0
      %3450 = vmatprep.mubr.bf16.mxu0 %v3321
      %3451 = vmatmul.mubr.bf16.gmra.mrb[0].mxu0 %v3190
      %v3452 = vpop.f32.mrb[0].mxu0
      %v3453 = vadd.f32 0.0, %v3452
      %v3454 = vpop.f32.mrb[0].mxu0
      %v3455 = vpop.f32.mrb[0].mxu0
      %v3456 = vadd.f32 0.0, %v3455
      %v3457 = vpop.f32.mrb[0].mxu0
      %3458 = vmatprep.mubr.bf16.mxu0 %v3324
      %3459 = vmatmul.mubr.bf16.gmra.mrb[0].mxu0 %v3192
      %v3460 = vpop.f32.mrb[0].mxu0
      %v3461 = vadd.f32 0.0, %v3460
      %v3462 = vpop.f32.mrb[0].mxu0
      %v3463 = vpop.f32.mrb[0].mxu0
      %v3464 = vadd.f32 0.0, %v3463
      %v3465 = vpop.f32.mrb[0].mxu0
      %3466 = vmatprep.mubr.bf16.mxu0 %v3327
      %3467 = vmatmul.mubr.bf16.gmra.mrb[0].mxu0 %v3194
      %v3468 = vpop.f32.mrb[0].mxu0
      %v3469 = vadd.f32 0.0, %v3468
      %v3470 = vpop.f32.mrb[0].mxu0
      %v3471 = vpop.f32.mrb[0].mxu0
      %v3472 = vadd.f32 0.0, %v3471
      %v3473 = vpop.f32.mrb[0].mxu0
      %3474 = vmatprep.mubr.bf16.mxu0 %v3330
      %3475 = vmatmul.mubr.bf16.gmra.mrb[0].mxu0 %v3196
      %v3476 = vpop.f32.mrb[0].mxu0
      %v3477 = vadd.f32 0.0, %v3476
      %v3478 = vpop.f32.mrb[0].mxu0
      %v3479 = vpop.f32.mrb[0].mxu0
      %v3480 = vadd.f32 0.0, %v3479
      %v3481 = vpop.f32.mrb[0].mxu0
      %3482 = vmatprep.mubr.bf16.mxu0 %v3333
      %3483 = vmatmul.mubr.bf16.gmra.mrb[0].mxu0 %v3198
      %v3484 = vpop.f32.mrb[0].mxu0
      %v3485 = vadd.f32 0.0, %v3484
      %v3486 = vpop.f32.mrb[0].mxu0
      %v3487 = vpop.f32.mrb[0].mxu0
      %v3488 = vadd.f32 0.0, %v3487
      %v3489 = vpop.f32.mrb[0].mxu0
      %3490 = vmatprep.mubr.bf16.mxu0 %v3336
      %3491 = vmatmul.mubr.bf16.gmra.mrb[0].mxu0 %v3200
      %v3492 = vpop.f32.mrb[0].mxu0
      %v3493 = vadd.f32 0.0, %v3492
      %v3494 = vpop.f32.mrb[0].mxu0
      %v3495 = vpop.f32.mrb[0].mxu0
      %v3496 = vadd.f32 0.0, %v3495
      %v3497 = vpop.f32.mrb[0].mxu0
      %3498 = vdwg.mxu0
      %v3499 = vadd.f32 %v2984, %v3373
      %v3500 = vadd.f32 %v2985, %v3376
      %v3501 = vadd.f32 %v2986, %v3381
      %v3502 = vadd.f32 %v2987, %v3384
      %v3503 = vadd.f32 %v2988, %v3389
      %v3504 = vadd.f32 %v2989, %v3392
      %v3505 = vadd.f32 %v2990, %v3397
      %v3506 = vadd.f32 %v2991, %v3400
      %v3507 = vadd.f32 %v2992, %v3405
      %v3508 = vadd.f32 %v2993, %v3408
      %v3509 = vadd.f32 %v2994, %v3413
      %v3510 = vadd.f32 %v2995, %v3416
      %v3511 = vadd.f32 %v2996, %v3421
      %v3512 = vadd.f32 %v2997, %v3424
      %v3513 = vadd.f32 %v2998, %v3429
      %v3514 = vadd.f32 %v2999, %v3432
      %v3515 = vadd.f32 %v3000, %v3437
      %v3516 = vadd.f32 %v3001, %v3440
      %v3517 = vadd.f32 %v3002, %v3445
      %v3518 = vadd.f32 %v3003, %v3448
      %v3519 = vadd.f32 %v3004, %v3453
      %v3520 = vadd.f32 %v3005, %v3456
      %v3521 = vadd.f32 %v3006, %v3461
      %v3522 = vadd.f32 %v3007, %v3464
      %v3523 = vadd.f32 %v3008, %v3469
      %v3524 = vadd.f32 %v3009, %v3472
      %v3525 = vadd.f32 %v3010, %v3477
      %v3526 = vadd.f32 %v3011, %v3480
      %v3527 = vadd.f32 %v3012, %v3485
      %v3528 = vadd.f32 %v3013, %v3488
      %v3529 = vadd.f32 %v3014, %v3493
      %v3530 = vadd.f32 %v3015, %v3496
      %v3531 = vld [vmem:[%s465] sm:$0xff]
      %v3532 = vld [vmem:[%s465 + $0x8] sm:$0xff]
      %v3533 = vld [vmem:[%s465 + $0x10] sm:$0xff]
      %v3534 = vld [vmem:[%s465 + $0x18] sm:$0xff]
      %v3535 = vld [vmem:[%s465 + $0x20] sm:$0xff]
      %v3536 = vld [vmem:[%s465 + $0x28] sm:$0xff]
      %v3537 = vld [vmem:[%s465 + $0x30] sm:$0xff]
      %v3538 = vld [vmem:[%s465 + $0x38] sm:$0xff]
      %v3539 = vld [vmem:[%s465 + $0x40] sm:$0xff]
      %v3540 = vld [vmem:[%s465 + $0x48] sm:$0xff]
      %v3541 = vld [vmem:[%s465 + $0x50] sm:$0xff]
      %v3542 = vld [vmem:[%s465 + $0x58] sm:$0xff]
      %v3543 = vld [vmem:[%s465 + $0x60] sm:$0xff]
      %v3544 = vld [vmem:[%s465 + $0x68] sm:$0xff]
      %v3545 = vld [vmem:[%s465 + $0x70] sm:$0xff]
      %v3546 = vld [vmem:[%s465 + $0x78] sm:$0xff]
      %v3547 = vld [vmem:[%s465 + $0x80] sm:$0xff]
      %v3548 = vld [vmem:[%s465 + $0x88] sm:$0xff]
      %v3549 = vld [vmem:[%s465 + $0x90] sm:$0xff]
      %v3550 = vld [vmem:[%s465 + $0x98] sm:$0xff]
      %v3551 = vld [vmem:[%s465 + $0xa0] sm:$0xff]
      %v3552 = vld [vmem:[%s465 + $0xa8] sm:$0xff]
      %v3553 = vld [vmem:[%s465 + $0xb0] sm:$0xff]
      %v3554 = vld [vmem:[%s465 + $0xb8] sm:$0xff]
      %v3555 = vld [vmem:[%s465 + $0xc0] sm:$0xff]
      %v3556 = vld [vmem:[%s465 + $0xc8] sm:$0xff]
      %v3557 = vld [vmem:[%s465 + $0xd0] sm:$0xff]
      %v3558 = vld [vmem:[%s465 + $0xd8] sm:$0xff]
      %v3559 = vld [vmem:[%s465 + $0xe0] sm:$0xff]
      %v3560 = vld [vmem:[%s465 + $0xe8] sm:$0xff]
      %v3561 = vld [vmem:[%s465 + $0xf0] sm:$0xff]
      %v3562 = vld [vmem:[%s465 + $0xf8] sm:$0xff]
      %s3563 = scalar_lea.vmem %s4, 576
      %v3564 = vld [vmem:[%s3563] sm:$0xf]
      %v3565 = vld [vmem:[%s3563 + $0x4] sm:$0xf]
      %v3566 = vld [vmem:[%s3563 + $0x8] sm:$0xf]
      %v3567 = vld [vmem:[%s3563 + $0xc] sm:$0xf]
      %v3568 = vld [vmem:[%s3563 + $0x10] sm:$0xf]
      %v3569 = vld [vmem:[%s3563 + $0x14] sm:$0xf]
      %v3570 = vld [vmem:[%s3563 + $0x18] sm:$0xf]
      %v3571 = vld [vmem:[%s3563 + $0x1c] sm:$0xf]
      %v3572 = vld [vmem:[%s3563 + $0x20] sm:$0xf]
      %v3573 = vld [vmem:[%s3563 + $0x24] sm:$0xf]
      %v3574 = vld [vmem:[%s3563 + $0x28] sm:$0xf]
      %v3575 = vld [vmem:[%s3563 + $0x2c] sm:$0xf]
      %v3576 = vld [vmem:[%s3563 + $0x30] sm:$0xf]
      %v3577 = vld [vmem:[%s3563 + $0x34] sm:$0xf]
      %v3578 = vld [vmem:[%s3563 + $0x38] sm:$0xf]
      %v3579 = vld [vmem:[%s3563 + $0x3c] sm:$0xf]
      %v3580 = vld [vmem:[%s3563 + $0x40] sm:$0xf]
      %v3581 = vld [vmem:[%s3563 + $0x44] sm:$0xf]
      %v3582 = vld [vmem:[%s3563 + $0x48] sm:$0xf]
      %v3583 = vld [vmem:[%s3563 + $0x4c] sm:$0xf]
      %v3584 = vld [vmem:[%s3563 + $0x50] sm:$0xf]
      %v3585 = vld [vmem:[%s3563 + $0x54] sm:$0xf]
      %v3586 = vld [vmem:[%s3563 + $0x58] sm:$0xf]
      %v3587 = vld [vmem:[%s3563 + $0x5c] sm:$0xf]
      %v3620 = vunpack.c.l.b16 %v3531
      %v3621 = vunpack.c.h.b16 %v3531
      %v3622 = vunpack.c.l.b16 %v3532
      %v3623 = vunpack.c.h.b16 %v3532
      %v3624 = vunpack.c.l.b16 %v3533
      %v3625 = vunpack.c.h.b16 %v3533
      %v3626 = vunpack.c.l.b16 %v3534
      %v3627 = vunpack.c.h.b16 %v3534
      %v3628 = vunpack.c.l.b16 %v3535
      %v3629 = vunpack.c.h.b16 %v3535
      %v3630 = vunpack.c.l.b16 %v3536
      %v3631 = vunpack.c.h.b16 %v3536
      %v3632 = vunpack.c.l.b16 %v3537
      %v3633 = vunpack.c.h.b16 %v3537
      %v3634 = vunpack.c.l.b16 %v3538
      %v3635 = vunpack.c.h.b16 %v3538
      %v3636 = vunpack.c.l.b16 %v3539
      %v3637 = vunpack.c.h.b16 %v3539
      %v3638 = vunpack.c.l.b16 %v3540
      %v3639 = vunpack.c.h.b16 %v3540
      %v3640 = vunpack.c.l.b16 %v3541
      %v3641 = vunpack.c.h.b16 %v3541
      %v3642 = vunpack.c.l.b16 %v3542
      %v3643 = vunpack.c.h.b16 %v3542
      %v3644 = vunpack.c.l.b16 %v3543
      %v3645 = vunpack.c.h.b16 %v3543
      %v3646 = vunpack.c.l.b16 %v3544
      %v3647 = vunpack.c.h.b16 %v3544
      %v3648 = vunpack.c.l.b16 %v3545
      %v3649 = vunpack.c.h.b16 %v3545
      %v3650 = vunpack.c.l.b16 %v3546
      %v3651 = vunpack.c.h.b16 %v3546
      %v3652 = vunpack.c.l.b16 %v3547
      %v3653 = vunpack.c.h.b16 %v3547
      %v3654 = vunpack.c.l.b16 %v3548
      %v3655 = vunpack.c.h.b16 %v3548
      %v3656 = vunpack.c.l.b16 %v3549
      %v3657 = vunpack.c.h.b16 %v3549
      %v3658 = vunpack.c.l.b16 %v3550
      %v3659 = vunpack.c.h.b16 %v3550
      %v3660 = vunpack.c.l.b16 %v3551
      %v3661 = vunpack.c.h.b16 %v3551
      %v3662 = vunpack.c.l.b16 %v3552
      %v3663 = vunpack.c.h.b16 %v3552
      %v3664 = vunpack.c.l.b16 %v3553
      %v3665 = vunpack.c.h.b16 %v3553
      %v3666 = vunpack.c.l.b16 %v3554
      %v3667 = vunpack.c.h.b16 %v3554
      %v3668 = vunpack.c.l.b16 %v3555
      %v3669 = vunpack.c.h.b16 %v3555
      %v3670 = vunpack.c.l.b16 %v3556
      %v3671 = vunpack.c.h.b16 %v3556
      %v3672 = vunpack.c.l.b16 %v3557
      %v3673 = vunpack.c.h.b16 %v3557
      %v3674 = vunpack.c.l.b16 %v3558
      %v3675 = vunpack.c.h.b16 %v3558
      %v3676 = vunpack.c.l.b16 %v3559
      %v3677 = vunpack.c.h.b16 %v3559
      %v3678 = vunpack.c.l.b16 %v3560
      %v3679 = vunpack.c.h.b16 %v3560
      %v3680 = vunpack.c.l.b16 %v3561
      %v3681 = vunpack.c.h.b16 %v3561
      %v3682 = vunpack.c.l.b16 %v3562
      %v3683 = vunpack.c.h.b16 %v3562
      %v3684 = vpack.c.b16 %v3622, %v3620
      %v3685 = vpack.c.b16 %v3623, %v3621
      %v3686 = vpack.c.b16 %v3626, %v3624
      %v3687 = vpack.c.b16 %v3627, %v3625
      %v3688 = vpack.c.b16 %v3630, %v3628
      %v3689 = vpack.c.b16 %v3631, %v3629
      %v3690 = vpack.c.b16 %v3634, %v3632
      %v3691 = vpack.c.b16 %v3635, %v3633
      %v3692 = vpack.c.b16 %v3638, %v3636
      %v3693 = vpack.c.b16 %v3639, %v3637
      %v3694 = vpack.c.b16 %v3642, %v3640
      %v3695 = vpack.c.b16 %v3643, %v3641
      %v3696 = vpack.c.b16 %v3646, %v3644
      %v3697 = vpack.c.b16 %v3647, %v3645
      %v3698 = vpack.c.b16 %v3650, %v3648
      %v3699 = vpack.c.b16 %v3651, %v3649
      %v3700 = vpack.c.b16 %v3654, %v3652
      %v3701 = vpack.c.b16 %v3655, %v3653
      %v3702 = vpack.c.b16 %v3658, %v3656
      %v3703 = vpack.c.b16 %v3659, %v3657
      %v3704 = vpack.c.b16 %v3662, %v3660
      %v3705 = vpack.c.b16 %v3663, %v3661
      %v3706 = vpack.c.b16 %v3666, %v3664
      %v3707 = vpack.c.b16 %v3667, %v3665
      %v3708 = vpack.c.b16 %v3670, %v3668
      %v3709 = vpack.c.b16 %v3671, %v3669
      %v3710 = vpack.c.b16 %v3674, %v3672
      %v3711 = vpack.c.b16 %v3675, %v3673
      %v3712 = vpack.c.b16 %v3678, %v3676
      %v3713 = vpack.c.b16 %v3679, %v3677
      %v3714 = vpack.c.b16 %v3682, %v3680
      %v3715 = vpack.c.b16 %v3683, %v3681
      %v3756 = vunpack.c.l.b16 %v3564
      %v3757 = vunpack.c.l.b16 %v3565
      %v3758 = vunpack.c.l.b16 %v3566
      %v3759 = vunpack.c.l.b16 %v3567
      %v3760 = vunpack.c.l.b16 %v3568
      %v3761 = vunpack.c.l.b16 %v3569
      %v3762 = vunpack.c.l.b16 %v3570
      %v3763 = vunpack.c.l.b16 %v3571
      %v3764 = vunpack.c.l.b16 %v3572
      %v3765 = vunpack.c.l.b16 %v3573
      %v3766 = vunpack.c.l.b16 %v3574
      %v3767 = vunpack.c.l.b16 %v3575
      %v3768 = vunpack.c.l.b16 %v3576
      %v3769 = vunpack.c.l.b16 %v3577
      %v3770 = vunpack.c.l.b16 %v3578
      %v3771 = vunpack.c.l.b16 %v3579
      %v3772 = vunpack.c.l.b16 %v3580
      %v3773 = vunpack.c.l.b16 %v3581
      %v3774 = vunpack.c.l.b16 %v3582
      %v3775 = vunpack.c.l.b16 %v3583
      %v3776 = vunpack.c.l.b16 %v3584
      %v3777 = vunpack.c.l.b16 %v3585
      %v3778 = vunpack.c.l.b16 %v3586
      %v3779 = vunpack.c.l.b16 %v3587
      %v3780 = vpack.c.b16 %v3757, %v3756
      %v3781 = vpack.c.b16 %v3759, %v3758
      %v3782 = vpack.c.b16 %v3761, %v3760
      %v3783 = vpack.c.b16 %v3763, %v3762
      %v3784 = vpack.c.b16 %v3765, %v3764
      %v3785 = vpack.c.b16 %v3767, %v3766
      %v3786 = vpack.c.b16 %v3769, %v3768
      %v3787 = vpack.c.b16 %v3771, %v3770
      %v3788 = vpack.c.b16 %v3773, %v3772
      %v3789 = vpack.c.b16 %v3775, %v3774
      %v3790 = vpack.c.b16 %v3777, %v3776
      %v3791 = vpack.c.b16 %v3779, %v3778
      %v3805 = vsel %vm837, %v3685, 0
      %v3808 = vsel %vm837, %v3687, 0
      %v3811 = vsel %vm837, %v3689, 0
      %v3814 = vsel %vm837, %v3691, 0
      %v3817 = vsel %vm837, %v3693, 0
      %v3820 = vsel %vm837, %v3695, 0
      %v3823 = vsel %vm837, %v3697, 0
      %v3826 = vsel %vm837, %v3699, 0
      %v3829 = vsel %vm837, %v3701, 0
      %v3832 = vsel %vm837, %v3703, 0
      %v3835 = vsel %vm837, %v3705, 0
      %v3838 = vsel %vm837, %v3707, 0
      %v3841 = vsel %vm837, %v3709, 0
      %v3844 = vsel %vm837, %v3711, 0
      %v3847 = vsel %vm837, %v3713, 0
      %v3850 = vsel %vm837, %v3715, 0
      %3852 = vmatprep.subr.bf16.mxu0 0
      %3853 = vmatpush1.bf16.msra.mxu0 %v3780
      %3854 = vmatprep.subr.bf16.mxu0 0
      %3855 = vmatpush1.bf16.msra.mxu0 %v3781
      %3856 = vmatprep.subr.bf16.mxu0 0
      %3857 = vmatpush1.bf16.msra.mxu0 %v3782
      %3858 = vmatprep.subr.bf16.mxu0 0
      %3859 = vmatpush1.bf16.msra.mxu0 %v3783
      %3860 = vmatprep.subr.bf16.mxu0 0
      %3861 = vmatpush1.bf16.msra.mxu0 %v3784
      %3862 = vmatprep.subr.bf16.mxu0 0
      %3863 = vmatpush1.bf16.msra.mxu0 %v3785
      %3864 = vmatprep.subr.bf16.mxu0 0
      %3865 = vmatpush1.bf16.msra.mxu0 %v3786
      %3866 = vmatprep.subr.bf16.mxu0 0
      %3867 = vmatpush1.bf16.msra.mxu0 %v3787
      %3868 = vmatprep.subr.bf16.mxu0 0
      %3869 = vmatpush1.bf16.msra.mxu0 %v3788
      %3870 = vmatprep.subr.bf16.mxu0 0
      %3871 = vmatpush1.bf16.msra.mxu0 %v3789
      %3872 = vmatprep.subr.bf16.mxu0 0
      %3873 = vmatpush1.bf16.msra.mxu0 %v3790
      %3874 = vmatprep.subr.bf16.mxu0 0
      %3875 = vmatpush1.bf16.msra.mxu0 %v3791
      %3876 = vmatprep.subr.bf16.mxu0 0
      %3877 = vmatpush1.bf16.msra.mxu0 0
      %3878 = vmatprep.subr.bf16.mxu0 0
      %3879 = vmatpush1.bf16.msra.mxu0 0
      %3880 = vmatprep.subr.bf16.mxu0 0
      %3881 = vmatpush1.bf16.msra.mxu0 0
      %3882 = vmatprep.subr.bf16.mxu0 0
      %3883 = vmatpush1.bf16.msra.mxu0 0
      %3884 = vmatprep.mubr.bf16.mxu0 %v3805
      %3885 = vmatmul.mubr.bf16.gmra.mrb[0].mxu0 %v3684
      %v3886 = vpop.f32.mrb[0].mxu0
      %v3887 = vadd.f32 0.0, %v3886
      %v3888 = vpop.f32.mrb[0].mxu0
      %v3889 = vpop.f32.mrb[0].mxu0
      %v3890 = vadd.f32 0.0, %v3889
      %v3891 = vpop.f32.mrb[0].mxu0
      %3892 = vmatprep.mubr.bf16.mxu0 %v3808
      %3893 = vmatmul.mubr.bf16.gmra.mrb[0].mxu0 %v3686
      %v3894 = vpop.f32.mrb[0].mxu0
      %v3895 = vadd.f32 0.0, %v3894
      %v3896 = vpop.f32.mrb[0].mxu0
      %v3897 = vpop.f32.mrb[0].mxu0
      %v3898 = vadd.f32 0.0, %v3897
      %v3899 = vpop.f32.mrb[0].mxu0
      %3900 = vmatprep.mubr.bf16.mxu0 %v3811
      %3901 = vmatmul.mubr.bf16.gmra.mrb[0].mxu0 %v3688
      %v3902 = vpop.f32.mrb[0].mxu0
      %v3903 = vadd.f32 0.0, %v3902
      %v3904 = vpop.f32.mrb[0].mxu0
      %v3905 = vpop.f32.mrb[0].mxu0
      %v3906 = vadd.f32 0.0, %v3905
      %v3907 = vpop.f32.mrb[0].mxu0
      %3908 = vmatprep.mubr.bf16.mxu0 %v3814
      %3909 = vmatmul.mubr.bf16.gmra.mrb[0].mxu0 %v3690
      %v3910 = vpop.f32.mrb[0].mxu0
      %v3911 = vadd.f32 0.0, %v3910
      %v3912 = vpop.f32.mrb[0].mxu0
      %v3913 = vpop.f32.mrb[0].mxu0
      %v3914 = vadd.f32 0.0, %v3913
      %v3915 = vpop.f32.mrb[0].mxu0
      %3916 = vmatprep.mubr.bf16.mxu0 %v3817
      %3917 = vmatmul.mubr.bf16.gmra.mrb[0].mxu0 %v3692
      %v3918 = vpop.f32.mrb[0].mxu0
      %v3919 = vadd.f32 0.0, %v3918
      %v3920 = vpop.f32.mrb[0].mxu0
      %v3921 = vpop.f32.mrb[0].mxu0
      %v3922 = vadd.f32 0.0, %v3921
      %v3923 = vpop.f32.mrb[0].mxu0
      %3924 = vmatprep.mubr.bf16.mxu0 %v3820
      %3925 = vmatmul.mubr.bf16.gmra.mrb[0].mxu0 %v3694
      %v3926 = vpop.f32.mrb[0].mxu0
      %v3927 = vadd.f32 0.0, %v3926
      %v3928 = vpop.f32.mrb[0].mxu0
      %v3929 = vpop.f32.mrb[0].mxu0
      %v3930 = vadd.f32 0.0, %v3929
      %v3931 = vpop.f32.mrb[0].mxu0
      %3932 = vmatprep.mubr.bf16.mxu0 %v3823
      %3933 = vmatmul.mubr.bf16.gmra.mrb[0].mxu0 %v3696
      %v3934 = vpop.f32.mrb[0].mxu0
      %v3935 = vadd.f32 0.0, %v3934
      %v3936 = vpop.f32.mrb[0].mxu0
      %v3937 = vpop.f32.mrb[0].mxu0
      %v3938 = vadd.f32 0.0, %v3937
      %v3939 = vpop.f32.mrb[0].mxu0
      %3940 = vmatprep.mubr.bf16.mxu0 %v3826
      %3941 = vmatmul.mubr.bf16.gmra.mrb[0].mxu0 %v3698
      %v3942 = vpop.f32.mrb[0].mxu0
      %v3943 = vadd.f32 0.0, %v3942
      %v3944 = vpop.f32.mrb[0].mxu0
      %v3945 = vpop.f32.mrb[0].mxu0
      %v3946 = vadd.f32 0.0, %v3945
      %v3947 = vpop.f32.mrb[0].mxu0
      %3948 = vmatprep.mubr.bf16.mxu0 %v3829
      %3949 = vmatmul.mubr.bf16.gmra.mrb[0].mxu0 %v3700
      %v3950 = vpop.f32.mrb[0].mxu0
      %v3951 = vadd.f32 0.0, %v3950
      %v3952 = vpop.f32.mrb[0].mxu0
      %v3953 = vpop.f32.mrb[0].mxu0
      %v3954 = vadd.f32 0.0, %v3953
      %v3955 = vpop.f32.mrb[0].mxu0
      %3956 = vmatprep.mubr.bf16.mxu0 %v3832
      %3957 = vmatmul.mubr.bf16.gmra.mrb[0].mxu0 %v3702
      %v3958 = vpop.f32.mrb[0].mxu0
      %v3959 = vadd.f32 0.0, %v3958
      %v3960 = vpop.f32.mrb[0].mxu0
      %v3961 = vpop.f32.mrb[0].mxu0
      %v3962 = vadd.f32 0.0, %v3961
      %v3963 = vpop.f32.mrb[0].mxu0
      %3964 = vmatprep.mubr.bf16.mxu0 %v3835
      %3965 = vmatmul.mubr.bf16.gmra.mrb[0].mxu0 %v3704
      %v3966 = vpop.f32.mrb[0].mxu0
      %v3967 = vadd.f32 0.0, %v3966
      %v3968 = vpop.f32.mrb[0].mxu0
      %v3969 = vpop.f32.mrb[0].mxu0
      %v3970 = vadd.f32 0.0, %v3969
      %v3971 = vpop.f32.mrb[0].mxu0
      %3972 = vmatprep.mubr.bf16.mxu0 %v3838
      %3973 = vmatmul.mubr.bf16.gmra.mrb[0].mxu0 %v3706
      %v3974 = vpop.f32.mrb[0].mxu0
      %v3975 = vadd.f32 0.0, %v3974
      %v3976 = vpop.f32.mrb[0].mxu0
      %v3977 = vpop.f32.mrb[0].mxu0
      %v3978 = vadd.f32 0.0, %v3977
      %v3979 = vpop.f32.mrb[0].mxu0
      %3980 = vmatprep.mubr.bf16.mxu0 %v3841
      %3981 = vmatmul.mubr.bf16.gmra.mrb[0].mxu0 %v3708
      %v3982 = vpop.f32.mrb[0].mxu0
      %v3983 = vadd.f32 0.0, %v3982
      %v3984 = vpop.f32.mrb[0].mxu0
      %v3985 = vpop.f32.mrb[0].mxu0
      %v3986 = vadd.f32 0.0, %v3985
      %v3987 = vpop.f32.mrb[0].mxu0
      %3988 = vmatprep.mubr.bf16.mxu0 %v3844
      %3989 = vmatmul.mubr.bf16.gmra.mrb[0].mxu0 %v3710
      %v3990 = vpop.f32.mrb[0].mxu0
      %v3991 = vadd.f32 0.0, %v3990
      %v3992 = vpop.f32.mrb[0].mxu0
      %v3993 = vpop.f32.mrb[0].mxu0
      %v3994 = vadd.f32 0.0, %v3993
      %v3995 = vpop.f32.mrb[0].mxu0
      %3996 = vmatprep.mubr.bf16.mxu0 %v3847
      %3997 = vmatmul.mubr.bf16.gmra.mrb[0].mxu0 %v3712
      %v3998 = vpop.f32.mrb[0].mxu0
      %v3999 = vadd.f32 0.0, %v3998
      %v4000 = vpop.f32.mrb[0].mxu0
      %v4001 = vpop.f32.mrb[0].mxu0
      %v4002 = vadd.f32 0.0, %v4001
      %v4003 = vpop.f32.mrb[0].mxu0
      %4004 = vmatprep.mubr.bf16.mxu0 %v3850
      %4005 = vmatmul.mubr.bf16.gmra.mrb[0].mxu0 %v3714
      %v4006 = vpop.f32.mrb[0].mxu0
      %v4007 = vadd.f32 0.0, %v4006
      %v4008 = vpop.f32.mrb[0].mxu0
      %v4009 = vpop.f32.mrb[0].mxu0
      %v4010 = vadd.f32 0.0, %v4009
      %v4011 = vpop.f32.mrb[0].mxu0
      %4012 = vdwg.mxu0
      %v4013 = vadd.f32 %v3499, %v3887
      %v4014 = vadd.f32 %v3500, %v3890
      %v4015 = vadd.f32 %v3501, %v3895
      %v4016 = vadd.f32 %v3502, %v3898
      %v4017 = vadd.f32 %v3503, %v3903
      %v4018 = vadd.f32 %v3504, %v3906
      %v4019 = vadd.f32 %v3505, %v3911
      %v4020 = vadd.f32 %v3506, %v3914
      %v4021 = vadd.f32 %v3507, %v3919
      %v4022 = vadd.f32 %v3508, %v3922
      %v4023 = vadd.f32 %v3509, %v3927
      %v4024 = vadd.f32 %v3510, %v3930
      %v4025 = vadd.f32 %v3511, %v3935
      %v4026 = vadd.f32 %v3512, %v3938
      %v4027 = vadd.f32 %v3513, %v3943
      %v4028 = vadd.f32 %v3514, %v3946
      %v4029 = vadd.f32 %v3515, %v3951
      %v4030 = vadd.f32 %v3516, %v3954
      %v4031 = vadd.f32 %v3517, %v3959
      %v4032 = vadd.f32 %v3518, %v3962
      %v4033 = vadd.f32 %v3519, %v3967
      %v4034 = vadd.f32 %v3520, %v3970
      %v4035 = vadd.f32 %v3521, %v3975
      %v4036 = vadd.f32 %v3522, %v3978
      %v4037 = vadd.f32 %v3523, %v3983
      %v4038 = vadd.f32 %v3524, %v3986
      %v4039 = vadd.f32 %v3525, %v3991
      %v4040 = vadd.f32 %v3526, %v3994
      %v4041 = vadd.f32 %v3527, %v3999
      %v4042 = vadd.f32 %v3528, %v4002
      %v4043 = vadd.f32 %v3529, %v4007
      %v4044 = vadd.f32 %v3530, %v4010
      %s4045 = scalar_lea.vmem %s465, 16
      %v4046 = vld [vmem:[%s4045] sm:$0xff]
      %v4047 = vld [vmem:[%s4045 + $0x8] sm:$0xff]
      %v4048 = vld [vmem:[%s4045 + $0x10] sm:$0xff]
      %v4049 = vld [vmem:[%s4045 + $0x18] sm:$0xff]
      %v4050 = vld [vmem:[%s4045 + $0x20] sm:$0xff]
      %v4051 = vld [vmem:[%s4045 + $0x28] sm:$0xff]
      %v4052 = vld [vmem:[%s4045 + $0x30] sm:$0xff]
      %v4053 = vld [vmem:[%s4045 + $0x38] sm:$0xff]
      %v4054 = vld [vmem:[%s4045 + $0x40] sm:$0xff]
      %v4055 = vld [vmem:[%s4045 + $0x48] sm:$0xff]
      %v4056 = vld [vmem:[%s4045 + $0x50] sm:$0xff]
      %v4057 = vld [vmem:[%s4045 + $0x58] sm:$0xff]
      %v4058 = vld [vmem:[%s4045 + $0x60] sm:$0xff]
      %v4059 = vld [vmem:[%s4045 + $0x68] sm:$0xff]
      %v4060 = vld [vmem:[%s4045 + $0x70] sm:$0xff]
      %v4061 = vld [vmem:[%s4045 + $0x78] sm:$0xff]
      %v4062 = vld [vmem:[%s4045 + $0x80] sm:$0xff]
      %v4063 = vld [vmem:[%s4045 + $0x88] sm:$0xff]
      %v4064 = vld [vmem:[%s4045 + $0x90] sm:$0xff]
      %v4065 = vld [vmem:[%s4045 + $0x98] sm:$0xff]
      %v4066 = vld [vmem:[%s4045 + $0xa0] sm:$0xff]
      %v4067 = vld [vmem:[%s4045 + $0xa8] sm:$0xff]
      %v4068 = vld [vmem:[%s4045 + $0xb0] sm:$0xff]
      %v4069 = vld [vmem:[%s4045 + $0xb8] sm:$0xff]
      %v4070 = vld [vmem:[%s4045 + $0xc0] sm:$0xff]
      %v4071 = vld [vmem:[%s4045 + $0xc8] sm:$0xff]
      %v4072 = vld [vmem:[%s4045 + $0xd0] sm:$0xff]
      %v4073 = vld [vmem:[%s4045 + $0xd8] sm:$0xff]
      %v4074 = vld [vmem:[%s4045 + $0xe0] sm:$0xff]
      %v4075 = vld [vmem:[%s4045 + $0xe8] sm:$0xff]
      %v4076 = vld [vmem:[%s4045 + $0xf0] sm:$0xff]
      %v4077 = vld [vmem:[%s4045 + $0xf8] sm:$0xff]
      %s4078 = scalar_lea.vmem %s4, 672
      %v4079 = vld [vmem:[%s4078] sm:$0xf]
      %v4080 = vld [vmem:[%s4078 + $0x4] sm:$0xf]
      %v4081 = vld [vmem:[%s4078 + $0x8] sm:$0xf]
      %v4082 = vld [vmem:[%s4078 + $0xc] sm:$0xf]
      %v4083 = vld [vmem:[%s4078 + $0x10] sm:$0xf]
      %v4084 = vld [vmem:[%s4078 + $0x14] sm:$0xf]
      %v4085 = vld [vmem:[%s4078 + $0x18] sm:$0xf]
      %v4086 = vld [vmem:[%s4078 + $0x1c] sm:$0xf]
      %v4087 = vld [vmem:[%s4078 + $0x20] sm:$0xf]
      %v4088 = vld [vmem:[%s4078 + $0x24] sm:$0xf]
      %v4089 = vld [vmem:[%s4078 + $0x28] sm:$0xf]
      %v4090 = vld [vmem:[%s4078 + $0x2c] sm:$0xf]
      %v4091 = vld [vmem:[%s4078 + $0x30] sm:$0xf]
      %v4092 = vld [vmem:[%s4078 + $0x34] sm:$0xf]
      %v4093 = vld [vmem:[%s4078 + $0x38] sm:$0xf]
      %v4094 = vld [vmem:[%s4078 + $0x3c] sm:$0xf]
      %v4095 = vld [vmem:[%s4078 + $0x40] sm:$0xf]
      %v4096 = vld [vmem:[%s4078 + $0x44] sm:$0xf]
      %v4097 = vld [vmem:[%s4078 + $0x48] sm:$0xf]
      %v4098 = vld [vmem:[%s4078 + $0x4c] sm:$0xf]
      %v4099 = vld [vmem:[%s4078 + $0x50] sm:$0xf]
      %v4100 = vld [vmem:[%s4078 + $0x54] sm:$0xf]
      %v4101 = vld [vmem:[%s4078 + $0x58] sm:$0xf]
      %v4102 = vld [vmem:[%s4078 + $0x5c] sm:$0xf]
      %v4135 = vunpack.c.l.b16 %v4046
      %v4136 = vunpack.c.h.b16 %v4046
      %v4137 = vunpack.c.l.b16 %v4047
      %v4138 = vunpack.c.h.b16 %v4047
      %v4139 = vunpack.c.l.b16 %v4048
      %v4140 = vunpack.c.h.b16 %v4048
      %v4141 = vunpack.c.l.b16 %v4049
      %v4142 = vunpack.c.h.b16 %v4049
      %v4143 = vunpack.c.l.b16 %v4050
      %v4144 = vunpack.c.h.b16 %v4050
      %v4145 = vunpack.c.l.b16 %v4051
      %v4146 = vunpack.c.h.b16 %v4051
      %v4147 = vunpack.c.l.b16 %v4052
      %v4148 = vunpack.c.h.b16 %v4052
      %v4149 = vunpack.c.l.b16 %v4053
      %v4150 = vunpack.c.h.b16 %v4053
      %v4151 = vunpack.c.l.b16 %v4054
      %v4152 = vunpack.c.h.b16 %v4054
      %v4153 = vunpack.c.l.b16 %v4055
      %v4154 = vunpack.c.h.b16 %v4055
      %v4155 = vunpack.c.l.b16 %v4056
      %v4156 = vunpack.c.h.b16 %v4056
      %v4157 = vunpack.c.l.b16 %v4057
      %v4158 = vunpack.c.h.b16 %v4057
      %v4159 = vunpack.c.l.b16 %v4058
      %v4160 = vunpack.c.h.b16 %v4058
      %v4161 = vunpack.c.l.b16 %v4059
      %v4162 = vunpack.c.h.b16 %v4059
      %v4163 = vunpack.c.l.b16 %v4060
      %v4164 = vunpack.c.h.b16 %v4060
      %v4165 = vunpack.c.l.b16 %v4061
      %v4166 = vunpack.c.h.b16 %v4061
      %v4167 = vunpack.c.l.b16 %v4062
      %v4168 = vunpack.c.h.b16 %v4062
      %v4169 = vunpack.c.l.b16 %v4063
      %v4170 = vunpack.c.h.b16 %v4063
      %v4171 = vunpack.c.l.b16 %v4064
      %v4172 = vunpack.c.h.b16 %v4064
      %v4173 = vunpack.c.l.b16 %v4065
      %v4174 = vunpack.c.h.b16 %v4065
      %v4175 = vunpack.c.l.b16 %v4066
      %v4176 = vunpack.c.h.b16 %v4066
      %v4177 = vunpack.c.l.b16 %v4067
      %v4178 = vunpack.c.h.b16 %v4067
      %v4179 = vunpack.c.l.b16 %v4068
      %v4180 = vunpack.c.h.b16 %v4068
      %v4181 = vunpack.c.l.b16 %v4069
      %v4182 = vunpack.c.h.b16 %v4069
      %v4183 = vunpack.c.l.b16 %v4070
      %v4184 = vunpack.c.h.b16 %v4070
      %v4185 = vunpack.c.l.b16 %v4071
      %v4186 = vunpack.c.h.b16 %v4071
      %v4187 = vunpack.c.l.b16 %v4072
      %v4188 = vunpack.c.h.b16 %v4072
      %v4189 = vunpack.c.l.b16 %v4073
      %v4190 = vunpack.c.h.b16 %v4073
      %v4191 = vunpack.c.l.b16 %v4074
      %v4192 = vunpack.c.h.b16 %v4074
      %v4193 = vunpack.c.l.b16 %v4075
      %v4194 = vunpack.c.h.b16 %v4075
      %v4195 = vunpack.c.l.b16 %v4076
      %v4196 = vunpack.c.h.b16 %v4076
      %v4197 = vunpack.c.l.b16 %v4077
      %v4198 = vunpack.c.h.b16 %v4077
      %v4199 = vpack.c.b16 %v4137, %v4135
      %v4200 = vpack.c.b16 %v4138, %v4136
      %v4201 = vpack.c.b16 %v4141, %v4139
      %v4202 = vpack.c.b16 %v4142, %v4140
      %v4203 = vpack.c.b16 %v4145, %v4143
      %v4204 = vpack.c.b16 %v4146, %v4144
      %v4205 = vpack.c.b16 %v4149, %v4147
      %v4206 = vpack.c.b16 %v4150, %v4148
      %v4207 = vpack.c.b16 %v4153, %v4151
      %v4208 = vpack.c.b16 %v4154, %v4152
      %v4209 = vpack.c.b16 %v4157, %v4155
      %v4210 = vpack.c.b16 %v4158, %v4156
      %v4211 = vpack.c.b16 %v4161, %v4159
      %v4212 = vpack.c.b16 %v4162, %v4160
      %v4213 = vpack.c.b16 %v4165, %v4163
      %v4214 = vpack.c.b16 %v4166, %v4164
      %v4215 = vpack.c.b16 %v4169, %v4167
      %v4216 = vpack.c.b16 %v4170, %v4168
      %v4217 = vpack.c.b16 %v4173, %v4171
      %v4218 = vpack.c.b16 %v4174, %v4172
      %v4219 = vpack.c.b16 %v4177, %v4175
      %v4220 = vpack.c.b16 %v4178, %v4176
      %v4221 = vpack.c.b16 %v4181, %v4179
      %v4222 = vpack.c.b16 %v4182, %v4180
      %v4223 = vpack.c.b16 %v4185, %v4183
      %v4224 = vpack.c.b16 %v4186, %v4184
      %v4225 = vpack.c.b16 %v4189, %v4187
      %v4226 = vpack.c.b16 %v4190, %v4188
      %v4227 = vpack.c.b16 %v4193, %v4191
      %v4228 = vpack.c.b16 %v4194, %v4192
      %v4229 = vpack.c.b16 %v4197, %v4195
      %v4230 = vpack.c.b16 %v4198, %v4196
      %v4271 = vunpack.c.l.b16 %v4079
      %v4272 = vunpack.c.l.b16 %v4080
      %v4273 = vunpack.c.l.b16 %v4081
      %v4274 = vunpack.c.l.b16 %v4082
      %v4275 = vunpack.c.l.b16 %v4083
      %v4276 = vunpack.c.l.b16 %v4084
      %v4277 = vunpack.c.l.b16 %v4085
      %v4278 = vunpack.c.l.b16 %v4086
      %v4279 = vunpack.c.l.b16 %v4087
      %v4280 = vunpack.c.l.b16 %v4088
      %v4281 = vunpack.c.l.b16 %v4089
      %v4282 = vunpack.c.l.b16 %v4090
      %v4283 = vunpack.c.l.b16 %v4091
      %v4284 = vunpack.c.l.b16 %v4092
      %v4285 = vunpack.c.l.b16 %v4093
      %v4286 = vunpack.c.l.b16 %v4094
      %v4287 = vunpack.c.l.b16 %v4095
      %v4288 = vunpack.c.l.b16 %v4096
      %v4289 = vunpack.c.l.b16 %v4097
      %v4290 = vunpack.c.l.b16 %v4098
      %v4291 = vunpack.c.l.b16 %v4099
      %v4292 = vunpack.c.l.b16 %v4100
      %v4293 = vunpack.c.l.b16 %v4101
      %v4294 = vunpack.c.l.b16 %v4102
      %v4295 = vpack.c.b16 %v4272, %v4271
      %v4296 = vpack.c.b16 %v4274, %v4273
      %v4297 = vpack.c.b16 %v4276, %v4275
      %v4298 = vpack.c.b16 %v4278, %v4277
      %v4299 = vpack.c.b16 %v4280, %v4279
      %v4300 = vpack.c.b16 %v4282, %v4281
      %v4301 = vpack.c.b16 %v4284, %v4283
      %v4302 = vpack.c.b16 %v4286, %v4285
      %v4303 = vpack.c.b16 %v4288, %v4287
      %v4304 = vpack.c.b16 %v4290, %v4289
      %v4305 = vpack.c.b16 %v4292, %v4291
      %v4306 = vpack.c.b16 %v4294, %v4293
      %v4320 = vsel %vm837, %v4200, 0
      %v4323 = vsel %vm837, %v4202, 0
      %v4326 = vsel %vm837, %v4204, 0
      %v4329 = vsel %vm837, %v4206, 0
      %v4332 = vsel %vm837, %v4208, 0
      %v4335 = vsel %vm837, %v4210, 0
      %v4338 = vsel %vm837, %v4212, 0
      %v4341 = vsel %vm837, %v4214, 0
      %v4344 = vsel %vm837, %v4216, 0
      %v4347 = vsel %vm837, %v4218, 0
      %v4350 = vsel %vm837, %v4220, 0
      %v4353 = vsel %vm837, %v4222, 0
      %v4356 = vsel %vm837, %v4224, 0
      %v4359 = vsel %vm837, %v4226, 0
      %v4362 = vsel %vm837, %v4228, 0
      %v4365 = vsel %vm837, %v4230, 0
      %4367 = vmatprep.subr.bf16.mxu0 0
      %4368 = vmatpush1.bf16.msra.mxu0 %v4295
      %4369 = vmatprep.subr.bf16.mxu0 0
      %4370 = vmatpush1.bf16.msra.mxu0 %v4296
      %4371 = vmatprep.subr.bf16.mxu0 0
      %4372 = vmatpush1.bf16.msra.mxu0 %v4297
      %4373 = vmatprep.subr.bf16.mxu0 0
      %4374 = vmatpush1.bf16.msra.mxu0 %v4298
      %4375 = vmatprep.subr.bf16.mxu0 0
      %4376 = vmatpush1.bf16.msra.mxu0 %v4299
      %4377 = vmatprep.subr.bf16.mxu0 0
      %4378 = vmatpush1.bf16.msra.mxu0 %v4300
      %4379 = vmatprep.subr.bf16.mxu0 0
      %4380 = vmatpush1.bf16.msra.mxu0 %v4301
      %4381 = vmatprep.subr.bf16.mxu0 0
      %4382 = vmatpush1.bf16.msra.mxu0 %v4302
      %4383 = vmatprep.subr.bf16.mxu0 0
      %4384 = vmatpush1.bf16.msra.mxu0 %v4303
      %4385 = vmatprep.subr.bf16.mxu0 0
      %4386 = vmatpush1.bf16.msra.mxu0 %v4304
      %4387 = vmatprep.subr.bf16.mxu0 0
      %4388 = vmatpush1.bf16.msra.mxu0 %v4305
      %4389 = vmatprep.subr.bf16.mxu0 0
      %4390 = vmatpush1.bf16.msra.mxu0 %v4306
      %4391 = vmatprep.subr.bf16.mxu0 0
      %4392 = vmatpush1.bf16.msra.mxu0 0
      %4393 = vmatprep.subr.bf16.mxu0 0
      %4394 = vmatpush1.bf16.msra.mxu0 0
      %4395 = vmatprep.subr.bf16.mxu0 0
      %4396 = vmatpush1.bf16.msra.mxu0 0
      %4397 = vmatprep.subr.bf16.mxu0 0
      %4398 = vmatpush1.bf16.msra.mxu0 0
      %4399 = vmatprep.mubr.bf16.mxu0 %v4320
      %4400 = vmatmul.mubr.bf16.gmra.mrb[0].mxu0 %v4199
      %v4401 = vpop.f32.mrb[0].mxu0
      %v4402 = vadd.f32 0.0, %v4401
      %v4403 = vpop.f32.mrb[0].mxu0
      %v4404 = vpop.f32.mrb[0].mxu0
      %v4405 = vadd.f32 0.0, %v4404
      %v4406 = vpop.f32.mrb[0].mxu0
      %4407 = vmatprep.mubr.bf16.mxu0 %v4323
      %4408 = vmatmul.mubr.bf16.gmra.mrb[0].mxu0 %v4201
      %v4409 = vpop.f32.mrb[0].mxu0
      %v4410 = vadd.f32 0.0, %v4409
      %v4411 = vpop.f32.mrb[0].mxu0
      %v4412 = vpop.f32.mrb[0].mxu0
      %v4413 = vadd.f32 0.0, %v4412
      %v4414 = vpop.f32.mrb[0].mxu0
      %4415 = vmatprep.mubr.bf16.mxu0 %v4326
      %4416 = vmatmul.mubr.bf16.gmra.mrb[0].mxu0 %v4203
      %v4417 = vpop.f32.mrb[0].mxu0
      %v4418 = vadd.f32 0.0, %v4417
      %v4419 = vpop.f32.mrb[0].mxu0
      %v4420 = vpop.f32.mrb[0].mxu0
      %v4421 = vadd.f32 0.0, %v4420
      %v4422 = vpop.f32.mrb[0].mxu0
      %4423 = vmatprep.mubr.bf16.mxu0 %v4329
      %4424 = vmatmul.mubr.bf16.gmra.mrb[0].mxu0 %v4205
      %v4425 = vpop.f32.mrb[0].mxu0
      %v4426 = vadd.f32 0.0, %v4425
      %v4427 = vpop.f32.mrb[0].mxu0
      %v4428 = vpop.f32.mrb[0].mxu0
      %v4429 = vadd.f32 0.0, %v4428
      %v4430 = vpop.f32.mrb[0].mxu0
      %4431 = vmatprep.mubr.bf16.mxu0 %v4332
      %4432 = vmatmul.mubr.bf16.gmra.mrb[0].mxu0 %v4207
      %v4433 = vpop.f32.mrb[0].mxu0
      %v4434 = vadd.f32 0.0, %v4433
      %v4435 = vpop.f32.mrb[0].mxu0
      %v4436 = vpop.f32.mrb[0].mxu0
      %v4437 = vadd.f32 0.0, %v4436
      %v4438 = vpop.f32.mrb[0].mxu0
      %4439 = vmatprep.mubr.bf16.mxu0 %v4335
      %4440 = vmatmul.mubr.bf16.gmra.mrb[0].mxu0 %v4209
      %v4441 = vpop.f32.mrb[0].mxu0
      %v4442 = vadd.f32 0.0, %v4441
      %v4443 = vpop.f32.mrb[0].mxu0
      %v4444 = vpop.f32.mrb[0].mxu0
      %v4445 = vadd.f32 0.0, %v4444
      %v4446 = vpop.f32.mrb[0].mxu0
      %4447 = vmatprep.mubr.bf16.mxu0 %v4338
      %4448 = vmatmul.mubr.bf16.gmra.mrb[0].mxu0 %v4211
      %v4449 = vpop.f32.mrb[0].mxu0
      %v4450 = vadd.f32 0.0, %v4449
      %v4451 = vpop.f32.mrb[0].mxu0
      %v4452 = vpop.f32.mrb[0].mxu0
      %v4453 = vadd.f32 0.0, %v4452
      %v4454 = vpop.f32.mrb[0].mxu0
      %4455 = vmatprep.mubr.bf16.mxu0 %v4341
      %4456 = vmatmul.mubr.bf16.gmra.mrb[0].mxu0 %v4213
      %v4457 = vpop.f32.mrb[0].mxu0
      %v4458 = vadd.f32 0.0, %v4457
      %v4459 = vpop.f32.mrb[0].mxu0
      %v4460 = vpop.f32.mrb[0].mxu0
      %v4461 = vadd.f32 0.0, %v4460
      %v4462 = vpop.f32.mrb[0].mxu0
      %4463 = vmatprep.mubr.bf16.mxu0 %v4344
      %4464 = vmatmul.mubr.bf16.gmra.mrb[0].mxu0 %v4215
      %v4465 = vpop.f32.mrb[0].mxu0
      %v4466 = vadd.f32 0.0, %v4465
      %v4467 = vpop.f32.mrb[0].mxu0
      %v4468 = vpop.f32.mrb[0].mxu0
      %v4469 = vadd.f32 0.0, %v4468
      %v4470 = vpop.f32.mrb[0].mxu0
      %4471 = vmatprep.mubr.bf16.mxu0 %v4347
      %4472 = vmatmul.mubr.bf16.gmra.mrb[0].mxu0 %v4217
      %v4473 = vpop.f32.mrb[0].mxu0
      %v4474 = vadd.f32 0.0, %v4473
      %v4475 = vpop.f32.mrb[0].mxu0
      %v4476 = vpop.f32.mrb[0].mxu0
      %v4477 = vadd.f32 0.0, %v4476
      %v4478 = vpop.f32.mrb[0].mxu0
      %4479 = vmatprep.mubr.bf16.mxu0 %v4350
      %4480 = vmatmul.mubr.bf16.gmra.mrb[0].mxu0 %v4219
      %v4481 = vpop.f32.mrb[0].mxu0
      %v4482 = vadd.f32 0.0, %v4481
      %v4483 = vpop.f32.mrb[0].mxu0
      %v4484 = vpop.f32.mrb[0].mxu0
      %v4485 = vadd.f32 0.0, %v4484
      %v4486 = vpop.f32.mrb[0].mxu0
      %4487 = vmatprep.mubr.bf16.mxu0 %v4353
      %4488 = vmatmul.mubr.bf16.gmra.mrb[0].mxu0 %v4221
      %v4489 = vpop.f32.mrb[0].mxu0
      %v4490 = vadd.f32 0.0, %v4489
      %v4491 = vpop.f32.mrb[0].mxu0
      %v4492 = vpop.f32.mrb[0].mxu0
      %v4493 = vadd.f32 0.0, %v4492
      %v4494 = vpop.f32.mrb[0].mxu0
      %4495 = vmatprep.mubr.bf16.mxu0 %v4356
      %4496 = vmatmul.mubr.bf16.gmra.mrb[0].mxu0 %v4223
      %v4497 = vpop.f32.mrb[0].mxu0
      %v4498 = vadd.f32 0.0, %v4497
      %v4499 = vpop.f32.mrb[0].mxu0
      %v4500 = vpop.f32.mrb[0].mxu0
      %v4501 = vadd.f32 0.0, %v4500
      %v4502 = vpop.f32.mrb[0].mxu0
      %4503 = vmatprep.mubr.bf16.mxu0 %v4359
      %4504 = vmatmul.mubr.bf16.gmra.mrb[0].mxu0 %v4225
      %v4505 = vpop.f32.mrb[0].mxu0
      %v4506 = vadd.f32 0.0, %v4505
      %v4507 = vpop.f32.mrb[0].mxu0
      %v4508 = vpop.f32.mrb[0].mxu0
      %v4509 = vadd.f32 0.0, %v4508
      %v4510 = vpop.f32.mrb[0].mxu0
      %4511 = vmatprep.mubr.bf16.mxu0 %v4362
      %4512 = vmatmul.mubr.bf16.gmra.mrb[0].mxu0 %v4227
      %v4513 = vpop.f32.mrb[0].mxu0
      %v4514 = vadd.f32 0.0, %v4513
      %v4515 = vpop.f32.mrb[0].mxu0
      %v4516 = vpop.f32.mrb[0].mxu0
      %v4517 = vadd.f32 0.0, %v4516
      %v4518 = vpop.f32.mrb[0].mxu0
      %4519 = vmatprep.mubr.bf16.mxu0 %v4365
      %4520 = vmatmul.mubr.bf16.gmra.mrb[0].mxu0 %v4229
      %v4521 = vpop.f32.mrb[0].mxu0
      %v4522 = vadd.f32 0.0, %v4521
      %v4523 = vpop.f32.mrb[0].mxu0
      %v4524 = vpop.f32.mrb[0].mxu0
      %v4525 = vadd.f32 0.0, %v4524
      %v4526 = vpop.f32.mrb[0].mxu0
      %4527 = vdwg.mxu0
      %v4528 = vadd.f32 %v4013, %v4402
      %v4529 = vadd.f32 %v4014, %v4405
      %v4530 = vadd.f32 %v4015, %v4410
      %v4531 = vadd.f32 %v4016, %v4413
      %v4532 = vadd.f32 %v4017, %v4418
      %v4533 = vadd.f32 %v4018, %v4421
      %v4534 = vadd.f32 %v4019, %v4426
      %v4535 = vadd.f32 %v4020, %v4429
      %v4536 = vadd.f32 %v4021, %v4434
      %v4537 = vadd.f32 %v4022, %v4437
      %v4538 = vadd.f32 %v4023, %v4442
      %v4539 = vadd.f32 %v4024, %v4445
      %v4540 = vadd.f32 %v4025, %v4450
      %v4541 = vadd.f32 %v4026, %v4453
      %v4542 = vadd.f32 %v4027, %v4458
      %v4543 = vadd.f32 %v4028, %v4461
      %v4544 = vadd.f32 %v4029, %v4466
      %v4545 = vadd.f32 %v4030, %v4469
      %v4546 = vadd.f32 %v4031, %v4474
      %v4547 = vadd.f32 %v4032, %v4477
      %v4548 = vadd.f32 %v4033, %v4482
      %v4549 = vadd.f32 %v4034, %v4485
      %v4550 = vadd.f32 %v4035, %v4490
      %v4551 = vadd.f32 %v4036, %v4493
      %v4552 = vadd.f32 %v4037, %v4498
      %v4553 = vadd.f32 %v4038, %v4501
      %v4554 = vadd.f32 %v4039, %v4506
      %v4555 = vadd.f32 %v4040, %v4509
      %v4556 = vadd.f32 %v4041, %v4514
      %v4557 = vadd.f32 %v4042, %v4517
      %v4558 = vadd.f32 %v4043, %v4522
      %v4559 = vadd.f32 %v4044, %v4525
      %s4560 = scalar_lea.vmem %s465, 32
      %v4561 = vld [vmem:[%s4560] sm:$0xff]
      %v4562 = vld [vmem:[%s4560 + $0x8] sm:$0xff]
      %v4563 = vld [vmem:[%s4560 + $0x10] sm:$0xff]
      %v4564 = vld [vmem:[%s4560 + $0x18] sm:$0xff]
      %v4565 = vld [vmem:[%s4560 + $0x20] sm:$0xff]
      %v4566 = vld [vmem:[%s4560 + $0x28] sm:$0xff]
      %v4567 = vld [vmem:[%s4560 + $0x30] sm:$0xff]
      %v4568 = vld [vmem:[%s4560 + $0x38] sm:$0xff]
      %v4569 = vld [vmem:[%s4560 + $0x40] sm:$0xff]
      %v4570 = vld [vmem:[%s4560 + $0x48] sm:$0xff]
      %v4571 = vld [vmem:[%s4560 + $0x50] sm:$0xff]
      %v4572 = vld [vmem:[%s4560 + $0x58] sm:$0xff]
      %v4573 = vld [vmem:[%s4560 + $0x60] sm:$0xff]
      %v4574 = vld [vmem:[%s4560 + $0x68] sm:$0xff]
      %v4575 = vld [vmem:[%s4560 + $0x70] sm:$0xff]
      %v4576 = vld [vmem:[%s4560 + $0x78] sm:$0xff]
      %v4577 = vld [vmem:[%s4560 + $0x80] sm:$0xff]
      %v4578 = vld [vmem:[%s4560 + $0x88] sm:$0xff]
      %v4579 = vld [vmem:[%s4560 + $0x90] sm:$0xff]
      %v4580 = vld [vmem:[%s4560 + $0x98] sm:$0xff]
      %v4581 = vld [vmem:[%s4560 + $0xa0] sm:$0xff]
      %v4582 = vld [vmem:[%s4560 + $0xa8] sm:$0xff]
      %v4583 = vld [vmem:[%s4560 + $0xb0] sm:$0xff]
      %v4584 = vld [vmem:[%s4560 + $0xb8] sm:$0xff]
      %v4585 = vld [vmem:[%s4560 + $0xc0] sm:$0xff]
      %v4586 = vld [vmem:[%s4560 + $0xc8] sm:$0xff]
      %v4587 = vld [vmem:[%s4560 + $0xd0] sm:$0xff]
      %v4588 = vld [vmem:[%s4560 + $0xd8] sm:$0xff]
      %v4589 = vld [vmem:[%s4560 + $0xe0] sm:$0xff]
      %v4590 = vld [vmem:[%s4560 + $0xe8] sm:$0xff]
      %v4591 = vld [vmem:[%s4560 + $0xf0] sm:$0xff]
      %v4592 = vld [vmem:[%s4560 + $0xf8] sm:$0xff]
      %s4593 = scalar_lea.vmem %s4, 768
      %v4594 = vld [vmem:[%s4593] sm:$0xf]
      %v4595 = vld [vmem:[%s4593 + $0x4] sm:$0xf]
      %v4596 = vld [vmem:[%s4593 + $0x8] sm:$0xf]
      %v4597 = vld [vmem:[%s4593 + $0xc] sm:$0xf]
      %v4598 = vld [vmem:[%s4593 + $0x10] sm:$0xf]
      %v4599 = vld [vmem:[%s4593 + $0x14] sm:$0xf]
      %v4600 = vld [vmem:[%s4593 + $0x18] sm:$0xf]
      %v4601 = vld [vmem:[%s4593 + $0x1c] sm:$0xf]
      %v4602 = vld [vmem:[%s4593 + $0x20] sm:$0xf]
      %v4603 = vld [vmem:[%s4593 + $0x24] sm:$0xf]
      %v4604 = vld [vmem:[%s4593 + $0x28] sm:$0xf]
      %v4605 = vld [vmem:[%s4593 + $0x2c] sm:$0xf]
      %v4606 = vld [vmem:[%s4593 + $0x30] sm:$0xf]
      %v4607 = vld [vmem:[%s4593 + $0x34] sm:$0xf]
      %v4608 = vld [vmem:[%s4593 + $0x38] sm:$0xf]
      %v4609 = vld [vmem:[%s4593 + $0x3c] sm:$0xf]
      %v4610 = vld [vmem:[%s4593 + $0x40] sm:$0xf]
      %v4611 = vld [vmem:[%s4593 + $0x44] sm:$0xf]
      %v4612 = vld [vmem:[%s4593 + $0x48] sm:$0xf]
      %v4613 = vld [vmem:[%s4593 + $0x4c] sm:$0xf]
      %v4614 = vld [vmem:[%s4593 + $0x50] sm:$0xf]
      %v4615 = vld [vmem:[%s4593 + $0x54] sm:$0xf]
      %v4616 = vld [vmem:[%s4593 + $0x58] sm:$0xf]
      %v4617 = vld [vmem:[%s4593 + $0x5c] sm:$0xf]
      %v4650 = vunpack.c.l.b16 %v4561
      %v4651 = vunpack.c.h.b16 %v4561
      %v4652 = vunpack.c.l.b16 %v4562
      %v4653 = vunpack.c.h.b16 %v4562
      %v4654 = vunpack.c.l.b16 %v4563
      %v4655 = vunpack.c.h.b16 %v4563
      %v4656 = vunpack.c.l.b16 %v4564
      %v4657 = vunpack.c.h.b16 %v4564
      %v4658 = vunpack.c.l.b16 %v4565
      %v4659 = vunpack.c.h.b16 %v4565
      %v4660 = vunpack.c.l.b16 %v4566
      %v4661 = vunpack.c.h.b16 %v4566
      %v4662 = vunpack.c.l.b16 %v4567
      %v4663 = vunpack.c.h.b16 %v4567
      %v4664 = vunpack.c.l.b16 %v4568
      %v4665 = vunpack.c.h.b16 %v4568
      %v4666 = vunpack.c.l.b16 %v4569
      %v4667 = vunpack.c.h.b16 %v4569
      %v4668 = vunpack.c.l.b16 %v4570
      %v4669 = vunpack.c.h.b16 %v4570
      %v4670 = vunpack.c.l.b16 %v4571
      %v4671 = vunpack.c.h.b16 %v4571
      %v4672 = vunpack.c.l.b16 %v4572
      %v4673 = vunpack.c.h.b16 %v4572
      %v4674 = vunpack.c.l.b16 %v4573
      %v4675 = vunpack.c.h.b16 %v4573
      %v4676 = vunpack.c.l.b16 %v4574
      %v4677 = vunpack.c.h.b16 %v4574
      %v4678 = vunpack.c.l.b16 %v4575
      %v4679 = vunpack.c.h.b16 %v4575
      %v4680 = vunpack.c.l.b16 %v4576
      %v4681 = vunpack.c.h.b16 %v4576
      %v4682 = vunpack.c.l.b16 %v4577
      %v4683 = vunpack.c.h.b16 %v4577
      %v4684 = vunpack.c.l.b16 %v4578
      %v4685 = vunpack.c.h.b16 %v4578
      %v4686 = vunpack.c.l.b16 %v4579
      %v4687 = vunpack.c.h.b16 %v4579
      %v4688 = vunpack.c.l.b16 %v4580
      %v4689 = vunpack.c.h.b16 %v4580
      %v4690 = vunpack.c.l.b16 %v4581
      %v4691 = vunpack.c.h.b16 %v4581
      %v4692 = vunpack.c.l.b16 %v4582
      %v4693 = vunpack.c.h.b16 %v4582
      %v4694 = vunpack.c.l.b16 %v4583
      %v4695 = vunpack.c.h.b16 %v4583
      %v4696 = vunpack.c.l.b16 %v4584
      %v4697 = vunpack.c.h.b16 %v4584
      %v4698 = vunpack.c.l.b16 %v4585
      %v4699 = vunpack.c.h.b16 %v4585
      %v4700 = vunpack.c.l.b16 %v4586
      %v4701 = vunpack.c.h.b16 %v4586
      %v4702 = vunpack.c.l.b16 %v4587
      %v4703 = vunpack.c.h.b16 %v4587
      %v4704 = vunpack.c.l.b16 %v4588
      %v4705 = vunpack.c.h.b16 %v4588
      %v4706 = vunpack.c.l.b16 %v4589
      %v4707 = vunpack.c.h.b16 %v4589
      %v4708 = vunpack.c.l.b16 %v4590
      %v4709 = vunpack.c.h.b16 %v4590
      %v4710 = vunpack.c.l.b16 %v4591
      %v4711 = vunpack.c.h.b16 %v4591
      %v4712 = vunpack.c.l.b16 %v4592
      %v4713 = vunpack.c.h.b16 %v4592
      %v4714 = vpack.c.b16 %v4652, %v4650
      %v4715 = vpack.c.b16 %v4653, %v4651
      %v4716 = vpack.c.b16 %v4656, %v4654
      %v4717 = vpack.c.b16 %v4657, %v4655
      %v4718 = vpack.c.b16 %v4660, %v4658
      %v4719 = vpack.c.b16 %v4661, %v4659
      %v4720 = vpack.c.b16 %v4664, %v4662
      %v4721 = vpack.c.b16 %v4665, %v4663
      %v4722 = vpack.c.b16 %v4668, %v4666
      %v4723 = vpack.c.b16 %v4669, %v4667
      %v4724 = vpack.c.b16 %v4672, %v4670
      %v4725 = vpack.c.b16 %v4673, %v4671
      %v4726 = vpack.c.b16 %v4676, %v4674
      %v4727 = vpack.c.b16 %v4677, %v4675
      %v4728 = vpack.c.b16 %v4680, %v4678
      %v4729 = vpack.c.b16 %v4681, %v4679
      %v4730 = vpack.c.b16 %v4684, %v4682
      %v4731 = vpack.c.b16 %v4685, %v4683
      %v4732 = vpack.c.b16 %v4688, %v4686
      %v4733 = vpack.c.b16 %v4689, %v4687
      %v4734 = vpack.c.b16 %v4692, %v4690
      %v4735 = vpack.c.b16 %v4693, %v4691
      %v4736 = vpack.c.b16 %v4696, %v4694
      %v4737 = vpack.c.b16 %v4697, %v4695
      %v4738 = vpack.c.b16 %v4700, %v4698
      %v4739 = vpack.c.b16 %v4701, %v4699
      %v4740 = vpack.c.b16 %v4704, %v4702
      %v4741 = vpack.c.b16 %v4705, %v4703
      %v4742 = vpack.c.b16 %v4708, %v4706
      %v4743 = vpack.c.b16 %v4709, %v4707
      %v4744 = vpack.c.b16 %v4712, %v4710
      %v4745 = vpack.c.b16 %v4713, %v4711
      %v4786 = vunpack.c.l.b16 %v4594
      %v4787 = vunpack.c.l.b16 %v4595
      %v4788 = vunpack.c.l.b16 %v4596
      %v4789 = vunpack.c.l.b16 %v4597
      %v4790 = vunpack.c.l.b16 %v4598
      %v4791 = vunpack.c.l.b16 %v4599
      %v4792 = vunpack.c.l.b16 %v4600
      %v4793 = vunpack.c.l.b16 %v4601
      %v4794 = vunpack.c.l.b16 %v4602
      %v4795 = vunpack.c.l.b16 %v4603
      %v4796 = vunpack.c.l.b16 %v4604
      %v4797 = vunpack.c.l.b16 %v4605
      %v4798 = vunpack.c.l.b16 %v4606
      %v4799 = vunpack.c.l.b16 %v4607
      %v4800 = vunpack.c.l.b16 %v4608
      %v4801 = vunpack.c.l.b16 %v4609
      %v4802 = vunpack.c.l.b16 %v4610
      %v4803 = vunpack.c.l.b16 %v4611
      %v4804 = vunpack.c.l.b16 %v4612
      %v4805 = vunpack.c.l.b16 %v4613
      %v4806 = vunpack.c.l.b16 %v4614
      %v4807 = vunpack.c.l.b16 %v4615
      %v4808 = vunpack.c.l.b16 %v4616
      %v4809 = vunpack.c.l.b16 %v4617
      %v4810 = vpack.c.b16 %v4787, %v4786
      %v4811 = vpack.c.b16 %v4789, %v4788
      %v4812 = vpack.c.b16 %v4791, %v4790
      %v4813 = vpack.c.b16 %v4793, %v4792
      %v4814 = vpack.c.b16 %v4795, %v4794
      %v4815 = vpack.c.b16 %v4797, %v4796
      %v4816 = vpack.c.b16 %v4799, %v4798
      %v4817 = vpack.c.b16 %v4801, %v4800
      %v4818 = vpack.c.b16 %v4803, %v4802
      %v4819 = vpack.c.b16 %v4805, %v4804
      %v4820 = vpack.c.b16 %v4807, %v4806
      %v4821 = vpack.c.b16 %v4809, %v4808
      %v4835 = vsel %vm837, %v4715, 0
      %v4838 = vsel %vm837, %v4717, 0
      %v4841 = vsel %vm837, %v4719, 0
      %v4844 = vsel %vm837, %v4721, 0
      %v4847 = vsel %vm837, %v4723, 0
      %v4850 = vsel %vm837, %v4725, 0
      %v4853 = vsel %vm837, %v4727, 0
      %v4856 = vsel %vm837, %v4729, 0
      %v4859 = vsel %vm837, %v4731, 0
      %v4862 = vsel %vm837, %v4733, 0
      %v4865 = vsel %vm837, %v4735, 0
      %v4868 = vsel %vm837, %v4737, 0
      %v4871 = vsel %vm837, %v4739, 0
      %v4874 = vsel %vm837, %v4741, 0
      %v4877 = vsel %vm837, %v4743, 0
      %v4880 = vsel %vm837, %v4745, 0
      %4882 = vmatprep.subr.bf16.mxu0 0
      %4883 = vmatpush1.bf16.msra.mxu0 %v4810
      %4884 = vmatprep.subr.bf16.mxu0 0
      %4885 = vmatpush1.bf16.msra.mxu0 %v4811
      %4886 = vmatprep.subr.bf16.mxu0 0
      %4887 = vmatpush1.bf16.msra.mxu0 %v4812
      %4888 = vmatprep.subr.bf16.mxu0 0
      %4889 = vmatpush1.bf16.msra.mxu0 %v4813
      %4890 = vmatprep.subr.bf16.mxu0 0
      %4891 = vmatpush1.bf16.msra.mxu0 %v4814
      %4892 = vmatprep.subr.bf16.mxu0 0
      %4893 = vmatpush1.bf16.msra.mxu0 %v4815
      %4894 = vmatprep.subr.bf16.mxu0 0
      %4895 = vmatpush1.bf16.msra.mxu0 %v4816
      %4896 = vmatprep.subr.bf16.mxu0 0
      %4897 = vmatpush1.bf16.msra.mxu0 %v4817
      %4898 = vmatprep.subr.bf16.mxu0 0
      %4899 = vmatpush1.bf16.msra.mxu0 %v4818
      %4900 = vmatprep.subr.bf16.mxu0 0
      %4901 = vmatpush1.bf16.msra.mxu0 %v4819
      %4902 = vmatprep.subr.bf16.mxu0 0
      %4903 = vmatpush1.bf16.msra.mxu0 %v4820
      %4904 = vmatprep.subr.bf16.mxu0 0
      %4905 = vmatpush1.bf16.msra.mxu0 %v4821
      %4906 = vmatprep.subr.bf16.mxu0 0
      %4907 = vmatpush1.bf16.msra.mxu0 0
      %4908 = vmatprep.subr.bf16.mxu0 0
      %4909 = vmatpush1.bf16.msra.mxu0 0
      %4910 = vmatprep.subr.bf16.mxu0 0
      %4911 = vmatpush1.bf16.msra.mxu0 0
      %4912 = vmatprep.subr.bf16.mxu0 0
      %4913 = vmatpush1.bf16.msra.mxu0 0
      %4914 = vmatprep.mubr.bf16.mxu0 %v4835
      %4915 = vmatmul.mubr.bf16.gmra.mrb[0].mxu0 %v4714
      %v4916 = vpop.f32.mrb[0].mxu0
      %v4917 = vadd.f32 0.0, %v4916
      %v4918 = vpop.f32.mrb[0].mxu0
      %v4919 = vpop.f32.mrb[0].mxu0
      %v4920 = vadd.f32 0.0, %v4919
      %v4921 = vpop.f32.mrb[0].mxu0
      %4922 = vmatprep.mubr.bf16.mxu0 %v4838
      %4923 = vmatmul.mubr.bf16.gmra.mrb[0].mxu0 %v4716
      %v4924 = vpop.f32.mrb[0].mxu0
      %v4925 = vadd.f32 0.0, %v4924
      %v4926 = vpop.f32.mrb[0].mxu0
      %v4927 = vpop.f32.mrb[0].mxu0
      %v4928 = vadd.f32 0.0, %v4927
      %v4929 = vpop.f32.mrb[0].mxu0
      %4930 = vmatprep.mubr.bf16.mxu0 %v4841
      %4931 = vmatmul.mubr.bf16.gmra.mrb[0].mxu0 %v4718
      %v4932 = vpop.f32.mrb[0].mxu0
      %v4933 = vadd.f32 0.0, %v4932
      %v4934 = vpop.f32.mrb[0].mxu0
      %v4935 = vpop.f32.mrb[0].mxu0
      %v4936 = vadd.f32 0.0, %v4935
      %v4937 = vpop.f32.mrb[0].mxu0
      %4938 = vmatprep.mubr.bf16.mxu0 %v4844
      %4939 = vmatmul.mubr.bf16.gmra.mrb[0].mxu0 %v4720
      %v4940 = vpop.f32.mrb[0].mxu0
      %v4941 = vadd.f32 0.0, %v4940
      %v4942 = vpop.f32.mrb[0].mxu0
      %v4943 = vpop.f32.mrb[0].mxu0
      %v4944 = vadd.f32 0.0, %v4943
      %v4945 = vpop.f32.mrb[0].mxu0
      %4946 = vmatprep.mubr.bf16.mxu0 %v4847
      %4947 = vmatmul.mubr.bf16.gmra.mrb[0].mxu0 %v4722
      %v4948 = vpop.f32.mrb[0].mxu0
      %v4949 = vadd.f32 0.0, %v4948
      %v4950 = vpop.f32.mrb[0].mxu0
      %v4951 = vpop.f32.mrb[0].mxu0
      %v4952 = vadd.f32 0.0, %v4951
      %v4953 = vpop.f32.mrb[0].mxu0
      %4954 = vmatprep.mubr.bf16.mxu0 %v4850
      %4955 = vmatmul.mubr.bf16.gmra.mrb[0].mxu0 %v4724
      %v4956 = vpop.f32.mrb[0].mxu0
      %v4957 = vadd.f32 0.0, %v4956
      %v4958 = vpop.f32.mrb[0].mxu0
      %v4959 = vpop.f32.mrb[0].mxu0
      %v4960 = vadd.f32 0.0, %v4959
      %v4961 = vpop.f32.mrb[0].mxu0
      %4962 = vmatprep.mubr.bf16.mxu0 %v4853
      %4963 = vmatmul.mubr.bf16.gmra.mrb[0].mxu0 %v4726
      %v4964 = vpop.f32.mrb[0].mxu0
      %v4965 = vadd.f32 0.0, %v4964
      %v4966 = vpop.f32.mrb[0].mxu0
      %v4967 = vpop.f32.mrb[0].mxu0
      %v4968 = vadd.f32 0.0, %v4967
      %v4969 = vpop.f32.mrb[0].mxu0
      %4970 = vmatprep.mubr.bf16.mxu0 %v4856
      %4971 = vmatmul.mubr.bf16.gmra.mrb[0].mxu0 %v4728
      %v4972 = vpop.f32.mrb[0].mxu0
      %v4973 = vadd.f32 0.0, %v4972
      %v4974 = vpop.f32.mrb[0].mxu0
      %v4975 = vpop.f32.mrb[0].mxu0
      %v4976 = vadd.f32 0.0, %v4975
      %v4977 = vpop.f32.mrb[0].mxu0
      %4978 = vmatprep.mubr.bf16.mxu0 %v4859
      %4979 = vmatmul.mubr.bf16.gmra.mrb[0].mxu0 %v4730
      %v4980 = vpop.f32.mrb[0].mxu0
      %v4981 = vadd.f32 0.0, %v4980
      %v4982 = vpop.f32.mrb[0].mxu0
      %v4983 = vpop.f32.mrb[0].mxu0
      %v4984 = vadd.f32 0.0, %v4983
      %v4985 = vpop.f32.mrb[0].mxu0
      %4986 = vmatprep.mubr.bf16.mxu0 %v4862
      %4987 = vmatmul.mubr.bf16.gmra.mrb[0].mxu0 %v4732
      %v4988 = vpop.f32.mrb[0].mxu0
      %v4989 = vadd.f32 0.0, %v4988
      %v4990 = vpop.f32.mrb[0].mxu0
      %v4991 = vpop.f32.mrb[0].mxu0
      %v4992 = vadd.f32 0.0, %v4991
      %v4993 = vpop.f32.mrb[0].mxu0
      %4994 = vmatprep.mubr.bf16.mxu0 %v4865
      %4995 = vmatmul.mubr.bf16.gmra.mrb[0].mxu0 %v4734
      %v4996 = vpop.f32.mrb[0].mxu0
      %v4997 = vadd.f32 0.0, %v4996
      %v4998 = vpop.f32.mrb[0].mxu0
      %v4999 = vpop.f32.mrb[0].mxu0
      %v5000 = vadd.f32 0.0, %v4999
      %v5001 = vpop.f32.mrb[0].mxu0
      %5002 = vmatprep.mubr.bf16.mxu0 %v4868
      %5003 = vmatmul.mubr.bf16.gmra.mrb[0].mxu0 %v4736
      %v5004 = vpop.f32.mrb[0].mxu0
      %v5005 = vadd.f32 0.0, %v5004
      %v5006 = vpop.f32.mrb[0].mxu0
      %v5007 = vpop.f32.mrb[0].mxu0
      %v5008 = vadd.f32 0.0, %v5007
      %v5009 = vpop.f32.mrb[0].mxu0
      %5010 = vmatprep.mubr.bf16.mxu0 %v4871
      %5011 = vmatmul.mubr.bf16.gmra.mrb[0].mxu0 %v4738
      %v5012 = vpop.f32.mrb[0].mxu0
      %v5013 = vadd.f32 0.0, %v5012
      %v5014 = vpop.f32.mrb[0].mxu0
      %v5015 = vpop.f32.mrb[0].mxu0
      %v5016 = vadd.f32 0.0, %v5015
      %v5017 = vpop.f32.mrb[0].mxu0
      %5018 = vmatprep.mubr.bf16.mxu0 %v4874
      %5019 = vmatmul.mubr.bf16.gmra.mrb[0].mxu0 %v4740
      %v5020 = vpop.f32.mrb[0].mxu0
      %v5021 = vadd.f32 0.0, %v5020
      %v5022 = vpop.f32.mrb[0].mxu0
      %v5023 = vpop.f32.mrb[0].mxu0
      %v5024 = vadd.f32 0.0, %v5023
      %v5025 = vpop.f32.mrb[0].mxu0
      %5026 = vmatprep.mubr.bf16.mxu0 %v4877
      %5027 = vmatmul.mubr.bf16.gmra.mrb[0].mxu0 %v4742
      %v5028 = vpop.f32.mrb[0].mxu0
      %v5029 = vadd.f32 0.0, %v5028
      %v5030 = vpop.f32.mrb[0].mxu0
      %v5031 = vpop.f32.mrb[0].mxu0
      %v5032 = vadd.f32 0.0, %v5031
      %v5033 = vpop.f32.mrb[0].mxu0
      %5034 = vmatprep.mubr.bf16.mxu0 %v4880
      %5035 = vmatmul.mubr.bf16.gmra.mrb[0].mxu0 %v4744
      %v5036 = vpop.f32.mrb[0].mxu0
      %v5037 = vadd.f32 0.0, %v5036
      %v5038 = vpop.f32.mrb[0].mxu0
      %v5039 = vpop.f32.mrb[0].mxu0
      %v5040 = vadd.f32 0.0, %v5039
      %v5041 = vpop.f32.mrb[0].mxu0
      %5042 = vdwg.mxu0
      %v5043 = vadd.f32 %v4528, %v4917
      %v5044 = vadd.f32 %v4529, %v4920
      %v5045 = vadd.f32 %v4530, %v4925
      %v5046 = vadd.f32 %v4531, %v4928
      %v5047 = vadd.f32 %v4532, %v4933
      %v5048 = vadd.f32 %v4533, %v4936
      %v5049 = vadd.f32 %v4534, %v4941
      %v5050 = vadd.f32 %v4535, %v4944
      %v5051 = vadd.f32 %v4536, %v4949
      %v5052 = vadd.f32 %v4537, %v4952
      %v5053 = vadd.f32 %v4538, %v4957
      %v5054 = vadd.f32 %v4539, %v4960
      %v5055 = vadd.f32 %v4540, %v4965
      %v5056 = vadd.f32 %v4541, %v4968
      %v5057 = vadd.f32 %v4542, %v4973
      %v5058 = vadd.f32 %v4543, %v4976
      %v5059 = vadd.f32 %v4544, %v4981
      %v5060 = vadd.f32 %v4545, %v4984
      %v5061 = vadd.f32 %v4546, %v4989
      %v5062 = vadd.f32 %v4547, %v4992
      %v5063 = vadd.f32 %v4548, %v4997
      %v5064 = vadd.f32 %v4549, %v5000
      %v5065 = vadd.f32 %v4550, %v5005
      %v5066 = vadd.f32 %v4551, %v5008
      %v5067 = vadd.f32 %v4552, %v5013
      %v5068 = vadd.f32 %v4553, %v5016
      %v5069 = vadd.f32 %v4554, %v5021
      %v5070 = vadd.f32 %v4555, %v5024
      %v5071 = vadd.f32 %v4556, %v5029
      %v5072 = vadd.f32 %v4557, %v5032
      %v5073 = vadd.f32 %v4558, %v5037
      %v5074 = vadd.f32 %v4559, %v5040
      %v5075 = vpack.c.bf16 %v5044, %v5043
      %v5076 = vpack.c.bf16 %v5046, %v5045
      %v5077 = vpack.c.bf16 %v5048, %v5047
      %v5078 = vpack.c.bf16 %v5050, %v5049
      %v5079 = vpack.c.bf16 %v5052, %v5051
      %v5080 = vpack.c.bf16 %v5054, %v5053
      %v5081 = vpack.c.bf16 %v5056, %v5055
      %v5082 = vpack.c.bf16 %v5058, %v5057
      %v5083 = vpack.c.bf16 %v5060, %v5059
      %v5084 = vpack.c.bf16 %v5062, %v5061
      %v5085 = vpack.c.bf16 %v5064, %v5063
      %v5086 = vpack.c.bf16 %v5066, %v5065
      %v5087 = vpack.c.bf16 %v5068, %v5067
      %v5088 = vpack.c.bf16 %v5070, %v5069
      %v5089 = vpack.c.bf16 %v5072, %v5071
      %v5090 = vpack.c.bf16 %v5074, %v5073
      %v5107 = vunpack.c.l.b16 %v5075
      %v5108 = vunpack.c.h.b16 %v5075
      %v5109 = vunpack.c.l.b16 %v5076
      %v5110 = vunpack.c.h.b16 %v5076
      %v5111 = vunpack.c.l.b16 %v5077
      %v5112 = vunpack.c.h.b16 %v5077
      %v5113 = vunpack.c.l.b16 %v5078
      %v5114 = vunpack.c.h.b16 %v5078
      %v5115 = vunpack.c.l.b16 %v5079
      %v5116 = vunpack.c.h.b16 %v5079
      %v5117 = vunpack.c.l.b16 %v5080
      %v5118 = vunpack.c.h.b16 %v5080
      %v5119 = vunpack.c.l.b16 %v5081
      %v5120 = vunpack.c.h.b16 %v5081
      %v5121 = vunpack.c.l.b16 %v5082
      %v5122 = vunpack.c.h.b16 %v5082
      %v5123 = vunpack.c.l.b16 %v5083
      %v5124 = vunpack.c.h.b16 %v5083
      %v5125 = vunpack.c.l.b16 %v5084
      %v5126 = vunpack.c.h.b16 %v5084
      %v5127 = vunpack.c.l.b16 %v5085
      %v5128 = vunpack.c.h.b16 %v5085
      %v5129 = vunpack.c.l.b16 %v5086
      %v5130 = vunpack.c.h.b16 %v5086
      %v5131 = vunpack.c.l.b16 %v5087
      %v5132 = vunpack.c.h.b16 %v5087
      %v5133 = vunpack.c.l.b16 %v5088
      %v5134 = vunpack.c.h.b16 %v5088
      %v5135 = vunpack.c.l.b16 %v5089
      %v5136 = vunpack.c.h.b16 %v5089
      %v5137 = vunpack.c.l.b16 %v5090
      %v5138 = vunpack.c.h.b16 %v5090
      %v5139 = vpack.c.b16 %v5107, %v5107
      %v5140 = vpack.c.b16 %v5108, %v5108
      %v5141 = vpack.c.b16 %v5109, %v5109
      %v5142 = vpack.c.b16 %v5110, %v5110
      %v5143 = vpack.c.b16 %v5111, %v5111
      %v5144 = vpack.c.b16 %v5112, %v5112
      %v5145 = vpack.c.b16 %v5113, %v5113
      %v5146 = vpack.c.b16 %v5114, %v5114
      %v5147 = vpack.c.b16 %v5115, %v5115
      %v5148 = vpack.c.b16 %v5116, %v5116
      %v5149 = vpack.c.b16 %v5117, %v5117
      %v5150 = vpack.c.b16 %v5118, %v5118
      %v5151 = vpack.c.b16 %v5119, %v5119
      %v5152 = vpack.c.b16 %v5120, %v5120
      %v5153 = vpack.c.b16 %v5121, %v5121
      %v5154 = vpack.c.b16 %v5122, %v5122
      %v5155 = vpack.c.b16 %v5123, %v5123
      %v5156 = vpack.c.b16 %v5124, %v5124
      %v5157 = vpack.c.b16 %v5125, %v5125
      %v5158 = vpack.c.b16 %v5126, %v5126
      %v5159 = vpack.c.b16 %v5127, %v5127
      %v5160 = vpack.c.b16 %v5128, %v5128
      %v5161 = vpack.c.b16 %v5129, %v5129
      %v5162 = vpack.c.b16 %v5130, %v5130
      %v5163 = vpack.c.b16 %v5131, %v5131
      %v5164 = vpack.c.b16 %v5132, %v5132
      %v5165 = vpack.c.b16 %v5133, %v5133
      %v5166 = vpack.c.b16 %v5134, %v5134
      %v5167 = vpack.c.b16 %v5135, %v5135
      %v5168 = vpack.c.b16 %v5136, %v5136
      %v5169 = vpack.c.b16 %v5137, %v5137
      %v5170 = vpack.c.b16 %v5138, %v5138
      %vm5203 = vcmask 519168
      %5204 = vst.msk [vmem:[%s490] sm:$0xf] %vm5203, %v5139
      %5205 = vst.msk [vmem:[%s490 + $0x4] sm:$0xf] %vm5203, %v5140
      %5206 = vst.msk [vmem:[%s490 + $0x8] sm:$0xf] %vm5203, %v5141
      %5207 = vst.msk [vmem:[%s490 + $0xc] sm:$0xf] %vm5203, %v5142
      %5208 = vst.msk [vmem:[%s490 + $0x10] sm:$0xf] %vm5203, %v5143
      %5209 = vst.msk [vmem:[%s490 + $0x14] sm:$0xf] %vm5203, %v5144
      %5210 = vst.msk [vmem:[%s490 + $0x18] sm:$0xf] %vm5203, %v5145
      %5211 = vst.msk [vmem:[%s490 + $0x1c] sm:$0xf] %vm5203, %v5146
      %5212 = vst.msk [vmem:[%s490 + $0x20] sm:$0xf] %vm5203, %v5147
      %5213 = vst.msk [vmem:[%s490 + $0x24] sm:$0xf] %vm5203, %v5148
      %5214 = vst.msk [vmem:[%s490 + $0x28] sm:$0xf] %vm5203, %v5149
      %5215 = vst.msk [vmem:[%s490 + $0x2c] sm:$0xf] %vm5203, %v5150
      %5216 = vst.msk [vmem:[%s490 + $0x30] sm:$0xf] %vm5203, %v5151
      %5217 = vst.msk [vmem:[%s490 + $0x34] sm:$0xf] %vm5203, %v5152
      %5218 = vst.msk [vmem:[%s490 + $0x38] sm:$0xf] %vm5203, %v5153
      %5219 = vst.msk [vmem:[%s490 + $0x3c] sm:$0xf] %vm5203, %v5154
      %5220 = vst.msk [vmem:[%s490 + $0x40] sm:$0xf] %vm5203, %v5155
      %5221 = vst.msk [vmem:[%s490 + $0x44] sm:$0xf] %vm5203, %v5156
      %5222 = vst.msk [vmem:[%s490 + $0x48] sm:$0xf] %vm5203, %v5157
      %5223 = vst.msk [vmem:[%s490 + $0x4c] sm:$0xf] %vm5203, %v5158
      %5224 = vst.msk [vmem:[%s490 + $0x50] sm:$0xf] %vm5203, %v5159
      %5225 = vst.msk [vmem:[%s490 + $0x54] sm:$0xf] %vm5203, %v5160
      %5226 = vst.msk [vmem:[%s490 + $0x58] sm:$0xf] %vm5203, %v5161
      %5227 = vst.msk [vmem:[%s490 + $0x5c] sm:$0xf] %vm5203, %v5162
      %5228 = vst.msk [vmem:[%s490 + $0x60] sm:$0xf] %vm5203, %v5163
      %5229 = vst.msk [vmem:[%s490 + $0x64] sm:$0xf] %vm5203, %v5164
      %5230 = vst.msk [vmem:[%s490 + $0x68] sm:$0xf] %vm5203, %v5165
      %5231 = vst.msk [vmem:[%s490 + $0x6c] sm:$0xf] %vm5203, %v5166
      %5232 = vst.msk [vmem:[%s490 + $0x70] sm:$0xf] %vm5203, %v5167
      %5233 = vst.msk [vmem:[%s490 + $0x74] sm:$0xf] %vm5203, %v5168
      %5234 = vst.msk [vmem:[%s490 + $0x78] sm:$0xf] %vm5203, %v5169
      %5235 = vst.msk [vmem:[%s490 + $0x7c] sm:$0xf] %vm5203, %v5170
      %v5236 = vsel %vm837, %v5043, 0.0
      %v5237 = vsel %vm837, %v5044, 0.0
      %v5238 = vadd.f32 %v5236, %v5237
      %v5239 = vsel %vm837, %v5045, 0.0
      %v5240 = vadd.f32 %v5238, %v5239
      %v5241 = vsel %vm837, %v5046, 0.0
      %v5242 = vadd.f32 %v5240, %v5241
      %v5243 = vsel %vm837, %v5047, 0.0
      %v5244 = vadd.f32 %v5242, %v5243
      %v5245 = vsel %vm837, %v5048, 0.0
      %v5246 = vadd.f32 %v5244, %v5245
      %v5247 = vsel %vm837, %v5049, 0.0
      %v5248 = vadd.f32 %v5246, %v5247
      %v5249 = vsel %vm837, %v5050, 0.0
      %v5250 = vadd.f32 %v5248, %v5249
      %v5251 = vsel %vm837, %v5051, 0.0
      %v5252 = vadd.f32 %v5250, %v5251
      %v5253 = vsel %vm837, %v5052, 0.0
      %v5254 = vadd.f32 %v5252, %v5253
      %v5255 = vsel %vm837, %v5053, 0.0
      %v5256 = vadd.f32 %v5254, %v5255
      %v5257 = vsel %vm837, %v5054, 0.0
      %v5258 = vadd.f32 %v5256, %v5257
      %v5259 = vsel %vm837, %v5055, 0.0
      %v5260 = vadd.f32 %v5258, %v5259
      %v5261 = vsel %vm837, %v5056, 0.0
      %v5262 = vadd.f32 %v5260, %v5261
      %v5263 = vsel %vm837, %v5057, 0.0
      %v5264 = vadd.f32 %v5262, %v5263
      %v5265 = vsel %vm837, %v5058, 0.0
      %v5266 = vadd.f32 %v5264, %v5265
      %v5267 = vsel %vm837, %v5059, 0.0
      %v5268 = vadd.f32 %v5266, %v5267
      %v5269 = vsel %vm837, %v5060, 0.0
      %v5270 = vadd.f32 %v5268, %v5269
      %v5271 = vsel %vm837, %v5061, 0.0
      %v5272 = vadd.f32 %v5270, %v5271
      %v5273 = vsel %vm837, %v5062, 0.0
      %v5274 = vadd.f32 %v5272, %v5273
      %v5275 = vsel %vm837, %v5063, 0.0
      %v5276 = vadd.f32 %v5274, %v5275
      %v5277 = vsel %vm837, %v5064, 0.0
      %v5278 = vadd.f32 %v5276, %v5277
      %v5279 = vsel %vm837, %v5065, 0.0
      %v5280 = vadd.f32 %v5278, %v5279
      %v5281 = vsel %vm837, %v5066, 0.0
      %v5282 = vadd.f32 %v5280, %v5281
      %v5283 = vsel %vm837, %v5067, 0.0
      %v5284 = vadd.f32 %v5282, %v5283
      %v5285 = vsel %vm837, %v5068, 0.0
      %v5286 = vadd.f32 %v5284, %v5285
      %v5287 = vsel %vm837, %v5069, 0.0
      %v5288 = vadd.f32 %v5286, %v5287
      %v5289 = vsel %vm837, %v5070, 0.0
      %v5290 = vadd.f32 %v5288, %v5289
      %v5291 = vsel %vm837, %v5071, 0.0
      %v5292 = vadd.f32 %v5290, %v5291
      %v5293 = vsel %vm837, %v5072, 0.0
      %v5294 = vadd.f32 %v5292, %v5293
      %v5295 = vsel %vm837, %v5073, 0.0
      %v5296 = vadd.f32 %v5294, %v5295
      %v5297 = vsel %vm837, %v5074, 0.0
      %v5298 = vadd.f32 %v5296, %v5297
      %v5299 = vrot.slane %v5298, 4
      %v5300 = vadd.f32 %v5298, %v5299
      %v5301 = vrot.slane %v5300, 2
      %v5302 = vadd.f32 %v5300, %v5301
      %v5303 = vrot.slane %v5302, 1
      %v5304 = vadd.f32 %v5302, %v5303
      %v5305 = vadd.f32 %v5304, 0.0
      %v5306 = vmul.f32 %v5043, %v5043
      %v5307 = vmul.f32 %v5044, %v5044
      %v5308 = vmul.f32 %v5045, %v5045
      %v5309 = vmul.f32 %v5046, %v5046
      %v5310 = vmul.f32 %v5047, %v5047
      %v5311 = vmul.f32 %v5048, %v5048
      %v5312 = vmul.f32 %v5049, %v5049
      %v5313 = vmul.f32 %v5050, %v5050
      %v5314 = vmul.f32 %v5051, %v5051
      %v5315 = vmul.f32 %v5052, %v5052
      %v5316 = vmul.f32 %v5053, %v5053
      %v5317 = vmul.f32 %v5054, %v5054
      %v5318 = vmul.f32 %v5055, %v5055
      %v5319 = vmul.f32 %v5056, %v5056
      %v5320 = vmul.f32 %v5057, %v5057
      %v5321 = vmul.f32 %v5058, %v5058
      %v5322 = vmul.f32 %v5059, %v5059
      %v5323 = vmul.f32 %v5060, %v5060
      %v5324 = vmul.f32 %v5061, %v5061
      %v5325 = vmul.f32 %v5062, %v5062
      %v5326 = vmul.f32 %v5063, %v5063
      %v5327 = vmul.f32 %v5064, %v5064
      %v5328 = vmul.f32 %v5065, %v5065
      %v5329 = vmul.f32 %v5066, %v5066
      %v5330 = vmul.f32 %v5067, %v5067
      %v5331 = vmul.f32 %v5068, %v5068
      %v5332 = vmul.f32 %v5069, %v5069
      %v5333 = vmul.f32 %v5070, %v5070
      %v5334 = vmul.f32 %v5071, %v5071
      %v5335 = vmul.f32 %v5072, %v5072
      %v5336 = vmul.f32 %v5073, %v5073
      %v5337 = vmul.f32 %v5074, %v5074
      %v5338 = vsel %vm837, %v5306, 0.0
      %v5339 = vsel %vm837, %v5307, 0.0
      %v5340 = vadd.f32 %v5338, %v5339
      %v5341 = vsel %vm837, %v5308, 0.0
      %v5342 = vadd.f32 %v5340, %v5341
      %v5343 = vsel %vm837, %v5309, 0.0
      %v5344 = vadd.f32 %v5342, %v5343
      %v5345 = vsel %vm837, %v5310, 0.0
      %v5346 = vadd.f32 %v5344, %v5345
      %v5347 = vsel %vm837, %v5311, 0.0
      %v5348 = vadd.f32 %v5346, %v5347
      %v5349 = vsel %vm837, %v5312, 0.0
      %v5350 = vadd.f32 %v5348, %v5349
      %v5351 = vsel %vm837, %v5313, 0.0
      %v5352 = vadd.f32 %v5350, %v5351
      %v5353 = vsel %vm837, %v5314, 0.0
      %v5354 = vadd.f32 %v5352, %v5353
      %v5355 = vsel %vm837, %v5315, 0.0
      %v5356 = vadd.f32 %v5354, %v5355
      %v5357 = vsel %vm837, %v5316, 0.0
      %v5358 = vadd.f32 %v5356, %v5357
      %v5359 = vsel %vm837, %v5317, 0.0
      %v5360 = vadd.f32 %v5358, %v5359
      %v5361 = vsel %vm837, %v5318, 0.0
      %v5362 = vadd.f32 %v5360, %v5361
      %v5363 = vsel %vm837, %v5319, 0.0
      %v5364 = vadd.f32 %v5362, %v5363
      %v5365 = vsel %vm837, %v5320, 0.0
      %v5366 = vadd.f32 %v5364, %v5365
      %v5367 = vsel %vm837, %v5321, 0.0
      %v5368 = vadd.f32 %v5366, %v5367
      %v5369 = vsel %vm837, %v5322, 0.0
      %v5370 = vadd.f32 %v5368, %v5369
      %v5371 = vsel %vm837, %v5323, 0.0
      %v5372 = vadd.f32 %v5370, %v5371
      %v5373 = vsel %vm837, %v5324, 0.0
      %v5374 = vadd.f32 %v5372, %v5373
      %v5375 = vsel %vm837, %v5325, 0.0
      %v5376 = vadd.f32 %v5374, %v5375
      %v5377 = vsel %vm837, %v5326, 0.0
      %v5378 = vadd.f32 %v5376, %v5377
      %v5379 = vsel %vm837, %v5327, 0.0
      %v5380 = vadd.f32 %v5378, %v5379
      %v5381 = vsel %vm837, %v5328, 0.0
      %v5382 = vadd.f32 %v5380, %v5381
      %v5383 = vsel %vm837, %v5329, 0.0
      %v5384 = vadd.f32 %v5382, %v5383
      %v5385 = vsel %vm837, %v5330, 0.0
      %v5386 = vadd.f32 %v5384, %v5385
      %v5387 = vsel %vm837, %v5331, 0.0
      %v5388 = vadd.f32 %v5386, %v5387
      %v5389 = vsel %vm837, %v5332, 0.0
      %v5390 = vadd.f32 %v5388, %v5389
      %v5391 = vsel %vm837, %v5333, 0.0
      %v5392 = vadd.f32 %v5390, %v5391
      %v5393 = vsel %vm837, %v5334, 0.0
      %v5394 = vadd.f32 %v5392, %v5393
      %v5395 = vsel %vm837, %v5335, 0.0
      %v5396 = vadd.f32 %v5394, %v5395
      %v5397 = vsel %vm837, %v5336, 0.0
      %v5398 = vadd.f32 %v5396, %v5397
      %v5399 = vsel %vm837, %v5337, 0.0
      %v5400 = vadd.f32 %v5398, %v5399
      %v5401 = vrot.slane %v5400, 4
      %v5402 = vadd.f32 %v5400, %v5401
      %v5403 = vrot.slane %v5402, 2
      %v5404 = vadd.f32 %v5402, %v5403
      %v5405 = vrot.slane %v5404, 1
      %v5406 = vadd.f32 %v5404, %v5405
      %v5407 = vadd.f32 %v5406, 0.0
      %v5408 = vld [vmem:[%s452] sm:$0xff]
      %v5409 = vld [vmem:[%s452 + $0x8] sm:$0xff]
      %v5410 = vld [vmem:[%s452 + $0x10] sm:$0xff]
      %v5411 = vld [vmem:[%s452 + $0x18] sm:$0xff]
      %v5412 = vld [vmem:[%s452 + $0x20] sm:$0xff]
      %v5413 = vld [vmem:[%s452 + $0x28] sm:$0xff]
      %v5414 = vld [vmem:[%s452 + $0x30] sm:$0xff]
      %v5415 = vld [vmem:[%s452 + $0x38] sm:$0xff]
      %v5416 = vld [vmem:[%s452 + $0x40] sm:$0xff]
      %v5417 = vld [vmem:[%s452 + $0x48] sm:$0xff]
      %v5418 = vld [vmem:[%s452 + $0x50] sm:$0xff]
      %v5419 = vld [vmem:[%s452 + $0x58] sm:$0xff]
      %v5420 = vld [vmem:[%s452 + $0x60] sm:$0xff]
      %v5421 = vld [vmem:[%s452 + $0x68] sm:$0xff]
      %v5422 = vld [vmem:[%s452 + $0x70] sm:$0xff]
      %v5423 = vld [vmem:[%s452 + $0x78] sm:$0xff]
      %v5424 = vld [vmem:[%s452 + $0x80] sm:$0xff]
      %v5425 = vld [vmem:[%s452 + $0x88] sm:$0xff]
      %v5426 = vld [vmem:[%s452 + $0x90] sm:$0xff]
      %v5427 = vld [vmem:[%s452 + $0x98] sm:$0xff]
      %v5428 = vld [vmem:[%s452 + $0xa0] sm:$0xff]
      %v5429 = vld [vmem:[%s452 + $0xa8] sm:$0xff]
      %v5430 = vld [vmem:[%s452 + $0xb0] sm:$0xff]
      %v5431 = vld [vmem:[%s452 + $0xb8] sm:$0xff]
      %v5432 = vld [vmem:[%s452 + $0xc0] sm:$0xff]
      %v5433 = vld [vmem:[%s452 + $0xc8] sm:$0xff]
      %v5434 = vld [vmem:[%s452 + $0xd0] sm:$0xff]
      %v5435 = vld [vmem:[%s452 + $0xd8] sm:$0xff]
      %v5436 = vld [vmem:[%s452 + $0xe0] sm:$0xff]
      %v5437 = vld [vmem:[%s452 + $0xe8] sm:$0xff]
      %v5438 = vld [vmem:[%s452 + $0xf0] sm:$0xff]
      %v5439 = vld [vmem:[%s452 + $0xf8] sm:$0xff]
      %v5440 = vld [vmem:[%s4] sm:$0xf]
      %v5441 = vld [vmem:[%s4 + $0x4] sm:$0xf]
      %v5442 = vld [vmem:[%s4 + $0x8] sm:$0xf]
      %v5443 = vld [vmem:[%s4 + $0xc] sm:$0xf]
      %v5444 = vld [vmem:[%s4 + $0x10] sm:$0xf]
      %v5445 = vld [vmem:[%s4 + $0x14] sm:$0xf]
      %v5446 = vld [vmem:[%s4 + $0x18] sm:$0xf]
      %v5447 = vld [vmem:[%s4 + $0x1c] sm:$0xf]
      %v5448 = vld [vmem:[%s4 + $0x20] sm:$0xf]
      %v5449 = vld [vmem:[%s4 + $0x24] sm:$0xf]
      %v5450 = vld [vmem:[%s4 + $0x28] sm:$0xf]
      %v5451 = vld [vmem:[%s4 + $0x2c] sm:$0xf]
      %v5452 = vld [vmem:[%s4 + $0x30] sm:$0xf]
      %v5453 = vld [vmem:[%s4 + $0x34] sm:$0xf]
      %v5454 = vld [vmem:[%s4 + $0x38] sm:$0xf]
      %v5455 = vld [vmem:[%s4 + $0x3c] sm:$0xf]
      %v5456 = vld [vmem:[%s4 + $0x40] sm:$0xf]
      %v5457 = vld [vmem:[%s4 + $0x44] sm:$0xf]
      %v5458 = vld [vmem:[%s4 + $0x48] sm:$0xf]
      %v5459 = vld [vmem:[%s4 + $0x4c] sm:$0xf]
      %v5460 = vld [vmem:[%s4 + $0x50] sm:$0xf]
      %v5461 = vld [vmem:[%s4 + $0x54] sm:$0xf]
      %v5462 = vld [vmem:[%s4 + $0x58] sm:$0xf]
      %v5463 = vld [vmem:[%s4 + $0x5c] sm:$0xf]
      %v5464 = vld [vmem:[%s2501] sm:$0xff]
      %v5465 = vld [vmem:[%s2501 + $0x8] sm:$0xff]
      %v5466 = vld [vmem:[%s2501 + $0x10] sm:$0xff]
      %v5467 = vld [vmem:[%s2501 + $0x18] sm:$0xff]
      %v5468 = vld [vmem:[%s2501 + $0x20] sm:$0xff]
      %v5469 = vld [vmem:[%s2501 + $0x28] sm:$0xff]
      %v5470 = vld [vmem:[%s2501 + $0x30] sm:$0xff]
      %v5471 = vld [vmem:[%s2501 + $0x38] sm:$0xff]
      %v5472 = vld [vmem:[%s2501 + $0x40] sm:$0xff]
      %v5473 = vld [vmem:[%s2501 + $0x48] sm:$0xff]
      %v5474 = vld [vmem:[%s2501 + $0x50] sm:$0xff]
      %v5475 = vld [vmem:[%s2501 + $0x58] sm:$0xff]
      %v5476 = vld [vmem:[%s2501 + $0x60] sm:$0xff]
      %v5477 = vld [vmem:[%s2501 + $0x68] sm:$0xff]
      %v5478 = vld [vmem:[%s2501 + $0x70] sm:$0xff]
      %v5479 = vld [vmem:[%s2501 + $0x78] sm:$0xff]
      %v5480 = vld [vmem:[%s2501 + $0x80] sm:$0xff]
      %v5481 = vld [vmem:[%s2501 + $0x88] sm:$0xff]
      %v5482 = vld [vmem:[%s2501 + $0x90] sm:$0xff]
      %v5483 = vld [vmem:[%s2501 + $0x98] sm:$0xff]
      %v5484 = vld [vmem:[%s2501 + $0xa0] sm:$0xff]
      %v5485 = vld [vmem:[%s2501 + $0xa8] sm:$0xff]
      %v5486 = vld [vmem:[%s2501 + $0xb0] sm:$0xff]
      %v5487 = vld [vmem:[%s2501 + $0xb8] sm:$0xff]
      %v5488 = vld [vmem:[%s2501 + $0xc0] sm:$0xff]
      %v5489 = vld [vmem:[%s2501 + $0xc8] sm:$0xff]
      %v5490 = vld [vmem:[%s2501 + $0xd0] sm:$0xff]
      %v5491 = vld [vmem:[%s2501 + $0xd8] sm:$0xff]
      %v5492 = vld [vmem:[%s2501 + $0xe0] sm:$0xff]
      %v5493 = vld [vmem:[%s2501 + $0xe8] sm:$0xff]
      %v5494 = vld [vmem:[%s2501 + $0xf0] sm:$0xff]
      %v5495 = vld [vmem:[%s2501 + $0xf8] sm:$0xff]
      %v5496 = vld [vmem:[%s596] sm:$0xf]
      %v5497 = vld [vmem:[%s596 + $0x4] sm:$0xf]
      %v5498 = vld [vmem:[%s596 + $0x8] sm:$0xf]
      %v5499 = vld [vmem:[%s596 + $0xc] sm:$0xf]
      %v5500 = vld [vmem:[%s596 + $0x10] sm:$0xf]
      %v5501 = vld [vmem:[%s596 + $0x14] sm:$0xf]
      %v5502 = vld [vmem:[%s596 + $0x18] sm:$0xf]
      %v5503 = vld [vmem:[%s596 + $0x1c] sm:$0xf]
      %v5504 = vld [vmem:[%s596 + $0x20] sm:$0xf]
      %v5505 = vld [vmem:[%s596 + $0x24] sm:$0xf]
      %v5506 = vld [vmem:[%s596 + $0x28] sm:$0xf]
      %v5507 = vld [vmem:[%s596 + $0x2c] sm:$0xf]
      %v5508 = vld [vmem:[%s596 + $0x30] sm:$0xf]
      %v5509 = vld [vmem:[%s596 + $0x34] sm:$0xf]
      %v5510 = vld [vmem:[%s596 + $0x38] sm:$0xf]
      %v5511 = vld [vmem:[%s596 + $0x3c] sm:$0xf]
      %v5512 = vld [vmem:[%s596 + $0x40] sm:$0xf]
      %v5513 = vld [vmem:[%s596 + $0x44] sm:$0xf]
      %v5514 = vld [vmem:[%s596 + $0x48] sm:$0xf]
      %v5515 = vld [vmem:[%s596 + $0x4c] sm:$0xf]
      %v5516 = vld [vmem:[%s596 + $0x50] sm:$0xf]
      %v5517 = vld [vmem:[%s596 + $0x54] sm:$0xf]
      %v5518 = vld [vmem:[%s596 + $0x58] sm:$0xf]
      %v5519 = vld [vmem:[%s596 + $0x5c] sm:$0xf]
      %v5552 = vunpack.c.l.b16 %v5464
      %v5553 = vunpack.c.h.b16 %v5464
      %v5554 = vunpack.c.l.b16 %v5465
      %v5555 = vunpack.c.h.b16 %v5465
      %v5556 = vunpack.c.l.b16 %v5466
      %v5557 = vunpack.c.h.b16 %v5466
      %v5558 = vunpack.c.l.b16 %v5467
      %v5559 = vunpack.c.h.b16 %v5467
      %v5560 = vunpack.c.l.b16 %v5468
      %v5561 = vunpack.c.h.b16 %v5468
      %v5562 = vunpack.c.l.b16 %v5469
      %v5563 = vunpack.c.h.b16 %v5469
      %v5564 = vunpack.c.l.b16 %v5470
      %v5565 = vunpack.c.h.b16 %v5470
      %v5566 = vunpack.c.l.b16 %v5471
      %v5567 = vunpack.c.h.b16 %v5471
      %v5568 = vunpack.c.l.b16 %v5472
      %v5569 = vunpack.c.h.b16 %v5472
      %v5570 = vunpack.c.l.b16 %v5473
      %v5571 = vunpack.c.h.b16 %v5473
      %v5572 = vunpack.c.l.b16 %v5474
      %v5573 = vunpack.c.h.b16 %v5474
      %v5574 = vunpack.c.l.b16 %v5475
      %v5575 = vunpack.c.h.b16 %v5475
      %v5576 = vunpack.c.l.b16 %v5476
      %v5577 = vunpack.c.h.b16 %v5476
      %v5578 = vunpack.c.l.b16 %v5477
      %v5579 = vunpack.c.h.b16 %v5477
      %v5580 = vunpack.c.l.b16 %v5478
      %v5581 = vunpack.c.h.b16 %v5478
      %v5582 = vunpack.c.l.b16 %v5479
      %v5583 = vunpack.c.h.b16 %v5479
      %v5584 = vunpack.c.l.b16 %v5480
      %v5585 = vunpack.c.h.b16 %v5480
      %v5586 = vunpack.c.l.b16 %v5481
      %v5587 = vunpack.c.h.b16 %v5481
      %v5588 = vunpack.c.l.b16 %v5482
      %v5589 = vunpack.c.h.b16 %v5482
      %v5590 = vunpack.c.l.b16 %v5483
      %v5591 = vunpack.c.h.b16 %v5483
      %v5592 = vunpack.c.l.b16 %v5484
      %v5593 = vunpack.c.h.b16 %v5484
      %v5594 = vunpack.c.l.b16 %v5485
      %v5595 = vunpack.c.h.b16 %v5485
      %v5596 = vunpack.c.l.b16 %v5486
      %v5597 = vunpack.c.h.b16 %v5486
      %v5598 = vunpack.c.l.b16 %v5487
      %v5599 = vunpack.c.h.b16 %v5487
      %v5600 = vunpack.c.l.b16 %v5488
      %v5601 = vunpack.c.h.b16 %v5488
      %v5602 = vunpack.c.l.b16 %v5489
      %v5603 = vunpack.c.h.b16 %v5489
      %v5604 = vunpack.c.l.b16 %v5490
      %v5605 = vunpack.c.h.b16 %v5490
      %v5606 = vunpack.c.l.b16 %v5491
      %v5607 = vunpack.c.h.b16 %v5491
      %v5608 = vunpack.c.l.b16 %v5492
      %v5609 = vunpack.c.h.b16 %v5492
      %v5610 = vunpack.c.l.b16 %v5493
      %v5611 = vunpack.c.h.b16 %v5493
      %v5612 = vunpack.c.l.b16 %v5494
      %v5613 = vunpack.c.h.b16 %v5494
      %v5614 = vunpack.c.l.b16 %v5495
      %v5615 = vunpack.c.h.b16 %v5495
      %v5616 = vpack.c.b16 %v5554, %v5552
      %v5617 = vpack.c.b16 %v5555, %v5553
      %v5618 = vpack.c.b16 %v5558, %v5556
      %v5619 = vpack.c.b16 %v5559, %v5557
      %v5620 = vpack.c.b16 %v5562, %v5560
      %v5621 = vpack.c.b16 %v5563, %v5561
      %v5622 = vpack.c.b16 %v5566, %v5564
      %v5623 = vpack.c.b16 %v5567, %v5565
      %v5624 = vpack.c.b16 %v5570, %v5568
      %v5625 = vpack.c.b16 %v5571, %v5569
      %v5626 = vpack.c.b16 %v5574, %v5572
      %v5627 = vpack.c.b16 %v5575, %v5573
      %v5628 = vpack.c.b16 %v5578, %v5576
      %v5629 = vpack.c.b16 %v5579, %v5577
      %v5630 = vpack.c.b16 %v5582, %v5580
      %v5631 = vpack.c.b16 %v5583, %v5581
      %v5632 = vpack.c.b16 %v5586, %v5584
      %v5633 = vpack.c.b16 %v5587, %v5585
      %v5634 = vpack.c.b16 %v5590, %v5588
      %v5635 = vpack.c.b16 %v5591, %v5589
      %v5636 = vpack.c.b16 %v5594, %v5592
      %v5637 = vpack.c.b16 %v5595, %v5593
      %v5638 = vpack.c.b16 %v5598, %v5596
      %v5639 = vpack.c.b16 %v5599, %v5597
      %v5640 = vpack.c.b16 %v5602, %v5600
      %v5641 = vpack.c.b16 %v5603, %v5601
      %v5642 = vpack.c.b16 %v5606, %v5604
      %v5643 = vpack.c.b16 %v5607, %v5605
      %v5644 = vpack.c.b16 %v5610, %v5608
      %v5645 = vpack.c.b16 %v5611, %v5609
      %v5646 = vpack.c.b16 %v5614, %v5612
      %v5647 = vpack.c.b16 %v5615, %v5613
      %v5688 = vunpack.c.l.b16 %v5496
      %v5689 = vunpack.c.l.b16 %v5497
      %v5690 = vunpack.c.l.b16 %v5498
      %v5691 = vunpack.c.l.b16 %v5499
      %v5692 = vunpack.c.l.b16 %v5500
      %v5693 = vunpack.c.l.b16 %v5501
      %v5694 = vunpack.c.l.b16 %v5502
      %v5695 = vunpack.c.l.b16 %v5503
      %v5696 = vunpack.c.l.b16 %v5504
      %v5697 = vunpack.c.l.b16 %v5505
      %v5698 = vunpack.c.l.b16 %v5506
      %v5699 = vunpack.c.l.b16 %v5507
      %v5700 = vunpack.c.l.b16 %v5508
      %v5701 = vunpack.c.l.b16 %v5509
      %v5702 = vunpack.c.l.b16 %v5510
      %v5703 = vunpack.c.l.b16 %v5511
      %v5704 = vunpack.c.l.b16 %v5512
      %v5705 = vunpack.c.l.b16 %v5513
      %v5706 = vunpack.c.l.b16 %v5514
      %v5707 = vunpack.c.l.b16 %v5515
      %v5708 = vunpack.c.l.b16 %v5516
      %v5709 = vunpack.c.l.b16 %v5517
      %v5710 = vunpack.c.l.b16 %v5518
      %v5711 = vunpack.c.l.b16 %v5519
      %v5712 = vpack.c.b16 %v5689, %v5688
      %v5713 = vpack.c.b16 %v5691, %v5690
      %v5714 = vpack.c.b16 %v5693, %v5692
      %v5715 = vpack.c.b16 %v5695, %v5694
      %v5716 = vpack.c.b16 %v5697, %v5696
      %v5717 = vpack.c.b16 %v5699, %v5698
      %v5718 = vpack.c.b16 %v5701, %v5700
      %v5719 = vpack.c.b16 %v5703, %v5702
      %v5720 = vpack.c.b16 %v5705, %v5704
      %v5721 = vpack.c.b16 %v5707, %v5706
      %v5722 = vpack.c.b16 %v5709, %v5708
      %v5723 = vpack.c.b16 %v5711, %v5710
      %v5737 = vsel %vm837, %v5617, 0
      %v5740 = vsel %vm837, %v5619, 0
      %v5743 = vsel %vm837, %v5621, 0
      %v5746 = vsel %vm837, %v5623, 0
      %v5749 = vsel %vm837, %v5625, 0
      %v5752 = vsel %vm837, %v5627, 0
      %v5755 = vsel %vm837, %v5629, 0
      %v5758 = vsel %vm837, %v5631, 0
      %v5761 = vsel %vm837, %v5633, 0
      %v5764 = vsel %vm837, %v5635, 0
      %v5767 = vsel %vm837, %v5637, 0
      %v5770 = vsel %vm837, %v5639, 0
      %v5773 = vsel %vm837, %v5641, 0
      %v5776 = vsel %vm837, %v5643, 0
      %v5779 = vsel %vm837, %v5645, 0
      %v5782 = vsel %vm837, %v5647, 0
      %5784 = vmatprep.subr.bf16.mxu0 0
      %5785 = vmatpush1.bf16.msra.mxu0 %v5712
      %5786 = vmatprep.subr.bf16.mxu0 0
      %5787 = vmatpush1.bf16.msra.mxu0 %v5713
      %5788 = vmatprep.subr.bf16.mxu0 0
      %5789 = vmatpush1.bf16.msra.mxu0 %v5714
      %5790 = vmatprep.subr.bf16.mxu0 0
      %5791 = vmatpush1.bf16.msra.mxu0 %v5715
      %5792 = vmatprep.subr.bf16.mxu0 0
      %5793 = vmatpush1.bf16.msra.mxu0 %v5716
      %5794 = vmatprep.subr.bf16.mxu0 0
      %5795 = vmatpush1.bf16.msra.mxu0 %v5717
      %5796 = vmatprep.subr.bf16.mxu0 0
      %5797 = vmatpush1.bf16.msra.mxu0 %v5718
      %5798 = vmatprep.subr.bf16.mxu0 0
      %5799 = vmatpush1.bf16.msra.mxu0 %v5719
      %5800 = vmatprep.subr.bf16.mxu0 0
      %5801 = vmatpush1.bf16.msra.mxu0 %v5720
      %5802 = vmatprep.subr.bf16.mxu0 0
      %5803 = vmatpush1.bf16.msra.mxu0 %v5721
      %5804 = vmatprep.subr.bf16.mxu0 0
      %5805 = vmatpush1.bf16.msra.mxu0 %v5722
      %5806 = vmatprep.subr.bf16.mxu0 0
      %5807 = vmatpush1.bf16.msra.mxu0 %v5723
      %5808 = vmatprep.subr.bf16.mxu0 0
      %5809 = vmatpush1.bf16.msra.mxu0 0
      %5810 = vmatprep.subr.bf16.mxu0 0
      %5811 = vmatpush1.bf16.msra.mxu0 0
      %5812 = vmatprep.subr.bf16.mxu0 0
      %5813 = vmatpush1.bf16.msra.mxu0 0
      %5814 = vmatprep.subr.bf16.mxu0 0
      %5815 = vmatpush1.bf16.msra.mxu0 0
      %5816 = vmatprep.mubr.bf16.mxu0 %v5737
      %5817 = vmatmul.mubr.bf16.gmra.mrb[0].mxu0 %v5616
      %v5818 = vpop.f32.mrb[0].mxu0
      %v5819 = vadd.f32 0.0, %v5818
      %v5820 = vpop.f32.mrb[0].mxu0
      %v5821 = vpop.f32.mrb[0].mxu0
      %v5822 = vadd.f32 0.0, %v5821
      %v5823 = vpop.f32.mrb[0].mxu0
      %5824 = vmatprep.mubr.bf16.mxu0 %v5740
      %5825 = vmatmul.mubr.bf16.gmra.mrb[0].mxu0 %v5618
      %v5826 = vpop.f32.mrb[0].mxu0
      %v5827 = vadd.f32 0.0, %v5826
      %v5828 = vpop.f32.mrb[0].mxu0
      %v5829 = vpop.f32.mrb[0].mxu0
      %v5830 = vadd.f32 0.0, %v5829
      %v5831 = vpop.f32.mrb[0].mxu0
      %5832 = vmatprep.mubr.bf16.mxu0 %v5743
      %5833 = vmatmul.mubr.bf16.gmra.mrb[0].mxu0 %v5620
      %v5834 = vpop.f32.mrb[0].mxu0
      %v5835 = vadd.f32 0.0, %v5834
      %v5836 = vpop.f32.mrb[0].mxu0
      %v5837 = vpop.f32.mrb[0].mxu0
      %v5838 = vadd.f32 0.0, %v5837
      %v5839 = vpop.f32.mrb[0].mxu0
      %5840 = vmatprep.mubr.bf16.mxu0 %v5746
      %5841 = vmatmul.mubr.bf16.gmra.mrb[0].mxu0 %v5622
      %v5842 = vpop.f32.mrb[0].mxu0
      %v5843 = vadd.f32 0.0, %v5842
      %v5844 = vpop.f32.mrb[0].mxu0
      %v5845 = vpop.f32.mrb[0].mxu0
      %v5846 = vadd.f32 0.0, %v5845
      %v5847 = vpop.f32.mrb[0].mxu0
      %5848 = vmatprep.mubr.bf16.mxu0 %v5749
      %5849 = vmatmul.mubr.bf16.gmra.mrb[0].mxu0 %v5624
      %v5850 = vpop.f32.mrb[0].mxu0
      %v5851 = vadd.f32 0.0, %v5850
      %v5852 = vpop.f32.mrb[0].mxu0
      %v5853 = vpop.f32.mrb[0].mxu0
      %v5854 = vadd.f32 0.0, %v5853
      %v5855 = vpop.f32.mrb[0].mxu0
      %5856 = vmatprep.mubr.bf16.mxu0 %v5752
      %5857 = vmatmul.mubr.bf16.gmra.mrb[0].mxu0 %v5626
      %v5858 = vpop.f32.mrb[0].mxu0
      %v5859 = vadd.f32 0.0, %v5858
      %v5860 = vpop.f32.mrb[0].mxu0
      %v5861 = vpop.f32.mrb[0].mxu0
      %v5862 = vadd.f32 0.0, %v5861
      %v5863 = vpop.f32.mrb[0].mxu0
      %5864 = vmatprep.mubr.bf16.mxu0 %v5755
      %5865 = vmatmul.mubr.bf16.gmra.mrb[0].mxu0 %v5628
      %v5866 = vpop.f32.mrb[0].mxu0
      %v5867 = vadd.f32 0.0, %v5866
      %v5868 = vpop.f32.mrb[0].mxu0
      %v5869 = vpop.f32.mrb[0].mxu0
      %v5870 = vadd.f32 0.0, %v5869
      %v5871 = vpop.f32.mrb[0].mxu0
      %5872 = vmatprep.mubr.bf16.mxu0 %v5758
      %5873 = vmatmul.mubr.bf16.gmra.mrb[0].mxu0 %v5630
      %v5874 = vpop.f32.mrb[0].mxu0
      %v5875 = vadd.f32 0.0, %v5874
      %v5876 = vpop.f32.mrb[0].mxu0
      %v5877 = vpop.f32.mrb[0].mxu0
      %v5878 = vadd.f32 0.0, %v5877
      %v5879 = vpop.f32.mrb[0].mxu0
      %5880 = vmatprep.mubr.bf16.mxu0 %v5761
      %5881 = vmatmul.mubr.bf16.gmra.mrb[0].mxu0 %v5632
      %v5882 = vpop.f32.mrb[0].mxu0
      %v5883 = vadd.f32 0.0, %v5882
      %v5884 = vpop.f32.mrb[0].mxu0
      %v5885 = vpop.f32.mrb[0].mxu0
      %v5886 = vadd.f32 0.0, %v5885
      %v5887 = vpop.f32.mrb[0].mxu0
      %5888 = vmatprep.mubr.bf16.mxu0 %v5764
      %5889 = vmatmul.mubr.bf16.gmra.mrb[0].mxu0 %v5634
      %v5890 = vpop.f32.mrb[0].mxu0
      %v5891 = vadd.f32 0.0, %v5890
      %v5892 = vpop.f32.mrb[0].mxu0
      %v5893 = vpop.f32.mrb[0].mxu0
      %v5894 = vadd.f32 0.0, %v5893
      %v5895 = vpop.f32.mrb[0].mxu0
      %5896 = vmatprep.mubr.bf16.mxu0 %v5767
      %5897 = vmatmul.mubr.bf16.gmra.mrb[0].mxu0 %v5636
      %v5898 = vpop.f32.mrb[0].mxu0
      %v5899 = vadd.f32 0.0, %v5898
      %v5900 = vpop.f32.mrb[0].mxu0
      %v5901 = vpop.f32.mrb[0].mxu0
      %v5902 = vadd.f32 0.0, %v5901
      %v5903 = vpop.f32.mrb[0].mxu0
      %5904 = vmatprep.mubr.bf16.mxu0 %v5770
      %5905 = vmatmul.mubr.bf16.gmra.mrb[0].mxu0 %v5638
      %v5906 = vpop.f32.mrb[0].mxu0
      %v5907 = vadd.f32 0.0, %v5906
      %v5908 = vpop.f32.mrb[0].mxu0
      %v5909 = vpop.f32.mrb[0].mxu0
      %v5910 = vadd.f32 0.0, %v5909
      %v5911 = vpop.f32.mrb[0].mxu0
      %5912 = vmatprep.mubr.bf16.mxu0 %v5773
      %5913 = vmatmul.mubr.bf16.gmra.mrb[0].mxu0 %v5640
      %v5914 = vpop.f32.mrb[0].mxu0
      %v5915 = vadd.f32 0.0, %v5914
      %v5916 = vpop.f32.mrb[0].mxu0
      %v5917 = vpop.f32.mrb[0].mxu0
      %v5918 = vadd.f32 0.0, %v5917
      %v5919 = vpop.f32.mrb[0].mxu0
      %5920 = vmatprep.mubr.bf16.mxu0 %v5776
      %5921 = vmatmul.mubr.bf16.gmra.mrb[0].mxu0 %v5642
      %v5922 = vpop.f32.mrb[0].mxu0
      %v5923 = vadd.f32 0.0, %v5922
      %v5924 = vpop.f32.mrb[0].mxu0
      %v5925 = vpop.f32.mrb[0].mxu0
      %v5926 = vadd.f32 0.0, %v5925
      %v5927 = vpop.f32.mrb[0].mxu0
      %5928 = vmatprep.mubr.bf16.mxu0 %v5779
      %5929 = vmatmul.mubr.bf16.gmra.mrb[0].mxu0 %v5644
      %v5930 = vpop.f32.mrb[0].mxu0
      %v5931 = vadd.f32 0.0, %v5930
      %v5932 = vpop.f32.mrb[0].mxu0
      %v5933 = vpop.f32.mrb[0].mxu0
      %v5934 = vadd.f32 0.0, %v5933
      %v5935 = vpop.f32.mrb[0].mxu0
      %5936 = vmatprep.mubr.bf16.mxu0 %v5782
      %5937 = vmatmul.mubr.bf16.gmra.mrb[0].mxu0 %v5646
      %v5938 = vpop.f32.mrb[0].mxu0
      %v5939 = vadd.f32 0.0, %v5938
      %v5940 = vpop.f32.mrb[0].mxu0
      %v5941 = vpop.f32.mrb[0].mxu0
      %v5942 = vadd.f32 0.0, %v5941
      %v5943 = vpop.f32.mrb[0].mxu0
      %5944 = vdwg.mxu0
      %v5977 = vunpack.c.l.b16 %v5408
      %v5978 = vunpack.c.h.b16 %v5408
      %v5979 = vunpack.c.l.b16 %v5409
      %v5980 = vunpack.c.h.b16 %v5409
      %v5981 = vunpack.c.l.b16 %v5410
      %v5982 = vunpack.c.h.b16 %v5410
      %v5983 = vunpack.c.l.b16 %v5411
      %v5984 = vunpack.c.h.b16 %v5411
      %v5985 = vunpack.c.l.b16 %v5412
      %v5986 = vunpack.c.h.b16 %v5412
      %v5987 = vunpack.c.l.b16 %v5413
      %v5988 = vunpack.c.h.b16 %v5413
      %v5989 = vunpack.c.l.b16 %v5414
      %v5990 = vunpack.c.h.b16 %v5414
      %v5991 = vunpack.c.l.b16 %v5415
      %v5992 = vunpack.c.h.b16 %v5415
      %v5993 = vunpack.c.l.b16 %v5416
      %v5994 = vunpack.c.h.b16 %v5416
      %v5995 = vunpack.c.l.b16 %v5417
      %v5996 = vunpack.c.h.b16 %v5417
      %v5997 = vunpack.c.l.b16 %v5418
      %v5998 = vunpack.c.h.b16 %v5418
      %v5999 = vunpack.c.l.b16 %v5419
      %v6000 = vunpack.c.h.b16 %v5419
      %v6001 = vunpack.c.l.b16 %v5420
      %v6002 = vunpack.c.h.b16 %v5420
      %v6003 = vunpack.c.l.b16 %v5421
      %v6004 = vunpack.c.h.b16 %v5421
      %v6005 = vunpack.c.l.b16 %v5422
      %v6006 = vunpack.c.h.b16 %v5422
      %v6007 = vunpack.c.l.b16 %v5423
      %v6008 = vunpack.c.h.b16 %v5423
      %v6009 = vunpack.c.l.b16 %v5424
      %v6010 = vunpack.c.h.b16 %v5424
      %v6011 = vunpack.c.l.b16 %v5425
      %v6012 = vunpack.c.h.b16 %v5425
      %v6013 = vunpack.c.l.b16 %v5426
      %v6014 = vunpack.c.h.b16 %v5426
      %v6015 = vunpack.c.l.b16 %v5427
      %v6016 = vunpack.c.h.b16 %v5427
      %v6017 = vunpack.c.l.b16 %v5428
      %v6018 = vunpack.c.h.b16 %v5428
      %v6019 = vunpack.c.l.b16 %v5429
      %v6020 = vunpack.c.h.b16 %v5429
      %v6021 = vunpack.c.l.b16 %v5430
      %v6022 = vunpack.c.h.b16 %v5430
      %v6023 = vunpack.c.l.b16 %v5431
      %v6024 = vunpack.c.h.b16 %v5431
      %v6025 = vunpack.c.l.b16 %v5432
      %v6026 = vunpack.c.h.b16 %v5432
      %v6027 = vunpack.c.l.b16 %v5433
      %v6028 = vunpack.c.h.b16 %v5433
      %v6029 = vunpack.c.l.b16 %v5434
      %v6030 = vunpack.c.h.b16 %v5434
      %v6031 = vunpack.c.l.b16 %v5435
      %v6032 = vunpack.c.h.b16 %v5435
      %v6033 = vunpack.c.l.b16 %v5436
      %v6034 = vunpack.c.h.b16 %v5436
      %v6035 = vunpack.c.l.b16 %v5437
      %v6036 = vunpack.c.h.b16 %v5437
      %v6037 = vunpack.c.l.b16 %v5438
      %v6038 = vunpack.c.h.b16 %v5438
      %v6039 = vunpack.c.l.b16 %v5439
      %v6040 = vunpack.c.h.b16 %v5439
      %v6041 = vpack.c.b16 %v5979, %v5977
      %v6042 = vpack.c.b16 %v5980, %v5978
      %v6043 = vpack.c.b16 %v5983, %v5981
      %v6044 = vpack.c.b16 %v5984, %v5982
      %v6045 = vpack.c.b16 %v5987, %v5985
      %v6046 = vpack.c.b16 %v5988, %v5986
      %v6047 = vpack.c.b16 %v5991, %v5989
      %v6048 = vpack.c.b16 %v5992, %v5990
      %v6049 = vpack.c.b16 %v5995, %v5993
      %v6050 = vpack.c.b16 %v5996, %v5994
      %v6051 = vpack.c.b16 %v5999, %v5997
      %v6052 = vpack.c.b16 %v6000, %v5998
      %v6053 = vpack.c.b16 %v6003, %v6001
      %v6054 = vpack.c.b16 %v6004, %v6002
      %v6055 = vpack.c.b16 %v6007, %v6005
      %v6056 = vpack.c.b16 %v6008, %v6006
      %v6057 = vpack.c.b16 %v6011, %v6009
      %v6058 = vpack.c.b16 %v6012, %v6010
      %v6059 = vpack.c.b16 %v6015, %v6013
      %v6060 = vpack.c.b16 %v6016, %v6014
      %v6061 = vpack.c.b16 %v6019, %v6017
      %v6062 = vpack.c.b16 %v6020, %v6018
      %v6063 = vpack.c.b16 %v6023, %v6021
      %v6064 = vpack.c.b16 %v6024, %v6022
      %v6065 = vpack.c.b16 %v6027, %v6025
      %v6066 = vpack.c.b16 %v6028, %v6026
      %v6067 = vpack.c.b16 %v6031, %v6029
      %v6068 = vpack.c.b16 %v6032, %v6030
      %v6069 = vpack.c.b16 %v6035, %v6033
      %v6070 = vpack.c.b16 %v6036, %v6034
      %v6071 = vpack.c.b16 %v6039, %v6037
      %v6072 = vpack.c.b16 %v6040, %v6038
      %v6113 = vunpack.c.l.b16 %v5440
      %v6114 = vunpack.c.l.b16 %v5441
      %v6115 = vunpack.c.l.b16 %v5442
      %v6116 = vunpack.c.l.b16 %v5443
      %v6117 = vunpack.c.l.b16 %v5444
      %v6118 = vunpack.c.l.b16 %v5445
      %v6119 = vunpack.c.l.b16 %v5446
      %v6120 = vunpack.c.l.b16 %v5447
      %v6121 = vunpack.c.l.b16 %v5448
      %v6122 = vunpack.c.l.b16 %v5449
      %v6123 = vunpack.c.l.b16 %v5450
      %v6124 = vunpack.c.l.b16 %v5451
      %v6125 = vunpack.c.l.b16 %v5452
      %v6126 = vunpack.c.l.b16 %v5453
      %v6127 = vunpack.c.l.b16 %v5454
      %v6128 = vunpack.c.l.b16 %v5455
      %v6129 = vunpack.c.l.b16 %v5456
      %v6130 = vunpack.c.l.b16 %v5457
      %v6131 = vunpack.c.l.b16 %v5458
      %v6132 = vunpack.c.l.b16 %v5459
      %v6133 = vunpack.c.l.b16 %v5460
      %v6134 = vunpack.c.l.b16 %v5461
      %v6135 = vunpack.c.l.b16 %v5462
      %v6136 = vunpack.c.l.b16 %v5463
      %v6137 = vpack.c.b16 %v6114, %v6113
      %v6138 = vpack.c.b16 %v6116, %v6115
      %v6139 = vpack.c.b16 %v6118, %v6117
      %v6140 = vpack.c.b16 %v6120, %v6119
      %v6141 = vpack.c.b16 %v6122, %v6121
      %v6142 = vpack.c.b16 %v6124, %v6123
      %v6143 = vpack.c.b16 %v6126, %v6125
      %v6144 = vpack.c.b16 %v6128, %v6127
      %v6145 = vpack.c.b16 %v6130, %v6129
      %v6146 = vpack.c.b16 %v6132, %v6131
      %v6147 = vpack.c.b16 %v6134, %v6133
      %v6148 = vpack.c.b16 %v6136, %v6135
      %v6162 = vsel %vm837, %v6042, 0
      %v6165 = vsel %vm837, %v6044, 0
      %v6168 = vsel %vm837, %v6046, 0
      %v6171 = vsel %vm837, %v6048, 0
      %v6174 = vsel %vm837, %v6050, 0
      %v6177 = vsel %vm837, %v6052, 0
      %v6180 = vsel %vm837, %v6054, 0
      %v6183 = vsel %vm837, %v6056, 0
      %v6186 = vsel %vm837, %v6058, 0
      %v6189 = vsel %vm837, %v6060, 0
      %v6192 = vsel %vm837, %v6062, 0
      %v6195 = vsel %vm837, %v6064, 0
      %v6198 = vsel %vm837, %v6066, 0
      %v6201 = vsel %vm837, %v6068, 0
      %v6204 = vsel %vm837, %v6070, 0
      %v6207 = vsel %vm837, %v6072, 0
      %6209 = vmatprep.subr.bf16.mxu0 0
      %6210 = vmatpush1.bf16.msra.mxu0 %v6137
      %6211 = vmatprep.subr.bf16.mxu0 0
      %6212 = vmatpush1.bf16.msra.mxu0 %v6138
      %6213 = vmatprep.subr.bf16.mxu0 0
      %6214 = vmatpush1.bf16.msra.mxu0 %v6139
      %6215 = vmatprep.subr.bf16.mxu0 0
      %6216 = vmatpush1.bf16.msra.mxu0 %v6140
      %6217 = vmatprep.subr.bf16.mxu0 0
      %6218 = vmatpush1.bf16.msra.mxu0 %v6141
      %6219 = vmatprep.subr.bf16.mxu0 0
      %6220 = vmatpush1.bf16.msra.mxu0 %v6142
      %6221 = vmatprep.subr.bf16.mxu0 0
      %6222 = vmatpush1.bf16.msra.mxu0 %v6143
      %6223 = vmatprep.subr.bf16.mxu0 0
      %6224 = vmatpush1.bf16.msra.mxu0 %v6144
      %6225 = vmatprep.subr.bf16.mxu0 0
      %6226 = vmatpush1.bf16.msra.mxu0 %v6145
      %6227 = vmatprep.subr.bf16.mxu0 0
      %6228 = vmatpush1.bf16.msra.mxu0 %v6146
      %6229 = vmatprep.subr.bf16.mxu0 0
      %6230 = vmatpush1.bf16.msra.mxu0 %v6147
      %6231 = vmatprep.subr.bf16.mxu0 0
      %6232 = vmatpush1.bf16.msra.mxu0 %v6148
      %6233 = vmatprep.subr.bf16.mxu0 0
      %6234 = vmatpush1.bf16.msra.mxu0 0
      %6235 = vmatprep.subr.bf16.mxu0 0
      %6236 = vmatpush1.bf16.msra.mxu0 0
      %6237 = vmatprep.subr.bf16.mxu0 0
      %6238 = vmatpush1.bf16.msra.mxu0 0
      %6239 = vmatprep.subr.bf16.mxu0 0
      %6240 = vmatpush1.bf16.msra.mxu0 0
      %6241 = vmatprep.mubr.bf16.mxu0 %v6162
      %6242 = vmatmul.mubr.bf16.gmra.mrb[0].mxu0 %v6041
      %v6243 = vpop.f32.mrb[0].mxu0
      %v6244 = vadd.f32 %v5819, %v6243
      %v6245 = vpop.f32.mrb[0].mxu0
      %v6246 = vpop.f32.mrb[0].mxu0
      %v6247 = vadd.f32 %v5822, %v6246
      %v6248 = vpop.f32.mrb[0].mxu0
      %6249 = vmatprep.mubr.bf16.mxu0 %v6165
      %6250 = vmatmul.mubr.bf16.gmra.mrb[0].mxu0 %v6043
      %v6251 = vpop.f32.mrb[0].mxu0
      %v6252 = vadd.f32 %v5827, %v6251
      %v6253 = vpop.f32.mrb[0].mxu0
      %v6254 = vpop.f32.mrb[0].mxu0
      %v6255 = vadd.f32 %v5830, %v6254
      %v6256 = vpop.f32.mrb[0].mxu0
      %6257 = vmatprep.mubr.bf16.mxu0 %v6168
      %6258 = vmatmul.mubr.bf16.gmra.mrb[0].mxu0 %v6045
      %v6259 = vpop.f32.mrb[0].mxu0
      %v6260 = vadd.f32 %v5835, %v6259
      %v6261 = vpop.f32.mrb[0].mxu0
      %v6262 = vpop.f32.mrb[0].mxu0
      %v6263 = vadd.f32 %v5838, %v6262
      %v6264 = vpop.f32.mrb[0].mxu0
      %6265 = vmatprep.mubr.bf16.mxu0 %v6171
      %6266 = vmatmul.mubr.bf16.gmra.mrb[0].mxu0 %v6047
      %v6267 = vpop.f32.mrb[0].mxu0
      %v6268 = vadd.f32 %v5843, %v6267
      %v6269 = vpop.f32.mrb[0].mxu0
      %v6270 = vpop.f32.mrb[0].mxu0
      %v6271 = vadd.f32 %v5846, %v6270
      %v6272 = vpop.f32.mrb[0].mxu0
      %6273 = vmatprep.mubr.bf16.mxu0 %v6174
      %6274 = vmatmul.mubr.bf16.gmra.mrb[0].mxu0 %v6049
      %v6275 = vpop.f32.mrb[0].mxu0
      %v6276 = vadd.f32 %v5851, %v6275
      %v6277 = vpop.f32.mrb[0].mxu0
      %v6278 = vpop.f32.mrb[0].mxu0
      %v6279 = vadd.f32 %v5854, %v6278
      %v6280 = vpop.f32.mrb[0].mxu0
      %6281 = vmatprep.mubr.bf16.mxu0 %v6177
      %6282 = vmatmul.mubr.bf16.gmra.mrb[0].mxu0 %v6051
      %v6283 = vpop.f32.mrb[0].mxu0
      %v6284 = vadd.f32 %v5859, %v6283
      %v6285 = vpop.f32.mrb[0].mxu0
      %v6286 = vpop.f32.mrb[0].mxu0
      %v6287 = vadd.f32 %v5862, %v6286
      %v6288 = vpop.f32.mrb[0].mxu0
      %6289 = vmatprep.mubr.bf16.mxu0 %v6180
      %6290 = vmatmul.mubr.bf16.gmra.mrb[0].mxu0 %v6053
      %v6291 = vpop.f32.mrb[0].mxu0
      %v6292 = vadd.f32 %v5867, %v6291
      %v6293 = vpop.f32.mrb[0].mxu0
      %v6294 = vpop.f32.mrb[0].mxu0
      %v6295 = vadd.f32 %v5870, %v6294
      %v6296 = vpop.f32.mrb[0].mxu0
      %6297 = vmatprep.mubr.bf16.mxu0 %v6183
      %6298 = vmatmul.mubr.bf16.gmra.mrb[0].mxu0 %v6055
      %v6299 = vpop.f32.mrb[0].mxu0
      %v6300 = vadd.f32 %v5875, %v6299
      %v6301 = vpop.f32.mrb[0].mxu0
      %v6302 = vpop.f32.mrb[0].mxu0
      %v6303 = vadd.f32 %v5878, %v6302
      %v6304 = vpop.f32.mrb[0].mxu0
      %6305 = vmatprep.mubr.bf16.mxu0 %v6186
      %6306 = vmatmul.mubr.bf16.gmra.mrb[0].mxu0 %v6057
      %v6307 = vpop.f32.mrb[0].mxu0
      %v6308 = vadd.f32 %v5883, %v6307
      %v6309 = vpop.f32.mrb[0].mxu0
      %v6310 = vpop.f32.mrb[0].mxu0
      %v6311 = vadd.f32 %v5886, %v6310
      %v6312 = vpop.f32.mrb[0].mxu0
      %6313 = vmatprep.mubr.bf16.mxu0 %v6189
      %6314 = vmatmul.mubr.bf16.gmra.mrb[0].mxu0 %v6059
      %v6315 = vpop.f32.mrb[0].mxu0
      %v6316 = vadd.f32 %v5891, %v6315
      %v6317 = vpop.f32.mrb[0].mxu0
      %v6318 = vpop.f32.mrb[0].mxu0
      %v6319 = vadd.f32 %v5894, %v6318
      %v6320 = vpop.f32.mrb[0].mxu0
      %6321 = vmatprep.mubr.bf16.mxu0 %v6192
      %6322 = vmatmul.mubr.bf16.gmra.mrb[0].mxu0 %v6061
      %v6323 = vpop.f32.mrb[0].mxu0
      %v6324 = vadd.f32 %v5899, %v6323
      %v6325 = vpop.f32.mrb[0].mxu0
      %v6326 = vpop.f32.mrb[0].mxu0
      %v6327 = vadd.f32 %v5902, %v6326
      %v6328 = vpop.f32.mrb[0].mxu0
      %6329 = vmatprep.mubr.bf16.mxu0 %v6195
      %6330 = vmatmul.mubr.bf16.gmra.mrb[0].mxu0 %v6063
      %v6331 = vpop.f32.mrb[0].mxu0
      %v6332 = vadd.f32 %v5907, %v6331
      %v6333 = vpop.f32.mrb[0].mxu0
      %v6334 = vpop.f32.mrb[0].mxu0
      %v6335 = vadd.f32 %v5910, %v6334
      %v6336 = vpop.f32.mrb[0].mxu0
      %6337 = vmatprep.mubr.bf16.mxu0 %v6198
      %6338 = vmatmul.mubr.bf16.gmra.mrb[0].mxu0 %v6065
      %v6339 = vpop.f32.mrb[0].mxu0
      %v6340 = vadd.f32 %v5915, %v6339
      %v6341 = vpop.f32.mrb[0].mxu0
      %v6342 = vpop.f32.mrb[0].mxu0
      %v6343 = vadd.f32 %v5918, %v6342
      %v6344 = vpop.f32.mrb[0].mxu0
      %6345 = vmatprep.mubr.bf16.mxu0 %v6201
      %6346 = vmatmul.mubr.bf16.gmra.mrb[0].mxu0 %v6067
      %v6347 = vpop.f32.mrb[0].mxu0
      %v6348 = vadd.f32 %v5923, %v6347
      %v6349 = vpop.f32.mrb[0].mxu0
      %v6350 = vpop.f32.mrb[0].mxu0
      %v6351 = vadd.f32 %v5926, %v6350
      %v6352 = vpop.f32.mrb[0].mxu0
      %6353 = vmatprep.mubr.bf16.mxu0 %v6204
      %6354 = vmatmul.mubr.bf16.gmra.mrb[0].mxu0 %v6069
      %v6355 = vpop.f32.mrb[0].mxu0
      %v6356 = vadd.f32 %v5931, %v6355
      %v6357 = vpop.f32.mrb[0].mxu0
      %v6358 = vpop.f32.mrb[0].mxu0
      %v6359 = vadd.f32 %v5934, %v6358
      %v6360 = vpop.f32.mrb[0].mxu0
      %6361 = vmatprep.mubr.bf16.mxu0 %v6207
      %6362 = vmatmul.mubr.bf16.gmra.mrb[0].mxu0 %v6071
      %v6363 = vpop.f32.mrb[0].mxu0
      %v6364 = vadd.f32 %v5939, %v6363
      %v6365 = vpop.f32.mrb[0].mxu0
      %v6366 = vpop.f32.mrb[0].mxu0
      %v6367 = vadd.f32 %v5942, %v6366
      %v6368 = vpop.f32.mrb[0].mxu0
      %6369 = vdwg.mxu0
      %v6370 = vld [vmem:[%s3016] sm:$0xff]
      %v6371 = vld [vmem:[%s3016 + $0x8] sm:$0xff]
      %v6372 = vld [vmem:[%s3016 + $0x10] sm:$0xff]
      %v6373 = vld [vmem:[%s3016 + $0x18] sm:$0xff]
      %v6374 = vld [vmem:[%s3016 + $0x20] sm:$0xff]
      %v6375 = vld [vmem:[%s3016 + $0x28] sm:$0xff]
      %v6376 = vld [vmem:[%s3016 + $0x30] sm:$0xff]
      %v6377 = vld [vmem:[%s3016 + $0x38] sm:$0xff]
      %v6378 = vld [vmem:[%s3016 + $0x40] sm:$0xff]
      %v6379 = vld [vmem:[%s3016 + $0x48] sm:$0xff]
      %v6380 = vld [vmem:[%s3016 + $0x50] sm:$0xff]
      %v6381 = vld [vmem:[%s3016 + $0x58] sm:$0xff]
      %v6382 = vld [vmem:[%s3016 + $0x60] sm:$0xff]
      %v6383 = vld [vmem:[%s3016 + $0x68] sm:$0xff]
      %v6384 = vld [vmem:[%s3016 + $0x70] sm:$0xff]
      %v6385 = vld [vmem:[%s3016 + $0x78] sm:$0xff]
      %v6386 = vld [vmem:[%s3016 + $0x80] sm:$0xff]
      %v6387 = vld [vmem:[%s3016 + $0x88] sm:$0xff]
      %v6388 = vld [vmem:[%s3016 + $0x90] sm:$0xff]
      %v6389 = vld [vmem:[%s3016 + $0x98] sm:$0xff]
      %v6390 = vld [vmem:[%s3016 + $0xa0] sm:$0xff]
      %v6391 = vld [vmem:[%s3016 + $0xa8] sm:$0xff]
      %v6392 = vld [vmem:[%s3016 + $0xb0] sm:$0xff]
      %v6393 = vld [vmem:[%s3016 + $0xb8] sm:$0xff]
      %v6394 = vld [vmem:[%s3016 + $0xc0] sm:$0xff]
      %v6395 = vld [vmem:[%s3016 + $0xc8] sm:$0xff]
      %v6396 = vld [vmem:[%s3016 + $0xd0] sm:$0xff]
      %v6397 = vld [vmem:[%s3016 + $0xd8] sm:$0xff]
      %v6398 = vld [vmem:[%s3016 + $0xe0] sm:$0xff]
      %v6399 = vld [vmem:[%s3016 + $0xe8] sm:$0xff]
      %v6400 = vld [vmem:[%s3016 + $0xf0] sm:$0xff]
      %v6401 = vld [vmem:[%s3016 + $0xf8] sm:$0xff]
      %v6402 = vld [vmem:[%s1505] sm:$0xf]
      %v6403 = vld [vmem:[%s1505 + $0x4] sm:$0xf]
      %v6404 = vld [vmem:[%s1505 + $0x8] sm:$0xf]
      %v6405 = vld [vmem:[%s1505 + $0xc] sm:$0xf]
      %v6406 = vld [vmem:[%s1505 + $0x10] sm:$0xf]
      %v6407 = vld [vmem:[%s1505 + $0x14] sm:$0xf]
      %v6408 = vld [vmem:[%s1505 + $0x18] sm:$0xf]
      %v6409 = vld [vmem:[%s1505 + $0x1c] sm:$0xf]
      %v6410 = vld [vmem:[%s1505 + $0x20] sm:$0xf]
      %v6411 = vld [vmem:[%s1505 + $0x24] sm:$0xf]
      %v6412 = vld [vmem:[%s1505 + $0x28] sm:$0xf]
      %v6413 = vld [vmem:[%s1505 + $0x2c] sm:$0xf]
      %v6414 = vld [vmem:[%s1505 + $0x30] sm:$0xf]
      %v6415 = vld [vmem:[%s1505 + $0x34] sm:$0xf]
      %v6416 = vld [vmem:[%s1505 + $0x38] sm:$0xf]
      %v6417 = vld [vmem:[%s1505 + $0x3c] sm:$0xf]
      %v6418 = vld [vmem:[%s1505 + $0x40] sm:$0xf]
      %v6419 = vld [vmem:[%s1505 + $0x44] sm:$0xf]
      %v6420 = vld [vmem:[%s1505 + $0x48] sm:$0xf]
      %v6421 = vld [vmem:[%s1505 + $0x4c] sm:$0xf]
      %v6422 = vld [vmem:[%s1505 + $0x50] sm:$0xf]
      %v6423 = vld [vmem:[%s1505 + $0x54] sm:$0xf]
      %v6424 = vld [vmem:[%s1505 + $0x58] sm:$0xf]
      %v6425 = vld [vmem:[%s1505 + $0x5c] sm:$0xf]
      %v6458 = vunpack.c.l.b16 %v6370
      %v6459 = vunpack.c.h.b16 %v6370
      %v6460 = vunpack.c.l.b16 %v6371
      %v6461 = vunpack.c.h.b16 %v6371
      %v6462 = vunpack.c.l.b16 %v6372
      %v6463 = vunpack.c.h.b16 %v6372
      %v6464 = vunpack.c.l.b16 %v6373
      %v6465 = vunpack.c.h.b16 %v6373
      %v6466 = vunpack.c.l.b16 %v6374
      %v6467 = vunpack.c.h.b16 %v6374
      %v6468 = vunpack.c.l.b16 %v6375
      %v6469 = vunpack.c.h.b16 %v6375
      %v6470 = vunpack.c.l.b16 %v6376
      %v6471 = vunpack.c.h.b16 %v6376
      %v6472 = vunpack.c.l.b16 %v6377
      %v6473 = vunpack.c.h.b16 %v6377
      %v6474 = vunpack.c.l.b16 %v6378
      %v6475 = vunpack.c.h.b16 %v6378
      %v6476 = vunpack.c.l.b16 %v6379
      %v6477 = vunpack.c.h.b16 %v6379
      %v6478 = vunpack.c.l.b16 %v6380
      %v6479 = vunpack.c.h.b16 %v6380
      %v6480 = vunpack.c.l.b16 %v6381
      %v6481 = vunpack.c.h.b16 %v6381
      %v6482 = vunpack.c.l.b16 %v6382
      %v6483 = vunpack.c.h.b16 %v6382
      %v6484 = vunpack.c.l.b16 %v6383
      %v6485 = vunpack.c.h.b16 %v6383
      %v6486 = vunpack.c.l.b16 %v6384
      %v6487 = vunpack.c.h.b16 %v6384
      %v6488 = vunpack.c.l.b16 %v6385
      %v6489 = vunpack.c.h.b16 %v6385
      %v6490 = vunpack.c.l.b16 %v6386
      %v6491 = vunpack.c.h.b16 %v6386
      %v6492 = vunpack.c.l.b16 %v6387
      %v6493 = vunpack.c.h.b16 %v6387
      %v6494 = vunpack.c.l.b16 %v6388
      %v6495 = vunpack.c.h.b16 %v6388
      %v6496 = vunpack.c.l.b16 %v6389
      %v6497 = vunpack.c.h.b16 %v6389
      %v6498 = vunpack.c.l.b16 %v6390
      %v6499 = vunpack.c.h.b16 %v6390
      %v6500 = vunpack.c.l.b16 %v6391
      %v6501 = vunpack.c.h.b16 %v6391
      %v6502 = vunpack.c.l.b16 %v6392
      %v6503 = vunpack.c.h.b16 %v6392
      %v6504 = vunpack.c.l.b16 %v6393
      %v6505 = vunpack.c.h.b16 %v6393
      %v6506 = vunpack.c.l.b16 %v6394
      %v6507 = vunpack.c.h.b16 %v6394
      %v6508 = vunpack.c.l.b16 %v6395
      %v6509 = vunpack.c.h.b16 %v6395
      %v6510 = vunpack.c.l.b16 %v6396
      %v6511 = vunpack.c.h.b16 %v6396
      %v6512 = vunpack.c.l.b16 %v6397
      %v6513 = vunpack.c.h.b16 %v6397
      %v6514 = vunpack.c.l.b16 %v6398
      %v6515 = vunpack.c.h.b16 %v6398
      %v6516 = vunpack.c.l.b16 %v6399
      %v6517 = vunpack.c.h.b16 %v6399
      %v6518 = vunpack.c.l.b16 %v6400
      %v6519 = vunpack.c.h.b16 %v6400
      %v6520 = vunpack.c.l.b16 %v6401
      %v6521 = vunpack.c.h.b16 %v6401
      %v6522 = vpack.c.b16 %v6460, %v6458
      %v6523 = vpack.c.b16 %v6461, %v6459
      %v6524 = vpack.c.b16 %v6464, %v6462
      %v6525 = vpack.c.b16 %v6465, %v6463
      %v6526 = vpack.c.b16 %v6468, %v6466
      %v6527 = vpack.c.b16 %v6469, %v6467
      %v6528 = vpack.c.b16 %v6472, %v6470
      %v6529 = vpack.c.b16 %v6473, %v6471
      %v6530 = vpack.c.b16 %v6476, %v6474
      %v6531 = vpack.c.b16 %v6477, %v6475
      %v6532 = vpack.c.b16 %v6480, %v6478
      %v6533 = vpack.c.b16 %v6481, %v6479
      %v6534 = vpack.c.b16 %v6484, %v6482
      %v6535 = vpack.c.b16 %v6485, %v6483
      %v6536 = vpack.c.b16 %v6488, %v6486
      %v6537 = vpack.c.b16 %v6489, %v6487
      %v6538 = vpack.c.b16 %v6492, %v6490
      %v6539 = vpack.c.b16 %v6493, %v6491
      %v6540 = vpack.c.b16 %v6496, %v6494
      %v6541 = vpack.c.b16 %v6497, %v6495
      %v6542 = vpack.c.b16 %v6500, %v6498
      %v6543 = vpack.c.b16 %v6501, %v6499
      %v6544 = vpack.c.b16 %v6504, %v6502
      %v6545 = vpack.c.b16 %v6505, %v6503
      %v6546 = vpack.c.b16 %v6508, %v6506
      %v6547 = vpack.c.b16 %v6509, %v6507
      %v6548 = vpack.c.b16 %v6512, %v6510
      %v6549 = vpack.c.b16 %v6513, %v6511
      %v6550 = vpack.c.b16 %v6516, %v6514
      %v6551 = vpack.c.b16 %v6517, %v6515
      %v6552 = vpack.c.b16 %v6520, %v6518
      %v6553 = vpack.c.b16 %v6521, %v6519
      %v6594 = vunpack.c.l.b16 %v6402
      %v6595 = vunpack.c.l.b16 %v6403
      %v6596 = vunpack.c.l.b16 %v6404
      %v6597 = vunpack.c.l.b16 %v6405
      %v6598 = vunpack.c.l.b16 %v6406
      %v6599 = vunpack.c.l.b16 %v6407
      %v6600 = vunpack.c.l.b16 %v6408
      %v6601 = vunpack.c.l.b16 %v6409
      %v6602 = vunpack.c.l.b16 %v6410
      %v6603 = vunpack.c.l.b16 %v6411
      %v6604 = vunpack.c.l.b16 %v6412
      %v6605 = vunpack.c.l.b16 %v6413
      %v6606 = vunpack.c.l.b16 %v6414
      %v6607 = vunpack.c.l.b16 %v6415
      %v6608 = vunpack.c.l.b16 %v6416
      %v6609 = vunpack.c.l.b16 %v6417
      %v6610 = vunpack.c.l.b16 %v6418
      %v6611 = vunpack.c.l.b16 %v6419
      %v6612 = vunpack.c.l.b16 %v6420
      %v6613 = vunpack.c.l.b16 %v6421
      %v6614 = vunpack.c.l.b16 %v6422
      %v6615 = vunpack.c.l.b16 %v6423
      %v6616 = vunpack.c.l.b16 %v6424
      %v6617 = vunpack.c.l.b16 %v6425
      %v6618 = vpack.c.b16 %v6595, %v6594
      %v6619 = vpack.c.b16 %v6597, %v6596
      %v6620 = vpack.c.b16 %v6599, %v6598
      %v6621 = vpack.c.b16 %v6601, %v6600
      %v6622 = vpack.c.b16 %v6603, %v6602
      %v6623 = vpack.c.b16 %v6605, %v6604
      %v6624 = vpack.c.b16 %v6607, %v6606
      %v6625 = vpack.c.b16 %v6609, %v6608
      %v6626 = vpack.c.b16 %v6611, %v6610
      %v6627 = vpack.c.b16 %v6613, %v6612
      %v6628 = vpack.c.b16 %v6615, %v6614
      %v6629 = vpack.c.b16 %v6617, %v6616
      %v6643 = vsel %vm837, %v6523, 0
      %v6646 = vsel %vm837, %v6525, 0
      %v6649 = vsel %vm837, %v6527, 0
      %v6652 = vsel %vm837, %v6529, 0
      %v6655 = vsel %vm837, %v6531, 0
      %v6658 = vsel %vm837, %v6533, 0
      %v6661 = vsel %vm837, %v6535, 0
      %v6664 = vsel %vm837, %v6537, 0
      %v6667 = vsel %vm837, %v6539, 0
      %v6670 = vsel %vm837, %v6541, 0
      %v6673 = vsel %vm837, %v6543, 0
      %v6676 = vsel %vm837, %v6545, 0
      %v6679 = vsel %vm837, %v6547, 0
      %v6682 = vsel %vm837, %v6549, 0
      %v6685 = vsel %vm837, %v6551, 0
      %v6688 = vsel %vm837, %v6553, 0
      %6690 = vmatprep.subr.bf16.mxu0 0
      %6691 = vmatpush1.bf16.msra.mxu0 %v6618
      %6692 = vmatprep.subr.bf16.mxu0 0
      %6693 = vmatpush1.bf16.msra.mxu0 %v6619
      %6694 = vmatprep.subr.bf16.mxu0 0
      %6695 = vmatpush1.bf16.msra.mxu0 %v6620
      %6696 = vmatprep.subr.bf16.mxu0 0
      %6697 = vmatpush1.bf16.msra.mxu0 %v6621
      %6698 = vmatprep.subr.bf16.mxu0 0
      %6699 = vmatpush1.bf16.msra.mxu0 %v6622
      %6700 = vmatprep.subr.bf16.mxu0 0
      %6701 = vmatpush1.bf16.msra.mxu0 %v6623
      %6702 = vmatprep.subr.bf16.mxu0 0
      %6703 = vmatpush1.bf16.msra.mxu0 %v6624
      %6704 = vmatprep.subr.bf16.mxu0 0
      %6705 = vmatpush1.bf16.msra.mxu0 %v6625
      %6706 = vmatprep.subr.bf16.mxu0 0
      %6707 = vmatpush1.bf16.msra.mxu0 %v6626
      %6708 = vmatprep.subr.bf16.mxu0 0
      %6709 = vmatpush1.bf16.msra.mxu0 %v6627
      %6710 = vmatprep.subr.bf16.mxu0 0
      %6711 = vmatpush1.bf16.msra.mxu0 %v6628
      %6712 = vmatprep.subr.bf16.mxu0 0
      %6713 = vmatpush1.bf16.msra.mxu0 %v6629
      %6714 = vmatprep.subr.bf16.mxu0 0
      %6715 = vmatpush1.bf16.msra.mxu0 0
      %6716 = vmatprep.subr.bf16.mxu0 0
      %6717 = vmatpush1.bf16.msra.mxu0 0
      %6718 = vmatprep.subr.bf16.mxu0 0
      %6719 = vmatpush1.bf16.msra.mxu0 0
      %6720 = vmatprep.subr.bf16.mxu0 0
      %6721 = vmatpush1.bf16.msra.mxu0 0
      %6722 = vmatprep.mubr.bf16.mxu0 %v6643
      %6723 = vmatmul.mubr.bf16.gmra.mrb[0].mxu0 %v6522
      %v6724 = vpop.f32.mrb[0].mxu0
      %v6725 = vadd.f32 0.0, %v6724
      %v6726 = vpop.f32.mrb[0].mxu0
      %v6727 = vpop.f32.mrb[0].mxu0
      %v6728 = vadd.f32 0.0, %v6727
      %v6729 = vpop.f32.mrb[0].mxu0
      %6730 = vmatprep.mubr.bf16.mxu0 %v6646
      %6731 = vmatmul.mubr.bf16.gmra.mrb[0].mxu0 %v6524
      %v6732 = vpop.f32.mrb[0].mxu0
      %v6733 = vadd.f32 0.0, %v6732
      %v6734 = vpop.f32.mrb[0].mxu0
      %v6735 = vpop.f32.mrb[0].mxu0
      %v6736 = vadd.f32 0.0, %v6735
      %v6737 = vpop.f32.mrb[0].mxu0
      %6738 = vmatprep.mubr.bf16.mxu0 %v6649
      %6739 = vmatmul.mubr.bf16.gmra.mrb[0].mxu0 %v6526
      %v6740 = vpop.f32.mrb[0].mxu0
      %v6741 = vadd.f32 0.0, %v6740
      %v6742 = vpop.f32.mrb[0].mxu0
      %v6743 = vpop.f32.mrb[0].mxu0
      %v6744 = vadd.f32 0.0, %v6743
      %v6745 = vpop.f32.mrb[0].mxu0
      %6746 = vmatprep.mubr.bf16.mxu0 %v6652
      %6747 = vmatmul.mubr.bf16.gmra.mrb[0].mxu0 %v6528
      %v6748 = vpop.f32.mrb[0].mxu0
      %v6749 = vadd.f32 0.0, %v6748
      %v6750 = vpop.f32.mrb[0].mxu0
      %v6751 = vpop.f32.mrb[0].mxu0
      %v6752 = vadd.f32 0.0, %v6751
      %v6753 = vpop.f32.mrb[0].mxu0
      %6754 = vmatprep.mubr.bf16.mxu0 %v6655
      %6755 = vmatmul.mubr.bf16.gmra.mrb[0].mxu0 %v6530
      %v6756 = vpop.f32.mrb[0].mxu0
      %v6757 = vadd.f32 0.0, %v6756
      %v6758 = vpop.f32.mrb[0].mxu0
      %v6759 = vpop.f32.mrb[0].mxu0
      %v6760 = vadd.f32 0.0, %v6759
      %v6761 = vpop.f32.mrb[0].mxu0
      %6762 = vmatprep.mubr.bf16.mxu0 %v6658
      %6763 = vmatmul.mubr.bf16.gmra.mrb[0].mxu0 %v6532
      %v6764 = vpop.f32.mrb[0].mxu0
      %v6765 = vadd.f32 0.0, %v6764
      %v6766 = vpop.f32.mrb[0].mxu0
      %v6767 = vpop.f32.mrb[0].mxu0
      %v6768 = vadd.f32 0.0, %v6767
      %v6769 = vpop.f32.mrb[0].mxu0
      %6770 = vmatprep.mubr.bf16.mxu0 %v6661
      %6771 = vmatmul.mubr.bf16.gmra.mrb[0].mxu0 %v6534
      %v6772 = vpop.f32.mrb[0].mxu0
      %v6773 = vadd.f32 0.0, %v6772
      %v6774 = vpop.f32.mrb[0].mxu0
      %v6775 = vpop.f32.mrb[0].mxu0
      %v6776 = vadd.f32 0.0, %v6775
      %v6777 = vpop.f32.mrb[0].mxu0
      %6778 = vmatprep.mubr.bf16.mxu0 %v6664
      %6779 = vmatmul.mubr.bf16.gmra.mrb[0].mxu0 %v6536
      %v6780 = vpop.f32.mrb[0].mxu0
      %v6781 = vadd.f32 0.0, %v6780
      %v6782 = vpop.f32.mrb[0].mxu0
      %v6783 = vpop.f32.mrb[0].mxu0
      %v6784 = vadd.f32 0.0, %v6783
      %v6785 = vpop.f32.mrb[0].mxu0
      %6786 = vmatprep.mubr.bf16.mxu0 %v6667
      %6787 = vmatmul.mubr.bf16.gmra.mrb[0].mxu0 %v6538
      %v6788 = vpop.f32.mrb[0].mxu0
      %v6789 = vadd.f32 0.0, %v6788
      %v6790 = vpop.f32.mrb[0].mxu0
      %v6791 = vpop.f32.mrb[0].mxu0
      %v6792 = vadd.f32 0.0, %v6791
      %v6793 = vpop.f32.mrb[0].mxu0
      %6794 = vmatprep.mubr.bf16.mxu0 %v6670
      %6795 = vmatmul.mubr.bf16.gmra.mrb[0].mxu0 %v6540
      %v6796 = vpop.f32.mrb[0].mxu0
      %v6797 = vadd.f32 0.0, %v6796
      %v6798 = vpop.f32.mrb[0].mxu0
      %v6799 = vpop.f32.mrb[0].mxu0
      %v6800 = vadd.f32 0.0, %v6799
      %v6801 = vpop.f32.mrb[0].mxu0
      %6802 = vmatprep.mubr.bf16.mxu0 %v6673
      %6803 = vmatmul.mubr.bf16.gmra.mrb[0].mxu0 %v6542
      %v6804 = vpop.f32.mrb[0].mxu0
      %v6805 = vadd.f32 0.0, %v6804
      %v6806 = vpop.f32.mrb[0].mxu0
      %v6807 = vpop.f32.mrb[0].mxu0
      %v6808 = vadd.f32 0.0, %v6807
      %v6809 = vpop.f32.mrb[0].mxu0
      %6810 = vmatprep.mubr.bf16.mxu0 %v6676
      %6811 = vmatmul.mubr.bf16.gmra.mrb[0].mxu0 %v6544
      %v6812 = vpop.f32.mrb[0].mxu0
      %v6813 = vadd.f32 0.0, %v6812
      %v6814 = vpop.f32.mrb[0].mxu0
      %v6815 = vpop.f32.mrb[0].mxu0
      %v6816 = vadd.f32 0.0, %v6815
      %v6817 = vpop.f32.mrb[0].mxu0
      %6818 = vmatprep.mubr.bf16.mxu0 %v6679
      %6819 = vmatmul.mubr.bf16.gmra.mrb[0].mxu0 %v6546
      %v6820 = vpop.f32.mrb[0].mxu0
      %v6821 = vadd.f32 0.0, %v6820
      %v6822 = vpop.f32.mrb[0].mxu0
      %v6823 = vpop.f32.mrb[0].mxu0
      %v6824 = vadd.f32 0.0, %v6823
      %v6825 = vpop.f32.mrb[0].mxu0
      %6826 = vmatprep.mubr.bf16.mxu0 %v6682
      %6827 = vmatmul.mubr.bf16.gmra.mrb[0].mxu0 %v6548
      %v6828 = vpop.f32.mrb[0].mxu0
      %v6829 = vadd.f32 0.0, %v6828
      %v6830 = vpop.f32.mrb[0].mxu0
      %v6831 = vpop.f32.mrb[0].mxu0
      %v6832 = vadd.f32 0.0, %v6831
      %v6833 = vpop.f32.mrb[0].mxu0
      %6834 = vmatprep.mubr.bf16.mxu0 %v6685
      %6835 = vmatmul.mubr.bf16.gmra.mrb[0].mxu0 %v6550
      %v6836 = vpop.f32.mrb[0].mxu0
      %v6837 = vadd.f32 0.0, %v6836
      %v6838 = vpop.f32.mrb[0].mxu0
      %v6839 = vpop.f32.mrb[0].mxu0
      %v6840 = vadd.f32 0.0, %v6839
      %v6841 = vpop.f32.mrb[0].mxu0
      %6842 = vmatprep.mubr.bf16.mxu0 %v6688
      %6843 = vmatmul.mubr.bf16.gmra.mrb[0].mxu0 %v6552
      %v6844 = vpop.f32.mrb[0].mxu0
      %v6845 = vadd.f32 0.0, %v6844
      %v6846 = vpop.f32.mrb[0].mxu0
      %v6847 = vpop.f32.mrb[0].mxu0
      %v6848 = vadd.f32 0.0, %v6847
      %v6849 = vpop.f32.mrb[0].mxu0
      %6850 = vdwg.mxu0
      %v6851 = vadd.f32 %v6244, %v6725
      %v6852 = vadd.f32 %v6247, %v6728
      %v6853 = vadd.f32 %v6252, %v6733
      %v6854 = vadd.f32 %v6255, %v6736
      %v6855 = vadd.f32 %v6260, %v6741
      %v6856 = vadd.f32 %v6263, %v6744
      %v6857 = vadd.f32 %v6268, %v6749
      %v6858 = vadd.f32 %v6271, %v6752
      %v6859 = vadd.f32 %v6276, %v6757
      %v6860 = vadd.f32 %v6279, %v6760
      %v6861 = vadd.f32 %v6284, %v6765
      %v6862 = vadd.f32 %v6287, %v6768
      %v6863 = vadd.f32 %v6292, %v6773
      %v6864 = vadd.f32 %v6295, %v6776
      %v6865 = vadd.f32 %v6300, %v6781
      %v6866 = vadd.f32 %v6303, %v6784
      %v6867 = vadd.f32 %v6308, %v6789
      %v6868 = vadd.f32 %v6311, %v6792
      %v6869 = vadd.f32 %v6316, %v6797
      %v6870 = vadd.f32 %v6319, %v6800
      %v6871 = vadd.f32 %v6324, %v6805
      %v6872 = vadd.f32 %v6327, %v6808
      %v6873 = vadd.f32 %v6332, %v6813
      %v6874 = vadd.f32 %v6335, %v6816
      %v6875 = vadd.f32 %v6340, %v6821
      %v6876 = vadd.f32 %v6343, %v6824
      %v6877 = vadd.f32 %v6348, %v6829
      %v6878 = vadd.f32 %v6351, %v6832
      %v6879 = vadd.f32 %v6356, %v6837
      %v6880 = vadd.f32 %v6359, %v6840
      %v6881 = vadd.f32 %v6364, %v6845
      %v6882 = vadd.f32 %v6367, %v6848
      %v6883 = vld [vmem:[%s465] sm:$0xff]
      %v6884 = vld [vmem:[%s465 + $0x8] sm:$0xff]
      %v6885 = vld [vmem:[%s465 + $0x10] sm:$0xff]
      %v6886 = vld [vmem:[%s465 + $0x18] sm:$0xff]
      %v6887 = vld [vmem:[%s465 + $0x20] sm:$0xff]
      %v6888 = vld [vmem:[%s465 + $0x28] sm:$0xff]
      %v6889 = vld [vmem:[%s465 + $0x30] sm:$0xff]
      %v6890 = vld [vmem:[%s465 + $0x38] sm:$0xff]
      %v6891 = vld [vmem:[%s465 + $0x40] sm:$0xff]
      %v6892 = vld [vmem:[%s465 + $0x48] sm:$0xff]
      %v6893 = vld [vmem:[%s465 + $0x50] sm:$0xff]
      %v6894 = vld [vmem:[%s465 + $0x58] sm:$0xff]
      %v6895 = vld [vmem:[%s465 + $0x60] sm:$0xff]
      %v6896 = vld [vmem:[%s465 + $0x68] sm:$0xff]
      %v6897 = vld [vmem:[%s465 + $0x70] sm:$0xff]
      %v6898 = vld [vmem:[%s465 + $0x78] sm:$0xff]
      %v6899 = vld [vmem:[%s465 + $0x80] sm:$0xff]
      %v6900 = vld [vmem:[%s465 + $0x88] sm:$0xff]
      %v6901 = vld [vmem:[%s465 + $0x90] sm:$0xff]
      %v6902 = vld [vmem:[%s465 + $0x98] sm:$0xff]
      %v6903 = vld [vmem:[%s465 + $0xa0] sm:$0xff]
      %v6904 = vld [vmem:[%s465 + $0xa8] sm:$0xff]
      %v6905 = vld [vmem:[%s465 + $0xb0] sm:$0xff]
      %v6906 = vld [vmem:[%s465 + $0xb8] sm:$0xff]
      %v6907 = vld [vmem:[%s465 + $0xc0] sm:$0xff]
      %v6908 = vld [vmem:[%s465 + $0xc8] sm:$0xff]
      %v6909 = vld [vmem:[%s465 + $0xd0] sm:$0xff]
      %v6910 = vld [vmem:[%s465 + $0xd8] sm:$0xff]
      %v6911 = vld [vmem:[%s465 + $0xe0] sm:$0xff]
      %v6912 = vld [vmem:[%s465 + $0xe8] sm:$0xff]
      %v6913 = vld [vmem:[%s465 + $0xf0] sm:$0xff]
      %v6914 = vld [vmem:[%s465 + $0xf8] sm:$0xff]
      %v6915 = vld [vmem:[%s2019] sm:$0xf]
      %v6916 = vld [vmem:[%s2019 + $0x4] sm:$0xf]
      %v6917 = vld [vmem:[%s2019 + $0x8] sm:$0xf]
      %v6918 = vld [vmem:[%s2019 + $0xc] sm:$0xf]
      %v6919 = vld [vmem:[%s2019 + $0x10] sm:$0xf]
      %v6920 = vld [vmem:[%s2019 + $0x14] sm:$0xf]
      %v6921 = vld [vmem:[%s2019 + $0x18] sm:$0xf]
      %v6922 = vld [vmem:[%s2019 + $0x1c] sm:$0xf]
      %v6923 = vld [vmem:[%s2019 + $0x20] sm:$0xf]
      %v6924 = vld [vmem:[%s2019 + $0x24] sm:$0xf]
      %v6925 = vld [vmem:[%s2019 + $0x28] sm:$0xf]
      %v6926 = vld [vmem:[%s2019 + $0x2c] sm:$0xf]
      %v6927 = vld [vmem:[%s2019 + $0x30] sm:$0xf]
      %v6928 = vld [vmem:[%s2019 + $0x34] sm:$0xf]
      %v6929 = vld [vmem:[%s2019 + $0x38] sm:$0xf]
      %v6930 = vld [vmem:[%s2019 + $0x3c] sm:$0xf]
      %v6931 = vld [vmem:[%s2019 + $0x40] sm:$0xf]
      %v6932 = vld [vmem:[%s2019 + $0x44] sm:$0xf]
      %v6933 = vld [vmem:[%s2019 + $0x48] sm:$0xf]
      %v6934 = vld [vmem:[%s2019 + $0x4c] sm:$0xf]
      %v6935 = vld [vmem:[%s2019 + $0x50] sm:$0xf]
      %v6936 = vld [vmem:[%s2019 + $0x54] sm:$0xf]
      %v6937 = vld [vmem:[%s2019 + $0x58] sm:$0xf]
      %v6938 = vld [vmem:[%s2019 + $0x5c] sm:$0xf]
      %v6971 = vunpack.c.l.b16 %v6883
      %v6972 = vunpack.c.h.b16 %v6883
      %v6973 = vunpack.c.l.b16 %v6884
      %v6974 = vunpack.c.h.b16 %v6884
      %v6975 = vunpack.c.l.b16 %v6885
      %v6976 = vunpack.c.h.b16 %v6885
      %v6977 = vunpack.c.l.b16 %v6886
      %v6978 = vunpack.c.h.b16 %v6886
      %v6979 = vunpack.c.l.b16 %v6887
      %v6980 = vunpack.c.h.b16 %v6887
      %v6981 = vunpack.c.l.b16 %v6888
      %v6982 = vunpack.c.h.b16 %v6888
      %v6983 = vunpack.c.l.b16 %v6889
      %v6984 = vunpack.c.h.b16 %v6889
      %v6985 = vunpack.c.l.b16 %v6890
      %v6986 = vunpack.c.h.b16 %v6890
      %v6987 = vunpack.c.l.b16 %v6891
      %v6988 = vunpack.c.h.b16 %v6891
      %v6989 = vunpack.c.l.b16 %v6892
      %v6990 = vunpack.c.h.b16 %v6892
      %v6991 = vunpack.c.l.b16 %v6893
      %v6992 = vunpack.c.h.b16 %v6893
      %v6993 = vunpack.c.l.b16 %v6894
      %v6994 = vunpack.c.h.b16 %v6894
      %v6995 = vunpack.c.l.b16 %v6895
      %v6996 = vunpack.c.h.b16 %v6895
      %v6997 = vunpack.c.l.b16 %v6896
      %v6998 = vunpack.c.h.b16 %v6896
      %v6999 = vunpack.c.l.b16 %v6897
      %v7000 = vunpack.c.h.b16 %v6897
      %v7001 = vunpack.c.l.b16 %v6898
      %v7002 = vunpack.c.h.b16 %v6898
      %v7003 = vunpack.c.l.b16 %v6899
      %v7004 = vunpack.c.h.b16 %v6899
      %v7005 = vunpack.c.l.b16 %v6900
      %v7006 = vunpack.c.h.b16 %v6900
      %v7007 = vunpack.c.l.b16 %v6901
      %v7008 = vunpack.c.h.b16 %v6901
      %v7009 = vunpack.c.l.b16 %v6902
      %v7010 = vunpack.c.h.b16 %v6902
      %v7011 = vunpack.c.l.b16 %v6903
      %v7012 = vunpack.c.h.b16 %v6903
      %v7013 = vunpack.c.l.b16 %v6904
      %v7014 = vunpack.c.h.b16 %v6904
      %v7015 = vunpack.c.l.b16 %v6905
      %v7016 = vunpack.c.h.b16 %v6905
      %v7017 = vunpack.c.l.b16 %v6906
      %v7018 = vunpack.c.h.b16 %v6906
      %v7019 = vunpack.c.l.b16 %v6907
      %v7020 = vunpack.c.h.b16 %v6907
      %v7021 = vunpack.c.l.b16 %v6908
      %v7022 = vunpack.c.h.b16 %v6908
      %v7023 = vunpack.c.l.b16 %v6909
      %v7024 = vunpack.c.h.b16 %v6909
      %v7025 = vunpack.c.l.b16 %v6910
      %v7026 = vunpack.c.h.b16 %v6910
      %v7027 = vunpack.c.l.b16 %v6911
      %v7028 = vunpack.c.h.b16 %v6911
      %v7029 = vunpack.c.l.b16 %v6912
      %v7030 = vunpack.c.h.b16 %v6912
      %v7031 = vunpack.c.l.b16 %v6913
      %v7032 = vunpack.c.h.b16 %v6913
      %v7033 = vunpack.c.l.b16 %v6914
      %v7034 = vunpack.c.h.b16 %v6914
      %v7035 = vpack.c.b16 %v6973, %v6971
      %v7036 = vpack.c.b16 %v6974, %v6972
      %v7037 = vpack.c.b16 %v6977, %v6975
      %v7038 = vpack.c.b16 %v6978, %v6976
      %v7039 = vpack.c.b16 %v6981, %v6979
      %v7040 = vpack.c.b16 %v6982, %v6980
      %v7041 = vpack.c.b16 %v6985, %v6983
      %v7042 = vpack.c.b16 %v6986, %v6984
      %v7043 = vpack.c.b16 %v6989, %v6987
      %v7044 = vpack.c.b16 %v6990, %v6988
      %v7045 = vpack.c.b16 %v6993, %v6991
      %v7046 = vpack.c.b16 %v6994, %v6992
      %v7047 = vpack.c.b16 %v6997, %v6995
      %v7048 = vpack.c.b16 %v6998, %v6996
      %v7049 = vpack.c.b16 %v7001, %v6999
      %v7050 = vpack.c.b16 %v7002, %v7000
      %v7051 = vpack.c.b16 %v7005, %v7003
      %v7052 = vpack.c.b16 %v7006, %v7004
      %v7053 = vpack.c.b16 %v7009, %v7007
      %v7054 = vpack.c.b16 %v7010, %v7008
      %v7055 = vpack.c.b16 %v7013, %v7011
      %v7056 = vpack.c.b16 %v7014, %v7012
      %v7057 = vpack.c.b16 %v7017, %v7015
      %v7058 = vpack.c.b16 %v7018, %v7016
      %v7059 = vpack.c.b16 %v7021, %v7019
      %v7060 = vpack.c.b16 %v7022, %v7020
      %v7061 = vpack.c.b16 %v7025, %v7023
      %v7062 = vpack.c.b16 %v7026, %v7024
      %v7063 = vpack.c.b16 %v7029, %v7027
      %v7064 = vpack.c.b16 %v7030, %v7028
      %v7065 = vpack.c.b16 %v7033, %v7031
      %v7066 = vpack.c.b16 %v7034, %v7032
      %v7107 = vunpack.c.l.b16 %v6915
      %v7108 = vunpack.c.l.b16 %v6916
      %v7109 = vunpack.c.l.b16 %v6917
      %v7110 = vunpack.c.l.b16 %v6918
      %v7111 = vunpack.c.l.b16 %v6919
      %v7112 = vunpack.c.l.b16 %v6920
      %v7113 = vunpack.c.l.b16 %v6921
      %v7114 = vunpack.c.l.b16 %v6922
      %v7115 = vunpack.c.l.b16 %v6923
      %v7116 = vunpack.c.l.b16 %v6924
      %v7117 = vunpack.c.l.b16 %v6925
      %v7118 = vunpack.c.l.b16 %v6926
      %v7119 = vunpack.c.l.b16 %v6927
      %v7120 = vunpack.c.l.b16 %v6928
      %v7121 = vunpack.c.l.b16 %v6929
      %v7122 = vunpack.c.l.b16 %v6930
      %v7123 = vunpack.c.l.b16 %v6931
      %v7124 = vunpack.c.l.b16 %v6932
      %v7125 = vunpack.c.l.b16 %v6933
      %v7126 = vunpack.c.l.b16 %v6934
      %v7127 = vunpack.c.l.b16 %v6935
      %v7128 = vunpack.c.l.b16 %v6936
      %v7129 = vunpack.c.l.b16 %v6937
      %v7130 = vunpack.c.l.b16 %v6938
      %v7131 = vpack.c.b16 %v7108, %v7107
      %v7132 = vpack.c.b16 %v7110, %v7109
      %v7133 = vpack.c.b16 %v7112, %v7111
      %v7134 = vpack.c.b16 %v7114, %v7113
      %v7135 = vpack.c.b16 %v7116, %v7115
      %v7136 = vpack.c.b16 %v7118, %v7117
      %v7137 = vpack.c.b16 %v7120, %v7119
      %v7138 = vpack.c.b16 %v7122, %v7121
      %v7139 = vpack.c.b16 %v7124, %v7123
      %v7140 = vpack.c.b16 %v7126, %v7125
      %v7141 = vpack.c.b16 %v7128, %v7127
      %v7142 = vpack.c.b16 %v7130, %v7129
      %v7156 = vsel %vm837, %v7036, 0
      %v7159 = vsel %vm837, %v7038, 0
      %v7162 = vsel %vm837, %v7040, 0
      %v7165 = vsel %vm837, %v7042, 0
      %v7168 = vsel %vm837, %v7044, 0
      %v7171 = vsel %vm837, %v7046, 0
      %v7174 = vsel %vm837, %v7048, 0
      %v7177 = vsel %vm837, %v7050, 0
      %v7180 = vsel %vm837, %v7052, 0
      %v7183 = vsel %vm837, %v7054, 0
      %v7186 = vsel %vm837, %v7056, 0
      %v7189 = vsel %vm837, %v7058, 0
      %v7192 = vsel %vm837, %v7060, 0
      %v7195 = vsel %vm837, %v7062, 0
      %v7198 = vsel %vm837, %v7064, 0
      %v7201 = vsel %vm837, %v7066, 0
      %7203 = vmatprep.subr.bf16.mxu0 0
      %7204 = vmatpush1.bf16.msra.mxu0 %v7131
      %7205 = vmatprep.subr.bf16.mxu0 0
      %7206 = vmatpush1.bf16.msra.mxu0 %v7132
      %7207 = vmatprep.subr.bf16.mxu0 0
      %7208 = vmatpush1.bf16.msra.mxu0 %v7133
      %7209 = vmatprep.subr.bf16.mxu0 0
      %7210 = vmatpush1.bf16.msra.mxu0 %v7134
      %7211 = vmatprep.subr.bf16.mxu0 0
      %7212 = vmatpush1.bf16.msra.mxu0 %v7135
      %7213 = vmatprep.subr.bf16.mxu0 0
      %7214 = vmatpush1.bf16.msra.mxu0 %v7136
      %7215 = vmatprep.subr.bf16.mxu0 0
      %7216 = vmatpush1.bf16.msra.mxu0 %v7137
      %7217 = vmatprep.subr.bf16.mxu0 0
      %7218 = vmatpush1.bf16.msra.mxu0 %v7138
      %7219 = vmatprep.subr.bf16.mxu0 0
      %7220 = vmatpush1.bf16.msra.mxu0 %v7139
      %7221 = vmatprep.subr.bf16.mxu0 0
      %7222 = vmatpush1.bf16.msra.mxu0 %v7140
      %7223 = vmatprep.subr.bf16.mxu0 0
      %7224 = vmatpush1.bf16.msra.mxu0 %v7141
      %7225 = vmatprep.subr.bf16.mxu0 0
      %7226 = vmatpush1.bf16.msra.mxu0 %v7142
      %7227 = vmatprep.subr.bf16.mxu0 0
      %7228 = vmatpush1.bf16.msra.mxu0 0
      %7229 = vmatprep.subr.bf16.mxu0 0
      %7230 = vmatpush1.bf16.msra.mxu0 0
      %7231 = vmatprep.subr.bf16.mxu0 0
      %7232 = vmatpush1.bf16.msra.mxu0 0
      %7233 = vmatprep.subr.bf16.mxu0 0
      %7234 = vmatpush1.bf16.msra.mxu0 0
      %7235 = vmatprep.mubr.bf16.mxu0 %v7156
      %7236 = vmatmul.mubr.bf16.gmra.mrb[0].mxu0 %v7035
      %v7237 = vpop.f32.mrb[0].mxu0
      %v7238 = vadd.f32 0.0, %v7237
      %v7239 = vpop.f32.mrb[0].mxu0
      %v7240 = vpop.f32.mrb[0].mxu0
      %v7241 = vadd.f32 0.0, %v7240
      %v7242 = vpop.f32.mrb[0].mxu0
      %7243 = vmatprep.mubr.bf16.mxu0 %v7159
      %7244 = vmatmul.mubr.bf16.gmra.mrb[0].mxu0 %v7037
      %v7245 = vpop.f32.mrb[0].mxu0
      %v7246 = vadd.f32 0.0, %v7245
      %v7247 = vpop.f32.mrb[0].mxu0
      %v7248 = vpop.f32.mrb[0].mxu0
      %v7249 = vadd.f32 0.0, %v7248
      %v7250 = vpop.f32.mrb[0].mxu0
      %7251 = vmatprep.mubr.bf16.mxu0 %v7162
      %7252 = vmatmul.mubr.bf16.gmra.mrb[0].mxu0 %v7039
      %v7253 = vpop.f32.mrb[0].mxu0
      %v7254 = vadd.f32 0.0, %v7253
      %v7255 = vpop.f32.mrb[0].mxu0
      %v7256 = vpop.f32.mrb[0].mxu0
      %v7257 = vadd.f32 0.0, %v7256
      %v7258 = vpop.f32.mrb[0].mxu0
      %7259 = vmatprep.mubr.bf16.mxu0 %v7165
      %7260 = vmatmul.mubr.bf16.gmra.mrb[0].mxu0 %v7041
      %v7261 = vpop.f32.mrb[0].mxu0
      %v7262 = vadd.f32 0.0, %v7261
      %v7263 = vpop.f32.mrb[0].mxu0
      %v7264 = vpop.f32.mrb[0].mxu0
      %v7265 = vadd.f32 0.0, %v7264
      %v7266 = vpop.f32.mrb[0].mxu0
      %7267 = vmatprep.mubr.bf16.mxu0 %v7168
      %7268 = vmatmul.mubr.bf16.gmra.mrb[0].mxu0 %v7043
      %v7269 = vpop.f32.mrb[0].mxu0
      %v7270 = vadd.f32 0.0, %v7269
      %v7271 = vpop.f32.mrb[0].mxu0
      %v7272 = vpop.f32.mrb[0].mxu0
      %v7273 = vadd.f32 0.0, %v7272
      %v7274 = vpop.f32.mrb[0].mxu0
      %7275 = vmatprep.mubr.bf16.mxu0 %v7171
      %7276 = vmatmul.mubr.bf16.gmra.mrb[0].mxu0 %v7045
      %v7277 = vpop.f32.mrb[0].mxu0
      %v7278 = vadd.f32 0.0, %v7277
      %v7279 = vpop.f32.mrb[0].mxu0
      %v7280 = vpop.f32.mrb[0].mxu0
      %v7281 = vadd.f32 0.0, %v7280
      %v7282 = vpop.f32.mrb[0].mxu0
      %7283 = vmatprep.mubr.bf16.mxu0 %v7174
      %7284 = vmatmul.mubr.bf16.gmra.mrb[0].mxu0 %v7047
      %v7285 = vpop.f32.mrb[0].mxu0
      %v7286 = vadd.f32 0.0, %v7285
      %v7287 = vpop.f32.mrb[0].mxu0
      %v7288 = vpop.f32.mrb[0].mxu0
      %v7289 = vadd.f32 0.0, %v7288
      %v7290 = vpop.f32.mrb[0].mxu0
      %7291 = vmatprep.mubr.bf16.mxu0 %v7177
      %7292 = vmatmul.mubr.bf16.gmra.mrb[0].mxu0 %v7049
      %v7293 = vpop.f32.mrb[0].mxu0
      %v7294 = vadd.f32 0.0, %v7293
      %v7295 = vpop.f32.mrb[0].mxu0
      %v7296 = vpop.f32.mrb[0].mxu0
      %v7297 = vadd.f32 0.0, %v7296
      %v7298 = vpop.f32.mrb[0].mxu0
      %7299 = vmatprep.mubr.bf16.mxu0 %v7180
      %7300 = vmatmul.mubr.bf16.gmra.mrb[0].mxu0 %v7051
      %v7301 = vpop.f32.mrb[0].mxu0
      %v7302 = vadd.f32 0.0, %v7301
      %v7303 = vpop.f32.mrb[0].mxu0
      %v7304 = vpop.f32.mrb[0].mxu0
      %v7305 = vadd.f32 0.0, %v7304
      %v7306 = vpop.f32.mrb[0].mxu0
      %7307 = vmatprep.mubr.bf16.mxu0 %v7183
      %7308 = vmatmul.mubr.bf16.gmra.mrb[0].mxu0 %v7053
      %v7309 = vpop.f32.mrb[0].mxu0
      %v7310 = vadd.f32 0.0, %v7309
      %v7311 = vpop.f32.mrb[0].mxu0
      %v7312 = vpop.f32.mrb[0].mxu0
      %v7313 = vadd.f32 0.0, %v7312
      %v7314 = vpop.f32.mrb[0].mxu0
      %7315 = vmatprep.mubr.bf16.mxu0 %v7186
      %7316 = vmatmul.mubr.bf16.gmra.mrb[0].mxu0 %v7055
      %v7317 = vpop.f32.mrb[0].mxu0
      %v7318 = vadd.f32 0.0, %v7317
      %v7319 = vpop.f32.mrb[0].mxu0
      %v7320 = vpop.f32.mrb[0].mxu0
      %v7321 = vadd.f32 0.0, %v7320
      %v7322 = vpop.f32.mrb[0].mxu0
      %7323 = vmatprep.mubr.bf16.mxu0 %v7189
      %7324 = vmatmul.mubr.bf16.gmra.mrb[0].mxu0 %v7057
      %v7325 = vpop.f32.mrb[0].mxu0
      %v7326 = vadd.f32 0.0, %v7325
      %v7327 = vpop.f32.mrb[0].mxu0
      %v7328 = vpop.f32.mrb[0].mxu0
      %v7329 = vadd.f32 0.0, %v7328
      %v7330 = vpop.f32.mrb[0].mxu0
      %7331 = vmatprep.mubr.bf16.mxu0 %v7192
      %7332 = vmatmul.mubr.bf16.gmra.mrb[0].mxu0 %v7059
      %v7333 = vpop.f32.mrb[0].mxu0
      %v7334 = vadd.f32 0.0, %v7333
      %v7335 = vpop.f32.mrb[0].mxu0
      %v7336 = vpop.f32.mrb[0].mxu0
      %v7337 = vadd.f32 0.0, %v7336
      %v7338 = vpop.f32.mrb[0].mxu0
      %7339 = vmatprep.mubr.bf16.mxu0 %v7195
      %7340 = vmatmul.mubr.bf16.gmra.mrb[0].mxu0 %v7061
      %v7341 = vpop.f32.mrb[0].mxu0
      %v7342 = vadd.f32 0.0, %v7341
      %v7343 = vpop.f32.mrb[0].mxu0
      %v7344 = vpop.f32.mrb[0].mxu0
      %v7345 = vadd.f32 0.0, %v7344
      %v7346 = vpop.f32.mrb[0].mxu0
      %7347 = vmatprep.mubr.bf16.mxu0 %v7198
      %7348 = vmatmul.mubr.bf16.gmra.mrb[0].mxu0 %v7063
      %v7349 = vpop.f32.mrb[0].mxu0
      %v7350 = vadd.f32 0.0, %v7349
      %v7351 = vpop.f32.mrb[0].mxu0
      %v7352 = vpop.f32.mrb[0].mxu0
      %v7353 = vadd.f32 0.0, %v7352
      %v7354 = vpop.f32.mrb[0].mxu0
      %7355 = vmatprep.mubr.bf16.mxu0 %v7201
      %7356 = vmatmul.mubr.bf16.gmra.mrb[0].mxu0 %v7065
      %v7357 = vpop.f32.mrb[0].mxu0
      %v7358 = vadd.f32 0.0, %v7357
      %v7359 = vpop.f32.mrb[0].mxu0
      %v7360 = vpop.f32.mrb[0].mxu0
      %v7361 = vadd.f32 0.0, %v7360
      %v7362 = vpop.f32.mrb[0].mxu0
      %7363 = vdwg.mxu0
      %v7364 = vadd.f32 %v6851, %v7238
      %v7365 = vadd.f32 %v6852, %v7241
      %v7366 = vadd.f32 %v6853, %v7246
      %v7367 = vadd.f32 %v6854, %v7249
      %v7368 = vadd.f32 %v6855, %v7254
      %v7369 = vadd.f32 %v6856, %v7257
      %v7370 = vadd.f32 %v6857, %v7262
      %v7371 = vadd.f32 %v6858, %v7265
      %v7372 = vadd.f32 %v6859, %v7270
      %v7373 = vadd.f32 %v6860, %v7273
      %v7374 = vadd.f32 %v6861, %v7278
      %v7375 = vadd.f32 %v6862, %v7281
      %v7376 = vadd.f32 %v6863, %v7286
      %v7377 = vadd.f32 %v6864, %v7289
      %v7378 = vadd.f32 %v6865, %v7294
      %v7379 = vadd.f32 %v6866, %v7297
      %v7380 = vadd.f32 %v6867, %v7302
      %v7381 = vadd.f32 %v6868, %v7305
      %v7382 = vadd.f32 %v6869, %v7310
      %v7383 = vadd.f32 %v6870, %v7313
      %v7384 = vadd.f32 %v6871, %v7318
      %v7385 = vadd.f32 %v6872, %v7321
      %v7386 = vadd.f32 %v6873, %v7326
      %v7387 = vadd.f32 %v6874, %v7329
      %v7388 = vadd.f32 %v6875, %v7334
      %v7389 = vadd.f32 %v6876, %v7337
      %v7390 = vadd.f32 %v6877, %v7342
      %v7391 = vadd.f32 %v6878, %v7345
      %v7392 = vadd.f32 %v6879, %v7350
      %v7393 = vadd.f32 %v6880, %v7353
      %v7394 = vadd.f32 %v6881, %v7358
      %v7395 = vadd.f32 %v6882, %v7361
      %v7396 = vld [vmem:[%s4045] sm:$0xff]
      %v7397 = vld [vmem:[%s4045 + $0x8] sm:$0xff]
      %v7398 = vld [vmem:[%s4045 + $0x10] sm:$0xff]
      %v7399 = vld [vmem:[%s4045 + $0x18] sm:$0xff]
      %v7400 = vld [vmem:[%s4045 + $0x20] sm:$0xff]
      %v7401 = vld [vmem:[%s4045 + $0x28] sm:$0xff]
      %v7402 = vld [vmem:[%s4045 + $0x30] sm:$0xff]
      %v7403 = vld [vmem:[%s4045 + $0x38] sm:$0xff]
      %v7404 = vld [vmem:[%s4045 + $0x40] sm:$0xff]
      %v7405 = vld [vmem:[%s4045 + $0x48] sm:$0xff]
      %v7406 = vld [vmem:[%s4045 + $0x50] sm:$0xff]
      %v7407 = vld [vmem:[%s4045 + $0x58] sm:$0xff]
      %v7408 = vld [vmem:[%s4045 + $0x60] sm:$0xff]
      %v7409 = vld [vmem:[%s4045 + $0x68] sm:$0xff]
      %v7410 = vld [vmem:[%s4045 + $0x70] sm:$0xff]
      %v7411 = vld [vmem:[%s4045 + $0x78] sm:$0xff]
      %v7412 = vld [vmem:[%s4045 + $0x80] sm:$0xff]
      %v7413 = vld [vmem:[%s4045 + $0x88] sm:$0xff]
      %v7414 = vld [vmem:[%s4045 + $0x90] sm:$0xff]
      %v7415 = vld [vmem:[%s4045 + $0x98] sm:$0xff]
      %v7416 = vld [vmem:[%s4045 + $0xa0] sm:$0xff]
      %v7417 = vld [vmem:[%s4045 + $0xa8] sm:$0xff]
      %v7418 = vld [vmem:[%s4045 + $0xb0] sm:$0xff]
      %v7419 = vld [vmem:[%s4045 + $0xb8] sm:$0xff]
      %v7420 = vld [vmem:[%s4045 + $0xc0] sm:$0xff]
      %v7421 = vld [vmem:[%s4045 + $0xc8] sm:$0xff]
      %v7422 = vld [vmem:[%s4045 + $0xd0] sm:$0xff]
      %v7423 = vld [vmem:[%s4045 + $0xd8] sm:$0xff]
      %v7424 = vld [vmem:[%s4045 + $0xe0] sm:$0xff]
      %v7425 = vld [vmem:[%s4045 + $0xe8] sm:$0xff]
      %v7426 = vld [vmem:[%s4045 + $0xf0] sm:$0xff]
      %v7427 = vld [vmem:[%s4045 + $0xf8] sm:$0xff]
      %v7428 = vld [vmem:[%s2534] sm:$0xf]
      %v7429 = vld [vmem:[%s2534 + $0x4] sm:$0xf]
      %v7430 = vld [vmem:[%s2534 + $0x8] sm:$0xf]
      %v7431 = vld [vmem:[%s2534 + $0xc] sm:$0xf]
      %v7432 = vld [vmem:[%s2534 + $0x10] sm:$0xf]
      %v7433 = vld [vmem:[%s2534 + $0x14] sm:$0xf]
      %v7434 = vld [vmem:[%s2534 + $0x18] sm:$0xf]
      %v7435 = vld [vmem:[%s2534 + $0x1c] sm:$0xf]
      %v7436 = vld [vmem:[%s2534 + $0x20] sm:$0xf]
      %v7437 = vld [vmem:[%s2534 + $0x24] sm:$0xf]
      %v7438 = vld [vmem:[%s2534 + $0x28] sm:$0xf]
      %v7439 = vld [vmem:[%s2534 + $0x2c] sm:$0xf]
      %v7440 = vld [vmem:[%s2534 + $0x30] sm:$0xf]
      %v7441 = vld [vmem:[%s2534 + $0x34] sm:$0xf]
      %v7442 = vld [vmem:[%s2534 + $0x38] sm:$0xf]
      %v7443 = vld [vmem:[%s2534 + $0x3c] sm:$0xf]
      %v7444 = vld [vmem:[%s2534 + $0x40] sm:$0xf]
      %v7445 = vld [vmem:[%s2534 + $0x44] sm:$0xf]
      %v7446 = vld [vmem:[%s2534 + $0x48] sm:$0xf]
      %v7447 = vld [vmem:[%s2534 + $0x4c] sm:$0xf]
      %v7448 = vld [vmem:[%s2534 + $0x50] sm:$0xf]
      %v7449 = vld [vmem:[%s2534 + $0x54] sm:$0xf]
      %v7450 = vld [vmem:[%s2534 + $0x58] sm:$0xf]
      %v7451 = vld [vmem:[%s2534 + $0x5c] sm:$0xf]
      %v7484 = vunpack.c.l.b16 %v7396
      %v7485 = vunpack.c.h.b16 %v7396
      %v7486 = vunpack.c.l.b16 %v7397
      %v7487 = vunpack.c.h.b16 %v7397
      %v7488 = vunpack.c.l.b16 %v7398
      %v7489 = vunpack.c.h.b16 %v7398
      %v7490 = vunpack.c.l.b16 %v7399
      %v7491 = vunpack.c.h.b16 %v7399
      %v7492 = vunpack.c.l.b16 %v7400
      %v7493 = vunpack.c.h.b16 %v7400
      %v7494 = vunpack.c.l.b16 %v7401
      %v7495 = vunpack.c.h.b16 %v7401
      %v7496 = vunpack.c.l.b16 %v7402
      %v7497 = vunpack.c.h.b16 %v7402
      %v7498 = vunpack.c.l.b16 %v7403
      %v7499 = vunpack.c.h.b16 %v7403
      %v7500 = vunpack.c.l.b16 %v7404
      %v7501 = vunpack.c.h.b16 %v7404
      %v7502 = vunpack.c.l.b16 %v7405
      %v7503 = vunpack.c.h.b16 %v7405
      %v7504 = vunpack.c.l.b16 %v7406
      %v7505 = vunpack.c.h.b16 %v7406
      %v7506 = vunpack.c.l.b16 %v7407
      %v7507 = vunpack.c.h.b16 %v7407
      %v7508 = vunpack.c.l.b16 %v7408
      %v7509 = vunpack.c.h.b16 %v7408
      %v7510 = vunpack.c.l.b16 %v7409
      %v7511 = vunpack.c.h.b16 %v7409
      %v7512 = vunpack.c.l.b16 %v7410
      %v7513 = vunpack.c.h.b16 %v7410
      %v7514 = vunpack.c.l.b16 %v7411
      %v7515 = vunpack.c.h.b16 %v7411
      %v7516 = vunpack.c.l.b16 %v7412
      %v7517 = vunpack.c.h.b16 %v7412
      %v7518 = vunpack.c.l.b16 %v7413
      %v7519 = vunpack.c.h.b16 %v7413
      %v7520 = vunpack.c.l.b16 %v7414
      %v7521 = vunpack.c.h.b16 %v7414
      %v7522 = vunpack.c.l.b16 %v7415
      %v7523 = vunpack.c.h.b16 %v7415
      %v7524 = vunpack.c.l.b16 %v7416
      %v7525 = vunpack.c.h.b16 %v7416
      %v7526 = vunpack.c.l.b16 %v7417
      %v7527 = vunpack.c.h.b16 %v7417
      %v7528 = vunpack.c.l.b16 %v7418
      %v7529 = vunpack.c.h.b16 %v7418
      %v7530 = vunpack.c.l.b16 %v7419
      %v7531 = vunpack.c.h.b16 %v7419
      %v7532 = vunpack.c.l.b16 %v7420
      %v7533 = vunpack.c.h.b16 %v7420
      %v7534 = vunpack.c.l.b16 %v7421
      %v7535 = vunpack.c.h.b16 %v7421
      %v7536 = vunpack.c.l.b16 %v7422
      %v7537 = vunpack.c.h.b16 %v7422
      %v7538 = vunpack.c.l.b16 %v7423
      %v7539 = vunpack.c.h.b16 %v7423
      %v7540 = vunpack.c.l.b16 %v7424
      %v7541 = vunpack.c.h.b16 %v7424
      %v7542 = vunpack.c.l.b16 %v7425
      %v7543 = vunpack.c.h.b16 %v7425
      %v7544 = vunpack.c.l.b16 %v7426
      %v7545 = vunpack.c.h.b16 %v7426
      %v7546 = vunpack.c.l.b16 %v7427
      %v7547 = vunpack.c.h.b16 %v7427
      %v7548 = vpack.c.b16 %v7486, %v7484
      %v7549 = vpack.c.b16 %v7487, %v7485
      %v7550 = vpack.c.b16 %v7490, %v7488
      %v7551 = vpack.c.b16 %v7491, %v7489
      %v7552 = vpack.c.b16 %v7494, %v7492
      %v7553 = vpack.c.b16 %v7495, %v7493
      %v7554 = vpack.c.b16 %v7498, %v7496
      %v7555 = vpack.c.b16 %v7499, %v7497
      %v7556 = vpack.c.b16 %v7502, %v7500
      %v7557 = vpack.c.b16 %v7503, %v7501
      %v7558 = vpack.c.b16 %v7506, %v7504
      %v7559 = vpack.c.b16 %v7507, %v7505
      %v7560 = vpack.c.b16 %v7510, %v7508
      %v7561 = vpack.c.b16 %v7511, %v7509
      %v7562 = vpack.c.b16 %v7514, %v7512
      %v7563 = vpack.c.b16 %v7515, %v7513
      %v7564 = vpack.c.b16 %v7518, %v7516
      %v7565 = vpack.c.b16 %v7519, %v7517
      %v7566 = vpack.c.b16 %v7522, %v7520
      %v7567 = vpack.c.b16 %v7523, %v7521
      %v7568 = vpack.c.b16 %v7526, %v7524
      %v7569 = vpack.c.b16 %v7527, %v7525
      %v7570 = vpack.c.b16 %v7530, %v7528
      %v7571 = vpack.c.b16 %v7531, %v7529
      %v7572 = vpack.c.b16 %v7534, %v7532
      %v7573 = vpack.c.b16 %v7535, %v7533
      %v7574 = vpack.c.b16 %v7538, %v7536
      %v7575 = vpack.c.b16 %v7539, %v7537
      %v7576 = vpack.c.b16 %v7542, %v7540
      %v7577 = vpack.c.b16 %v7543, %v7541
      %v7578 = vpack.c.b16 %v7546, %v7544
      %v7579 = vpack.c.b16 %v7547, %v7545
      %v7620 = vunpack.c.l.b16 %v7428
      %v7621 = vunpack.c.l.b16 %v7429
      %v7622 = vunpack.c.l.b16 %v7430
      %v7623 = vunpack.c.l.b16 %v7431
      %v7624 = vunpack.c.l.b16 %v7432
      %v7625 = vunpack.c.l.b16 %v7433
      %v7626 = vunpack.c.l.b16 %v7434
      %v7627 = vunpack.c.l.b16 %v7435
      %v7628 = vunpack.c.l.b16 %v7436
      %v7629 = vunpack.c.l.b16 %v7437
      %v7630 = vunpack.c.l.b16 %v7438
      %v7631 = vunpack.c.l.b16 %v7439
      %v7632 = vunpack.c.l.b16 %v7440
      %v7633 = vunpack.c.l.b16 %v7441
      %v7634 = vunpack.c.l.b16 %v7442
      %v7635 = vunpack.c.l.b16 %v7443
      %v7636 = vunpack.c.l.b16 %v7444
      %v7637 = vunpack.c.l.b16 %v7445
      %v7638 = vunpack.c.l.b16 %v7446
      %v7639 = vunpack.c.l.b16 %v7447
      %v7640 = vunpack.c.l.b16 %v7448
      %v7641 = vunpack.c.l.b16 %v7449
      %v7642 = vunpack.c.l.b16 %v7450
      %v7643 = vunpack.c.l.b16 %v7451
      %v7644 = vpack.c.b16 %v7621, %v7620
      %v7645 = vpack.c.b16 %v7623, %v7622
      %v7646 = vpack.c.b16 %v7625, %v7624
      %v7647 = vpack.c.b16 %v7627, %v7626
      %v7648 = vpack.c.b16 %v7629, %v7628
      %v7649 = vpack.c.b16 %v7631, %v7630
      %v7650 = vpack.c.b16 %v7633, %v7632
      %v7651 = vpack.c.b16 %v7635, %v7634
      %v7652 = vpack.c.b16 %v7637, %v7636
      %v7653 = vpack.c.b16 %v7639, %v7638
      %v7654 = vpack.c.b16 %v7641, %v7640
      %v7655 = vpack.c.b16 %v7643, %v7642
      %v7669 = vsel %vm837, %v7549, 0
      %v7672 = vsel %vm837, %v7551, 0
      %v7675 = vsel %vm837, %v7553, 0
      %v7678 = vsel %vm837, %v7555, 0
      %v7681 = vsel %vm837, %v7557, 0
      %v7684 = vsel %vm837, %v7559, 0
      %v7687 = vsel %vm837, %v7561, 0
      %v7690 = vsel %vm837, %v7563, 0
      %v7693 = vsel %vm837, %v7565, 0
      %v7696 = vsel %vm837, %v7567, 0
      %v7699 = vsel %vm837, %v7569, 0
      %v7702 = vsel %vm837, %v7571, 0
      %v7705 = vsel %vm837, %v7573, 0
      %v7708 = vsel %vm837, %v7575, 0
      %v7711 = vsel %vm837, %v7577, 0
      %v7714 = vsel %vm837, %v7579, 0
      %7716 = vmatprep.subr.bf16.mxu0 0
      %7717 = vmatpush1.bf16.msra.mxu0 %v7644
      %7718 = vmatprep.subr.bf16.mxu0 0
      %7719 = vmatpush1.bf16.msra.mxu0 %v7645
      %7720 = vmatprep.subr.bf16.mxu0 0
      %7721 = vmatpush1.bf16.msra.mxu0 %v7646
      %7722 = vmatprep.subr.bf16.mxu0 0
      %7723 = vmatpush1.bf16.msra.mxu0 %v7647
      %7724 = vmatprep.subr.bf16.mxu0 0
      %7725 = vmatpush1.bf16.msra.mxu0 %v7648
      %7726 = vmatprep.subr.bf16.mxu0 0
      %7727 = vmatpush1.bf16.msra.mxu0 %v7649
      %7728 = vmatprep.subr.bf16.mxu0 0
      %7729 = vmatpush1.bf16.msra.mxu0 %v7650
      %7730 = vmatprep.subr.bf16.mxu0 0
      %7731 = vmatpush1.bf16.msra.mxu0 %v7651
      %7732 = vmatprep.subr.bf16.mxu0 0
      %7733 = vmatpush1.bf16.msra.mxu0 %v7652
      %7734 = vmatprep.subr.bf16.mxu0 0
      %7735 = vmatpush1.bf16.msra.mxu0 %v7653
      %7736 = vmatprep.subr.bf16.mxu0 0
      %7737 = vmatpush1.bf16.msra.mxu0 %v7654
      %7738 = vmatprep.subr.bf16.mxu0 0
      %7739 = vmatpush1.bf16.msra.mxu0 %v7655
      %7740 = vmatprep.subr.bf16.mxu0 0
      %7741 = vmatpush1.bf16.msra.mxu0 0
      %7742 = vmatprep.subr.bf16.mxu0 0
      %7743 = vmatpush1.bf16.msra.mxu0 0
      %7744 = vmatprep.subr.bf16.mxu0 0
      %7745 = vmatpush1.bf16.msra.mxu0 0
      %7746 = vmatprep.subr.bf16.mxu0 0
      %7747 = vmatpush1.bf16.msra.mxu0 0
      %7748 = vmatprep.mubr.bf16.mxu0 %v7669
      %7749 = vmatmul.mubr.bf16.gmra.mrb[0].mxu0 %v7548
      %v7750 = vpop.f32.mrb[0].mxu0
      %v7751 = vadd.f32 0.0, %v7750
      %v7752 = vpop.f32.mrb[0].mxu0
      %v7753 = vpop.f32.mrb[0].mxu0
      %v7754 = vadd.f32 0.0, %v7753
      %v7755 = vpop.f32.mrb[0].mxu0
      %7756 = vmatprep.mubr.bf16.mxu0 %v7672
      %7757 = vmatmul.mubr.bf16.gmra.mrb[0].mxu0 %v7550
      %v7758 = vpop.f32.mrb[0].mxu0
      %v7759 = vadd.f32 0.0, %v7758
      %v7760 = vpop.f32.mrb[0].mxu0
      %v7761 = vpop.f32.mrb[0].mxu0
      %v7762 = vadd.f32 0.0, %v7761
      %v7763 = vpop.f32.mrb[0].mxu0
      %7764 = vmatprep.mubr.bf16.mxu0 %v7675
      %7765 = vmatmul.mubr.bf16.gmra.mrb[0].mxu0 %v7552
      %v7766 = vpop.f32.mrb[0].mxu0
      %v7767 = vadd.f32 0.0, %v7766
      %v7768 = vpop.f32.mrb[0].mxu0
      %v7769 = vpop.f32.mrb[0].mxu0
      %v7770 = vadd.f32 0.0, %v7769
      %v7771 = vpop.f32.mrb[0].mxu0
      %7772 = vmatprep.mubr.bf16.mxu0 %v7678
      %7773 = vmatmul.mubr.bf16.gmra.mrb[0].mxu0 %v7554
      %v7774 = vpop.f32.mrb[0].mxu0
      %v7775 = vadd.f32 0.0, %v7774
      %v7776 = vpop.f32.mrb[0].mxu0
      %v7777 = vpop.f32.mrb[0].mxu0
      %v7778 = vadd.f32 0.0, %v7777
      %v7779 = vpop.f32.mrb[0].mxu0
      %7780 = vmatprep.mubr.bf16.mxu0 %v7681
      %7781 = vmatmul.mubr.bf16.gmra.mrb[0].mxu0 %v7556
      %v7782 = vpop.f32.mrb[0].mxu0
      %v7783 = vadd.f32 0.0, %v7782
      %v7784 = vpop.f32.mrb[0].mxu0
      %v7785 = vpop.f32.mrb[0].mxu0
      %v7786 = vadd.f32 0.0, %v7785
      %v7787 = vpop.f32.mrb[0].mxu0
      %7788 = vmatprep.mubr.bf16.mxu0 %v7684
      %7789 = vmatmul.mubr.bf16.gmra.mrb[0].mxu0 %v7558
      %v7790 = vpop.f32.mrb[0].mxu0
      %v7791 = vadd.f32 0.0, %v7790
      %v7792 = vpop.f32.mrb[0].mxu0
      %v7793 = vpop.f32.mrb[0].mxu0
      %v7794 = vadd.f32 0.0, %v7793
      %v7795 = vpop.f32.mrb[0].mxu0
      %7796 = vmatprep.mubr.bf16.mxu0 %v7687
      %7797 = vmatmul.mubr.bf16.gmra.mrb[0].mxu0 %v7560
      %v7798 = vpop.f32.mrb[0].mxu0
      %v7799 = vadd.f32 0.0, %v7798
      %v7800 = vpop.f32.mrb[0].mxu0
      %v7801 = vpop.f32.mrb[0].mxu0
      %v7802 = vadd.f32 0.0, %v7801
      %v7803 = vpop.f32.mrb[0].mxu0
      %7804 = vmatprep.mubr.bf16.mxu0 %v7690
      %7805 = vmatmul.mubr.bf16.gmra.mrb[0].mxu0 %v7562
      %v7806 = vpop.f32.mrb[0].mxu0
      %v7807 = vadd.f32 0.0, %v7806
      %v7808 = vpop.f32.mrb[0].mxu0
      %v7809 = vpop.f32.mrb[0].mxu0
      %v7810 = vadd.f32 0.0, %v7809
      %v7811 = vpop.f32.mrb[0].mxu0
      %7812 = vmatprep.mubr.bf16.mxu0 %v7693
      %7813 = vmatmul.mubr.bf16.gmra.mrb[0].mxu0 %v7564
      %v7814 = vpop.f32.mrb[0].mxu0
      %v7815 = vadd.f32 0.0, %v7814
      %v7816 = vpop.f32.mrb[0].mxu0
      %v7817 = vpop.f32.mrb[0].mxu0
      %v7818 = vadd.f32 0.0, %v7817
      %v7819 = vpop.f32.mrb[0].mxu0
      %7820 = vmatprep.mubr.bf16.mxu0 %v7696
      %7821 = vmatmul.mubr.bf16.gmra.mrb[0].mxu0 %v7566
      %v7822 = vpop.f32.mrb[0].mxu0
      %v7823 = vadd.f32 0.0, %v7822
      %v7824 = vpop.f32.mrb[0].mxu0
      %v7825 = vpop.f32.mrb[0].mxu0
      %v7826 = vadd.f32 0.0, %v7825
      %v7827 = vpop.f32.mrb[0].mxu0
      %7828 = vmatprep.mubr.bf16.mxu0 %v7699
      %7829 = vmatmul.mubr.bf16.gmra.mrb[0].mxu0 %v7568
      %v7830 = vpop.f32.mrb[0].mxu0
      %v7831 = vadd.f32 0.0, %v7830
      %v7832 = vpop.f32.mrb[0].mxu0
      %v7833 = vpop.f32.mrb[0].mxu0
      %v7834 = vadd.f32 0.0, %v7833
      %v7835 = vpop.f32.mrb[0].mxu0
      %7836 = vmatprep.mubr.bf16.mxu0 %v7702
      %7837 = vmatmul.mubr.bf16.gmra.mrb[0].mxu0 %v7570
      %v7838 = vpop.f32.mrb[0].mxu0
      %v7839 = vadd.f32 0.0, %v7838
      %v7840 = vpop.f32.mrb[0].mxu0
      %v7841 = vpop.f32.mrb[0].mxu0
      %v7842 = vadd.f32 0.0, %v7841
      %v7843 = vpop.f32.mrb[0].mxu0
      %7844 = vmatprep.mubr.bf16.mxu0 %v7705
      %7845 = vmatmul.mubr.bf16.gmra.mrb[0].mxu0 %v7572
      %v7846 = vpop.f32.mrb[0].mxu0
      %v7847 = vadd.f32 0.0, %v7846
      %v7848 = vpop.f32.mrb[0].mxu0
      %v7849 = vpop.f32.mrb[0].mxu0
      %v7850 = vadd.f32 0.0, %v7849
      %v7851 = vpop.f32.mrb[0].mxu0
      %7852 = vmatprep.mubr.bf16.mxu0 %v7708
      %7853 = vmatmul.mubr.bf16.gmra.mrb[0].mxu0 %v7574
      %v7854 = vpop.f32.mrb[0].mxu0
      %v7855 = vadd.f32 0.0, %v7854
      %v7856 = vpop.f32.mrb[0].mxu0
      %v7857 = vpop.f32.mrb[0].mxu0
      %v7858 = vadd.f32 0.0, %v7857
      %v7859 = vpop.f32.mrb[0].mxu0
      %7860 = vmatprep.mubr.bf16.mxu0 %v7711
      %7861 = vmatmul.mubr.bf16.gmra.mrb[0].mxu0 %v7576
      %v7862 = vpop.f32.mrb[0].mxu0
      %v7863 = vadd.f32 0.0, %v7862
      %v7864 = vpop.f32.mrb[0].mxu0
      %v7865 = vpop.f32.mrb[0].mxu0
      %v7866 = vadd.f32 0.0, %v7865
      %v7867 = vpop.f32.mrb[0].mxu0
      %7868 = vmatprep.mubr.bf16.mxu0 %v7714
      %7869 = vmatmul.mubr.bf16.gmra.mrb[0].mxu0 %v7578
      %v7870 = vpop.f32.mrb[0].mxu0
      %v7871 = vadd.f32 0.0, %v7870
      %v7872 = vpop.f32.mrb[0].mxu0
      %v7873 = vpop.f32.mrb[0].mxu0
      %v7874 = vadd.f32 0.0, %v7873
      %v7875 = vpop.f32.mrb[0].mxu0
      %7876 = vdwg.mxu0
      %v7877 = vadd.f32 %v7364, %v7751
      %v7878 = vadd.f32 %v7365, %v7754
      %v7879 = vadd.f32 %v7366, %v7759
      %v7880 = vadd.f32 %v7367, %v7762
      %v7881 = vadd.f32 %v7368, %v7767
      %v7882 = vadd.f32 %v7369, %v7770
      %v7883 = vadd.f32 %v7370, %v7775
      %v7884 = vadd.f32 %v7371, %v7778
      %v7885 = vadd.f32 %v7372, %v7783
      %v7886 = vadd.f32 %v7373, %v7786
      %v7887 = vadd.f32 %v7374, %v7791
      %v7888 = vadd.f32 %v7375, %v7794
      %v7889 = vadd.f32 %v7376, %v7799
      %v7890 = vadd.f32 %v7377, %v7802
      %v7891 = vadd.f32 %v7378, %v7807
      %v7892 = vadd.f32 %v7379, %v7810
      %v7893 = vadd.f32 %v7380, %v7815
      %v7894 = vadd.f32 %v7381, %v7818
      %v7895 = vadd.f32 %v7382, %v7823
      %v7896 = vadd.f32 %v7383, %v7826
      %v7897 = vadd.f32 %v7384, %v7831
      %v7898 = vadd.f32 %v7385, %v7834
      %v7899 = vadd.f32 %v7386, %v7839
      %v7900 = vadd.f32 %v7387, %v7842
      %v7901 = vadd.f32 %v7388, %v7847
      %v7902 = vadd.f32 %v7389, %v7850
      %v7903 = vadd.f32 %v7390, %v7855
      %v7904 = vadd.f32 %v7391, %v7858
      %v7905 = vadd.f32 %v7392, %v7863
      %v7906 = vadd.f32 %v7393, %v7866
      %v7907 = vadd.f32 %v7394, %v7871
      %v7908 = vadd.f32 %v7395, %v7874
      %v7909 = vld [vmem:[%s4560] sm:$0xff]
      %v7910 = vld [vmem:[%s4560 + $0x8] sm:$0xff]
      %v7911 = vld [vmem:[%s4560 + $0x10] sm:$0xff]
      %v7912 = vld [vmem:[%s4560 + $0x18] sm:$0xff]
      %v7913 = vld [vmem:[%s4560 + $0x20] sm:$0xff]
      %v7914 = vld [vmem:[%s4560 + $0x28] sm:$0xff]
      %v7915 = vld [vmem:[%s4560 + $0x30] sm:$0xff]
      %v7916 = vld [vmem:[%s4560 + $0x38] sm:$0xff]
      %v7917 = vld [vmem:[%s4560 + $0x40] sm:$0xff]
      %v7918 = vld [vmem:[%s4560 + $0x48] sm:$0xff]
      %v7919 = vld [vmem:[%s4560 + $0x50] sm:$0xff]
      %v7920 = vld [vmem:[%s4560 + $0x58] sm:$0xff]
      %v7921 = vld [vmem:[%s4560 + $0x60] sm:$0xff]
      %v7922 = vld [vmem:[%s4560 + $0x68] sm:$0xff]
      %v7923 = vld [vmem:[%s4560 + $0x70] sm:$0xff]
      %v7924 = vld [vmem:[%s4560 + $0x78] sm:$0xff]
      %v7925 = vld [vmem:[%s4560 + $0x80] sm:$0xff]
      %v7926 = vld [vmem:[%s4560 + $0x88] sm:$0xff]
      %v7927 = vld [vmem:[%s4560 + $0x90] sm:$0xff]
      %v7928 = vld [vmem:[%s4560 + $0x98] sm:$0xff]
      %v7929 = vld [vmem:[%s4560 + $0xa0] sm:$0xff]
      %v7930 = vld [vmem:[%s4560 + $0xa8] sm:$0xff]
      %v7931 = vld [vmem:[%s4560 + $0xb0] sm:$0xff]
      %v7932 = vld [vmem:[%s4560 + $0xb8] sm:$0xff]
      %v7933 = vld [vmem:[%s4560 + $0xc0] sm:$0xff]
      %v7934 = vld [vmem:[%s4560 + $0xc8] sm:$0xff]
      %v7935 = vld [vmem:[%s4560 + $0xd0] sm:$0xff]
      %v7936 = vld [vmem:[%s4560 + $0xd8] sm:$0xff]
      %v7937 = vld [vmem:[%s4560 + $0xe0] sm:$0xff]
      %v7938 = vld [vmem:[%s4560 + $0xe8] sm:$0xff]
      %v7939 = vld [vmem:[%s4560 + $0xf0] sm:$0xff]
      %v7940 = vld [vmem:[%s4560 + $0xf8] sm:$0xff]
      %v7941 = vld [vmem:[%s3049] sm:$0xf]
      %v7942 = vld [vmem:[%s3049 + $0x4] sm:$0xf]
      %v7943 = vld [vmem:[%s3049 + $0x8] sm:$0xf]
      %v7944 = vld [vmem:[%s3049 + $0xc] sm:$0xf]
      %v7945 = vld [vmem:[%s3049 + $0x10] sm:$0xf]
      %v7946 = vld [vmem:[%s3049 + $0x14] sm:$0xf]
      %v7947 = vld [vmem:[%s3049 + $0x18] sm:$0xf]
      %v7948 = vld [vmem:[%s3049 + $0x1c] sm:$0xf]
      %v7949 = vld [vmem:[%s3049 + $0x20] sm:$0xf]
      %v7950 = vld [vmem:[%s3049 + $0x24] sm:$0xf]
      %v7951 = vld [vmem:[%s3049 + $0x28] sm:$0xf]
      %v7952 = vld [vmem:[%s3049 + $0x2c] sm:$0xf]
      %v7953 = vld [vmem:[%s3049 + $0x30] sm:$0xf]
      %v7954 = vld [vmem:[%s3049 + $0x34] sm:$0xf]
      %v7955 = vld [vmem:[%s3049 + $0x38] sm:$0xf]
      %v7956 = vld [vmem:[%s3049 + $0x3c] sm:$0xf]
      %v7957 = vld [vmem:[%s3049 + $0x40] sm:$0xf]
      %v7958 = vld [vmem:[%s3049 + $0x44] sm:$0xf]
      %v7959 = vld [vmem:[%s3049 + $0x48] sm:$0xf]
      %v7960 = vld [vmem:[%s3049 + $0x4c] sm:$0xf]
      %v7961 = vld [vmem:[%s3049 + $0x50] sm:$0xf]
      %v7962 = vld [vmem:[%s3049 + $0x54] sm:$0xf]
      %v7963 = vld [vmem:[%s3049 + $0x58] sm:$0xf]
      %v7964 = vld [vmem:[%s3049 + $0x5c] sm:$0xf]
      %v7997 = vunpack.c.l.b16 %v7909
      %v7998 = vunpack.c.h.b16 %v7909
      %v7999 = vunpack.c.l.b16 %v7910
      %v8000 = vunpack.c.h.b16 %v7910
      %v8001 = vunpack.c.l.b16 %v7911
      %v8002 = vunpack.c.h.b16 %v7911
      %v8003 = vunpack.c.l.b16 %v7912
      %v8004 = vunpack.c.h.b16 %v7912
      %v8005 = vunpack.c.l.b16 %v7913
      %v8006 = vunpack.c.h.b16 %v7913
      %v8007 = vunpack.c.l.b16 %v7914
      %v8008 = vunpack.c.h.b16 %v7914
      %v8009 = vunpack.c.l.b16 %v7915
      %v8010 = vunpack.c.h.b16 %v7915
      %v8011 = vunpack.c.l.b16 %v7916
      %v8012 = vunpack.c.h.b16 %v7916
      %v8013 = vunpack.c.l.b16 %v7917
      %v8014 = vunpack.c.h.b16 %v7917
      %v8015 = vunpack.c.l.b16 %v7918
      %v8016 = vunpack.c.h.b16 %v7918
      %v8017 = vunpack.c.l.b16 %v7919
      %v8018 = vunpack.c.h.b16 %v7919
      %v8019 = vunpack.c.l.b16 %v7920
      %v8020 = vunpack.c.h.b16 %v7920
      %v8021 = vunpack.c.l.b16 %v7921
      %v8022 = vunpack.c.h.b16 %v7921
      %v8023 = vunpack.c.l.b16 %v7922
      %v8024 = vunpack.c.h.b16 %v7922
      %v8025 = vunpack.c.l.b16 %v7923
      %v8026 = vunpack.c.h.b16 %v7923
      %v8027 = vunpack.c.l.b16 %v7924
      %v8028 = vunpack.c.h.b16 %v7924
      %v8029 = vunpack.c.l.b16 %v7925
      %v8030 = vunpack.c.h.b16 %v7925
      %v8031 = vunpack.c.l.b16 %v7926
      %v8032 = vunpack.c.h.b16 %v7926
      %v8033 = vunpack.c.l.b16 %v7927
      %v8034 = vunpack.c.h.b16 %v7927
      %v8035 = vunpack.c.l.b16 %v7928
      %v8036 = vunpack.c.h.b16 %v7928
      %v8037 = vunpack.c.l.b16 %v7929
      %v8038 = vunpack.c.h.b16 %v7929
      %v8039 = vunpack.c.l.b16 %v7930
      %v8040 = vunpack.c.h.b16 %v7930
      %v8041 = vunpack.c.l.b16 %v7931
      %v8042 = vunpack.c.h.b16 %v7931
      %v8043 = vunpack.c.l.b16 %v7932
      %v8044 = vunpack.c.h.b16 %v7932
      %v8045 = vunpack.c.l.b16 %v7933
      %v8046 = vunpack.c.h.b16 %v7933
      %v8047 = vunpack.c.l.b16 %v7934
      %v8048 = vunpack.c.h.b16 %v7934
      %v8049 = vunpack.c.l.b16 %v7935
      %v8050 = vunpack.c.h.b16 %v7935
      %v8051 = vunpack.c.l.b16 %v7936
      %v8052 = vunpack.c.h.b16 %v7936
      %v8053 = vunpack.c.l.b16 %v7937
      %v8054 = vunpack.c.h.b16 %v7937
      %v8055 = vunpack.c.l.b16 %v7938
      %v8056 = vunpack.c.h.b16 %v7938
      %v8057 = vunpack.c.l.b16 %v7939
      %v8058 = vunpack.c.h.b16 %v7939
      %v8059 = vunpack.c.l.b16 %v7940
      %v8060 = vunpack.c.h.b16 %v7940
      %v8061 = vpack.c.b16 %v7999, %v7997
      %v8062 = vpack.c.b16 %v8000, %v7998
      %v8063 = vpack.c.b16 %v8003, %v8001
      %v8064 = vpack.c.b16 %v8004, %v8002
      %v8065 = vpack.c.b16 %v8007, %v8005
      %v8066 = vpack.c.b16 %v8008, %v8006
      %v8067 = vpack.c.b16 %v8011, %v8009
      %v8068 = vpack.c.b16 %v8012, %v8010
      %v8069 = vpack.c.b16 %v8015, %v8013
      %v8070 = vpack.c.b16 %v8016, %v8014
      %v8071 = vpack.c.b16 %v8019, %v8017
      %v8072 = vpack.c.b16 %v8020, %v8018
      %v8073 = vpack.c.b16 %v8023, %v8021
      %v8074 = vpack.c.b16 %v8024, %v8022
      %v8075 = vpack.c.b16 %v8027, %v8025
      %v8076 = vpack.c.b16 %v8028, %v8026
      %v8077 = vpack.c.b16 %v8031, %v8029
      %v8078 = vpack.c.b16 %v8032, %v8030
      %v8079 = vpack.c.b16 %v8035, %v8033
      %v8080 = vpack.c.b16 %v8036, %v8034
      %v8081 = vpack.c.b16 %v8039, %v8037
      %v8082 = vpack.c.b16 %v8040, %v8038
      %v8083 = vpack.c.b16 %v8043, %v8041
      %v8084 = vpack.c.b16 %v8044, %v8042
      %v8085 = vpack.c.b16 %v8047, %v8045
      %v8086 = vpack.c.b16 %v8048, %v8046
      %v8087 = vpack.c.b16 %v8051, %v8049
      %v8088 = vpack.c.b16 %v8052, %v8050
      %v8089 = vpack.c.b16 %v8055, %v8053
      %v8090 = vpack.c.b16 %v8056, %v8054
      %v8091 = vpack.c.b16 %v8059, %v8057
      %v8092 = vpack.c.b16 %v8060, %v8058
      %v8133 = vunpack.c.l.b16 %v7941
      %v8134 = vunpack.c.l.b16 %v7942
      %v8135 = vunpack.c.l.b16 %v7943
      %v8136 = vunpack.c.l.b16 %v7944
      %v8137 = vunpack.c.l.b16 %v7945
      %v8138 = vunpack.c.l.b16 %v7946
      %v8139 = vunpack.c.l.b16 %v7947
      %v8140 = vunpack.c.l.b16 %v7948
      %v8141 = vunpack.c.l.b16 %v7949
      %v8142 = vunpack.c.l.b16 %v7950
      %v8143 = vunpack.c.l.b16 %v7951
      %v8144 = vunpack.c.l.b16 %v7952
      %v8145 = vunpack.c.l.b16 %v7953
      %v8146 = vunpack.c.l.b16 %v7954
      %v8147 = vunpack.c.l.b16 %v7955
      %v8148 = vunpack.c.l.b16 %v7956
      %v8149 = vunpack.c.l.b16 %v7957
      %v8150 = vunpack.c.l.b16 %v7958
      %v8151 = vunpack.c.l.b16 %v7959
      %v8152 = vunpack.c.l.b16 %v7960
      %v8153 = vunpack.c.l.b16 %v7961
      %v8154 = vunpack.c.l.b16 %v7962
      %v8155 = vunpack.c.l.b16 %v7963
      %v8156 = vunpack.c.l.b16 %v7964
      %v8157 = vpack.c.b16 %v8134, %v8133
      %v8158 = vpack.c.b16 %v8136, %v8135
      %v8159 = vpack.c.b16 %v8138, %v8137
      %v8160 = vpack.c.b16 %v8140, %v8139
      %v8161 = vpack.c.b16 %v8142, %v8141
      %v8162 = vpack.c.b16 %v8144, %v8143
      %v8163 = vpack.c.b16 %v8146, %v8145
      %v8164 = vpack.c.b16 %v8148, %v8147
      %v8165 = vpack.c.b16 %v8150, %v8149
      %v8166 = vpack.c.b16 %v8152, %v8151
      %v8167 = vpack.c.b16 %v8154, %v8153
      %v8168 = vpack.c.b16 %v8156, %v8155
      %v8182 = vsel %vm837, %v8062, 0
      %v8185 = vsel %vm837, %v8064, 0
      %v8188 = vsel %vm837, %v8066, 0
      %v8191 = vsel %vm837, %v8068, 0
      %v8194 = vsel %vm837, %v8070, 0
      %v8197 = vsel %vm837, %v8072, 0
      %v8200 = vsel %vm837, %v8074, 0
      %v8203 = vsel %vm837, %v8076, 0
      %v8206 = vsel %vm837, %v8078, 0
      %v8209 = vsel %vm837, %v8080, 0
      %v8212 = vsel %vm837, %v8082, 0
      %v8215 = vsel %vm837, %v8084, 0
      %v8218 = vsel %vm837, %v8086, 0
      %v8221 = vsel %vm837, %v8088, 0
      %v8224 = vsel %vm837, %v8090, 0
      %v8227 = vsel %vm837, %v8092, 0
      %8229 = vmatprep.subr.bf16.mxu0 0
      %8230 = vmatpush1.bf16.msra.mxu0 %v8157
      %8231 = vmatprep.subr.bf16.mxu0 0
      %8232 = vmatpush1.bf16.msra.mxu0 %v8158
      %8233 = vmatprep.subr.bf16.mxu0 0
      %8234 = vmatpush1.bf16.msra.mxu0 %v8159
      %8235 = vmatprep.subr.bf16.mxu0 0
      %8236 = vmatpush1.bf16.msra.mxu0 %v8160
      %8237 = vmatprep.subr.bf16.mxu0 0
      %8238 = vmatpush1.bf16.msra.mxu0 %v8161
      %8239 = vmatprep.subr.bf16.mxu0 0
      %8240 = vmatpush1.bf16.msra.mxu0 %v8162
      %8241 = vmatprep.subr.bf16.mxu0 0
      %8242 = vmatpush1.bf16.msra.mxu0 %v8163
      %8243 = vmatprep.subr.bf16.mxu0 0
      %8244 = vmatpush1.bf16.msra.mxu0 %v8164
      %8245 = vmatprep.subr.bf16.mxu0 0
      %8246 = vmatpush1.bf16.msra.mxu0 %v8165
      %8247 = vmatprep.subr.bf16.mxu0 0
      %8248 = vmatpush1.bf16.msra.mxu0 %v8166
      %8249 = vmatprep.subr.bf16.mxu0 0
      %8250 = vmatpush1.bf16.msra.mxu0 %v8167
      %8251 = vmatprep.subr.bf16.mxu0 0
      %8252 = vmatpush1.bf16.msra.mxu0 %v8168
      %8253 = vmatprep.subr.bf16.mxu0 0
      %8254 = vmatpush1.bf16.msra.mxu0 0
      %8255 = vmatprep.subr.bf16.mxu0 0
      %8256 = vmatpush1.bf16.msra.mxu0 0
      %8257 = vmatprep.subr.bf16.mxu0 0
      %8258 = vmatpush1.bf16.msra.mxu0 0
      %8259 = vmatprep.subr.bf16.mxu0 0
      %8260 = vmatpush1.bf16.msra.mxu0 0
      %8261 = vmatprep.mubr.bf16.mxu0 %v8182
      %8262 = vmatmul.mubr.bf16.gmra.mrb[0].mxu0 %v8061
      %v8263 = vpop.f32.mrb[0].mxu0
      %v8264 = vadd.f32 0.0, %v8263
      %v8265 = vpop.f32.mrb[0].mxu0
      %v8266 = vpop.f32.mrb[0].mxu0
      %v8267 = vadd.f32 0.0, %v8266
      %v8268 = vpop.f32.mrb[0].mxu0
      %8269 = vmatprep.mubr.bf16.mxu0 %v8185
      %8270 = vmatmul.mubr.bf16.gmra.mrb[0].mxu0 %v8063
      %v8271 = vpop.f32.mrb[0].mxu0
      %v8272 = vadd.f32 0.0, %v8271
      %v8273 = vpop.f32.mrb[0].mxu0
      %v8274 = vpop.f32.mrb[0].mxu0
      %v8275 = vadd.f32 0.0, %v8274
      %v8276 = vpop.f32.mrb[0].mxu0
      %8277 = vmatprep.mubr.bf16.mxu0 %v8188
      %8278 = vmatmul.mubr.bf16.gmra.mrb[0].mxu0 %v8065
      %v8279 = vpop.f32.mrb[0].mxu0
      %v8280 = vadd.f32 0.0, %v8279
      %v8281 = vpop.f32.mrb[0].mxu0
      %v8282 = vpop.f32.mrb[0].mxu0
      %v8283 = vadd.f32 0.0, %v8282
      %v8284 = vpop.f32.mrb[0].mxu0
      %8285 = vmatprep.mubr.bf16.mxu0 %v8191
      %8286 = vmatmul.mubr.bf16.gmra.mrb[0].mxu0 %v8067
      %v8287 = vpop.f32.mrb[0].mxu0
      %v8288 = vadd.f32 0.0, %v8287
      %v8289 = vpop.f32.mrb[0].mxu0
      %v8290 = vpop.f32.mrb[0].mxu0
      %v8291 = vadd.f32 0.0, %v8290
      %v8292 = vpop.f32.mrb[0].mxu0
      %8293 = vmatprep.mubr.bf16.mxu0 %v8194
      %8294 = vmatmul.mubr.bf16.gmra.mrb[0].mxu0 %v8069
      %v8295 = vpop.f32.mrb[0].mxu0
      %v8296 = vadd.f32 0.0, %v8295
      %v8297 = vpop.f32.mrb[0].mxu0
      %v8298 = vpop.f32.mrb[0].mxu0
      %v8299 = vadd.f32 0.0, %v8298
      %v8300 = vpop.f32.mrb[0].mxu0
      %8301 = vmatprep.mubr.bf16.mxu0 %v8197
      %8302 = vmatmul.mubr.bf16.gmra.mrb[0].mxu0 %v8071
      %v8303 = vpop.f32.mrb[0].mxu0
      %v8304 = vadd.f32 0.0, %v8303
      %v8305 = vpop.f32.mrb[0].mxu0
      %v8306 = vpop.f32.mrb[0].mxu0
      %v8307 = vadd.f32 0.0, %v8306
      %v8308 = vpop.f32.mrb[0].mxu0
      %8309 = vmatprep.mubr.bf16.mxu0 %v8200
      %8310 = vmatmul.mubr.bf16.gmra.mrb[0].mxu0 %v8073
      %v8311 = vpop.f32.mrb[0].mxu0
      %v8312 = vadd.f32 0.0, %v8311
      %v8313 = vpop.f32.mrb[0].mxu0
      %v8314 = vpop.f32.mrb[0].mxu0
      %v8315 = vadd.f32 0.0, %v8314
      %v8316 = vpop.f32.mrb[0].mxu0
      %8317 = vmatprep.mubr.bf16.mxu0 %v8203
      %8318 = vmatmul.mubr.bf16.gmra.mrb[0].mxu0 %v8075
      %v8319 = vpop.f32.mrb[0].mxu0
      %v8320 = vadd.f32 0.0, %v8319
      %v8321 = vpop.f32.mrb[0].mxu0
      %v8322 = vpop.f32.mrb[0].mxu0
      %v8323 = vadd.f32 0.0, %v8322
      %v8324 = vpop.f32.mrb[0].mxu0
      %8325 = vmatprep.mubr.bf16.mxu0 %v8206
      %8326 = vmatmul.mubr.bf16.gmra.mrb[0].mxu0 %v8077
      %v8327 = vpop.f32.mrb[0].mxu0
      %v8328 = vadd.f32 0.0, %v8327
      %v8329 = vpop.f32.mrb[0].mxu0
      %v8330 = vpop.f32.mrb[0].mxu0
      %v8331 = vadd.f32 0.0, %v8330
      %v8332 = vpop.f32.mrb[0].mxu0
      %8333 = vmatprep.mubr.bf16.mxu0 %v8209
      %8334 = vmatmul.mubr.bf16.gmra.mrb[0].mxu0 %v8079
      %v8335 = vpop.f32.mrb[0].mxu0
      %v8336 = vadd.f32 0.0, %v8335
      %v8337 = vpop.f32.mrb[0].mxu0
      %v8338 = vpop.f32.mrb[0].mxu0
      %v8339 = vadd.f32 0.0, %v8338
      %v8340 = vpop.f32.mrb[0].mxu0
      %8341 = vmatprep.mubr.bf16.mxu0 %v8212
      %8342 = vmatmul.mubr.bf16.gmra.mrb[0].mxu0 %v8081
      %v8343 = vpop.f32.mrb[0].mxu0
      %v8344 = vadd.f32 0.0, %v8343
      %v8345 = vpop.f32.mrb[0].mxu0
      %v8346 = vpop.f32.mrb[0].mxu0
      %v8347 = vadd.f32 0.0, %v8346
      %v8348 = vpop.f32.mrb[0].mxu0
      %8349 = vmatprep.mubr.bf16.mxu0 %v8215
      %8350 = vmatmul.mubr.bf16.gmra.mrb[0].mxu0 %v8083
      %v8351 = vpop.f32.mrb[0].mxu0
      %v8352 = vadd.f32 0.0, %v8351
      %v8353 = vpop.f32.mrb[0].mxu0
      %v8354 = vpop.f32.mrb[0].mxu0
      %v8355 = vadd.f32 0.0, %v8354
      %v8356 = vpop.f32.mrb[0].mxu0
      %8357 = vmatprep.mubr.bf16.mxu0 %v8218
      %8358 = vmatmul.mubr.bf16.gmra.mrb[0].mxu0 %v8085
      %v8359 = vpop.f32.mrb[0].mxu0
      %v8360 = vadd.f32 0.0, %v8359
      %v8361 = vpop.f32.mrb[0].mxu0
      %v8362 = vpop.f32.mrb[0].mxu0
      %v8363 = vadd.f32 0.0, %v8362
      %v8364 = vpop.f32.mrb[0].mxu0
      %8365 = vmatprep.mubr.bf16.mxu0 %v8221
      %8366 = vmatmul.mubr.bf16.gmra.mrb[0].mxu0 %v8087
      %v8367 = vpop.f32.mrb[0].mxu0
      %v8368 = vadd.f32 0.0, %v8367
      %v8369 = vpop.f32.mrb[0].mxu0
      %v8370 = vpop.f32.mrb[0].mxu0
      %v8371 = vadd.f32 0.0, %v8370
      %v8372 = vpop.f32.mrb[0].mxu0
      %8373 = vmatprep.mubr.bf16.mxu0 %v8224
      %8374 = vmatmul.mubr.bf16.gmra.mrb[0].mxu0 %v8089
      %v8375 = vpop.f32.mrb[0].mxu0
      %v8376 = vadd.f32 0.0, %v8375
      %v8377 = vpop.f32.mrb[0].mxu0
      %v8378 = vpop.f32.mrb[0].mxu0
      %v8379 = vadd.f32 0.0, %v8378
      %v8380 = vpop.f32.mrb[0].mxu0
      %8381 = vmatprep.mubr.bf16.mxu0 %v8227
      %8382 = vmatmul.mubr.bf16.gmra.mrb[0].mxu0 %v8091
      %v8383 = vpop.f32.mrb[0].mxu0
      %v8384 = vadd.f32 0.0, %v8383
      %v8385 = vpop.f32.mrb[0].mxu0
      %v8386 = vpop.f32.mrb[0].mxu0
      %v8387 = vadd.f32 0.0, %v8386
      %v8388 = vpop.f32.mrb[0].mxu0
      %8389 = vdwg.mxu0
      %v8390 = vadd.f32 %v7877, %v8264
      %v8391 = vadd.f32 %v7878, %v8267
      %v8392 = vadd.f32 %v7879, %v8272
      %v8393 = vadd.f32 %v7880, %v8275
      %v8394 = vadd.f32 %v7881, %v8280
      %v8395 = vadd.f32 %v7882, %v8283
      %v8396 = vadd.f32 %v7883, %v8288
      %v8397 = vadd.f32 %v7884, %v8291
      %v8398 = vadd.f32 %v7885, %v8296
      %v8399 = vadd.f32 %v7886, %v8299
      %v8400 = vadd.f32 %v7887, %v8304
      %v8401 = vadd.f32 %v7888, %v8307
      %v8402 = vadd.f32 %v7889, %v8312
      %v8403 = vadd.f32 %v7890, %v8315
      %v8404 = vadd.f32 %v7891, %v8320
      %v8405 = vadd.f32 %v7892, %v8323
      %v8406 = vadd.f32 %v7893, %v8328
      %v8407 = vadd.f32 %v7894, %v8331
      %v8408 = vadd.f32 %v7895, %v8336
      %v8409 = vadd.f32 %v7896, %v8339
      %v8410 = vadd.f32 %v7897, %v8344
      %v8411 = vadd.f32 %v7898, %v8347
      %v8412 = vadd.f32 %v7899, %v8352
      %v8413 = vadd.f32 %v7900, %v8355
      %v8414 = vadd.f32 %v7901, %v8360
      %v8415 = vadd.f32 %v7902, %v8363
      %v8416 = vadd.f32 %v7903, %v8368
      %v8417 = vadd.f32 %v7904, %v8371
      %v8418 = vadd.f32 %v7905, %v8376
      %v8419 = vadd.f32 %v7906, %v8379
      %v8420 = vadd.f32 %v7907, %v8384
      %v8421 = vadd.f32 %v7908, %v8387
      %v8422 = vld [vmem:[%s478] sm:$0xff]
      %v8423 = vld [vmem:[%s478 + $0x8] sm:$0xff]
      %v8424 = vld [vmem:[%s478 + $0x10] sm:$0xff]
      %v8425 = vld [vmem:[%s478 + $0x18] sm:$0xff]
      %v8426 = vld [vmem:[%s478 + $0x20] sm:$0xff]
      %v8427 = vld [vmem:[%s478 + $0x28] sm:$0xff]
      %v8428 = vld [vmem:[%s478 + $0x30] sm:$0xff]
      %v8429 = vld [vmem:[%s478 + $0x38] sm:$0xff]
      %v8430 = vld [vmem:[%s478 + $0x40] sm:$0xff]
      %v8431 = vld [vmem:[%s478 + $0x48] sm:$0xff]
      %v8432 = vld [vmem:[%s478 + $0x50] sm:$0xff]
      %v8433 = vld [vmem:[%s478 + $0x58] sm:$0xff]
      %v8434 = vld [vmem:[%s478 + $0x60] sm:$0xff]
      %v8435 = vld [vmem:[%s478 + $0x68] sm:$0xff]
      %v8436 = vld [vmem:[%s478 + $0x70] sm:$0xff]
      %v8437 = vld [vmem:[%s478 + $0x78] sm:$0xff]
      %v8438 = vld [vmem:[%s478 + $0x80] sm:$0xff]
      %v8439 = vld [vmem:[%s478 + $0x88] sm:$0xff]
      %v8440 = vld [vmem:[%s478 + $0x90] sm:$0xff]
      %v8441 = vld [vmem:[%s478 + $0x98] sm:$0xff]
      %v8442 = vld [vmem:[%s478 + $0xa0] sm:$0xff]
      %v8443 = vld [vmem:[%s478 + $0xa8] sm:$0xff]
      %v8444 = vld [vmem:[%s478 + $0xb0] sm:$0xff]
      %v8445 = vld [vmem:[%s478 + $0xb8] sm:$0xff]
      %v8446 = vld [vmem:[%s478 + $0xc0] sm:$0xff]
      %v8447 = vld [vmem:[%s478 + $0xc8] sm:$0xff]
      %v8448 = vld [vmem:[%s478 + $0xd0] sm:$0xff]
      %v8449 = vld [vmem:[%s478 + $0xd8] sm:$0xff]
      %v8450 = vld [vmem:[%s478 + $0xe0] sm:$0xff]
      %v8451 = vld [vmem:[%s478 + $0xe8] sm:$0xff]
      %v8452 = vld [vmem:[%s478 + $0xf0] sm:$0xff]
      %v8453 = vld [vmem:[%s478 + $0xf8] sm:$0xff]
      %v8454 = vld [vmem:[%s3563] sm:$0xf]
      %v8455 = vld [vmem:[%s3563 + $0x4] sm:$0xf]
      %v8456 = vld [vmem:[%s3563 + $0x8] sm:$0xf]
      %v8457 = vld [vmem:[%s3563 + $0xc] sm:$0xf]
      %v8458 = vld [vmem:[%s3563 + $0x10] sm:$0xf]
      %v8459 = vld [vmem:[%s3563 + $0x14] sm:$0xf]
      %v8460 = vld [vmem:[%s3563 + $0x18] sm:$0xf]
      %v8461 = vld [vmem:[%s3563 + $0x1c] sm:$0xf]
      %v8462 = vld [vmem:[%s3563 + $0x20] sm:$0xf]
      %v8463 = vld [vmem:[%s3563 + $0x24] sm:$0xf]
      %v8464 = vld [vmem:[%s3563 + $0x28] sm:$0xf]
      %v8465 = vld [vmem:[%s3563 + $0x2c] sm:$0xf]
      %v8466 = vld [vmem:[%s3563 + $0x30] sm:$0xf]
      %v8467 = vld [vmem:[%s3563 + $0x34] sm:$0xf]
      %v8468 = vld [vmem:[%s3563 + $0x38] sm:$0xf]
      %v8469 = vld [vmem:[%s3563 + $0x3c] sm:$0xf]
      %v8470 = vld [vmem:[%s3563 + $0x40] sm:$0xf]
      %v8471 = vld [vmem:[%s3563 + $0x44] sm:$0xf]
      %v8472 = vld [vmem:[%s3563 + $0x48] sm:$0xf]
      %v8473 = vld [vmem:[%s3563 + $0x4c] sm:$0xf]
      %v8474 = vld [vmem:[%s3563 + $0x50] sm:$0xf]
      %v8475 = vld [vmem:[%s3563 + $0x54] sm:$0xf]
      %v8476 = vld [vmem:[%s3563 + $0x58] sm:$0xf]
      %v8477 = vld [vmem:[%s3563 + $0x5c] sm:$0xf]
      %v8510 = vunpack.c.l.b16 %v8422
      %v8511 = vunpack.c.h.b16 %v8422
      %v8512 = vunpack.c.l.b16 %v8423
      %v8513 = vunpack.c.h.b16 %v8423
      %v8514 = vunpack.c.l.b16 %v8424
      %v8515 = vunpack.c.h.b16 %v8424
      %v8516 = vunpack.c.l.b16 %v8425
      %v8517 = vunpack.c.h.b16 %v8425
      %v8518 = vunpack.c.l.b16 %v8426
      %v8519 = vunpack.c.h.b16 %v8426
      %v8520 = vunpack.c.l.b16 %v8427
      %v8521 = vunpack.c.h.b16 %v8427
      %v8522 = vunpack.c.l.b16 %v8428
      %v8523 = vunpack.c.h.b16 %v8428
      %v8524 = vunpack.c.l.b16 %v8429
      %v8525 = vunpack.c.h.b16 %v8429
      %v8526 = vunpack.c.l.b16 %v8430
      %v8527 = vunpack.c.h.b16 %v8430
      %v8528 = vunpack.c.l.b16 %v8431
      %v8529 = vunpack.c.h.b16 %v8431
      %v8530 = vunpack.c.l.b16 %v8432
      %v8531 = vunpack.c.h.b16 %v8432
      %v8532 = vunpack.c.l.b16 %v8433
      %v8533 = vunpack.c.h.b16 %v8433
      %v8534 = vunpack.c.l.b16 %v8434
      %v8535 = vunpack.c.h.b16 %v8434
      %v8536 = vunpack.c.l.b16 %v8435
      %v8537 = vunpack.c.h.b16 %v8435
      %v8538 = vunpack.c.l.b16 %v8436
      %v8539 = vunpack.c.h.b16 %v8436
      %v8540 = vunpack.c.l.b16 %v8437
      %v8541 = vunpack.c.h.b16 %v8437
      %v8542 = vunpack.c.l.b16 %v8438
      %v8543 = vunpack.c.h.b16 %v8438
      %v8544 = vunpack.c.l.b16 %v8439
      %v8545 = vunpack.c.h.b16 %v8439
      %v8546 = vunpack.c.l.b16 %v8440
      %v8547 = vunpack.c.h.b16 %v8440
      %v8548 = vunpack.c.l.b16 %v8441
      %v8549 = vunpack.c.h.b16 %v8441
      %v8550 = vunpack.c.l.b16 %v8442
      %v8551 = vunpack.c.h.b16 %v8442
      %v8552 = vunpack.c.l.b16 %v8443
      %v8553 = vunpack.c.h.b16 %v8443
      %v8554 = vunpack.c.l.b16 %v8444
      %v8555 = vunpack.c.h.b16 %v8444
      %v8556 = vunpack.c.l.b16 %v8445
      %v8557 = vunpack.c.h.b16 %v8445
      %v8558 = vunpack.c.l.b16 %v8446
      %v8559 = vunpack.c.h.b16 %v8446
      %v8560 = vunpack.c.l.b16 %v8447
      %v8561 = vunpack.c.h.b16 %v8447
      %v8562 = vunpack.c.l.b16 %v8448
      %v8563 = vunpack.c.h.b16 %v8448
      %v8564 = vunpack.c.l.b16 %v8449
      %v8565 = vunpack.c.h.b16 %v8449
      %v8566 = vunpack.c.l.b16 %v8450
      %v8567 = vunpack.c.h.b16 %v8450
      %v8568 = vunpack.c.l.b16 %v8451
      %v8569 = vunpack.c.h.b16 %v8451
      %v8570 = vunpack.c.l.b16 %v8452
      %v8571 = vunpack.c.h.b16 %v8452
      %v8572 = vunpack.c.l.b16 %v8453
      %v8573 = vunpack.c.h.b16 %v8453
      %v8574 = vpack.c.b16 %v8512, %v8510
      %v8575 = vpack.c.b16 %v8513, %v8511
      %v8576 = vpack.c.b16 %v8516, %v8514
      %v8577 = vpack.c.b16 %v8517, %v8515
      %v8578 = vpack.c.b16 %v8520, %v8518
      %v8579 = vpack.c.b16 %v8521, %v8519
      %v8580 = vpack.c.b16 %v8524, %v8522
      %v8581 = vpack.c.b16 %v8525, %v8523
      %v8582 = vpack.c.b16 %v8528, %v8526
      %v8583 = vpack.c.b16 %v8529, %v8527
      %v8584 = vpack.c.b16 %v8532, %v8530
      %v8585 = vpack.c.b16 %v8533, %v8531
      %v8586 = vpack.c.b16 %v8536, %v8534
      %v8587 = vpack.c.b16 %v8537, %v8535
      %v8588 = vpack.c.b16 %v8540, %v8538
      %v8589 = vpack.c.b16 %v8541, %v8539
      %v8590 = vpack.c.b16 %v8544, %v8542
      %v8591 = vpack.c.b16 %v8545, %v8543
      %v8592 = vpack.c.b16 %v8548, %v8546
      %v8593 = vpack.c.b16 %v8549, %v8547
      %v8594 = vpack.c.b16 %v8552, %v8550
      %v8595 = vpack.c.b16 %v8553, %v8551
      %v8596 = vpack.c.b16 %v8556, %v8554
      %v8597 = vpack.c.b16 %v8557, %v8555
      %v8598 = vpack.c.b16 %v8560, %v8558
      %v8599 = vpack.c.b16 %v8561, %v8559
      %v8600 = vpack.c.b16 %v8564, %v8562
      %v8601 = vpack.c.b16 %v8565, %v8563
      %v8602 = vpack.c.b16 %v8568, %v8566
      %v8603 = vpack.c.b16 %v8569, %v8567
      %v8604 = vpack.c.b16 %v8572, %v8570
      %v8605 = vpack.c.b16 %v8573, %v8571
      %v8646 = vunpack.c.l.b16 %v8454
      %v8647 = vunpack.c.l.b16 %v8455
      %v8648 = vunpack.c.l.b16 %v8456
      %v8649 = vunpack.c.l.b16 %v8457
      %v8650 = vunpack.c.l.b16 %v8458
      %v8651 = vunpack.c.l.b16 %v8459
      %v8652 = vunpack.c.l.b16 %v8460
      %v8653 = vunpack.c.l.b16 %v8461
      %v8654 = vunpack.c.l.b16 %v8462
      %v8655 = vunpack.c.l.b16 %v8463
      %v8656 = vunpack.c.l.b16 %v8464
      %v8657 = vunpack.c.l.b16 %v8465
      %v8658 = vunpack.c.l.b16 %v8466
      %v8659 = vunpack.c.l.b16 %v8467
      %v8660 = vunpack.c.l.b16 %v8468
      %v8661 = vunpack.c.l.b16 %v8469
      %v8662 = vunpack.c.l.b16 %v8470
      %v8663 = vunpack.c.l.b16 %v8471
      %v8664 = vunpack.c.l.b16 %v8472
      %v8665 = vunpack.c.l.b16 %v8473
      %v8666 = vunpack.c.l.b16 %v8474
      %v8667 = vunpack.c.l.b16 %v8475
      %v8668 = vunpack.c.l.b16 %v8476
      %v8669 = vunpack.c.l.b16 %v8477
      %v8670 = vpack.c.b16 %v8647, %v8646
      %v8671 = vpack.c.b16 %v8649, %v8648
      %v8672 = vpack.c.b16 %v8651, %v8650
      %v8673 = vpack.c.b16 %v8653, %v8652
      %v8674 = vpack.c.b16 %v8655, %v8654
      %v8675 = vpack.c.b16 %v8657, %v8656
      %v8676 = vpack.c.b16 %v8659, %v8658
      %v8677 = vpack.c.b16 %v8661, %v8660
      %v8678 = vpack.c.b16 %v8663, %v8662
      %v8679 = vpack.c.b16 %v8665, %v8664
      %v8680 = vpack.c.b16 %v8667, %v8666
      %v8681 = vpack.c.b16 %v8669, %v8668
      %v8695 = vsel %vm837, %v8575, 0
      %v8698 = vsel %vm837, %v8577, 0
      %v8701 = vsel %vm837, %v8579, 0
      %v8704 = vsel %vm837, %v8581, 0
      %v8707 = vsel %vm837, %v8583, 0
      %v8710 = vsel %vm837, %v8585, 0
      %v8713 = vsel %vm837, %v8587, 0
      %v8716 = vsel %vm837, %v8589, 0
      %v8719 = vsel %vm837, %v8591, 0
      %v8722 = vsel %vm837, %v8593, 0
      %v8725 = vsel %vm837, %v8595, 0
      %v8728 = vsel %vm837, %v8597, 0
      %v8731 = vsel %vm837, %v8599, 0
      %v8734 = vsel %vm837, %v8601, 0
      %v8737 = vsel %vm837, %v8603, 0
      %v8740 = vsel %vm837, %v8605, 0
      %8742 = vmatprep.subr.bf16.mxu0 0
      %8743 = vmatpush1.bf16.msra.mxu0 %v8670
      %8744 = vmatprep.subr.bf16.mxu0 0
      %8745 = vmatpush1.bf16.msra.mxu0 %v8671
      %8746 = vmatprep.subr.bf16.mxu0 0
      %8747 = vmatpush1.bf16.msra.mxu0 %v8672
      %8748 = vmatprep.subr.bf16.mxu0 0
      %8749 = vmatpush1.bf16.msra.mxu0 %v8673
      %8750 = vmatprep.subr.bf16.mxu0 0
      %8751 = vmatpush1.bf16.msra.mxu0 %v8674
      %8752 = vmatprep.subr.bf16.mxu0 0
      %8753 = vmatpush1.bf16.msra.mxu0 %v8675
      %8754 = vmatprep.subr.bf16.mxu0 0
      %8755 = vmatpush1.bf16.msra.mxu0 %v8676
      %8756 = vmatprep.subr.bf16.mxu0 0
      %8757 = vmatpush1.bf16.msra.mxu0 %v8677
      %8758 = vmatprep.subr.bf16.mxu0 0
      %8759 = vmatpush1.bf16.msra.mxu0 %v8678
      %8760 = vmatprep.subr.bf16.mxu0 0
      %8761 = vmatpush1.bf16.msra.mxu0 %v8679
      %8762 = vmatprep.subr.bf16.mxu0 0
      %8763 = vmatpush1.bf16.msra.mxu0 %v8680
      %8764 = vmatprep.subr.bf16.mxu0 0
      %8765 = vmatpush1.bf16.msra.mxu0 %v8681
      %8766 = vmatprep.subr.bf16.mxu0 0
      %8767 = vmatpush1.bf16.msra.mxu0 0
      %8768 = vmatprep.subr.bf16.mxu0 0
      %8769 = vmatpush1.bf16.msra.mxu0 0
      %8770 = vmatprep.subr.bf16.mxu0 0
      %8771 = vmatpush1.bf16.msra.mxu0 0
      %8772 = vmatprep.subr.bf16.mxu0 0
      %8773 = vmatpush1.bf16.msra.mxu0 0
      %8774 = vmatprep.mubr.bf16.mxu0 %v8695
      %8775 = vmatmul.mubr.bf16.gmra.mrb[0].mxu0 %v8574
      %v8776 = vpop.f32.mrb[0].mxu0
      %v8777 = vadd.f32 0.0, %v8776
      %v8778 = vpop.f32.mrb[0].mxu0
      %v8779 = vpop.f32.mrb[0].mxu0
      %v8780 = vadd.f32 0.0, %v8779
      %v8781 = vpop.f32.mrb[0].mxu0
      %8782 = vmatprep.mubr.bf16.mxu0 %v8698
      %8783 = vmatmul.mubr.bf16.gmra.mrb[0].mxu0 %v8576
      %v8784 = vpop.f32.mrb[0].mxu0
      %v8785 = vadd.f32 0.0, %v8784
      %v8786 = vpop.f32.mrb[0].mxu0
      %v8787 = vpop.f32.mrb[0].mxu0
      %v8788 = vadd.f32 0.0, %v8787
      %v8789 = vpop.f32.mrb[0].mxu0
      %8790 = vmatprep.mubr.bf16.mxu0 %v8701
      %8791 = vmatmul.mubr.bf16.gmra.mrb[0].mxu0 %v8578
      %v8792 = vpop.f32.mrb[0].mxu0
      %v8793 = vadd.f32 0.0, %v8792
      %v8794 = vpop.f32.mrb[0].mxu0
      %v8795 = vpop.f32.mrb[0].mxu0
      %v8796 = vadd.f32 0.0, %v8795
      %v8797 = vpop.f32.mrb[0].mxu0
      %8798 = vmatprep.mubr.bf16.mxu0 %v8704
      %8799 = vmatmul.mubr.bf16.gmra.mrb[0].mxu0 %v8580
      %v8800 = vpop.f32.mrb[0].mxu0
      %v8801 = vadd.f32 0.0, %v8800
      %v8802 = vpop.f32.mrb[0].mxu0
      %v8803 = vpop.f32.mrb[0].mxu0
      %v8804 = vadd.f32 0.0, %v8803
      %v8805 = vpop.f32.mrb[0].mxu0
      %8806 = vmatprep.mubr.bf16.mxu0 %v8707
      %8807 = vmatmul.mubr.bf16.gmra.mrb[0].mxu0 %v8582
      %v8808 = vpop.f32.mrb[0].mxu0
      %v8809 = vadd.f32 0.0, %v8808
      %v8810 = vpop.f32.mrb[0].mxu0
      %v8811 = vpop.f32.mrb[0].mxu0
      %v8812 = vadd.f32 0.0, %v8811
      %v8813 = vpop.f32.mrb[0].mxu0
      %8814 = vmatprep.mubr.bf16.mxu0 %v8710
      %8815 = vmatmul.mubr.bf16.gmra.mrb[0].mxu0 %v8584
      %v8816 = vpop.f32.mrb[0].mxu0
      %v8817 = vadd.f32 0.0, %v8816
      %v8818 = vpop.f32.mrb[0].mxu0
      %v8819 = vpop.f32.mrb[0].mxu0
      %v8820 = vadd.f32 0.0, %v8819
      %v8821 = vpop.f32.mrb[0].mxu0
      %8822 = vmatprep.mubr.bf16.mxu0 %v8713
      %8823 = vmatmul.mubr.bf16.gmra.mrb[0].mxu0 %v8586
      %v8824 = vpop.f32.mrb[0].mxu0
      %v8825 = vadd.f32 0.0, %v8824
      %v8826 = vpop.f32.mrb[0].mxu0
      %v8827 = vpop.f32.mrb[0].mxu0
      %v8828 = vadd.f32 0.0, %v8827
      %v8829 = vpop.f32.mrb[0].mxu0
      %8830 = vmatprep.mubr.bf16.mxu0 %v8716
      %8831 = vmatmul.mubr.bf16.gmra.mrb[0].mxu0 %v8588
      %v8832 = vpop.f32.mrb[0].mxu0
      %v8833 = vadd.f32 0.0, %v8832
      %v8834 = vpop.f32.mrb[0].mxu0
      %v8835 = vpop.f32.mrb[0].mxu0
      %v8836 = vadd.f32 0.0, %v8835
      %v8837 = vpop.f32.mrb[0].mxu0
      %8838 = vmatprep.mubr.bf16.mxu0 %v8719
      %8839 = vmatmul.mubr.bf16.gmra.mrb[0].mxu0 %v8590
      %v8840 = vpop.f32.mrb[0].mxu0
      %v8841 = vadd.f32 0.0, %v8840
      %v8842 = vpop.f32.mrb[0].mxu0
      %v8843 = vpop.f32.mrb[0].mxu0
      %v8844 = vadd.f32 0.0, %v8843
      %v8845 = vpop.f32.mrb[0].mxu0
      %8846 = vmatprep.mubr.bf16.mxu0 %v8722
      %8847 = vmatmul.mubr.bf16.gmra.mrb[0].mxu0 %v8592
      %v8848 = vpop.f32.mrb[0].mxu0
      %v8849 = vadd.f32 0.0, %v8848
      %v8850 = vpop.f32.mrb[0].mxu0
      %v8851 = vpop.f32.mrb[0].mxu0
      %v8852 = vadd.f32 0.0, %v8851
      %v8853 = vpop.f32.mrb[0].mxu0
      %8854 = vmatprep.mubr.bf16.mxu0 %v8725
      %8855 = vmatmul.mubr.bf16.gmra.mrb[0].mxu0 %v8594
      %v8856 = vpop.f32.mrb[0].mxu0
      %v8857 = vadd.f32 0.0, %v8856
      %v8858 = vpop.f32.mrb[0].mxu0
      %v8859 = vpop.f32.mrb[0].mxu0
      %v8860 = vadd.f32 0.0, %v8859
      %v8861 = vpop.f32.mrb[0].mxu0
      %8862 = vmatprep.mubr.bf16.mxu0 %v8728
      %8863 = vmatmul.mubr.bf16.gmra.mrb[0].mxu0 %v8596
      %v8864 = vpop.f32.mrb[0].mxu0
      %v8865 = vadd.f32 0.0, %v8864
      %v8866 = vpop.f32.mrb[0].mxu0
      %v8867 = vpop.f32.mrb[0].mxu0
      %v8868 = vadd.f32 0.0, %v8867
      %v8869 = vpop.f32.mrb[0].mxu0
      %8870 = vmatprep.mubr.bf16.mxu0 %v8731
      %8871 = vmatmul.mubr.bf16.gmra.mrb[0].mxu0 %v8598
      %v8872 = vpop.f32.mrb[0].mxu0
      %v8873 = vadd.f32 0.0, %v8872
      %v8874 = vpop.f32.mrb[0].mxu0
      %v8875 = vpop.f32.mrb[0].mxu0
      %v8876 = vadd.f32 0.0, %v8875
      %v8877 = vpop.f32.mrb[0].mxu0
      %8878 = vmatprep.mubr.bf16.mxu0 %v8734
      %8879 = vmatmul.mubr.bf16.gmra.mrb[0].mxu0 %v8600
      %v8880 = vpop.f32.mrb[0].mxu0
      %v8881 = vadd.f32 0.0, %v8880
      %v8882 = vpop.f32.mrb[0].mxu0
      %v8883 = vpop.f32.mrb[0].mxu0
      %v8884 = vadd.f32 0.0, %v8883
      %v8885 = vpop.f32.mrb[0].mxu0
      %8886 = vmatprep.mubr.bf16.mxu0 %v8737
      %8887 = vmatmul.mubr.bf16.gmra.mrb[0].mxu0 %v8602
      %v8888 = vpop.f32.mrb[0].mxu0
      %v8889 = vadd.f32 0.0, %v8888
      %v8890 = vpop.f32.mrb[0].mxu0
      %v8891 = vpop.f32.mrb[0].mxu0
      %v8892 = vadd.f32 0.0, %v8891
      %v8893 = vpop.f32.mrb[0].mxu0
      %8894 = vmatprep.mubr.bf16.mxu0 %v8740
      %8895 = vmatmul.mubr.bf16.gmra.mrb[0].mxu0 %v8604
      %v8896 = vpop.f32.mrb[0].mxu0
      %v8897 = vadd.f32 0.0, %v8896
      %v8898 = vpop.f32.mrb[0].mxu0
      %v8899 = vpop.f32.mrb[0].mxu0
      %v8900 = vadd.f32 0.0, %v8899
      %v8901 = vpop.f32.mrb[0].mxu0
      %8902 = vdwg.mxu0
      %v8903 = vadd.f32 %v8390, %v8777
      %v8904 = vadd.f32 %v8391, %v8780
      %v8905 = vadd.f32 %v8392, %v8785
      %v8906 = vadd.f32 %v8393, %v8788
      %v8907 = vadd.f32 %v8394, %v8793
      %v8908 = vadd.f32 %v8395, %v8796
      %v8909 = vadd.f32 %v8396, %v8801
      %v8910 = vadd.f32 %v8397, %v8804
      %v8911 = vadd.f32 %v8398, %v8809
      %v8912 = vadd.f32 %v8399, %v8812
      %v8913 = vadd.f32 %v8400, %v8817
      %v8914 = vadd.f32 %v8401, %v8820
      %v8915 = vadd.f32 %v8402, %v8825
      %v8916 = vadd.f32 %v8403, %v8828
      %v8917 = vadd.f32 %v8404, %v8833
      %v8918 = vadd.f32 %v8405, %v8836
      %v8919 = vadd.f32 %v8406, %v8841
      %v8920 = vadd.f32 %v8407, %v8844
      %v8921 = vadd.f32 %v8408, %v8849
      %v8922 = vadd.f32 %v8409, %v8852
      %v8923 = vadd.f32 %v8410, %v8857
      %v8924 = vadd.f32 %v8411, %v8860
      %v8925 = vadd.f32 %v8412, %v8865
      %v8926 = vadd.f32 %v8413, %v8868
      %v8927 = vadd.f32 %v8414, %v8873
      %v8928 = vadd.f32 %v8415, %v8876
      %v8929 = vadd.f32 %v8416, %v8881
      %v8930 = vadd.f32 %v8417, %v8884
      %v8931 = vadd.f32 %v8418, %v8889
      %v8932 = vadd.f32 %v8419, %v8892
      %v8933 = vadd.f32 %v8420, %v8897
      %v8934 = vadd.f32 %v8421, %v8900
      %s8935 = scalar_lea.vmem %s478, 16
      %v8936 = vld [vmem:[%s8935] sm:$0xff]
      %v8937 = vld [vmem:[%s8935 + $0x8] sm:$0xff]
      %v8938 = vld [vmem:[%s8935 + $0x10] sm:$0xff]
      %v8939 = vld [vmem:[%s8935 + $0x18] sm:$0xff]
      %v8940 = vld [vmem:[%s8935 + $0x20] sm:$0xff]
      %v8941 = vld [vmem:[%s8935 + $0x28] sm:$0xff]
      %v8942 = vld [vmem:[%s8935 + $0x30] sm:$0xff]
      %v8943 = vld [vmem:[%s8935 + $0x38] sm:$0xff]
      %v8944 = vld [vmem:[%s8935 + $0x40] sm:$0xff]
      %v8945 = vld [vmem:[%s8935 + $0x48] sm:$0xff]
      %v8946 = vld [vmem:[%s8935 + $0x50] sm:$0xff]
      %v8947 = vld [vmem:[%s8935 + $0x58] sm:$0xff]
      %v8948 = vld [vmem:[%s8935 + $0x60] sm:$0xff]
      %v8949 = vld [vmem:[%s8935 + $0x68] sm:$0xff]
      %v8950 = vld [vmem:[%s8935 + $0x70] sm:$0xff]
      %v8951 = vld [vmem:[%s8935 + $0x78] sm:$0xff]
      %v8952 = vld [vmem:[%s8935 + $0x80] sm:$0xff]
      %v8953 = vld [vmem:[%s8935 + $0x88] sm:$0xff]
      %v8954 = vld [vmem:[%s8935 + $0x90] sm:$0xff]
      %v8955 = vld [vmem:[%s8935 + $0x98] sm:$0xff]
      %v8956 = vld [vmem:[%s8935 + $0xa0] sm:$0xff]
      %v8957 = vld [vmem:[%s8935 + $0xa8] sm:$0xff]
      %v8958 = vld [vmem:[%s8935 + $0xb0] sm:$0xff]
      %v8959 = vld [vmem:[%s8935 + $0xb8] sm:$0xff]
      %v8960 = vld [vmem:[%s8935 + $0xc0] sm:$0xff]
      %v8961 = vld [vmem:[%s8935 + $0xc8] sm:$0xff]
      %v8962 = vld [vmem:[%s8935 + $0xd0] sm:$0xff]
      %v8963 = vld [vmem:[%s8935 + $0xd8] sm:$0xff]
      %v8964 = vld [vmem:[%s8935 + $0xe0] sm:$0xff]
      %v8965 = vld [vmem:[%s8935 + $0xe8] sm:$0xff]
      %v8966 = vld [vmem:[%s8935 + $0xf0] sm:$0xff]
      %v8967 = vld [vmem:[%s8935 + $0xf8] sm:$0xff]
      %v8968 = vld [vmem:[%s4078] sm:$0xf]
      %v8969 = vld [vmem:[%s4078 + $0x4] sm:$0xf]
      %v8970 = vld [vmem:[%s4078 + $0x8] sm:$0xf]
      %v8971 = vld [vmem:[%s4078 + $0xc] sm:$0xf]
      %v8972 = vld [vmem:[%s4078 + $0x10] sm:$0xf]
      %v8973 = vld [vmem:[%s4078 + $0x14] sm:$0xf]
      %v8974 = vld [vmem:[%s4078 + $0x18] sm:$0xf]
      %v8975 = vld [vmem:[%s4078 + $0x1c] sm:$0xf]
      %v8976 = vld [vmem:[%s4078 + $0x20] sm:$0xf]
      %v8977 = vld [vmem:[%s4078 + $0x24] sm:$0xf]
      %v8978 = vld [vmem:[%s4078 + $0x28] sm:$0xf]
      %v8979 = vld [vmem:[%s4078 + $0x2c] sm:$0xf]
      %v8980 = vld [vmem:[%s4078 + $0x30] sm:$0xf]
      %v8981 = vld [vmem:[%s4078 + $0x34] sm:$0xf]
      %v8982 = vld [vmem:[%s4078 + $0x38] sm:$0xf]
      %v8983 = vld [vmem:[%s4078 + $0x3c] sm:$0xf]
      %v8984 = vld [vmem:[%s4078 + $0x40] sm:$0xf]
      %v8985 = vld [vmem:[%s4078 + $0x44] sm:$0xf]
      %v8986 = vld [vmem:[%s4078 + $0x48] sm:$0xf]
      %v8987 = vld [vmem:[%s4078 + $0x4c] sm:$0xf]
      %v8988 = vld [vmem:[%s4078 + $0x50] sm:$0xf]
      %v8989 = vld [vmem:[%s4078 + $0x54] sm:$0xf]
      %v8990 = vld [vmem:[%s4078 + $0x58] sm:$0xf]
      %v8991 = vld [vmem:[%s4078 + $0x5c] sm:$0xf]
      %v9024 = vunpack.c.l.b16 %v8936
      %v9025 = vunpack.c.h.b16 %v8936
      %v9026 = vunpack.c.l.b16 %v8937
      %v9027 = vunpack.c.h.b16 %v8937
      %v9028 = vunpack.c.l.b16 %v8938
      %v9029 = vunpack.c.h.b16 %v8938
      %v9030 = vunpack.c.l.b16 %v8939
      %v9031 = vunpack.c.h.b16 %v8939
      %v9032 = vunpack.c.l.b16 %v8940
      %v9033 = vunpack.c.h.b16 %v8940
      %v9034 = vunpack.c.l.b16 %v8941
      %v9035 = vunpack.c.h.b16 %v8941
      %v9036 = vunpack.c.l.b16 %v8942
      %v9037 = vunpack.c.h.b16 %v8942
      %v9038 = vunpack.c.l.b16 %v8943
      %v9039 = vunpack.c.h.b16 %v8943
      %v9040 = vunpack.c.l.b16 %v8944
      %v9041 = vunpack.c.h.b16 %v8944
      %v9042 = vunpack.c.l.b16 %v8945
      %v9043 = vunpack.c.h.b16 %v8945
      %v9044 = vunpack.c.l.b16 %v8946
      %v9045 = vunpack.c.h.b16 %v8946
      %v9046 = vunpack.c.l.b16 %v8947
      %v9047 = vunpack.c.h.b16 %v8947
      %v9048 = vunpack.c.l.b16 %v8948
      %v9049 = vunpack.c.h.b16 %v8948
      %v9050 = vunpack.c.l.b16 %v8949
      %v9051 = vunpack.c.h.b16 %v8949
      %v9052 = vunpack.c.l.b16 %v8950
      %v9053 = vunpack.c.h.b16 %v8950
      %v9054 = vunpack.c.l.b16 %v8951
      %v9055 = vunpack.c.h.b16 %v8951
      %v9056 = vunpack.c.l.b16 %v8952
      %v9057 = vunpack.c.h.b16 %v8952
      %v9058 = vunpack.c.l.b16 %v8953
      %v9059 = vunpack.c.h.b16 %v8953
      %v9060 = vunpack.c.l.b16 %v8954
      %v9061 = vunpack.c.h.b16 %v8954
      %v9062 = vunpack.c.l.b16 %v8955
      %v9063 = vunpack.c.h.b16 %v8955
      %v9064 = vunpack.c.l.b16 %v8956
      %v9065 = vunpack.c.h.b16 %v8956
      %v9066 = vunpack.c.l.b16 %v8957
      %v9067 = vunpack.c.h.b16 %v8957
      %v9068 = vunpack.c.l.b16 %v8958
      %v9069 = vunpack.c.h.b16 %v8958
      %v9070 = vunpack.c.l.b16 %v8959
      %v9071 = vunpack.c.h.b16 %v8959
      %v9072 = vunpack.c.l.b16 %v8960
      %v9073 = vunpack.c.h.b16 %v8960
      %v9074 = vunpack.c.l.b16 %v8961
      %v9075 = vunpack.c.h.b16 %v8961
      %v9076 = vunpack.c.l.b16 %v8962
      %v9077 = vunpack.c.h.b16 %v8962
      %v9078 = vunpack.c.l.b16 %v8963
      %v9079 = vunpack.c.h.b16 %v8963
      %v9080 = vunpack.c.l.b16 %v8964
      %v9081 = vunpack.c.h.b16 %v8964
      %v9082 = vunpack.c.l.b16 %v8965
      %v9083 = vunpack.c.h.b16 %v8965
      %v9084 = vunpack.c.l.b16 %v8966
      %v9085 = vunpack.c.h.b16 %v8966
      %v9086 = vunpack.c.l.b16 %v8967
      %v9087 = vunpack.c.h.b16 %v8967
      %v9088 = vpack.c.b16 %v9026, %v9024
      %v9089 = vpack.c.b16 %v9027, %v9025
      %v9090 = vpack.c.b16 %v9030, %v9028
      %v9091 = vpack.c.b16 %v9031, %v9029
      %v9092 = vpack.c.b16 %v9034, %v9032
      %v9093 = vpack.c.b16 %v9035, %v9033
      %v9094 = vpack.c.b16 %v9038, %v9036
      %v9095 = vpack.c.b16 %v9039, %v9037
      %v9096 = vpack.c.b16 %v9042, %v9040
      %v9097 = vpack.c.b16 %v9043, %v9041
      %v9098 = vpack.c.b16 %v9046, %v9044
      %v9099 = vpack.c.b16 %v9047, %v9045
      %v9100 = vpack.c.b16 %v9050, %v9048
      %v9101 = vpack.c.b16 %v9051, %v9049
      %v9102 = vpack.c.b16 %v9054, %v9052
      %v9103 = vpack.c.b16 %v9055, %v9053
      %v9104 = vpack.c.b16 %v9058, %v9056
      %v9105 = vpack.c.b16 %v9059, %v9057
      %v9106 = vpack.c.b16 %v9062, %v9060
      %v9107 = vpack.c.b16 %v9063, %v9061
      %v9108 = vpack.c.b16 %v9066, %v9064
      %v9109 = vpack.c.b16 %v9067, %v9065
      %v9110 = vpack.c.b16 %v9070, %v9068
      %v9111 = vpack.c.b16 %v9071, %v9069
      %v9112 = vpack.c.b16 %v9074, %v9072
      %v9113 = vpack.c.b16 %v9075, %v9073
      %v9114 = vpack.c.b16 %v9078, %v9076
      %v9115 = vpack.c.b16 %v9079, %v9077
      %v9116 = vpack.c.b16 %v9082, %v9080
      %v9117 = vpack.c.b16 %v9083, %v9081
      %v9118 = vpack.c.b16 %v9086, %v9084
      %v9119 = vpack.c.b16 %v9087, %v9085
      %v9160 = vunpack.c.l.b16 %v8968
      %v9161 = vunpack.c.l.b16 %v8969
      %v9162 = vunpack.c.l.b16 %v8970
      %v9163 = vunpack.c.l.b16 %v8971
      %v9164 = vunpack.c.l.b16 %v8972
      %v9165 = vunpack.c.l.b16 %v8973
      %v9166 = vunpack.c.l.b16 %v8974
      %v9167 = vunpack.c.l.b16 %v8975
      %v9168 = vunpack.c.l.b16 %v8976
      %v9169 = vunpack.c.l.b16 %v8977
      %v9170 = vunpack.c.l.b16 %v8978
      %v9171 = vunpack.c.l.b16 %v8979
      %v9172 = vunpack.c.l.b16 %v8980
      %v9173 = vunpack.c.l.b16 %v8981
      %v9174 = vunpack.c.l.b16 %v8982
      %v9175 = vunpack.c.l.b16 %v8983
      %v9176 = vunpack.c.l.b16 %v8984
      %v9177 = vunpack.c.l.b16 %v8985
      %v9178 = vunpack.c.l.b16 %v8986
      %v9179 = vunpack.c.l.b16 %v8987
      %v9180 = vunpack.c.l.b16 %v8988
      %v9181 = vunpack.c.l.b16 %v8989
      %v9182 = vunpack.c.l.b16 %v8990
      %v9183 = vunpack.c.l.b16 %v8991
      %v9184 = vpack.c.b16 %v9161, %v9160
      %v9185 = vpack.c.b16 %v9163, %v9162
      %v9186 = vpack.c.b16 %v9165, %v9164
      %v9187 = vpack.c.b16 %v9167, %v9166
      %v9188 = vpack.c.b16 %v9169, %v9168
      %v9189 = vpack.c.b16 %v9171, %v9170
      %v9190 = vpack.c.b16 %v9173, %v9172
      %v9191 = vpack.c.b16 %v9175, %v9174
      %v9192 = vpack.c.b16 %v9177, %v9176
      %v9193 = vpack.c.b16 %v9179, %v9178
      %v9194 = vpack.c.b16 %v9181, %v9180
      %v9195 = vpack.c.b16 %v9183, %v9182
      %v9209 = vsel %vm837, %v9089, 0
      %v9212 = vsel %vm837, %v9091, 0
      %v9215 = vsel %vm837, %v9093, 0
      %v9218 = vsel %vm837, %v9095, 0
      %v9221 = vsel %vm837, %v9097, 0
      %v9224 = vsel %vm837, %v9099, 0
      %v9227 = vsel %vm837, %v9101, 0
      %v9230 = vsel %vm837, %v9103, 0
      %v9233 = vsel %vm837, %v9105, 0
      %v9236 = vsel %vm837, %v9107, 0
      %v9239 = vsel %vm837, %v9109, 0
      %v9242 = vsel %vm837, %v9111, 0
      %v9245 = vsel %vm837, %v9113, 0
      %v9248 = vsel %vm837, %v9115, 0
      %v9251 = vsel %vm837, %v9117, 0
      %v9254 = vsel %vm837, %v9119, 0
      %9256 = vmatprep.subr.bf16.mxu0 0
      %9257 = vmatpush1.bf16.msra.mxu0 %v9184
      %9258 = vmatprep.subr.bf16.mxu0 0
      %9259 = vmatpush1.bf16.msra.mxu0 %v9185
      %9260 = vmatprep.subr.bf16.mxu0 0
      %9261 = vmatpush1.bf16.msra.mxu0 %v9186
      %9262 = vmatprep.subr.bf16.mxu0 0
      %9263 = vmatpush1.bf16.msra.mxu0 %v9187
      %9264 = vmatprep.subr.bf16.mxu0 0
      %9265 = vmatpush1.bf16.msra.mxu0 %v9188
      %9266 = vmatprep.subr.bf16.mxu0 0
      %9267 = vmatpush1.bf16.msra.mxu0 %v9189
      %9268 = vmatprep.subr.bf16.mxu0 0
      %9269 = vmatpush1.bf16.msra.mxu0 %v9190
      %9270 = vmatprep.subr.bf16.mxu0 0
      %9271 = vmatpush1.bf16.msra.mxu0 %v9191
      %9272 = vmatprep.subr.bf16.mxu0 0
      %9273 = vmatpush1.bf16.msra.mxu0 %v9192
      %9274 = vmatprep.subr.bf16.mxu0 0
      %9275 = vmatpush1.bf16.msra.mxu0 %v9193
      %9276 = vmatprep.subr.bf16.mxu0 0
      %9277 = vmatpush1.bf16.msra.mxu0 %v9194
      %9278 = vmatprep.subr.bf16.mxu0 0
      %9279 = vmatpush1.bf16.msra.mxu0 %v9195
      %9280 = vmatprep.subr.bf16.mxu0 0
      %9281 = vmatpush1.bf16.msra.mxu0 0
      %9282 = vmatprep.subr.bf16.mxu0 0
      %9283 = vmatpush1.bf16.msra.mxu0 0
      %9284 = vmatprep.subr.bf16.mxu0 0
      %9285 = vmatpush1.bf16.msra.mxu0 0
      %9286 = vmatprep.subr.bf16.mxu0 0
      %9287 = vmatpush1.bf16.msra.mxu0 0
      %9288 = vmatprep.mubr.bf16.mxu0 %v9209
      %9289 = vmatmul.mubr.bf16.gmra.mrb[0].mxu0 %v9088
      %v9290 = vpop.f32.mrb[0].mxu0
      %v9291 = vadd.f32 0.0, %v9290
      %v9292 = vpop.f32.mrb[0].mxu0
      %v9293 = vpop.f32.mrb[0].mxu0
      %v9294 = vadd.f32 0.0, %v9293
      %v9295 = vpop.f32.mrb[0].mxu0
      %9296 = vmatprep.mubr.bf16.mxu0 %v9212
      %9297 = vmatmul.mubr.bf16.gmra.mrb[0].mxu0 %v9090
      %v9298 = vpop.f32.mrb[0].mxu0
      %v9299 = vadd.f32 0.0, %v9298
      %v9300 = vpop.f32.mrb[0].mxu0
      %v9301 = vpop.f32.mrb[0].mxu0
      %v9302 = vadd.f32 0.0, %v9301
      %v9303 = vpop.f32.mrb[0].mxu0
      %9304 = vmatprep.mubr.bf16.mxu0 %v9215
      %9305 = vmatmul.mubr.bf16.gmra.mrb[0].mxu0 %v9092
      %v9306 = vpop.f32.mrb[0].mxu0
      %v9307 = vadd.f32 0.0, %v9306
      %v9308 = vpop.f32.mrb[0].mxu0
      %v9309 = vpop.f32.mrb[0].mxu0
      %v9310 = vadd.f32 0.0, %v9309
      %v9311 = vpop.f32.mrb[0].mxu0
      %9312 = vmatprep.mubr.bf16.mxu0 %v9218
      %9313 = vmatmul.mubr.bf16.gmra.mrb[0].mxu0 %v9094
      %v9314 = vpop.f32.mrb[0].mxu0
      %v9315 = vadd.f32 0.0, %v9314
      %v9316 = vpop.f32.mrb[0].mxu0
      %v9317 = vpop.f32.mrb[0].mxu0
      %v9318 = vadd.f32 0.0, %v9317
      %v9319 = vpop.f32.mrb[0].mxu0
      %9320 = vmatprep.mubr.bf16.mxu0 %v9221
      %9321 = vmatmul.mubr.bf16.gmra.mrb[0].mxu0 %v9096
      %v9322 = vpop.f32.mrb[0].mxu0
      %v9323 = vadd.f32 0.0, %v9322
      %v9324 = vpop.f32.mrb[0].mxu0
      %v9325 = vpop.f32.mrb[0].mxu0
      %v9326 = vadd.f32 0.0, %v9325
      %v9327 = vpop.f32.mrb[0].mxu0
      %9328 = vmatprep.mubr.bf16.mxu0 %v9224
      %9329 = vmatmul.mubr.bf16.gmra.mrb[0].mxu0 %v9098
      %v9330 = vpop.f32.mrb[0].mxu0
      %v9331 = vadd.f32 0.0, %v9330
      %v9332 = vpop.f32.mrb[0].mxu0
      %v9333 = vpop.f32.mrb[0].mxu0
      %v9334 = vadd.f32 0.0, %v9333
      %v9335 = vpop.f32.mrb[0].mxu0
      %9336 = vmatprep.mubr.bf16.mxu0 %v9227
      %9337 = vmatmul.mubr.bf16.gmra.mrb[0].mxu0 %v9100
      %v9338 = vpop.f32.mrb[0].mxu0
      %v9339 = vadd.f32 0.0, %v9338
      %v9340 = vpop.f32.mrb[0].mxu0
      %v9341 = vpop.f32.mrb[0].mxu0
      %v9342 = vadd.f32 0.0, %v9341
      %v9343 = vpop.f32.mrb[0].mxu0
      %9344 = vmatprep.mubr.bf16.mxu0 %v9230
      %9345 = vmatmul.mubr.bf16.gmra.mrb[0].mxu0 %v9102
      %v9346 = vpop.f32.mrb[0].mxu0
      %v9347 = vadd.f32 0.0, %v9346
      %v9348 = vpop.f32.mrb[0].mxu0
      %v9349 = vpop.f32.mrb[0].mxu0
      %v9350 = vadd.f32 0.0, %v9349
      %v9351 = vpop.f32.mrb[0].mxu0
      %9352 = vmatprep.mubr.bf16.mxu0 %v9233
      %9353 = vmatmul.mubr.bf16.gmra.mrb[0].mxu0 %v9104
      %v9354 = vpop.f32.mrb[0].mxu0
      %v9355 = vadd.f32 0.0, %v9354
      %v9356 = vpop.f32.mrb[0].mxu0
      %v9357 = vpop.f32.mrb[0].mxu0
      %v9358 = vadd.f32 0.0, %v9357
      %v9359 = vpop.f32.mrb[0].mxu0
      %9360 = vmatprep.mubr.bf16.mxu0 %v9236
      %9361 = vmatmul.mubr.bf16.gmra.mrb[0].mxu0 %v9106
      %v9362 = vpop.f32.mrb[0].mxu0
      %v9363 = vadd.f32 0.0, %v9362
      %v9364 = vpop.f32.mrb[0].mxu0
      %v9365 = vpop.f32.mrb[0].mxu0
      %v9366 = vadd.f32 0.0, %v9365
      %v9367 = vpop.f32.mrb[0].mxu0
      %9368 = vmatprep.mubr.bf16.mxu0 %v9239
      %9369 = vmatmul.mubr.bf16.gmra.mrb[0].mxu0 %v9108
      %v9370 = vpop.f32.mrb[0].mxu0
      %v9371 = vadd.f32 0.0, %v9370
      %v9372 = vpop.f32.mrb[0].mxu0
      %v9373 = vpop.f32.mrb[0].mxu0
      %v9374 = vadd.f32 0.0, %v9373
      %v9375 = vpop.f32.mrb[0].mxu0
      %9376 = vmatprep.mubr.bf16.mxu0 %v9242
      %9377 = vmatmul.mubr.bf16.gmra.mrb[0].mxu0 %v9110
      %v9378 = vpop.f32.mrb[0].mxu0
      %v9379 = vadd.f32 0.0, %v9378
      %v9380 = vpop.f32.mrb[0].mxu0
      %v9381 = vpop.f32.mrb[0].mxu0
      %v9382 = vadd.f32 0.0, %v9381
      %v9383 = vpop.f32.mrb[0].mxu0
      %9384 = vmatprep.mubr.bf16.mxu0 %v9245
      %9385 = vmatmul.mubr.bf16.gmra.mrb[0].mxu0 %v9112
      %v9386 = vpop.f32.mrb[0].mxu0
      %v9387 = vadd.f32 0.0, %v9386
      %v9388 = vpop.f32.mrb[0].mxu0
      %v9389 = vpop.f32.mrb[0].mxu0
      %v9390 = vadd.f32 0.0, %v9389
      %v9391 = vpop.f32.mrb[0].mxu0
      %9392 = vmatprep.mubr.bf16.mxu0 %v9248
      %9393 = vmatmul.mubr.bf16.gmra.mrb[0].mxu0 %v9114
      %v9394 = vpop.f32.mrb[0].mxu0
      %v9395 = vadd.f32 0.0, %v9394
      %v9396 = vpop.f32.mrb[0].mxu0
      %v9397 = vpop.f32.mrb[0].mxu0
      %v9398 = vadd.f32 0.0, %v9397
      %v9399 = vpop.f32.mrb[0].mxu0
      %9400 = vmatprep.mubr.bf16.mxu0 %v9251
      %9401 = vmatmul.mubr.bf16.gmra.mrb[0].mxu0 %v9116
      %v9402 = vpop.f32.mrb[0].mxu0
      %v9403 = vadd.f32 0.0, %v9402
      %v9404 = vpop.f32.mrb[0].mxu0
      %v9405 = vpop.f32.mrb[0].mxu0
      %v9406 = vadd.f32 0.0, %v9405
      %v9407 = vpop.f32.mrb[0].mxu0
      %9408 = vmatprep.mubr.bf16.mxu0 %v9254
      %9409 = vmatmul.mubr.bf16.gmra.mrb[0].mxu0 %v9118
      %v9410 = vpop.f32.mrb[0].mxu0
      %v9411 = vadd.f32 0.0, %v9410
      %v9412 = vpop.f32.mrb[0].mxu0
      %v9413 = vpop.f32.mrb[0].mxu0
      %v9414 = vadd.f32 0.0, %v9413
      %v9415 = vpop.f32.mrb[0].mxu0
      %9416 = vdwg.mxu0
      %v9417 = vadd.f32 %v8903, %v9291
      %v9418 = vadd.f32 %v8904, %v9294
      %v9419 = vadd.f32 %v8905, %v9299
      %v9420 = vadd.f32 %v8906, %v9302
      %v9421 = vadd.f32 %v8907, %v9307
      %v9422 = vadd.f32 %v8908, %v9310
      %v9423 = vadd.f32 %v8909, %v9315
      %v9424 = vadd.f32 %v8910, %v9318
      %v9425 = vadd.f32 %v8911, %v9323
      %v9426 = vadd.f32 %v8912, %v9326
      %v9427 = vadd.f32 %v8913, %v9331
      %v9428 = vadd.f32 %v8914, %v9334
      %v9429 = vadd.f32 %v8915, %v9339
      %v9430 = vadd.f32 %v8916, %v9342
      %v9431 = vadd.f32 %v8917, %v9347
      %v9432 = vadd.f32 %v8918, %v9350
      %v9433 = vadd.f32 %v8919, %v9355
      %v9434 = vadd.f32 %v8920, %v9358
      %v9435 = vadd.f32 %v8921, %v9363
      %v9436 = vadd.f32 %v8922, %v9366
      %v9437 = vadd.f32 %v8923, %v9371
      %v9438 = vadd.f32 %v8924, %v9374
      %v9439 = vadd.f32 %v8925, %v9379
      %v9440 = vadd.f32 %v8926, %v9382
      %v9441 = vadd.f32 %v8927, %v9387
      %v9442 = vadd.f32 %v8928, %v9390
      %v9443 = vadd.f32 %v8929, %v9395
      %v9444 = vadd.f32 %v8930, %v9398
      %v9445 = vadd.f32 %v8931, %v9403
      %v9446 = vadd.f32 %v8932, %v9406
      %v9447 = vadd.f32 %v8933, %v9411
      %v9448 = vadd.f32 %v8934, %v9414
      %s9449 = scalar_lea.vmem %s478, 32
      %v9450 = vld [vmem:[%s9449] sm:$0xff]
      %v9451 = vld [vmem:[%s9449 + $0x8] sm:$0xff]
      %v9452 = vld [vmem:[%s9449 + $0x10] sm:$0xff]
      %v9453 = vld [vmem:[%s9449 + $0x18] sm:$0xff]
      %v9454 = vld [vmem:[%s9449 + $0x20] sm:$0xff]
      %v9455 = vld [vmem:[%s9449 + $0x28] sm:$0xff]
      %v9456 = vld [vmem:[%s9449 + $0x30] sm:$0xff]
      %v9457 = vld [vmem:[%s9449 + $0x38] sm:$0xff]
      %v9458 = vld [vmem:[%s9449 + $0x40] sm:$0xff]
      %v9459 = vld [vmem:[%s9449 + $0x48] sm:$0xff]
      %v9460 = vld [vmem:[%s9449 + $0x50] sm:$0xff]
      %v9461 = vld [vmem:[%s9449 + $0x58] sm:$0xff]
      %v9462 = vld [vmem:[%s9449 + $0x60] sm:$0xff]
      %v9463 = vld [vmem:[%s9449 + $0x68] sm:$0xff]
      %v9464 = vld [vmem:[%s9449 + $0x70] sm:$0xff]
      %v9465 = vld [vmem:[%s9449 + $0x78] sm:$0xff]
      %v9466 = vld [vmem:[%s9449 + $0x80] sm:$0xff]
      %v9467 = vld [vmem:[%s9449 + $0x88] sm:$0xff]
      %v9468 = vld [vmem:[%s9449 + $0x90] sm:$0xff]
      %v9469 = vld [vmem:[%s9449 + $0x98] sm:$0xff]
      %v9470 = vld [vmem:[%s9449 + $0xa0] sm:$0xff]
      %v9471 = vld [vmem:[%s9449 + $0xa8] sm:$0xff]
      %v9472 = vld [vmem:[%s9449 + $0xb0] sm:$0xff]
      %v9473 = vld [vmem:[%s9449 + $0xb8] sm:$0xff]
      %v9474 = vld [vmem:[%s9449 + $0xc0] sm:$0xff]
      %v9475 = vld [vmem:[%s9449 + $0xc8] sm:$0xff]
      %v9476 = vld [vmem:[%s9449 + $0xd0] sm:$0xff]
      %v9477 = vld [vmem:[%s9449 + $0xd8] sm:$0xff]
      %v9478 = vld [vmem:[%s9449 + $0xe0] sm:$0xff]
      %v9479 = vld [vmem:[%s9449 + $0xe8] sm:$0xff]
      %v9480 = vld [vmem:[%s9449 + $0xf0] sm:$0xff]
      %v9481 = vld [vmem:[%s9449 + $0xf8] sm:$0xff]
      %v9482 = vld [vmem:[%s4593] sm:$0xf]
      %v9483 = vld [vmem:[%s4593 + $0x4] sm:$0xf]
      %v9484 = vld [vmem:[%s4593 + $0x8] sm:$0xf]
      %v9485 = vld [vmem:[%s4593 + $0xc] sm:$0xf]
      %v9486 = vld [vmem:[%s4593 + $0x10] sm:$0xf]
      %v9487 = vld [vmem:[%s4593 + $0x14] sm:$0xf]
      %v9488 = vld [vmem:[%s4593 + $0x18] sm:$0xf]
      %v9489 = vld [vmem:[%s4593 + $0x1c] sm:$0xf]
      %v9490 = vld [vmem:[%s4593 + $0x20] sm:$0xf]
      %v9491 = vld [vmem:[%s4593 + $0x24] sm:$0xf]
      %v9492 = vld [vmem:[%s4593 + $0x28] sm:$0xf]
      %v9493 = vld [vmem:[%s4593 + $0x2c] sm:$0xf]
      %v9494 = vld [vmem:[%s4593 + $0x30] sm:$0xf]
      %v9495 = vld [vmem:[%s4593 + $0x34] sm:$0xf]
      %v9496 = vld [vmem:[%s4593 + $0x38] sm:$0xf]
      %v9497 = vld [vmem:[%s4593 + $0x3c] sm:$0xf]
      %v9498 = vld [vmem:[%s4593 + $0x40] sm:$0xf]
      %v9499 = vld [vmem:[%s4593 + $0x44] sm:$0xf]
      %v9500 = vld [vmem:[%s4593 + $0x48] sm:$0xf]
      %v9501 = vld [vmem:[%s4593 + $0x4c] sm:$0xf]
      %v9502 = vld [vmem:[%s4593 + $0x50] sm:$0xf]
      %v9503 = vld [vmem:[%s4593 + $0x54] sm:$0xf]
      %v9504 = vld [vmem:[%s4593 + $0x58] sm:$0xf]
      %v9505 = vld [vmem:[%s4593 + $0x5c] sm:$0xf]
      %v9538 = vunpack.c.l.b16 %v9450
      %v9539 = vunpack.c.h.b16 %v9450
      %v9540 = vunpack.c.l.b16 %v9451
      %v9541 = vunpack.c.h.b16 %v9451
      %v9542 = vunpack.c.l.b16 %v9452
      %v9543 = vunpack.c.h.b16 %v9452
      %v9544 = vunpack.c.l.b16 %v9453
      %v9545 = vunpack.c.h.b16 %v9453
      %v9546 = vunpack.c.l.b16 %v9454
      %v9547 = vunpack.c.h.b16 %v9454
      %v9548 = vunpack.c.l.b16 %v9455
      %v9549 = vunpack.c.h.b16 %v9455
      %v9550 = vunpack.c.l.b16 %v9456
      %v9551 = vunpack.c.h.b16 %v9456
      %v9552 = vunpack.c.l.b16 %v9457
      %v9553 = vunpack.c.h.b16 %v9457
      %v9554 = vunpack.c.l.b16 %v9458
      %v9555 = vunpack.c.h.b16 %v9458
      %v9556 = vunpack.c.l.b16 %v9459
      %v9557 = vunpack.c.h.b16 %v9459
      %v9558 = vunpack.c.l.b16 %v9460
      %v9559 = vunpack.c.h.b16 %v9460
      %v9560 = vunpack.c.l.b16 %v9461
      %v9561 = vunpack.c.h.b16 %v9461
      %v9562 = vunpack.c.l.b16 %v9462
      %v9563 = vunpack.c.h.b16 %v9462
      %v9564 = vunpack.c.l.b16 %v9463
      %v9565 = vunpack.c.h.b16 %v9463
      %v9566 = vunpack.c.l.b16 %v9464
      %v9567 = vunpack.c.h.b16 %v9464
      %v9568 = vunpack.c.l.b16 %v9465
      %v9569 = vunpack.c.h.b16 %v9465
      %v9570 = vunpack.c.l.b16 %v9466
      %v9571 = vunpack.c.h.b16 %v9466
      %v9572 = vunpack.c.l.b16 %v9467
      %v9573 = vunpack.c.h.b16 %v9467
      %v9574 = vunpack.c.l.b16 %v9468
      %v9575 = vunpack.c.h.b16 %v9468
      %v9576 = vunpack.c.l.b16 %v9469
      %v9577 = vunpack.c.h.b16 %v9469
      %v9578 = vunpack.c.l.b16 %v9470
      %v9579 = vunpack.c.h.b16 %v9470
      %v9580 = vunpack.c.l.b16 %v9471
      %v9581 = vunpack.c.h.b16 %v9471
      %v9582 = vunpack.c.l.b16 %v9472
      %v9583 = vunpack.c.h.b16 %v9472
      %v9584 = vunpack.c.l.b16 %v9473
      %v9585 = vunpack.c.h.b16 %v9473
      %v9586 = vunpack.c.l.b16 %v9474
      %v9587 = vunpack.c.h.b16 %v9474
      %v9588 = vunpack.c.l.b16 %v9475
      %v9589 = vunpack.c.h.b16 %v9475
      %v9590 = vunpack.c.l.b16 %v9476
      %v9591 = vunpack.c.h.b16 %v9476
      %v9592 = vunpack.c.l.b16 %v9477
      %v9593 = vunpack.c.h.b16 %v9477
      %v9594 = vunpack.c.l.b16 %v9478
      %v9595 = vunpack.c.h.b16 %v9478
      %v9596 = vunpack.c.l.b16 %v9479
      %v9597 = vunpack.c.h.b16 %v9479
      %v9598 = vunpack.c.l.b16 %v9480
      %v9599 = vunpack.c.h.b16 %v9480
      %v9600 = vunpack.c.l.b16 %v9481
      %v9601 = vunpack.c.h.b16 %v9481
      %v9602 = vpack.c.b16 %v9540, %v9538
      %v9603 = vpack.c.b16 %v9541, %v9539
      %v9604 = vpack.c.b16 %v9544, %v9542
      %v9605 = vpack.c.b16 %v9545, %v9543
      %v9606 = vpack.c.b16 %v9548, %v9546
      %v9607 = vpack.c.b16 %v9549, %v9547
      %v9608 = vpack.c.b16 %v9552, %v9550
      %v9609 = vpack.c.b16 %v9553, %v9551
      %v9610 = vpack.c.b16 %v9556, %v9554
      %v9611 = vpack.c.b16 %v9557, %v9555
      %v9612 = vpack.c.b16 %v9560, %v9558
      %v9613 = vpack.c.b16 %v9561, %v9559
      %v9614 = vpack.c.b16 %v9564, %v9562
      %v9615 = vpack.c.b16 %v9565, %v9563
      %v9616 = vpack.c.b16 %v9568, %v9566
      %v9617 = vpack.c.b16 %v9569, %v9567
      %v9618 = vpack.c.b16 %v9572, %v9570
      %v9619 = vpack.c.b16 %v9573, %v9571
      %v9620 = vpack.c.b16 %v9576, %v9574
      %v9621 = vpack.c.b16 %v9577, %v9575
      %v9622 = vpack.c.b16 %v9580, %v9578
      %v9623 = vpack.c.b16 %v9581, %v9579
      %v9624 = vpack.c.b16 %v9584, %v9582
      %v9625 = vpack.c.b16 %v9585, %v9583
      %v9626 = vpack.c.b16 %v9588, %v9586
      %v9627 = vpack.c.b16 %v9589, %v9587
      %v9628 = vpack.c.b16 %v9592, %v9590
      %v9629 = vpack.c.b16 %v9593, %v9591
      %v9630 = vpack.c.b16 %v9596, %v9594
      %v9631 = vpack.c.b16 %v9597, %v9595
      %v9632 = vpack.c.b16 %v9600, %v9598
      %v9633 = vpack.c.b16 %v9601, %v9599
      %v9674 = vunpack.c.l.b16 %v9482
      %v9675 = vunpack.c.l.b16 %v9483
      %v9676 = vunpack.c.l.b16 %v9484
      %v9677 = vunpack.c.l.b16 %v9485
      %v9678 = vunpack.c.l.b16 %v9486
      %v9679 = vunpack.c.l.b16 %v9487
      %v9680 = vunpack.c.l.b16 %v9488
      %v9681 = vunpack.c.l.b16 %v9489
      %v9682 = vunpack.c.l.b16 %v9490
      %v9683 = vunpack.c.l.b16 %v9491
      %v9684 = vunpack.c.l.b16 %v9492
      %v9685 = vunpack.c.l.b16 %v9493
      %v9686 = vunpack.c.l.b16 %v9494
      %v9687 = vunpack.c.l.b16 %v9495
      %v9688 = vunpack.c.l.b16 %v9496
      %v9689 = vunpack.c.l.b16 %v9497
      %v9690 = vunpack.c.l.b16 %v9498
      %v9691 = vunpack.c.l.b16 %v9499
      %v9692 = vunpack.c.l.b16 %v9500
      %v9693 = vunpack.c.l.b16 %v9501
      %v9694 = vunpack.c.l.b16 %v9502
      %v9695 = vunpack.c.l.b16 %v9503
      %v9696 = vunpack.c.l.b16 %v9504
      %v9697 = vunpack.c.l.b16 %v9505
      %v9698 = vpack.c.b16 %v9675, %v9674
      %v9699 = vpack.c.b16 %v9677, %v9676
      %v9700 = vpack.c.b16 %v9679, %v9678
      %v9701 = vpack.c.b16 %v9681, %v9680
      %v9702 = vpack.c.b16 %v9683, %v9682
      %v9703 = vpack.c.b16 %v9685, %v9684
      %v9704 = vpack.c.b16 %v9687, %v9686
      %v9705 = vpack.c.b16 %v9689, %v9688
      %v9706 = vpack.c.b16 %v9691, %v9690
      %v9707 = vpack.c.b16 %v9693, %v9692
      %v9708 = vpack.c.b16 %v9695, %v9694
      %v9709 = vpack.c.b16 %v9697, %v9696
      %v9723 = vsel %vm837, %v9603, 0
      %v9726 = vsel %vm837, %v9605, 0
      %v9729 = vsel %vm837, %v9607, 0
      %v9732 = vsel %vm837, %v9609, 0
      %v9735 = vsel %vm837, %v9611, 0
      %v9738 = vsel %vm837, %v9613, 0
      %v9741 = vsel %vm837, %v9615, 0
      %v9744 = vsel %vm837, %v9617, 0
      %v9747 = vsel %vm837, %v9619, 0
      %v9750 = vsel %vm837, %v9621, 0
      %v9753 = vsel %vm837, %v9623, 0
      %v9756 = vsel %vm837, %v9625, 0
      %v9759 = vsel %vm837, %v9627, 0
      %v9762 = vsel %vm837, %v9629, 0
      %v9765 = vsel %vm837, %v9631, 0
      %v9768 = vsel %vm837, %v9633, 0
      %9770 = vmatprep.subr.bf16.mxu0 0
      %9771 = vmatpush1.bf16.msra.mxu0 %v9698
      %9772 = vmatprep.subr.bf16.mxu0 0
      %9773 = vmatpush1.bf16.msra.mxu0 %v9699
      %9774 = vmatprep.subr.bf16.mxu0 0
      %9775 = vmatpush1.bf16.msra.mxu0 %v9700
      %9776 = vmatprep.subr.bf16.mxu0 0
      %9777 = vmatpush1.bf16.msra.mxu0 %v9701
      %9778 = vmatprep.subr.bf16.mxu0 0
      %9779 = vmatpush1.bf16.msra.mxu0 %v9702
      %9780 = vmatprep.subr.bf16.mxu0 0
      %9781 = vmatpush1.bf16.msra.mxu0 %v9703
      %9782 = vmatprep.subr.bf16.mxu0 0
      %9783 = vmatpush1.bf16.msra.mxu0 %v9704
      %9784 = vmatprep.subr.bf16.mxu0 0
      %9785 = vmatpush1.bf16.msra.mxu0 %v9705
      %9786 = vmatprep.subr.bf16.mxu0 0
      %9787 = vmatpush1.bf16.msra.mxu0 %v9706
      %9788 = vmatprep.subr.bf16.mxu0 0
      %9789 = vmatpush1.bf16.msra.mxu0 %v9707
      %9790 = vmatprep.subr.bf16.mxu0 0
      %9791 = vmatpush1.bf16.msra.mxu0 %v9708
      %9792 = vmatprep.subr.bf16.mxu0 0
      %9793 = vmatpush1.bf16.msra.mxu0 %v9709
      %9794 = vmatprep.subr.bf16.mxu0 0
      %9795 = vmatpush1.bf16.msra.mxu0 0
      %9796 = vmatprep.subr.bf16.mxu0 0
      %9797 = vmatpush1.bf16.msra.mxu0 0
      %9798 = vmatprep.subr.bf16.mxu0 0
      %9799 = vmatpush1.bf16.msra.mxu0 0
      %9800 = vmatprep.subr.bf16.mxu0 0
      %9801 = vmatpush1.bf16.msra.mxu0 0
      %9802 = vmatprep.mubr.bf16.mxu0 %v9723
      %9803 = vmatmul.mubr.bf16.gmra.mrb[0].mxu0 %v9602
      %v9804 = vpop.f32.mrb[0].mxu0
      %v9805 = vadd.f32 0.0, %v9804
      %v9806 = vpop.f32.mrb[0].mxu0
      %v9807 = vpop.f32.mrb[0].mxu0
      %v9808 = vadd.f32 0.0, %v9807
      %v9809 = vpop.f32.mrb[0].mxu0
      %9810 = vmatprep.mubr.bf16.mxu0 %v9726
      %9811 = vmatmul.mubr.bf16.gmra.mrb[0].mxu0 %v9604
      %v9812 = vpop.f32.mrb[0].mxu0
      %v9813 = vadd.f32 0.0, %v9812
      %v9814 = vpop.f32.mrb[0].mxu0
      %v9815 = vpop.f32.mrb[0].mxu0
      %v9816 = vadd.f32 0.0, %v9815
      %v9817 = vpop.f32.mrb[0].mxu0
      %9818 = vmatprep.mubr.bf16.mxu0 %v9729
      %9819 = vmatmul.mubr.bf16.gmra.mrb[0].mxu0 %v9606
      %v9820 = vpop.f32.mrb[0].mxu0
      %v9821 = vadd.f32 0.0, %v9820
      %v9822 = vpop.f32.mrb[0].mxu0
      %v9823 = vpop.f32.mrb[0].mxu0
      %v9824 = vadd.f32 0.0, %v9823
      %v9825 = vpop.f32.mrb[0].mxu0
      %9826 = vmatprep.mubr.bf16.mxu0 %v9732
      %9827 = vmatmul.mubr.bf16.gmra.mrb[0].mxu0 %v9608
      %v9828 = vpop.f32.mrb[0].mxu0
      %v9829 = vadd.f32 0.0, %v9828
      %v9830 = vpop.f32.mrb[0].mxu0
      %v9831 = vpop.f32.mrb[0].mxu0
      %v9832 = vadd.f32 0.0, %v9831
      %v9833 = vpop.f32.mrb[0].mxu0
      %9834 = vmatprep.mubr.bf16.mxu0 %v9735
      %9835 = vmatmul.mubr.bf16.gmra.mrb[0].mxu0 %v9610
      %v9836 = vpop.f32.mrb[0].mxu0
      %v9837 = vadd.f32 0.0, %v9836
      %v9838 = vpop.f32.mrb[0].mxu0
      %v9839 = vpop.f32.mrb[0].mxu0
      %v9840 = vadd.f32 0.0, %v9839
      %v9841 = vpop.f32.mrb[0].mxu0
      %9842 = vmatprep.mubr.bf16.mxu0 %v9738
      %9843 = vmatmul.mubr.bf16.gmra.mrb[0].mxu0 %v9612
      %v9844 = vpop.f32.mrb[0].mxu0
      %v9845 = vadd.f32 0.0, %v9844
      %v9846 = vpop.f32.mrb[0].mxu0
      %v9847 = vpop.f32.mrb[0].mxu0
      %v9848 = vadd.f32 0.0, %v9847
      %v9849 = vpop.f32.mrb[0].mxu0
      %9850 = vmatprep.mubr.bf16.mxu0 %v9741
      %9851 = vmatmul.mubr.bf16.gmra.mrb[0].mxu0 %v9614
      %v9852 = vpop.f32.mrb[0].mxu0
      %v9853 = vadd.f32 0.0, %v9852
      %v9854 = vpop.f32.mrb[0].mxu0
      %v9855 = vpop.f32.mrb[0].mxu0
      %v9856 = vadd.f32 0.0, %v9855
      %v9857 = vpop.f32.mrb[0].mxu0
      %9858 = vmatprep.mubr.bf16.mxu0 %v9744
      %9859 = vmatmul.mubr.bf16.gmra.mrb[0].mxu0 %v9616
      %v9860 = vpop.f32.mrb[0].mxu0
      %v9861 = vadd.f32 0.0, %v9860
      %v9862 = vpop.f32.mrb[0].mxu0
      %v9863 = vpop.f32.mrb[0].mxu0
      %v9864 = vadd.f32 0.0, %v9863
      %v9865 = vpop.f32.mrb[0].mxu0
      %9866 = vmatprep.mubr.bf16.mxu0 %v9747
      %9867 = vmatmul.mubr.bf16.gmra.mrb[0].mxu0 %v9618
      %v9868 = vpop.f32.mrb[0].mxu0
      %v9869 = vadd.f32 0.0, %v9868
      %v9870 = vpop.f32.mrb[0].mxu0
      %v9871 = vpop.f32.mrb[0].mxu0
      %v9872 = vadd.f32 0.0, %v9871
      %v9873 = vpop.f32.mrb[0].mxu0
      %9874 = vmatprep.mubr.bf16.mxu0 %v9750
      %9875 = vmatmul.mubr.bf16.gmra.mrb[0].mxu0 %v9620
      %v9876 = vpop.f32.mrb[0].mxu0
      %v9877 = vadd.f32 0.0, %v9876
      %v9878 = vpop.f32.mrb[0].mxu0
      %v9879 = vpop.f32.mrb[0].mxu0
      %v9880 = vadd.f32 0.0, %v9879
      %v9881 = vpop.f32.mrb[0].mxu0
      %9882 = vmatprep.mubr.bf16.mxu0 %v9753
      %9883 = vmatmul.mubr.bf16.gmra.mrb[0].mxu0 %v9622
      %v9884 = vpop.f32.mrb[0].mxu0
      %v9885 = vadd.f32 0.0, %v9884
      %v9886 = vpop.f32.mrb[0].mxu0
      %v9887 = vpop.f32.mrb[0].mxu0
      %v9888 = vadd.f32 0.0, %v9887
      %v9889 = vpop.f32.mrb[0].mxu0
      %9890 = vmatprep.mubr.bf16.mxu0 %v9756
      %9891 = vmatmul.mubr.bf16.gmra.mrb[0].mxu0 %v9624
      %v9892 = vpop.f32.mrb[0].mxu0
      %v9893 = vadd.f32 0.0, %v9892
      %v9894 = vpop.f32.mrb[0].mxu0
      %v9895 = vpop.f32.mrb[0].mxu0
      %v9896 = vadd.f32 0.0, %v9895
      %v9897 = vpop.f32.mrb[0].mxu0
      %9898 = vmatprep.mubr.bf16.mxu0 %v9759
      %9899 = vmatmul.mubr.bf16.gmra.mrb[0].mxu0 %v9626
      %v9900 = vpop.f32.mrb[0].mxu0
      %v9901 = vadd.f32 0.0, %v9900
      %v9902 = vpop.f32.mrb[0].mxu0
      %v9903 = vpop.f32.mrb[0].mxu0
      %v9904 = vadd.f32 0.0, %v9903
      %v9905 = vpop.f32.mrb[0].mxu0
      %9906 = vmatprep.mubr.bf16.mxu0 %v9762
      %9907 = vmatmul.mubr.bf16.gmra.mrb[0].mxu0 %v9628
      %v9908 = vpop.f32.mrb[0].mxu0
      %v9909 = vadd.f32 0.0, %v9908
      %v9910 = vpop.f32.mrb[0].mxu0
      %v9911 = vpop.f32.mrb[0].mxu0
      %v9912 = vadd.f32 0.0, %v9911
      %v9913 = vpop.f32.mrb[0].mxu0
      %9914 = vmatprep.mubr.bf16.mxu0 %v9765
      %9915 = vmatmul.mubr.bf16.gmra.mrb[0].mxu0 %v9630
      %v9916 = vpop.f32.mrb[0].mxu0
      %v9917 = vadd.f32 0.0, %v9916
      %v9918 = vpop.f32.mrb[0].mxu0
      %v9919 = vpop.f32.mrb[0].mxu0
      %v9920 = vadd.f32 0.0, %v9919
      %v9921 = vpop.f32.mrb[0].mxu0
      %9922 = vmatprep.mubr.bf16.mxu0 %v9768
      %9923 = vmatmul.mubr.bf16.gmra.mrb[0].mxu0 %v9632
      %v9924 = vpop.f32.mrb[0].mxu0
      %v9925 = vadd.f32 0.0, %v9924
      %v9926 = vpop.f32.mrb[0].mxu0
      %v9927 = vpop.f32.mrb[0].mxu0
      %v9928 = vadd.f32 0.0, %v9927
      %v9929 = vpop.f32.mrb[0].mxu0
      %9930 = vdwg.mxu0
      %v9931 = vadd.f32 %v9417, %v9805
      %v9932 = vadd.f32 %v9418, %v9808
      %v9933 = vadd.f32 %v9419, %v9813
      %v9934 = vadd.f32 %v9420, %v9816
      %v9935 = vadd.f32 %v9421, %v9821
      %v9936 = vadd.f32 %v9422, %v9824
      %v9937 = vadd.f32 %v9423, %v9829
      %v9938 = vadd.f32 %v9424, %v9832
      %v9939 = vadd.f32 %v9425, %v9837
      %v9940 = vadd.f32 %v9426, %v9840
      %v9941 = vadd.f32 %v9427, %v9845
      %v9942 = vadd.f32 %v9428, %v9848
      %v9943 = vadd.f32 %v9429, %v9853
      %v9944 = vadd.f32 %v9430, %v9856
      %v9945 = vadd.f32 %v9431, %v9861
      %v9946 = vadd.f32 %v9432, %v9864
      %v9947 = vadd.f32 %v9433, %v9869
      %v9948 = vadd.f32 %v9434, %v9872
      %v9949 = vadd.f32 %v9435, %v9877
      %v9950 = vadd.f32 %v9436, %v9880
      %v9951 = vadd.f32 %v9437, %v9885
      %v9952 = vadd.f32 %v9438, %v9888
      %v9953 = vadd.f32 %v9439, %v9893
      %v9954 = vadd.f32 %v9440, %v9896
      %v9955 = vadd.f32 %v9441, %v9901
      %v9956 = vadd.f32 %v9442, %v9904
      %v9957 = vadd.f32 %v9443, %v9909
      %v9958 = vadd.f32 %v9444, %v9912
      %v9959 = vadd.f32 %v9445, %v9917
      %v9960 = vadd.f32 %v9446, %v9920
      %v9961 = vadd.f32 %v9447, %v9925
      %v9962 = vadd.f32 %v9448, %v9928
      %v9963 = vpack.c.bf16 %v9932, %v9931
      %v9964 = vpack.c.bf16 %v9934, %v9933
      %v9965 = vpack.c.bf16 %v9936, %v9935
      %v9966 = vpack.c.bf16 %v9938, %v9937
      %v9967 = vpack.c.bf16 %v9940, %v9939
      %v9968 = vpack.c.bf16 %v9942, %v9941
      %v9969 = vpack.c.bf16 %v9944, %v9943
      %v9970 = vpack.c.bf16 %v9946, %v9945
      %v9971 = vpack.c.bf16 %v9948, %v9947
      %v9972 = vpack.c.bf16 %v9950, %v9949
      %v9973 = vpack.c.bf16 %v9952, %v9951
      %v9974 = vpack.c.bf16 %v9954, %v9953
      %v9975 = vpack.c.bf16 %v9956, %v9955
      %v9976 = vpack.c.bf16 %v9958, %v9957
      %v9977 = vpack.c.bf16 %v9960, %v9959
      %v9978 = vpack.c.bf16 %v9962, %v9961
      %v9995 = vunpack.c.l.b16 %v9963
      %v9996 = vunpack.c.h.b16 %v9963
      %v9997 = vunpack.c.l.b16 %v9964
      %v9998 = vunpack.c.h.b16 %v9964
      %v9999 = vunpack.c.l.b16 %v9965
      %v10000 = vunpack.c.h.b16 %v9965
      %v10001 = vunpack.c.l.b16 %v9966
      %v10002 = vunpack.c.h.b16 %v9966
      %v10003 = vunpack.c.l.b16 %v9967
      %v10004 = vunpack.c.h.b16 %v9967
      %v10005 = vunpack.c.l.b16 %v9968
      %v10006 = vunpack.c.h.b16 %v9968
      %v10007 = vunpack.c.l.b16 %v9969
      %v10008 = vunpack.c.h.b16 %v9969
      %v10009 = vunpack.c.l.b16 %v9970
      %v10010 = vunpack.c.h.b16 %v9970
      %v10011 = vunpack.c.l.b16 %v9971
      %v10012 = vunpack.c.h.b16 %v9971
      %v10013 = vunpack.c.l.b16 %v9972
      %v10014 = vunpack.c.h.b16 %v9972
      %v10015 = vunpack.c.l.b16 %v9973
      %v10016 = vunpack.c.h.b16 %v9973
      %v10017 = vunpack.c.l.b16 %v9974
      %v10018 = vunpack.c.h.b16 %v9974
      %v10019 = vunpack.c.l.b16 %v9975
      %v10020 = vunpack.c.h.b16 %v9975
      %v10021 = vunpack.c.l.b16 %v9976
      %v10022 = vunpack.c.h.b16 %v9976
      %v10023 = vunpack.c.l.b16 %v9977
      %v10024 = vunpack.c.h.b16 %v9977
      %v10025 = vunpack.c.l.b16 %v9978
      %v10026 = vunpack.c.h.b16 %v9978
      %v10027 = vpack.c.b16 %v9995, %v9995
      %v10028 = vpack.c.b16 %v9996, %v9996
      %v10029 = vpack.c.b16 %v9997, %v9997
      %v10030 = vpack.c.b16 %v9998, %v9998
      %v10031 = vpack.c.b16 %v9999, %v9999
      %v10032 = vpack.c.b16 %v10000, %v10000
      %v10033 = vpack.c.b16 %v10001, %v10001
      %v10034 = vpack.c.b16 %v10002, %v10002
      %v10035 = vpack.c.b16 %v10003, %v10003
      %v10036 = vpack.c.b16 %v10004, %v10004
      %v10037 = vpack.c.b16 %v10005, %v10005
      %v10038 = vpack.c.b16 %v10006, %v10006
      %v10039 = vpack.c.b16 %v10007, %v10007
      %v10040 = vpack.c.b16 %v10008, %v10008
      %v10041 = vpack.c.b16 %v10009, %v10009
      %v10042 = vpack.c.b16 %v10010, %v10010
      %v10043 = vpack.c.b16 %v10011, %v10011
      %v10044 = vpack.c.b16 %v10012, %v10012
      %v10045 = vpack.c.b16 %v10013, %v10013
      %v10046 = vpack.c.b16 %v10014, %v10014
      %v10047 = vpack.c.b16 %v10015, %v10015
      %v10048 = vpack.c.b16 %v10016, %v10016
      %v10049 = vpack.c.b16 %v10017, %v10017
      %v10050 = vpack.c.b16 %v10018, %v10018
      %v10051 = vpack.c.b16 %v10019, %v10019
      %v10052 = vpack.c.b16 %v10020, %v10020
      %v10053 = vpack.c.b16 %v10021, %v10021
      %v10054 = vpack.c.b16 %v10022, %v10022
      %v10055 = vpack.c.b16 %v10023, %v10023
      %v10056 = vpack.c.b16 %v10024, %v10024
      %v10057 = vpack.c.b16 %v10025, %v10025
      %v10058 = vpack.c.b16 %v10026, %v10026
      %s10091 = scalar_lea.vmem %s490, 128
      %10092 = vst.msk [vmem:[%s10091] sm:$0xf] %vm5203, %v10027
      %10093 = vst.msk [vmem:[%s10091 + $0x4] sm:$0xf] %vm5203, %v10028
      %10094 = vst.msk [vmem:[%s10091 + $0x8] sm:$0xf] %vm5203, %v10029
      %10095 = vst.msk [vmem:[%s10091 + $0xc] sm:$0xf] %vm5203, %v10030
      %10096 = vst.msk [vmem:[%s10091 + $0x10] sm:$0xf] %vm5203, %v10031
      %10097 = vst.msk [vmem:[%s10091 + $0x14] sm:$0xf] %vm5203, %v10032
      %10098 = vst.msk [vmem:[%s10091 + $0x18] sm:$0xf] %vm5203, %v10033
      %10099 = vst.msk [vmem:[%s10091 + $0x1c] sm:$0xf] %vm5203, %v10034
      %10100 = vst.msk [vmem:[%s10091 + $0x20] sm:$0xf] %vm5203, %v10035
      %10101 = vst.msk [vmem:[%s10091 + $0x24] sm:$0xf] %vm5203, %v10036
      %10102 = vst.msk [vmem:[%s10091 + $0x28] sm:$0xf] %vm5203, %v10037
      %10103 = vst.msk [vmem:[%s10091 + $0x2c] sm:$0xf] %vm5203, %v10038
      %10104 = vst.msk [vmem:[%s10091 + $0x30] sm:$0xf] %vm5203, %v10039
      %10105 = vst.msk [vmem:[%s10091 + $0x34] sm:$0xf] %vm5203, %v10040
      %10106 = vst.msk [vmem:[%s10091 + $0x38] sm:$0xf] %vm5203, %v10041
      %10107 = vst.msk [vmem:[%s10091 + $0x3c] sm:$0xf] %vm5203, %v10042
      %10108 = vst.msk [vmem:[%s10091 + $0x40] sm:$0xf] %vm5203, %v10043
      %10109 = vst.msk [vmem:[%s10091 + $0x44] sm:$0xf] %vm5203, %v10044
      %10110 = vst.msk [vmem:[%s10091 + $0x48] sm:$0xf] %vm5203, %v10045
      %10111 = vst.msk [vmem:[%s10091 + $0x4c] sm:$0xf] %vm5203, %v10046
      %10112 = vst.msk [vmem:[%s10091 + $0x50] sm:$0xf] %vm5203, %v10047
      %10113 = vst.msk [vmem:[%s10091 + $0x54] sm:$0xf] %vm5203, %v10048
      %10114 = vst.msk [vmem:[%s10091 + $0x58] sm:$0xf] %vm5203, %v10049
      %10115 = vst.msk [vmem:[%s10091 + $0x5c] sm:$0xf] %vm5203, %v10050
      %10116 = vst.msk [vmem:[%s10091 + $0x60] sm:$0xf] %vm5203, %v10051
      %10117 = vst.msk [vmem:[%s10091 + $0x64] sm:$0xf] %vm5203, %v10052
      %10118 = vst.msk [vmem:[%s10091 + $0x68] sm:$0xf] %vm5203, %v10053
      %10119 = vst.msk [vmem:[%s10091 + $0x6c] sm:$0xf] %vm5203, %v10054
      %10120 = vst.msk [vmem:[%s10091 + $0x70] sm:$0xf] %vm5203, %v10055
      %10121 = vst.msk [vmem:[%s10091 + $0x74] sm:$0xf] %vm5203, %v10056
      %10122 = vst.msk [vmem:[%s10091 + $0x78] sm:$0xf] %vm5203, %v10057
      %10123 = vst.msk [vmem:[%s10091 + $0x7c] sm:$0xf] %vm5203, %v10058
      %v10124 = vsel %vm837, %v9931, 0.0
      %v10125 = vsel %vm837, %v9932, 0.0
      %v10126 = vadd.f32 %v10124, %v10125
      %v10127 = vsel %vm837, %v9933, 0.0
      %v10128 = vadd.f32 %v10126, %v10127
      %v10129 = vsel %vm837, %v9934, 0.0
      %v10130 = vadd.f32 %v10128, %v10129
      %v10131 = vsel %vm837, %v9935, 0.0
      %v10132 = vadd.f32 %v10130, %v10131
      %v10133 = vsel %vm837, %v9936, 0.0
      %v10134 = vadd.f32 %v10132, %v10133
      %v10135 = vsel %vm837, %v9937, 0.0
      %v10136 = vadd.f32 %v10134, %v10135
      %v10137 = vsel %vm837, %v9938, 0.0
      %v10138 = vadd.f32 %v10136, %v10137
      %v10139 = vsel %vm837, %v9939, 0.0
      %v10140 = vadd.f32 %v10138, %v10139
      %v10141 = vsel %vm837, %v9940, 0.0
      %v10142 = vadd.f32 %v10140, %v10141
      %v10143 = vsel %vm837, %v9941, 0.0
      %v10144 = vadd.f32 %v10142, %v10143
      %v10145 = vsel %vm837, %v9942, 0.0
      %v10146 = vadd.f32 %v10144, %v10145
      %v10147 = vsel %vm837, %v9943, 0.0
      %v10148 = vadd.f32 %v10146, %v10147
      %v10149 = vsel %vm837, %v9944, 0.0
      %v10150 = vadd.f32 %v10148, %v10149
      %v10151 = vsel %vm837, %v9945, 0.0
      %v10152 = vadd.f32 %v10150, %v10151
      %v10153 = vsel %vm837, %v9946, 0.0
      %v10154 = vadd.f32 %v10152, %v10153
      %v10155 = vsel %vm837, %v9947, 0.0
      %v10156 = vadd.f32 %v10154, %v10155
      %v10157 = vsel %vm837, %v9948, 0.0
      %v10158 = vadd.f32 %v10156, %v10157
      %v10159 = vsel %vm837, %v9949, 0.0
      %v10160 = vadd.f32 %v10158, %v10159
      %v10161 = vsel %vm837, %v9950, 0.0
      %v10162 = vadd.f32 %v10160, %v10161
      %v10163 = vsel %vm837, %v9951, 0.0
      %v10164 = vadd.f32 %v10162, %v10163
      %v10165 = vsel %vm837, %v9952, 0.0
      %v10166 = vadd.f32 %v10164, %v10165
      %v10167 = vsel %vm837, %v9953, 0.0
      %v10168 = vadd.f32 %v10166, %v10167
      %v10169 = vsel %vm837, %v9954, 0.0
      %v10170 = vadd.f32 %v10168, %v10169
      %v10171 = vsel %vm837, %v9955, 0.0
      %v10172 = vadd.f32 %v10170, %v10171
      %v10173 = vsel %vm837, %v9956, 0.0
      %v10174 = vadd.f32 %v10172, %v10173
      %v10175 = vsel %vm837, %v9957, 0.0
      %v10176 = vadd.f32 %v10174, %v10175
      %v10177 = vsel %vm837, %v9958, 0.0
      %v10178 = vadd.f32 %v10176, %v10177
      %v10179 = vsel %vm837, %v9959, 0.0
      %v10180 = vadd.f32 %v10178, %v10179
      %v10181 = vsel %vm837, %v9960, 0.0
      %v10182 = vadd.f32 %v10180, %v10181
      %v10183 = vsel %vm837, %v9961, 0.0
      %v10184 = vadd.f32 %v10182, %v10183
      %v10185 = vsel %vm837, %v9962, 0.0
      %v10186 = vadd.f32 %v10184, %v10185
      %v10187 = vrot.slane %v10186, 4
      %v10188 = vadd.f32 %v10186, %v10187
      %v10189 = vrot.slane %v10188, 2
      %v10190 = vadd.f32 %v10188, %v10189
      %v10191 = vrot.slane %v10190, 1
      %v10192 = vadd.f32 %v10190, %v10191
      %v10193 = vadd.f32 %v5305, %v10192
      %v10194 = vmul.f32 %v9931, %v9931
      %v10195 = vmul.f32 %v9932, %v9932
      %v10196 = vmul.f32 %v9933, %v9933
      %v10197 = vmul.f32 %v9934, %v9934
      %v10198 = vmul.f32 %v9935, %v9935
      %v10199 = vmul.f32 %v9936, %v9936
      %v10200 = vmul.f32 %v9937, %v9937
      %v10201 = vmul.f32 %v9938, %v9938
      %v10202 = vmul.f32 %v9939, %v9939
      %v10203 = vmul.f32 %v9940, %v9940
      %v10204 = vmul.f32 %v9941, %v9941
      %v10205 = vmul.f32 %v9942, %v9942
      %v10206 = vmul.f32 %v9943, %v9943
      %v10207 = vmul.f32 %v9944, %v9944
      %v10208 = vmul.f32 %v9945, %v9945
      %v10209 = vmul.f32 %v9946, %v9946
      %v10210 = vmul.f32 %v9947, %v9947
      %v10211 = vmul.f32 %v9948, %v9948
      %v10212 = vmul.f32 %v9949, %v9949
      %v10213 = vmul.f32 %v9950, %v9950
      %v10214 = vmul.f32 %v9951, %v9951
      %v10215 = vmul.f32 %v9952, %v9952
      %v10216 = vmul.f32 %v9953, %v9953
      %v10217 = vmul.f32 %v9954, %v9954
      %v10218 = vmul.f32 %v9955, %v9955
      %v10219 = vmul.f32 %v9956, %v9956
      %v10220 = vmul.f32 %v9957, %v9957
      %v10221 = vmul.f32 %v9958, %v9958
      %v10222 = vmul.f32 %v9959, %v9959
      %v10223 = vmul.f32 %v9960, %v9960
      %v10224 = vmul.f32 %v9961, %v9961
      %v10225 = vmul.f32 %v9962, %v9962
      %v10226 = vsel %vm837, %v10194, 0.0
      %v10227 = vsel %vm837, %v10195, 0.0
      %v10228 = vadd.f32 %v10226, %v10227
      %v10229 = vsel %vm837, %v10196, 0.0
      %v10230 = vadd.f32 %v10228, %v10229
      %v10231 = vsel %vm837, %v10197, 0.0
      %v10232 = vadd.f32 %v10230, %v10231
      %v10233 = vsel %vm837, %v10198, 0.0
      %v10234 = vadd.f32 %v10232, %v10233
      %v10235 = vsel %vm837, %v10199, 0.0
      %v10236 = vadd.f32 %v10234, %v10235
      %v10237 = vsel %vm837, %v10200, 0.0
      %v10238 = vadd.f32 %v10236, %v10237
      %v10239 = vsel %vm837, %v10201, 0.0
      %v10240 = vadd.f32 %v10238, %v10239
      %v10241 = vsel %vm837, %v10202, 0.0
      %v10242 = vadd.f32 %v10240, %v10241
      %v10243 = vsel %vm837, %v10203, 0.0
      %v10244 = vadd.f32 %v10242, %v10243
      %v10245 = vsel %vm837, %v10204, 0.0
      %v10246 = vadd.f32 %v10244, %v10245
      %v10247 = vsel %vm837, %v10205, 0.0
      %v10248 = vadd.f32 %v10246, %v10247
      %v10249 = vsel %vm837, %v10206, 0.0
      %v10250 = vadd.f32 %v10248, %v10249
      %v10251 = vsel %vm837, %v10207, 0.0
      %v10252 = vadd.f32 %v10250, %v10251
      %v10253 = vsel %vm837, %v10208, 0.0
      %v10254 = vadd.f32 %v10252, %v10253
      %v10255 = vsel %vm837, %v10209, 0.0
      %v10256 = vadd.f32 %v10254, %v10255
      %v10257 = vsel %vm837, %v10210, 0.0
      %v10258 = vadd.f32 %v10256, %v10257
      %v10259 = vsel %vm837, %v10211, 0.0
      %v10260 = vadd.f32 %v10258, %v10259
      %v10261 = vsel %vm837, %v10212, 0.0
      %v10262 = vadd.f32 %v10260, %v10261
      %v10263 = vsel %vm837, %v10213, 0.0
      %v10264 = vadd.f32 %v10262, %v10263
      %v10265 = vsel %vm837, %v10214, 0.0
      %v10266 = vadd.f32 %v10264, %v10265
      %v10267 = vsel %vm837, %v10215, 0.0
      %v10268 = vadd.f32 %v10266, %v10267
      %v10269 = vsel %vm837, %v10216, 0.0
      %v10270 = vadd.f32 %v10268, %v10269
      %v10271 = vsel %vm837, %v10217, 0.0
      %v10272 = vadd.f32 %v10270, %v10271
      %v10273 = vsel %vm837, %v10218, 0.0
      %v10274 = vadd.f32 %v10272, %v10273
      %v10275 = vsel %vm837, %v10219, 0.0
      %v10276 = vadd.f32 %v10274, %v10275
      %v10277 = vsel %vm837, %v10220, 0.0
      %v10278 = vadd.f32 %v10276, %v10277
      %v10279 = vsel %vm837, %v10221, 0.0
      %v10280 = vadd.f32 %v10278, %v10279
      %v10281 = vsel %vm837, %v10222, 0.0
      %v10282 = vadd.f32 %v10280, %v10281
      %v10283 = vsel %vm837, %v10223, 0.0
      %v10284 = vadd.f32 %v10282, %v10283
      %v10285 = vsel %vm837, %v10224, 0.0
      %v10286 = vadd.f32 %v10284, %v10285
      %v10287 = vsel %vm837, %v10225, 0.0
      %v10288 = vadd.f32 %v10286, %v10287
      %v10289 = vrot.slane %v10288, 4
      %v10290 = vadd.f32 %v10288, %v10289
      %v10291 = vrot.slane %v10290, 2
      %v10292 = vadd.f32 %v10290, %v10291
      %v10293 = vrot.slane %v10292, 1
      %v10294 = vadd.f32 %v10292, %v10293
      %v10295 = vadd.f32 %v5407, %v10294
      %vm10296 = vcmask 516096
      %10297 = vst.msk [vmem:[%s498] sm:$0x1] %vm10296, %v10193
      %10298 = vst.msk [vmem:[%s505] sm:$0x1] %vm10296, %v10295
      %s10299 = smul.u32 2, %s24
      %p10300 = scmp.lt.s32.totalorder %s23, 1
      %s10301 = scalar_select %p10300, %s23, 1
      %p10302 = scmp.lt.s32.totalorder %s10299, 7
      %s10303 = scalar_select %p10302, %s10299, 7
      %s10304 = smul.addr %s10303, 32
      %s10305 = smul.addr %s10301, 256
      %s10306 = sadd.s32 %s10304, %s10305
      %s10307 = smul.addr %s10306, 4
      %s10308 = scalar_lea.vmem %s5, %s10307
      %p10309 = scmp.lt.s32.totalorder %s23, 1
      %s10310 = scalar_select %p10309, %s23, 1
      %p10311 = scmp.lt.s32.totalorder %s24, 3
      %s10312 = scalar_select %p10311, %s24, 3
      %s10313 = smul.addr %s10310, 4
      %s10314 = sadd.s32 %s10312, %s10313
      %s10315 = scalar_lea.vmem %s6, %s10314
      %p10316 = scmp.lt.s32.totalorder %s23, 1
      %s10317 = scalar_select %p10316, %s23, 1
      %p10318 = scmp.lt.s32.totalorder %s24, 3
      %s10319 = scalar_select %p10318, %s24, 3
      %s10320 = smul.addr %s10317, 4
      %s10321 = sadd.s32 %s10319, %s10320
      %s10322 = scalar_lea.vmem %s7, %s10321
      // Predicated region
      $region41: #{_lambda_.3} parent=39 // pred_check
        %p10323 = pneg %p198
      $region42: #{_lambda_.3} parent=39 // pred_check_branch
        %10325 = sbr.rel (%p10323) target = $region44
      $region43: #{_lambda_.3} parent=39 // pred_region
        %s10326 = smul.u32 2, %s24
      $region44: #{_lambda_.3} parent=39 // pred_fallthru
        _
      // Predicated region
      $region45: #{_lambda_.3} parent=39 // pred_check
        %p10327 = pneg %p226
      $region46: #{_lambda_.3} parent=39 // pred_check_branch
        %10329 = sbr.rel (%p10327) target = $region48
      $region47: #{_lambda_.3} parent=39 // pred_region
        _
      $region48: #{_lambda_.3} parent=39 // pred_fallthru
        _
      // Predicated region
      $region49: #{_lambda_.3} parent=39 // pred_check
        %p10330 = pneg %p254
      $region50: #{_lambda_.3} parent=39 // pred_check_branch
        %10332 = sbr.rel (%p10330) target = $region52
      $region51: #{_lambda_.3} parent=39 // pred_region
        _
      $region52: #{_lambda_.3} parent=39 // pred_fallthru
        _
    $region40: #{_lambda_.3} parent=5 // pred_fallthru
      _
    %p10333 = scmp.le.s32.totalorder 2, %s14
    // Predicated region
    $region53: #{_lambda_.3} parent=5 // pred_check
      %p10334 = pneg %p10333
    $region54: #{_lambda_.3} parent=5 // pred_check_branch
      %10336 = sbr.rel (%p10334) target = $region56
    $region55: #{_lambda_.3} parent=5 // pred_region
      %s10337 = ssub.s32 %s14, 2
      // Predicated region
      $region57: #{_lambda_.3} parent=55 // pred_check
        %p10338 = pneg %p204
      $region58: #{_lambda_.3} parent=55 // pred_check_branch
        %10340 = sbr.rel (%p10338) target = $region60
      $region59: #{_lambda_.3} parent=55 // pred_region
        %s10341 = smul.u32 2, %s26
        %p10342 = scmp.lt.s32.totalorder %s25, 1
        %s10343 = scalar_select %p10342, %s25, 1
        %p10344 = scmp.lt.s32.totalorder %s10341, 7
        %s10345 = scalar_select %p10344, %s10341, 7
        %s10346 = smul.addr %s10345, 32
        %s10347 = smul.addr %s10343, 256
        %s10348 = sadd.s32 %s10346, %s10347
        %s10349 = smul.addr %s10348, 4
        %s10350 = scalar_lea.vmem %s5, %s10349
      $region60: #{_lambda_.3} parent=55 // pred_fallthru
        _
      // Predicated region
      $region61: #{_lambda_.3} parent=55 // pred_check
        %p10351 = pneg %p232
      $region62: #{_lambda_.3} parent=55 // pred_check_branch
        %10353 = sbr.rel (%p10351) target = $region64
      $region63: #{_lambda_.3} parent=55 // pred_region
        %p10354 = scmp.lt.s32.totalorder %s25, 1
        %s10355 = scalar_select %p10354, %s25, 1
        %p10356 = scmp.lt.s32.totalorder %s26, 3
        %s10357 = scalar_select %p10356, %s26, 3
        %s10358 = smul.addr %s10355, 4
        %s10359 = sadd.s32 %s10357, %s10358
        %s10360 = scalar_lea.vmem %s6, %s10359
      $region64: #{_lambda_.3} parent=55 // pred_fallthru
        _
      // Predicated region
      $region65: #{_lambda_.3} parent=55 // pred_check
        %p10361 = pneg %p260
      $region66: #{_lambda_.3} parent=55 // pred_check_branch
        %10363 = sbr.rel (%p10361) target = $region68
      $region67: #{_lambda_.3} parent=55 // pred_region
        %p10364 = scmp.lt.s32.totalorder %s25, 1
        %s10365 = scalar_select %p10364, %s25, 1
        %p10366 = scmp.lt.s32.totalorder %s26, 3
        %s10367 = scalar_select %p10366, %s26, 3
        %s10368 = smul.addr %s10365, 4
        %s10369 = sadd.s32 %s10367, %s10368
        %s10370 = scalar_lea.vmem %s7, %s10369
      $region68: #{_lambda_.3} parent=55 // pred_fallthru
        _
    $region56: #{_lambda_.3} parent=5 // pred_fallthru
      _
  $region6: #{_lambda_.3} parent=0 // loop_footer
    %s18 = sadd.s32 1, %s14
  $region7: #{_lambda_.3} parent=0 // loop_footer_branch
    %13 = sbr.rel target = $region3
  $region8: #{_lambda_.3} parent=0 // loop_exit
    _

</llo_original>
